<compile_context>
chip_gen: v7x
topology: tpu7x:2x2x1
jax: 0.10.0
libtpu: 0.0.40
codegen_flags: <defaults>
</compile_context>

<pallas_src>
import jax
import jax.numpy as jnp
from jax.experimental import pallas as pl
from jax.experimental.pallas import tpu as pltpu


def _conv1x1_kernel(x_ref, w_ref, o_ref):
    # x_ref: (1, Cin, M)   w_ref: (Cout_blk, Cin)   o_ref: (1, Cout_blk, M)
    o_ref[0] = jnp.dot(
        w_ref[...],
        x_ref[0],
        preferred_element_type=jnp.float32,
        precision=jax.lax.Precision.HIGHEST,
    )


def _is_v7x():
    """Best-effort detection of a 2-TensorCore (v7x-class) chip."""
    try:
        kind = jax.devices()[0].device_kind.lower()
    except Exception:
        return False
    return "v7" in kind


def _call(x_3d, w_mat, N, Cin, Cout, M, num_cout_blocks, cout_sem):
    cout_blk = Cout // num_cout_blocks
    cost = pl.CostEstimate(
        flops=2 * N * Cout * Cin * M,
        transcendentals=0,
        bytes_accessed=4 * (N * Cin * M + Cout * Cin + N * Cout * M),
    )
    return pl.pallas_call(
        _conv1x1_kernel,
        out_shape=jax.ShapeDtypeStruct((N, Cout, M), jnp.float32),
        grid=(N, num_cout_blocks),
        in_specs=[
            pl.BlockSpec((1, Cin, M), lambda n, j: (n, 0, 0)),
            pl.BlockSpec((cout_blk, Cin), lambda n, j: (j, 0)),
        ],
        out_specs=pl.BlockSpec((1, cout_blk, M), lambda n, j: (n, j, 0)),
        compiler_params=pltpu.CompilerParams(
            dimension_semantics=(pltpu.ARBITRARY, cout_sem)
        ),
        cost_estimate=cost,
    )(x_3d, w_mat)


def conv1x1(x_nchw, weight_oihw):
    """1x1 convolution, stride 1, no bias.

    x_nchw:      (N, Cin, H, W)
    weight_oihw: (Cout, Cin, 1, 1)   (PyTorch Conv2d weight layout)
    returns:     (N, Cout, H, W) in float32
    """
    N, Cin, H, W = x_nchw.shape
    Cout = weight_oihw.shape[0]
    M = H * W

    # Pure reshapes (no data movement): NCHW is already (Cin, M) per batch.
    x_3d = x_nchw.reshape(N, Cin, M)        # (N, Cin, M)
    w_mat = weight_oihw.reshape(Cout, Cin)  # (Cout, Cin), no transpose

    use_v7x_split = _is_v7x() and Cout % 2 == 0 and (Cout // 2) % 8 == 0

    if use_v7x_split:
        try:
            # Two Cout blocks, CORE_PARALLEL -> one 144-row block per TC.
            out_3d = _call(x_3d, w_mat, N, Cin, Cout, M, 2, pltpu.CORE_PARALLEL)
        except Exception:
            # Robust fallback: single-step path (always valid).
            out_3d = _call(x_3d, w_mat, N, Cin, Cout, M, 1, pltpu.ARBITRARY)
    else:
        # v5e / v6e: single TensorCore -> one grid step per batch element.
        out_3d = _call(x_3d, w_mat, N, Cin, Cout, M, 1, pltpu.ARBITRARY)

    return out_3d.reshape(N, Cout, H, W)


if __name__ == "__main__":
    key = jax.random.PRNGKey(0)
    k_x, k_w = jax.random.split(key)

    # Shapes implied by the module's forward: x86 = randn([1, 48, 28, 28]),
    # Conv2d(48, 288, kernel_size=1, stride=1, bias=False).
    N, Cin, H, W, Cout = 1, 48, 28, 28, 288
    x = jax.random.normal(k_x, (N, Cin, H, W), dtype=jnp.float32)
    weight = jax.random.normal(k_w, (Cout, Cin, 1, 1), dtype=jnp.float32) * (
        1.0 / jnp.sqrt(Cin)
    )

    out = conv1x1(x, weight)
    out = jax.block_until_ready(out)

    # Correctness check against plain-JAX reference (same math as torch conv).
    ref = jnp.einsum(
        "nchw,oc->nohw",
        x,
        weight.reshape(Cout, Cin),
        precision=jax.lax.Precision.HIGHEST,
    )
    assert out.shape == (N, Cout, H, W)
    assert jnp.allclose(out, ref, atol=1e-4, rtol=1e-4)

    print("KERNEL_OK")
</pallas_src>

<mosaic_0001>
module attributes {stable_mosaic.version = 11 : i64} {
  func.func @_conv1x1_kernel(%arg0: i32, %arg1: i32, %arg2: memref<1x48x784xf32, #tpu.memory_space<vmem>>, %arg3: memref<288x48xf32, #tpu.memory_space<vmem>>, %arg4: memref<1x288x784xf32, #tpu.memory_space<vmem>>) attributes {dimension_semantics = [#tpu.dimension_semantics<arbitrary>, #tpu.dimension_semantics<arbitrary>], iteration_bounds = array<i64: 1, 1>, scalar_prefetch = 0 : i64, scratch_operands = 0 : i64, tpu.core_type = #tpu.core_type<tc>, window_params = [{transform_indices = @transform_0, window_bounds = array<i64: 1, 48, 784>}, {transform_indices = @transform_1, window_bounds = array<i64: 288, 48>}, {transform_indices = @transform_2, window_bounds = array<i64: 1, 288, 784>}]} {
    %c0 = arith.constant 0 : index
    %c0_0 = arith.constant 0 : index
    %0 = vector.load %arg3[%c0, %c0_0] : memref<288x48xf32, #tpu.memory_space<vmem>>, vector<288x48xf32>
    %c0_1 = arith.constant 0 : index
    %c0_2 = arith.constant 0 : index
    %c0_3 = arith.constant 0 : index
    %1 = vector.load %arg2[%c0_1, %c0_2, %c0_3] : memref<1x48x784xf32, #tpu.memory_space<vmem>>, vector<1x48x784xf32>
    %2 = vector.shape_cast %1 : vector<1x48x784xf32> to vector<48x784xf32>
    %cst = arith.constant dense<0.000000e+00> : vector<288x784xf32>
    %3 = tpu.matmul %0, %2, %cst {dimension_numbers = #tpu.dot_dimension_numbers<[1], [0], [0], [1], [0, 0, 1, 1], [], []>, precision = #tpu.contract_precision<fp32>} : vector<288x48xf32>, vector<48x784xf32>, vector<288x784xf32> -> vector<288x784xf32>
    %c0_4 = arith.constant 0 : index
    %c0_5 = arith.constant 0 : index
    %c0_6 = arith.constant 0 : index
    %4 = vector.load %arg4[%c0_4, %c0_5, %c0_6] : memref<1x288x784xf32, #tpu.memory_space<vmem>>, vector<1x288x784xf32>
    %5 = vector.shape_cast %4 : vector<1x288x784xf32> to vector<288x784xf32>
    %6 = vector.shape_cast %3 : vector<288x784xf32> to vector<1x288x784xf32>
    tpu.vector_store %arg4[%c0_4, %c0_5, %c0_6], %6 {strides = array<i32>} : memref<1x288x784xf32, #tpu.memory_space<vmem>>, vector<1x288x784xf32>,
    return
  }
  func.func @transform_0(%arg0: i32, %arg1: i32) -> (i32, i32, i32) {
    %c0_i32 = arith.constant 0 : i32
    %c0_i32_0 = arith.constant 0 : i32
    %c0_i32_1 = arith.constant 0 : i32
    return %arg0, %c0_i32, %c0_i32_0 : i32, i32, i32
  }
  func.func @transform_1(%arg0: i32, %arg1: i32) -> (i32, i32) {
    %c0_i32 = arith.constant 0 : i32
    %c0_i32_0 = arith.constant 0 : i32
    return %arg1, %c0_i32 : i32, i32
  }
  func.func @transform_2(%arg0: i32, %arg1: i32) -> (i32, i32, i32) {
    %c0_i32 = arith.constant 0 : i32
    %c0_i32_0 = arith.constant 0 : i32
    return %arg0, %arg1, %c0_i32 : i32, i32, i32
  }
}

</mosaic_0001>

<llo_original>
// kernel: tpu_custom_call.1
$region0: #{tpu_custom_call.1}
  #allocation0 [shape = 'u32[]', space=smem, size = 0x4, offset = 0x4, fixed_abs, tag = 'smem constant byte address 0x4 - core index']
  #allocation1 [shape = 'u32[144,128]{1,0:T(1,128)}', space=vmem, size = 0x12000, scoped, tag = 'internal scratch']
  %s0 = inlined_call_operand.vmem [shape: f32[1,48,784], index: 0, kind: input, shape index: {}]
  %s1 = inlined_call_operand.vmem [shape: f32[288,48], index: 1, kind: input, shape index: {}]
  %s2 = inlined_call_operand.hbm [shape: f32[1,288,784], index: 2, kind: output, shape index: {}]
  %s3 = sld [smem:[#allocation0]]
  $region18: #{tpu_custom_call.1} parent=0
    _
  %s5 = ssub.s32 1, %s3
  %s6 = scalar_select 0, %s5, %s3
  $region1: #{tpu_custom_call.1} parent=0
    #allocation2 [shape = 'u8[1032192]{0}', space=vmem, size = 0xfc000, scoped, tag = 'output window, operand 0, single buffered']
    #allocation3 [shape = 's32[1]{0}', space=sflag, size = 0x4, scoped, tag = 'scoped memory for tpu_custom_call.1']
    %7 = vsyncpa [#allocation3], 0
    // Predicated region
    $region2: #{tpu_custom_call.1} parent=1 // pred_check
      _
    $region3: #{tpu_custom_call.1} parent=1 // pred_check_branch
      %9 = sbr.rel (0) target = $region5
    $region4: #{tpu_custom_call.1} parent=1 // pred_region
      _
    $region5: #{tpu_custom_call.1} parent=1 // pred_fallthru
      _
    // Predicated region
    $region6: #{tpu_custom_call.1} parent=1 // pred_check
      _
    $region7: #{tpu_custom_call.1} parent=1 // pred_check_branch
      %11 = sbr.rel (0) target = $region9
    $region8: #{tpu_custom_call.1} parent=1 // pred_region
      _
    $region9: #{tpu_custom_call.1} parent=1 // pred_fallthru
      _
    %v12 = vld [vmem:[%s1] sm:$0xff]
    %v13 = vld [vmem:[%s1 + $0x8] sm:$0xff]
    %v14 = vld [vmem:[%s1 + $0x10] sm:$0xff]
    %v15 = vld [vmem:[%s1 + $0x18] sm:$0xff]
    %v16 = vld [vmem:[%s1 + $0x20] sm:$0xff]
    %v17 = vld [vmem:[%s1 + $0x28] sm:$0xff]
    %v18 = vld [vmem:[%s1 + $0x30] sm:$0xff]
    %v19 = vld [vmem:[%s1 + $0x38] sm:$0xff]
    %v20 = vld [vmem:[%s1 + $0x40] sm:$0xff]
    %v21 = vld [vmem:[%s1 + $0x48] sm:$0xff]
    %v22 = vld [vmem:[%s1 + $0x50] sm:$0xff]
    %v23 = vld [vmem:[%s1 + $0x58] sm:$0xff]
    %v24 = vld [vmem:[%s1 + $0x60] sm:$0xff]
    %v25 = vld [vmem:[%s1 + $0x68] sm:$0xff]
    %v26 = vld [vmem:[%s1 + $0x70] sm:$0xff]
    %v27 = vld [vmem:[%s1 + $0x78] sm:$0xff]
    %v28 = vld [vmem:[%s1 + $0x80] sm:$0xff]
    %v29 = vld [vmem:[%s1 + $0x88] sm:$0xff]
    %v30 = vld [vmem:[%s1 + $0x90] sm:$0xff]
    %v31 = vld [vmem:[%s1 + $0x98] sm:$0xff]
    %v32 = vld [vmem:[%s1 + $0xa0] sm:$0xff]
    %v33 = vld [vmem:[%s1 + $0xa8] sm:$0xff]
    %v34 = vld [vmem:[%s1 + $0xb0] sm:$0xff]
    %v35 = vld [vmem:[%s1 + $0xb8] sm:$0xff]
    %v36 = vld [vmem:[%s1 + $0xc0] sm:$0xff]
    %v37 = vld [vmem:[%s1 + $0xc8] sm:$0xff]
    %v38 = vld [vmem:[%s1 + $0xd0] sm:$0xff]
    %v39 = vld [vmem:[%s1 + $0xd8] sm:$0xff]
    %v40 = vld [vmem:[%s1 + $0xe0] sm:$0xff]
    %v41 = vld [vmem:[%s1 + $0xe8] sm:$0xff]
    %v42 = vld [vmem:[%s1 + $0xf0] sm:$0xff]
    %v43 = vld [vmem:[%s1 + $0xf8] sm:$0xff]
    %v44 = vld [vmem:[%s1 + $0x100] sm:$0xff]
    %v45 = vld [vmem:[%s1 + $0x108] sm:$0xff]
    %v46 = vld [vmem:[%s1 + $0x110] sm:$0xff]
    %v47 = vld [vmem:[%s1 + $0x118] sm:$0xff]
    %v48 = vld [vmem:[%s0] sm:$0xff]
    %v49 = vld [vmem:[%s0 + $0x8] sm:$0xff]
    %v50 = vld [vmem:[%s0 + $0x10] sm:$0xff]
    %v51 = vld [vmem:[%s0 + $0x18] sm:$0xff]
    %v52 = vld [vmem:[%s0 + $0x20] sm:$0xff]
    %v53 = vld [vmem:[%s0 + $0x28] sm:$0xff]
    %v54 = vld [vmem:[%s0 + $0x30] sm:$0xff]
    %v55 = vld [vmem:[%s0 + $0x38] sm:$0xff]
    %v56 = vld [vmem:[%s0 + $0x40] sm:$0xff]
    %v57 = vld [vmem:[%s0 + $0x48] sm:$0xff]
    %v58 = vld [vmem:[%s0 + $0x50] sm:$0xff]
    %v59 = vld [vmem:[%s0 + $0x58] sm:$0xff]
    %v60 = vld [vmem:[%s0 + $0x60] sm:$0xff]
    %v61 = vld [vmem:[%s0 + $0x68] sm:$0xff]
    %v62 = vld [vmem:[%s0 + $0x70] sm:$0xff]
    %v63 = vld [vmem:[%s0 + $0x78] sm:$0xff]
    %v64 = vld [vmem:[%s0 + $0x80] sm:$0xff]
    %v65 = vld [vmem:[%s0 + $0x88] sm:$0xff]
    %v66 = vld [vmem:[%s0 + $0x90] sm:$0xff]
    %v67 = vld [vmem:[%s0 + $0x98] sm:$0xff]
    %v68 = vld [vmem:[%s0 + $0xa0] sm:$0xff]
    %v69 = vld [vmem:[%s0 + $0xa8] sm:$0xff]
    %v70 = vld [vmem:[%s0 + $0xb0] sm:$0xff]
    %v71 = vld [vmem:[%s0 + $0xb8] sm:$0xff]
    %v72 = vld [vmem:[%s0 + $0xc0] sm:$0xff]
    %v73 = vld [vmem:[%s0 + $0xc8] sm:$0xff]
    %v74 = vld [vmem:[%s0 + $0xd0] sm:$0xff]
    %v75 = vld [vmem:[%s0 + $0xd8] sm:$0xff]
    %v76 = vld [vmem:[%s0 + $0xe0] sm:$0xff]
    %v77 = vld [vmem:[%s0 + $0xe8] sm:$0xff]
    %v78 = vld [vmem:[%s0 + $0xf0] sm:$0xff]
    %v79 = vld [vmem:[%s0 + $0xf8] sm:$0xff]
    %v80 = vld [vmem:[%s0 + $0x100] sm:$0xff]
    %v81 = vld [vmem:[%s0 + $0x108] sm:$0xff]
    %v82 = vld [vmem:[%s0 + $0x110] sm:$0xff]
    %v83 = vld [vmem:[%s0 + $0x118] sm:$0xff]
    %v84 = vld [vmem:[%s0 + $0x120] sm:$0xff]
    %v85 = vld [vmem:[%s0 + $0x128] sm:$0xff]
    %v86 = vld [vmem:[%s0 + $0x130] sm:$0xff]
    %v87 = vld [vmem:[%s0 + $0x138] sm:$0xff]
    %v88 = vld [vmem:[%s0 + $0x140] sm:$0xff]
    %v89 = vld [vmem:[%s0 + $0x148] sm:$0xff]
    %vm90 = vcmask 392192
    %v92 = vsel %vm90, %v12, 0
    %v95 = vsel %vm90, %v13, 0
    %v98 = vsel %vm90, %v14, 0
    %v101 = vsel %vm90, %v15, 0
    %v104 = vsel %vm90, %v16, 0
    %v107 = vsel %vm90, %v17, 0
    %v110 = vsel %vm90, %v18, 0
    %v113 = vsel %vm90, %v19, 0
    %v116 = vsel %vm90, %v20, 0
    %v119 = vsel %vm90, %v21, 0
    %v122 = vsel %vm90, %v22, 0
    %v125 = vsel %vm90, %v23, 0
    %v128 = vsel %vm90, %v24, 0
    %v131 = vsel %vm90, %v25, 0
    %v134 = vsel %vm90, %v26, 0
    %v137 = vsel %vm90, %v27, 0
    %v140 = vsel %vm90, %v28, 0
    %v143 = vsel %vm90, %v29, 0
    %v146 = vsel %vm90, %v30, 0
    %v149 = vsel %vm90, %v31, 0
    %v152 = vsel %vm90, %v32, 0
    %v155 = vsel %vm90, %v33, 0
    %v158 = vsel %vm90, %v34, 0
    %v161 = vsel %vm90, %v35, 0
    %v164 = vsel %vm90, %v36, 0
    %v167 = vsel %vm90, %v37, 0
    %v170 = vsel %vm90, %v38, 0
    %v173 = vsel %vm90, %v39, 0
    %v176 = vsel %vm90, %v40, 0
    %v179 = vsel %vm90, %v41, 0
    %v182 = vsel %vm90, %v42, 0
    %v185 = vsel %vm90, %v43, 0
    %v188 = vsel %vm90, %v44, 0
    %v191 = vsel %vm90, %v45, 0
    %v194 = vsel %vm90, %v46, 0
    %v197 = vsel %vm90, %v47, 0
    %v199 = vand.u32 %v49, 4294901760
    %200 = vmatprep.subr.mxu0 %v199
    %v201 = vand.u32 %v48, 4294901760
    %202 = vmatpush1.msra.mxu0 %v201
    %v203 = vand.u32 %v56, 4294901760
    %204 = vmatprep.subr.mxu0 %v203
    %v205 = vand.u32 %v55, 4294901760
    %206 = vmatpush1.msra.mxu0 %v205
    %v207 = vand.u32 %v63, 4294901760
    %208 = vmatprep.subr.mxu0 %v207
    %v209 = vand.u32 %v62, 4294901760
    %210 = vmatpush1.msra.mxu0 %v209
    %v211 = vand.u32 %v70, 4294901760
    %212 = vmatprep.subr.mxu0 %v211
    %v213 = vand.u32 %v69, 4294901760
    %214 = vmatpush1.msra.mxu0 %v213
    %v215 = vand.u32 %v77, 4294901760
    %216 = vmatprep.subr.mxu0 %v215
    %v217 = vand.u32 %v76, 4294901760
    %218 = vmatpush1.msra.mxu0 %v217
    %v219 = vand.u32 %v84, 4294901760
    %220 = vmatprep.subr.mxu0 %v219
    %v221 = vand.u32 %v83, 4294901760
    %222 = vmatpush1.msra.mxu0 %v221
    %223 = vmatprep.subr.mxu0 0.0
    %224 = vmatpush1.msra.mxu0 0.0
    %225 = vmatprep.subr.mxu0 0.0
    %226 = vmatpush1.msra.mxu0 0.0
    %227 = vmatprep.subr.mxu0 0.0
    %228 = vmatpush1.msra.mxu0 0.0
    %229 = vmatprep.subr.mxu0 0.0
    %230 = vmatpush1.msra.mxu0 0.0
    %231 = vmatprep.subr.mxu0 0.0
    %232 = vmatpush1.msra.mxu0 0.0
    %233 = vmatprep.subr.mxu0 0.0
    %234 = vmatpush1.msra.mxu0 0.0
    %235 = vmatprep.subr.mxu0 0.0
    %236 = vmatpush1.msra.mxu0 0.0
    %237 = vmatprep.subr.mxu0 0.0
    %238 = vmatpush1.msra.mxu0 0.0
    %239 = vmatprep.subr.mxu0 0.0
    %240 = vmatpush1.msra.mxu0 0.0
    %241 = vmatprep.subr.mxu0 0.0
    %242 = vmatpush1.msra.mxu0 0.0
    %243 = vmatprep.subr.mxu0 0.0
    %244 = vmatpush1.msra.mxu0 0.0
    %245 = vmatprep.subr.mxu0 0.0
    %246 = vmatpush1.msra.mxu0 0.0
    %247 = vmatprep.subr.mxu0 0.0
    %248 = vmatpush1.msra.mxu0 0.0
    %249 = vmatprep.subr.mxu0 0.0
    %250 = vmatpush1.msra.mxu0 0.0
    %251 = vmatprep.subr.mxu0 0.0
    %252 = vmatpush1.msra.mxu0 0.0
    %253 = vmatprep.subr.mxu0 0.0
    %254 = vmatpush1.msra.mxu0 0.0
    %255 = vmatprep.subr.mxu0 0.0
    %256 = vmatpush1.msra.mxu0 0.0
    %257 = vmatprep.subr.mxu0 0.0
    %258 = vmatpush1.msra.mxu0 0.0
    %259 = vmatprep.subr.mxu0 0.0
    %260 = vmatpush1.msra.mxu0 0.0
    %261 = vmatprep.subr.mxu0 0.0
    %262 = vmatpush1.msra.mxu0 0.0
    %263 = vmatprep.subr.mxu0 0.0
    %264 = vmatpush1.msra.mxu0 0.0
    %265 = vmatprep.subr.mxu0 0.0
    %266 = vmatpush1.msra.mxu0 0.0
    %267 = vmatprep.subr.mxu0 0.0
    %268 = vmatpush1.msra.mxu0 0.0
    %269 = vmatprep.subr.mxu0 0.0
    %270 = vmatpush1.msra.mxu0 0.0
    %271 = vmatprep.subr.mxu0 0.0
    %272 = vmatpush1.msra.mxu0 0.0
    %273 = vmatprep.subr.mxu0 0.0
    %274 = vmatpush1.msra.mxu0 0.0
    %275 = vmatprep.mubr.f32.mxu0 0.0
    %v276 = vand.u32 %v92, 4294901760
    %v277 = vsub.f32 %v92, %v276
    %v278 = vand.u32 %v277, 4294901760
    %v279 = vsub.f32 %v277, %v278
    %v280 = vand.u32 %v279, 4294901760
    %281 = vmatmul.mubr.f32.gmra.mrb[0].mxu0 %v280
    %v282 = vpop.f32.mrb[0].mxu0
    %v283 = vadd.f32 0.0, %v282
    %v284 = vpop.f32.mrb[0].mxu0
    %v285 = vadd.f32 0.0, %v284
    %286 = vmatprep.mubr.f32.mxu0 0.0
    %v287 = vand.u32 %v95, 4294901760
    %v288 = vsub.f32 %v95, %v287
    %v289 = vand.u32 %v288, 4294901760
    %v290 = vsub.f32 %v288, %v289
    %v291 = vand.u32 %v290, 4294901760
    %292 = vmatmul.mubr.f32.gmra.mrb[0].mxu0 %v291
    %v293 = vpop.f32.mrb[0].mxu0
    %v294 = vadd.f32 0.0, %v293
    %v295 = vpop.f32.mrb[0].mxu0
    %v296 = vadd.f32 0.0, %v295
    %297 = vmatprep.mubr.f32.mxu0 0.0
    %v298 = vand.u32 %v98, 4294901760
    %v299 = vsub.f32 %v98, %v298
    %v300 = vand.u32 %v299, 4294901760
    %v301 = vsub.f32 %v299, %v300
    %v302 = vand.u32 %v301, 4294901760
    %303 = vmatmul.mubr.f32.gmra.mrb[0].mxu0 %v302
    %v304 = vpop.f32.mrb[0].mxu0
    %v305 = vadd.f32 0.0, %v304
    %v306 = vpop.f32.mrb[0].mxu0
    %v307 = vadd.f32 0.0, %v306
    %308 = vmatprep.mubr.f32.mxu0 0.0
    %v309 = vand.u32 %v101, 4294901760
    %v310 = vsub.f32 %v101, %v309
    %v311 = vand.u32 %v310, 4294901760
    %v312 = vsub.f32 %v310, %v311
    %v313 = vand.u32 %v312, 4294901760
    %314 = vmatmul.mubr.f32.gmra.mrb[0].mxu0 %v313
    %v315 = vpop.f32.mrb[0].mxu0
    %v316 = vadd.f32 0.0, %v315
    %v317 = vpop.f32.mrb[0].mxu0
    %v318 = vadd.f32 0.0, %v317
    %319 = vmatprep.mubr.f32.mxu0 0.0
    %v320 = vand.u32 %v104, 4294901760
    %v321 = vsub.f32 %v104, %v320
    %v322 = vand.u32 %v321, 4294901760
    %v323 = vsub.f32 %v321, %v322
    %v324 = vand.u32 %v323, 4294901760
    %325 = vmatmul.mubr.f32.gmra.mrb[0].mxu0 %v324
    %v326 = vpop.f32.mrb[0].mxu0
    %v327 = vadd.f32 0.0, %v326
    %v328 = vpop.f32.mrb[0].mxu0
    %v329 = vadd.f32 0.0, %v328
    %330 = vmatprep.mubr.f32.mxu0 0.0
    %v331 = vand.u32 %v107, 4294901760
    %v332 = vsub.f32 %v107, %v331
    %v333 = vand.u32 %v332, 4294901760
    %v334 = vsub.f32 %v332, %v333
    %v335 = vand.u32 %v334, 4294901760
    %336 = vmatmul.mubr.f32.gmra.mrb[0].mxu0 %v335
    %v337 = vpop.f32.mrb[0].mxu0
    %v338 = vadd.f32 0.0, %v337
    %v339 = vpop.f32.mrb[0].mxu0
    %v340 = vadd.f32 0.0, %v339
    %341 = vmatprep.mubr.f32.mxu0 0.0
    %v342 = vand.u32 %v110, 4294901760
    %v343 = vsub.f32 %v110, %v342
    %v344 = vand.u32 %v343, 4294901760
    %v345 = vsub.f32 %v343, %v344
    %v346 = vand.u32 %v345, 4294901760
    %347 = vmatmul.mubr.f32.gmra.mrb[0].mxu0 %v346
    %v348 = vpop.f32.mrb[0].mxu0
    %v349 = vadd.f32 0.0, %v348
    %v350 = vpop.f32.mrb[0].mxu0
    %v351 = vadd.f32 0.0, %v350
    %352 = vmatprep.mubr.f32.mxu0 0.0
    %v353 = vand.u32 %v113, 4294901760
    %v354 = vsub.f32 %v113, %v353
    %v355 = vand.u32 %v354, 4294901760
    %v356 = vsub.f32 %v354, %v355
    %v357 = vand.u32 %v356, 4294901760
    %358 = vmatmul.mubr.f32.gmra.mrb[0].mxu0 %v357
    %v359 = vpop.f32.mrb[0].mxu0
    %v360 = vadd.f32 0.0, %v359
    %v361 = vpop.f32.mrb[0].mxu0
    %v362 = vadd.f32 0.0, %v361
    %363 = vmatprep.mubr.f32.mxu0 0.0
    %v364 = vand.u32 %v116, 4294901760
    %v365 = vsub.f32 %v116, %v364
    %v366 = vand.u32 %v365, 4294901760
    %v367 = vsub.f32 %v365, %v366
    %v368 = vand.u32 %v367, 4294901760
    %369 = vmatmul.mubr.f32.gmra.mrb[0].mxu0 %v368
    %v370 = vpop.f32.mrb[0].mxu0
    %v371 = vadd.f32 0.0, %v370
    %v372 = vpop.f32.mrb[0].mxu0
    %v373 = vadd.f32 0.0, %v372
    %374 = vmatprep.mubr.f32.mxu0 0.0
    %v375 = vand.u32 %v119, 4294901760
    %v376 = vsub.f32 %v119, %v375
    %v377 = vand.u32 %v376, 4294901760
    %v378 = vsub.f32 %v376, %v377
    %v379 = vand.u32 %v378, 4294901760
    %380 = vmatmul.mubr.f32.gmra.mrb[0].mxu0 %v379
    %v381 = vpop.f32.mrb[0].mxu0
    %v382 = vadd.f32 0.0, %v381
    %v383 = vpop.f32.mrb[0].mxu0
    %v384 = vadd.f32 0.0, %v383
    %385 = vmatprep.mubr.f32.mxu0 0.0
    %v386 = vand.u32 %v122, 4294901760
    %v387 = vsub.f32 %v122, %v386
    %v388 = vand.u32 %v387, 4294901760
    %v389 = vsub.f32 %v387, %v388
    %v390 = vand.u32 %v389, 4294901760
    %391 = vmatmul.mubr.f32.gmra.mrb[0].mxu0 %v390
    %v392 = vpop.f32.mrb[0].mxu0
    %v393 = vadd.f32 0.0, %v392
    %v394 = vpop.f32.mrb[0].mxu0
    %v395 = vadd.f32 0.0, %v394
    %396 = vmatprep.mubr.f32.mxu0 0.0
    %v397 = vand.u32 %v125, 4294901760
    %v398 = vsub.f32 %v125, %v397
    %v399 = vand.u32 %v398, 4294901760
    %v400 = vsub.f32 %v398, %v399
    %v401 = vand.u32 %v400, 4294901760
    %402 = vmatmul.mubr.f32.gmra.mrb[0].mxu0 %v401
    %v403 = vpop.f32.mrb[0].mxu0
    %v404 = vadd.f32 0.0, %v403
    %v405 = vpop.f32.mrb[0].mxu0
    %v406 = vadd.f32 0.0, %v405
    %407 = vmatprep.mubr.f32.mxu0 0.0
    %v408 = vand.u32 %v128, 4294901760
    %v409 = vsub.f32 %v128, %v408
    %v410 = vand.u32 %v409, 4294901760
    %v411 = vsub.f32 %v409, %v410
    %v412 = vand.u32 %v411, 4294901760
    %413 = vmatmul.mubr.f32.gmra.mrb[0].mxu0 %v412
    %v414 = vpop.f32.mrb[0].mxu0
    %v415 = vadd.f32 0.0, %v414
    %v416 = vpop.f32.mrb[0].mxu0
    %v417 = vadd.f32 0.0, %v416
    %418 = vmatprep.mubr.f32.mxu0 0.0
    %v419 = vand.u32 %v131, 4294901760
    %v420 = vsub.f32 %v131, %v419
    %v421 = vand.u32 %v420, 4294901760
    %v422 = vsub.f32 %v420, %v421
    %v423 = vand.u32 %v422, 4294901760
    %424 = vmatmul.mubr.f32.gmra.mrb[0].mxu0 %v423
    %v425 = vpop.f32.mrb[0].mxu0
    %v426 = vadd.f32 0.0, %v425
    %v427 = vpop.f32.mrb[0].mxu0
    %v428 = vadd.f32 0.0, %v427
    %429 = vmatprep.mubr.f32.mxu0 0.0
    %v430 = vand.u32 %v134, 4294901760
    %v431 = vsub.f32 %v134, %v430
    %v432 = vand.u32 %v431, 4294901760
    %v433 = vsub.f32 %v431, %v432
    %v434 = vand.u32 %v433, 4294901760
    %435 = vmatmul.mubr.f32.gmra.mrb[0].mxu0 %v434
    %v436 = vpop.f32.mrb[0].mxu0
    %v437 = vadd.f32 0.0, %v436
    %v438 = vpop.f32.mrb[0].mxu0
    %v439 = vadd.f32 0.0, %v438
    %440 = vmatprep.mubr.f32.mxu0 0.0
    %v441 = vand.u32 %v137, 4294901760
    %v442 = vsub.f32 %v137, %v441
    %v443 = vand.u32 %v442, 4294901760
    %v444 = vsub.f32 %v442, %v443
    %v445 = vand.u32 %v444, 4294901760
    %446 = vmatmul.mubr.f32.gmra.mrb[0].mxu0 %v445
    %v447 = vpop.f32.mrb[0].mxu0
    %v448 = vadd.f32 0.0, %v447
    %v449 = vpop.f32.mrb[0].mxu0
    %v450 = vadd.f32 0.0, %v449
    %451 = vmatprep.mubr.f32.mxu0 0.0
    %v452 = vand.u32 %v140, 4294901760
    %v453 = vsub.f32 %v140, %v452
    %v454 = vand.u32 %v453, 4294901760
    %v455 = vsub.f32 %v453, %v454
    %v456 = vand.u32 %v455, 4294901760
    %457 = vmatmul.mubr.f32.gmra.mrb[0].mxu0 %v456
    %v458 = vpop.f32.mrb[0].mxu0
    %v459 = vadd.f32 0.0, %v458
    %v460 = vpop.f32.mrb[0].mxu0
    %v461 = vadd.f32 0.0, %v460
    %462 = vmatprep.mubr.f32.mxu0 0.0
    %v463 = vand.u32 %v143, 4294901760
    %v464 = vsub.f32 %v143, %v463
    %v465 = vand.u32 %v464, 4294901760
    %v466 = vsub.f32 %v464, %v465
    %v467 = vand.u32 %v466, 4294901760
    %468 = vmatmul.mubr.f32.gmra.mrb[0].mxu0 %v467
    %v469 = vpop.f32.mrb[0].mxu0
    %v470 = vadd.f32 0.0, %v469
    %v471 = vpop.f32.mrb[0].mxu0
    %v472 = vadd.f32 0.0, %v471
    %473 = vmatprep.mubr.f32.mxu0 0.0
    %v474 = vand.u32 %v146, 4294901760
    %v475 = vsub.f32 %v146, %v474
    %v476 = vand.u32 %v475, 4294901760
    %v477 = vsub.f32 %v475, %v476
    %v478 = vand.u32 %v477, 4294901760
    %479 = vmatmul.mubr.f32.gmra.mrb[0].mxu0 %v478
    %v480 = vpop.f32.mrb[0].mxu0
    %v481 = vadd.f32 0.0, %v480
    %v482 = vpop.f32.mrb[0].mxu0
    %v483 = vadd.f32 0.0, %v482
    %484 = vmatprep.mubr.f32.mxu0 0.0
    %v485 = vand.u32 %v149, 4294901760
    %v486 = vsub.f32 %v149, %v485
    %v487 = vand.u32 %v486, 4294901760
    %v488 = vsub.f32 %v486, %v487
    %v489 = vand.u32 %v488, 4294901760
    %490 = vmatmul.mubr.f32.gmra.mrb[0].mxu0 %v489
    %v491 = vpop.f32.mrb[0].mxu0
    %v492 = vadd.f32 0.0, %v491
    %v493 = vpop.f32.mrb[0].mxu0
    %v494 = vadd.f32 0.0, %v493
    %495 = vmatprep.mubr.f32.mxu0 0.0
    %v496 = vand.u32 %v152, 4294901760
    %v497 = vsub.f32 %v152, %v496
    %v498 = vand.u32 %v497, 4294901760
    %v499 = vsub.f32 %v497, %v498
    %v500 = vand.u32 %v499, 4294901760
    %501 = vmatmul.mubr.f32.gmra.mrb[0].mxu0 %v500
    %v502 = vpop.f32.mrb[0].mxu0
    %v503 = vadd.f32 0.0, %v502
    %v504 = vpop.f32.mrb[0].mxu0
    %v505 = vadd.f32 0.0, %v504
    %506 = vmatprep.mubr.f32.mxu0 0.0
    %v507 = vand.u32 %v155, 4294901760
    %v508 = vsub.f32 %v155, %v507
    %v509 = vand.u32 %v508, 4294901760
    %v510 = vsub.f32 %v508, %v509
    %v511 = vand.u32 %v510, 4294901760
    %512 = vmatmul.mubr.f32.gmra.mrb[0].mxu0 %v511
    %v513 = vpop.f32.mrb[0].mxu0
    %v514 = vadd.f32 0.0, %v513
    %v515 = vpop.f32.mrb[0].mxu0
    %v516 = vadd.f32 0.0, %v515
    %517 = vmatprep.mubr.f32.mxu0 0.0
    %v518 = vand.u32 %v158, 4294901760
    %v519 = vsub.f32 %v158, %v518
    %v520 = vand.u32 %v519, 4294901760
    %v521 = vsub.f32 %v519, %v520
    %v522 = vand.u32 %v521, 4294901760
    %523 = vmatmul.mubr.f32.gmra.mrb[0].mxu0 %v522
    %v524 = vpop.f32.mrb[0].mxu0
    %v525 = vadd.f32 0.0, %v524
    %v526 = vpop.f32.mrb[0].mxu0
    %v527 = vadd.f32 0.0, %v526
    %528 = vmatprep.mubr.f32.mxu0 0.0
    %v529 = vand.u32 %v161, 4294901760
    %v530 = vsub.f32 %v161, %v529
    %v531 = vand.u32 %v530, 4294901760
    %v532 = vsub.f32 %v530, %v531
    %v533 = vand.u32 %v532, 4294901760
    %534 = vmatmul.mubr.f32.gmra.mrb[0].mxu0 %v533
    %v535 = vpop.f32.mrb[0].mxu0
    %v536 = vadd.f32 0.0, %v535
    %v537 = vpop.f32.mrb[0].mxu0
    %v538 = vadd.f32 0.0, %v537
    %539 = vmatprep.mubr.f32.mxu0 0.0
    %v540 = vand.u32 %v164, 4294901760
    %v541 = vsub.f32 %v164, %v540
    %v542 = vand.u32 %v541, 4294901760
    %v543 = vsub.f32 %v541, %v542
    %v544 = vand.u32 %v543, 4294901760
    %545 = vmatmul.mubr.f32.gmra.mrb[0].mxu0 %v544
    %v546 = vpop.f32.mrb[0].mxu0
    %v547 = vadd.f32 0.0, %v546
    %v548 = vpop.f32.mrb[0].mxu0
    %v549 = vadd.f32 0.0, %v548
    %550 = vmatprep.mubr.f32.mxu0 0.0
    %v551 = vand.u32 %v167, 4294901760
    %v552 = vsub.f32 %v167, %v551
    %v553 = vand.u32 %v552, 4294901760
    %v554 = vsub.f32 %v552, %v553
    %v555 = vand.u32 %v554, 4294901760
    %556 = vmatmul.mubr.f32.gmra.mrb[0].mxu0 %v555
    %v557 = vpop.f32.mrb[0].mxu0
    %v558 = vadd.f32 0.0, %v557
    %v559 = vpop.f32.mrb[0].mxu0
    %v560 = vadd.f32 0.0, %v559
    %561 = vmatprep.mubr.f32.mxu0 0.0
    %v562 = vand.u32 %v170, 4294901760
    %v563 = vsub.f32 %v170, %v562
    %v564 = vand.u32 %v563, 4294901760
    %v565 = vsub.f32 %v563, %v564
    %v566 = vand.u32 %v565, 4294901760
    %567 = vmatmul.mubr.f32.gmra.mrb[0].mxu0 %v566
    %v568 = vpop.f32.mrb[0].mxu0
    %v569 = vadd.f32 0.0, %v568
    %v570 = vpop.f32.mrb[0].mxu0
    %v571 = vadd.f32 0.0, %v570
    %572 = vmatprep.mubr.f32.mxu0 0.0
    %v573 = vand.u32 %v173, 4294901760
    %v574 = vsub.f32 %v173, %v573
    %v575 = vand.u32 %v574, 4294901760
    %v576 = vsub.f32 %v574, %v575
    %v577 = vand.u32 %v576, 4294901760
    %578 = vmatmul.mubr.f32.gmra.mrb[0].mxu0 %v577
    %v579 = vpop.f32.mrb[0].mxu0
    %v580 = vadd.f32 0.0, %v579
    %v581 = vpop.f32.mrb[0].mxu0
    %v582 = vadd.f32 0.0, %v581
    %583 = vmatprep.mubr.f32.mxu0 0.0
    %v584 = vand.u32 %v176, 4294901760
    %v585 = vsub.f32 %v176, %v584
    %v586 = vand.u32 %v585, 4294901760
    %v587 = vsub.f32 %v585, %v586
    %v588 = vand.u32 %v587, 4294901760
    %589 = vmatmul.mubr.f32.gmra.mrb[0].mxu0 %v588
    %v590 = vpop.f32.mrb[0].mxu0
    %v591 = vadd.f32 0.0, %v590
    %v592 = vpop.f32.mrb[0].mxu0
    %v593 = vadd.f32 0.0, %v592
    %594 = vmatprep.mubr.f32.mxu0 0.0
    %v595 = vand.u32 %v179, 4294901760
    %v596 = vsub.f32 %v179, %v595
    %v597 = vand.u32 %v596, 4294901760
    %v598 = vsub.f32 %v596, %v597
    %v599 = vand.u32 %v598, 4294901760
    %600 = vmatmul.mubr.f32.gmra.mrb[0].mxu0 %v599
    %v601 = vpop.f32.mrb[0].mxu0
    %v602 = vadd.f32 0.0, %v601
    %v603 = vpop.f32.mrb[0].mxu0
    %v604 = vadd.f32 0.0, %v603
    %605 = vmatprep.mubr.f32.mxu0 0.0
    %v606 = vand.u32 %v182, 4294901760
    %v607 = vsub.f32 %v182, %v606
    %v608 = vand.u32 %v607, 4294901760
    %v609 = vsub.f32 %v607, %v608
    %v610 = vand.u32 %v609, 4294901760
    %611 = vmatmul.mubr.f32.gmra.mrb[0].mxu0 %v610
    %v612 = vpop.f32.mrb[0].mxu0
    %v613 = vadd.f32 0.0, %v612
    %v614 = vpop.f32.mrb[0].mxu0
    %v615 = vadd.f32 0.0, %v614
    %616 = vmatprep.mubr.f32.mxu0 0.0
    %v617 = vand.u32 %v185, 4294901760
    %v618 = vsub.f32 %v185, %v617
    %v619 = vand.u32 %v618, 4294901760
    %v620 = vsub.f32 %v618, %v619
    %v621 = vand.u32 %v620, 4294901760
    %622 = vmatmul.mubr.f32.gmra.mrb[0].mxu0 %v621
    %v623 = vpop.f32.mrb[0].mxu0
    %v624 = vadd.f32 0.0, %v623
    %v625 = vpop.f32.mrb[0].mxu0
    %v626 = vadd.f32 0.0, %v625
    %627 = vmatprep.mubr.f32.mxu0 0.0
    %v628 = vand.u32 %v188, 4294901760
    %v629 = vsub.f32 %v188, %v628
    %v630 = vand.u32 %v629, 4294901760
    %v631 = vsub.f32 %v629, %v630
    %v632 = vand.u32 %v631, 4294901760
    %633 = vmatmul.mubr.f32.gmra.mrb[0].mxu0 %v632
    %v634 = vpop.f32.mrb[0].mxu0
    %v635 = vadd.f32 0.0, %v634
    %v636 = vpop.f32.mrb[0].mxu0
    %v637 = vadd.f32 0.0, %v636
    %638 = vmatprep.mubr.f32.mxu0 0.0
    %v639 = vand.u32 %v191, 4294901760
    %v640 = vsub.f32 %v191, %v639
    %v641 = vand.u32 %v640, 4294901760
    %v642 = vsub.f32 %v640, %v641
    %v643 = vand.u32 %v642, 4294901760
    %644 = vmatmul.mubr.f32.gmra.mrb[0].mxu0 %v643
    %v645 = vpop.f32.mrb[0].mxu0
    %v646 = vadd.f32 0.0, %v645
    %v647 = vpop.f32.mrb[0].mxu0
    %v648 = vadd.f32 0.0, %v647
    %649 = vmatprep.mubr.f32.mxu0 0.0
    %v650 = vand.u32 %v194, 4294901760
    %v651 = vsub.f32 %v194, %v650
    %v652 = vand.u32 %v651, 4294901760
    %v653 = vsub.f32 %v651, %v652
    %v654 = vand.u32 %v653, 4294901760
    %655 = vmatmul.mubr.f32.gmra.mrb[0].mxu0 %v654
    %v656 = vpop.f32.mrb[0].mxu0
    %v657 = vadd.f32 0.0, %v656
    %v658 = vpop.f32.mrb[0].mxu0
    %v659 = vadd.f32 0.0, %v658
    %660 = vmatprep.mubr.f32.mxu0 0.0
    %v661 = vand.u32 %v197, 4294901760
    %v662 = vsub.f32 %v197, %v661
    %v663 = vand.u32 %v662, 4294901760
    %v664 = vsub.f32 %v662, %v663
    %v665 = vand.u32 %v664, 4294901760
    %666 = vmatmul.mubr.f32.gmra.mrb[0].mxu0 %v665
    %v667 = vpop.f32.mrb[0].mxu0
    %v668 = vadd.f32 0.0, %v667
    %v669 = vpop.f32.mrb[0].mxu0
    %v670 = vadd.f32 0.0, %v669
    %671 = vdwg.mxu0
    %v672 = vand.u32 %v49, 4294901760
    %v673 = vsub.f32 %v49, %v672
    %v674 = vand.u32 %v673, 4294901760
    %v675 = vsub.f32 %v673, %v674
    %v676 = vand.u32 %v675, 4294901760
    %677 = vmatprep.subr.mxu0 %v676
    %v678 = vand.u32 %v48, 4294901760
    %v679 = vsub.f32 %v48, %v678
    %v680 = vand.u32 %v679, 4294901760
    %v681 = vsub.f32 %v679, %v680
    %v682 = vand.u32 %v681, 4294901760
    %683 = vmatpush1.msra.mxu0 %v682
    %v684 = vand.u32 %v56, 4294901760
    %v685 = vsub.f32 %v56, %v684
    %v686 = vand.u32 %v685, 4294901760
    %v687 = vsub.f32 %v685, %v686
    %v688 = vand.u32 %v687, 4294901760
    %689 = vmatprep.subr.mxu0 %v688
    %v690 = vand.u32 %v55, 4294901760
    %v691 = vsub.f32 %v55, %v690
    %v692 = vand.u32 %v691, 4294901760
    %v693 = vsub.f32 %v691, %v692
    %v694 = vand.u32 %v693, 4294901760
    %695 = vmatpush1.msra.mxu0 %v694
    %v696 = vand.u32 %v63, 4294901760
    %v697 = vsub.f32 %v63, %v696
    %v698 = vand.u32 %v697, 4294901760
    %v699 = vsub.f32 %v697, %v698
    %v700 = vand.u32 %v699, 4294901760
    %701 = vmatprep.subr.mxu0 %v700
    %v702 = vand.u32 %v62, 4294901760
    %v703 = vsub.f32 %v62, %v702
    %v704 = vand.u32 %v703, 4294901760
    %v705 = vsub.f32 %v703, %v704
    %v706 = vand.u32 %v705, 4294901760
    %707 = vmatpush1.msra.mxu0 %v706
    %v708 = vand.u32 %v70, 4294901760
    %v709 = vsub.f32 %v70, %v708
    %v710 = vand.u32 %v709, 4294901760
    %v711 = vsub.f32 %v709, %v710
    %v712 = vand.u32 %v711, 4294901760
    %713 = vmatprep.subr.mxu0 %v712
    %v714 = vand.u32 %v69, 4294901760
    %v715 = vsub.f32 %v69, %v714
    %v716 = vand.u32 %v715, 4294901760
    %v717 = vsub.f32 %v715, %v716
    %v718 = vand.u32 %v717, 4294901760
    %719 = vmatpush1.msra.mxu0 %v718
    %v720 = vand.u32 %v77, 4294901760
    %v721 = vsub.f32 %v77, %v720
    %v722 = vand.u32 %v721, 4294901760
    %v723 = vsub.f32 %v721, %v722
    %v724 = vand.u32 %v723, 4294901760
    %725 = vmatprep.subr.mxu0 %v724
    %v726 = vand.u32 %v76, 4294901760
    %v727 = vsub.f32 %v76, %v726
    %v728 = vand.u32 %v727, 4294901760
    %v729 = vsub.f32 %v727, %v728
    %v730 = vand.u32 %v729, 4294901760
    %731 = vmatpush1.msra.mxu0 %v730
    %v732 = vand.u32 %v84, 4294901760
    %v733 = vsub.f32 %v84, %v732
    %v734 = vand.u32 %v733, 4294901760
    %v735 = vsub.f32 %v733, %v734
    %v736 = vand.u32 %v735, 4294901760
    %737 = vmatprep.subr.mxu0 %v736
    %v738 = vand.u32 %v83, 4294901760
    %v739 = vsub.f32 %v83, %v738
    %v740 = vand.u32 %v739, 4294901760
    %v741 = vsub.f32 %v739, %v740
    %v742 = vand.u32 %v741, 4294901760
    %743 = vmatpush1.msra.mxu0 %v742
    %744 = vmatprep.subr.mxu0 0.0
    %745 = vmatpush1.msra.mxu0 0.0
    %746 = vmatprep.subr.mxu0 0.0
    %747 = vmatpush1.msra.mxu0 0.0
    %748 = vmatprep.subr.mxu0 0.0
    %749 = vmatpush1.msra.mxu0 0.0
    %750 = vmatprep.subr.mxu0 0.0
    %751 = vmatpush1.msra.mxu0 0.0
    %752 = vmatprep.subr.mxu0 0.0
    %753 = vmatpush1.msra.mxu0 0.0
    %754 = vmatprep.subr.mxu0 0.0
    %755 = vmatpush1.msra.mxu0 0.0
    %756 = vmatprep.subr.mxu0 0.0
    %757 = vmatpush1.msra.mxu0 0.0
    %758 = vmatprep.subr.mxu0 0.0
    %759 = vmatpush1.msra.mxu0 0.0
    %760 = vmatprep.subr.mxu0 0.0
    %761 = vmatpush1.msra.mxu0 0.0
    %762 = vmatprep.subr.mxu0 0.0
    %763 = vmatpush1.msra.mxu0 0.0
    %764 = vmatprep.subr.mxu0 0.0
    %765 = vmatpush1.msra.mxu0 0.0
    %766 = vmatprep.subr.mxu0 0.0
    %767 = vmatpush1.msra.mxu0 0.0
    %768 = vmatprep.subr.mxu0 0.0
    %769 = vmatpush1.msra.mxu0 0.0
    %770 = vmatprep.subr.mxu0 0.0
    %771 = vmatpush1.msra.mxu0 0.0
    %772 = vmatprep.subr.mxu0 0.0
    %773 = vmatpush1.msra.mxu0 0.0
    %774 = vmatprep.subr.mxu0 0.0
    %775 = vmatpush1.msra.mxu0 0.0
    %776 = vmatprep.subr.mxu0 0.0
    %777 = vmatpush1.msra.mxu0 0.0
    %778 = vmatprep.subr.mxu0 0.0
    %779 = vmatpush1.msra.mxu0 0.0
    %780 = vmatprep.subr.mxu0 0.0
    %781 = vmatpush1.msra.mxu0 0.0
    %782 = vmatprep.subr.mxu0 0.0
    %783 = vmatpush1.msra.mxu0 0.0
    %784 = vmatprep.subr.mxu0 0.0
    %785 = vmatpush1.msra.mxu0 0.0
    %786 = vmatprep.subr.mxu0 0.0
    %787 = vmatpush1.msra.mxu0 0.0
    %788 = vmatprep.subr.mxu0 0.0
    %789 = vmatpush1.msra.mxu0 0.0
    %790 = vmatprep.subr.mxu0 0.0
    %791 = vmatpush1.msra.mxu0 0.0
    %792 = vmatprep.subr.mxu0 0.0
    %793 = vmatpush1.msra.mxu0 0.0
    %794 = vmatprep.subr.mxu0 0.0
    %795 = vmatpush1.msra.mxu0 0.0
    %796 = vmatprep.mubr.f32.mxu0 0.0
    %v797 = vand.u32 %v92, 4294901760
    %798 = vmatmul.mubr.f32.gmra.mrb[0].mxu0 %v797
    %v799 = vpop.f32.mrb[0].mxu0
    %v800 = vadd.f32 %v283, %v799
    %v801 = vpop.f32.mrb[0].mxu0
    %v802 = vadd.f32 %v285, %v801
    %803 = vmatprep.mubr.f32.mxu0 0.0
    %v804 = vand.u32 %v95, 4294901760
    %805 = vmatmul.mubr.f32.gmra.mrb[0].mxu0 %v804
    %v806 = vpop.f32.mrb[0].mxu0
    %v807 = vadd.f32 %v294, %v806
    %v808 = vpop.f32.mrb[0].mxu0
    %v809 = vadd.f32 %v296, %v808
    %810 = vmatprep.mubr.f32.mxu0 0.0
    %v811 = vand.u32 %v98, 4294901760
    %812 = vmatmul.mubr.f32.gmra.mrb[0].mxu0 %v811
    %v813 = vpop.f32.mrb[0].mxu0
    %v814 = vadd.f32 %v305, %v813
    %v815 = vpop.f32.mrb[0].mxu0
    %v816 = vadd.f32 %v307, %v815
    %817 = vmatprep.mubr.f32.mxu0 0.0
    %v818 = vand.u32 %v101, 4294901760
    %819 = vmatmul.mubr.f32.gmra.mrb[0].mxu0 %v818
    %v820 = vpop.f32.mrb[0].mxu0
    %v821 = vadd.f32 %v316, %v820
    %v822 = vpop.f32.mrb[0].mxu0
    %v823 = vadd.f32 %v318, %v822
    %824 = vmatprep.mubr.f32.mxu0 0.0
    %v825 = vand.u32 %v104, 4294901760
    %826 = vmatmul.mubr.f32.gmra.mrb[0].mxu0 %v825
    %v827 = vpop.f32.mrb[0].mxu0
    %v828 = vadd.f32 %v327, %v827
    %v829 = vpop.f32.mrb[0].mxu0
    %v830 = vadd.f32 %v329, %v829
    %831 = vmatprep.mubr.f32.mxu0 0.0
    %v832 = vand.u32 %v107, 4294901760
    %833 = vmatmul.mubr.f32.gmra.mrb[0].mxu0 %v832
    %v834 = vpop.f32.mrb[0].mxu0
    %v835 = vadd.f32 %v338, %v834
    %v836 = vpop.f32.mrb[0].mxu0
    %v837 = vadd.f32 %v340, %v836
    %838 = vmatprep.mubr.f32.mxu0 0.0
    %v839 = vand.u32 %v110, 4294901760
    %840 = vmatmul.mubr.f32.gmra.mrb[0].mxu0 %v839
    %v841 = vpop.f32.mrb[0].mxu0
    %v842 = vadd.f32 %v349, %v841
    %v843 = vpop.f32.mrb[0].mxu0
    %v844 = vadd.f32 %v351, %v843
    %845 = vmatprep.mubr.f32.mxu0 0.0
    %v846 = vand.u32 %v113, 4294901760
    %847 = vmatmul.mubr.f32.gmra.mrb[0].mxu0 %v846
    %v848 = vpop.f32.mrb[0].mxu0
    %v849 = vadd.f32 %v360, %v848
    %v850 = vpop.f32.mrb[0].mxu0
    %v851 = vadd.f32 %v362, %v850
    %852 = vmatprep.mubr.f32.mxu0 0.0
    %v853 = vand.u32 %v116, 4294901760
    %854 = vmatmul.mubr.f32.gmra.mrb[0].mxu0 %v853
    %v855 = vpop.f32.mrb[0].mxu0
    %v856 = vadd.f32 %v371, %v855
    %v857 = vpop.f32.mrb[0].mxu0
    %v858 = vadd.f32 %v373, %v857
    %859 = vmatprep.mubr.f32.mxu0 0.0
    %v860 = vand.u32 %v119, 4294901760
    %861 = vmatmul.mubr.f32.gmra.mrb[0].mxu0 %v860
    %v862 = vpop.f32.mrb[0].mxu0
    %v863 = vadd.f32 %v382, %v862
    %v864 = vpop.f32.mrb[0].mxu0
    %v865 = vadd.f32 %v384, %v864
    %866 = vmatprep.mubr.f32.mxu0 0.0
    %v867 = vand.u32 %v122, 4294901760
    %868 = vmatmul.mubr.f32.gmra.mrb[0].mxu0 %v867
    %v869 = vpop.f32.mrb[0].mxu0
    %v870 = vadd.f32 %v393, %v869
    %v871 = vpop.f32.mrb[0].mxu0
    %v872 = vadd.f32 %v395, %v871
    %873 = vmatprep.mubr.f32.mxu0 0.0
    %v874 = vand.u32 %v125, 4294901760
    %875 = vmatmul.mubr.f32.gmra.mrb[0].mxu0 %v874
    %v876 = vpop.f32.mrb[0].mxu0
    %v877 = vadd.f32 %v404, %v876
    %v878 = vpop.f32.mrb[0].mxu0
    %v879 = vadd.f32 %v406, %v878
    %880 = vmatprep.mubr.f32.mxu0 0.0
    %v881 = vand.u32 %v128, 4294901760
    %882 = vmatmul.mubr.f32.gmra.mrb[0].mxu0 %v881
    %v883 = vpop.f32.mrb[0].mxu0
    %v884 = vadd.f32 %v415, %v883
    %v885 = vpop.f32.mrb[0].mxu0
    %v886 = vadd.f32 %v417, %v885
    %887 = vmatprep.mubr.f32.mxu0 0.0
    %v888 = vand.u32 %v131, 4294901760
    %889 = vmatmul.mubr.f32.gmra.mrb[0].mxu0 %v888
    %v890 = vpop.f32.mrb[0].mxu0
    %v891 = vadd.f32 %v426, %v890
    %v892 = vpop.f32.mrb[0].mxu0
    %v893 = vadd.f32 %v428, %v892
    %894 = vmatprep.mubr.f32.mxu0 0.0
    %v895 = vand.u32 %v134, 4294901760
    %896 = vmatmul.mubr.f32.gmra.mrb[0].mxu0 %v895
    %v897 = vpop.f32.mrb[0].mxu0
    %v898 = vadd.f32 %v437, %v897
    %v899 = vpop.f32.mrb[0].mxu0
    %v900 = vadd.f32 %v439, %v899
    %901 = vmatprep.mubr.f32.mxu0 0.0
    %v902 = vand.u32 %v137, 4294901760
    %903 = vmatmul.mubr.f32.gmra.mrb[0].mxu0 %v902
    %v904 = vpop.f32.mrb[0].mxu0
    %v905 = vadd.f32 %v448, %v904
    %v906 = vpop.f32.mrb[0].mxu0
    %v907 = vadd.f32 %v450, %v906
    %908 = vmatprep.mubr.f32.mxu0 0.0
    %v909 = vand.u32 %v140, 4294901760
    %910 = vmatmul.mubr.f32.gmra.mrb[0].mxu0 %v909
    %v911 = vpop.f32.mrb[0].mxu0
    %v912 = vadd.f32 %v459, %v911
    %v913 = vpop.f32.mrb[0].mxu0
    %v914 = vadd.f32 %v461, %v913
    %915 = vmatprep.mubr.f32.mxu0 0.0
    %v916 = vand.u32 %v143, 4294901760
    %917 = vmatmul.mubr.f32.gmra.mrb[0].mxu0 %v916
    %v918 = vpop.f32.mrb[0].mxu0
    %v919 = vadd.f32 %v470, %v918
    %v920 = vpop.f32.mrb[0].mxu0
    %v921 = vadd.f32 %v472, %v920
    %922 = vmatprep.mubr.f32.mxu0 0.0
    %v923 = vand.u32 %v146, 4294901760
    %924 = vmatmul.mubr.f32.gmra.mrb[0].mxu0 %v923
    %v925 = vpop.f32.mrb[0].mxu0
    %v926 = vadd.f32 %v481, %v925
    %v927 = vpop.f32.mrb[0].mxu0
    %v928 = vadd.f32 %v483, %v927
    %929 = vmatprep.mubr.f32.mxu0 0.0
    %v930 = vand.u32 %v149, 4294901760
    %931 = vmatmul.mubr.f32.gmra.mrb[0].mxu0 %v930
    %v932 = vpop.f32.mrb[0].mxu0
    %v933 = vadd.f32 %v492, %v932
    %v934 = vpop.f32.mrb[0].mxu0
    %v935 = vadd.f32 %v494, %v934
    %936 = vmatprep.mubr.f32.mxu0 0.0
    %v937 = vand.u32 %v152, 4294901760
    %938 = vmatmul.mubr.f32.gmra.mrb[0].mxu0 %v937
    %v939 = vpop.f32.mrb[0].mxu0
    %v940 = vadd.f32 %v503, %v939
    %v941 = vpop.f32.mrb[0].mxu0
    %v942 = vadd.f32 %v505, %v941
    %943 = vmatprep.mubr.f32.mxu0 0.0
    %v944 = vand.u32 %v155, 4294901760
    %945 = vmatmul.mubr.f32.gmra.mrb[0].mxu0 %v944
    %v946 = vpop.f32.mrb[0].mxu0
    %v947 = vadd.f32 %v514, %v946
    %v948 = vpop.f32.mrb[0].mxu0
    %v949 = vadd.f32 %v516, %v948
    %950 = vmatprep.mubr.f32.mxu0 0.0
    %v951 = vand.u32 %v158, 4294901760
    %952 = vmatmul.mubr.f32.gmra.mrb[0].mxu0 %v951
    %v953 = vpop.f32.mrb[0].mxu0
    %v954 = vadd.f32 %v525, %v953
    %v955 = vpop.f32.mrb[0].mxu0
    %v956 = vadd.f32 %v527, %v955
    %957 = vmatprep.mubr.f32.mxu0 0.0
    %v958 = vand.u32 %v161, 4294901760
    %959 = vmatmul.mubr.f32.gmra.mrb[0].mxu0 %v958
    %v960 = vpop.f32.mrb[0].mxu0
    %v961 = vadd.f32 %v536, %v960
    %v962 = vpop.f32.mrb[0].mxu0
    %v963 = vadd.f32 %v538, %v962
    %964 = vmatprep.mubr.f32.mxu0 0.0
    %v965 = vand.u32 %v164, 4294901760
    %966 = vmatmul.mubr.f32.gmra.mrb[0].mxu0 %v965
    %v967 = vpop.f32.mrb[0].mxu0
    %v968 = vadd.f32 %v547, %v967
    %v969 = vpop.f32.mrb[0].mxu0
    %v970 = vadd.f32 %v549, %v969
    %971 = vmatprep.mubr.f32.mxu0 0.0
    %v972 = vand.u32 %v167, 4294901760
    %973 = vmatmul.mubr.f32.gmra.mrb[0].mxu0 %v972
    %v974 = vpop.f32.mrb[0].mxu0
    %v975 = vadd.f32 %v558, %v974
    %v976 = vpop.f32.mrb[0].mxu0
    %v977 = vadd.f32 %v560, %v976
    %978 = vmatprep.mubr.f32.mxu0 0.0
    %v979 = vand.u32 %v170, 4294901760
    %980 = vmatmul.mubr.f32.gmra.mrb[0].mxu0 %v979
    %v981 = vpop.f32.mrb[0].mxu0
    %v982 = vadd.f32 %v569, %v981
    %v983 = vpop.f32.mrb[0].mxu0
    %v984 = vadd.f32 %v571, %v983
    %985 = vmatprep.mubr.f32.mxu0 0.0
    %v986 = vand.u32 %v173, 4294901760
    %987 = vmatmul.mubr.f32.gmra.mrb[0].mxu0 %v986
    %v988 = vpop.f32.mrb[0].mxu0
    %v989 = vadd.f32 %v580, %v988
    %v990 = vpop.f32.mrb[0].mxu0
    %v991 = vadd.f32 %v582, %v990
    %992 = vmatprep.mubr.f32.mxu0 0.0
    %v993 = vand.u32 %v176, 4294901760
    %994 = vmatmul.mubr.f32.gmra.mrb[0].mxu0 %v993
    %v995 = vpop.f32.mrb[0].mxu0
    %v996 = vadd.f32 %v591, %v995
    %v997 = vpop.f32.mrb[0].mxu0
    %v998 = vadd.f32 %v593, %v997
    %999 = vmatprep.mubr.f32.mxu0 0.0
    %v1000 = vand.u32 %v179, 4294901760
    %1001 = vmatmul.mubr.f32.gmra.mrb[0].mxu0 %v1000
    %v1002 = vpop.f32.mrb[0].mxu0
    %v1003 = vadd.f32 %v602, %v1002
    %v1004 = vpop.f32.mrb[0].mxu0
    %v1005 = vadd.f32 %v604, %v1004
    %1006 = vmatprep.mubr.f32.mxu0 0.0
    %v1007 = vand.u32 %v182, 4294901760
    %1008 = vmatmul.mubr.f32.gmra.mrb[0].mxu0 %v1007
    %v1009 = vpop.f32.mrb[0].mxu0
    %v1010 = vadd.f32 %v613, %v1009
    %v1011 = vpop.f32.mrb[0].mxu0
    %v1012 = vadd.f32 %v615, %v1011
    %1013 = vmatprep.mubr.f32.mxu0 0.0
    %v1014 = vand.u32 %v185, 4294901760
    %1015 = vmatmul.mubr.f32.gmra.mrb[0].mxu0 %v1014
    %v1016 = vpop.f32.mrb[0].mxu0
    %v1017 = vadd.f32 %v624, %v1016
    %v1018 = vpop.f32.mrb[0].mxu0
    %v1019 = vadd.f32 %v626, %v1018
    %1020 = vmatprep.mubr.f32.mxu0 0.0
    %v1021 = vand.u32 %v188, 4294901760
    %1022 = vmatmul.mubr.f32.gmra.mrb[0].mxu0 %v1021
    %v1023 = vpop.f32.mrb[0].mxu0
    %v1024 = vadd.f32 %v635, %v1023
    %v1025 = vpop.f32.mrb[0].mxu0
    %v1026 = vadd.f32 %v637, %v1025
    %1027 = vmatprep.mubr.f32.mxu0 0.0
    %v1028 = vand.u32 %v191, 4294901760
    %1029 = vmatmul.mubr.f32.gmra.mrb[0].mxu0 %v1028
    %v1030 = vpop.f32.mrb[0].mxu0
    %v1031 = vadd.f32 %v646, %v1030
    %v1032 = vpop.f32.mrb[0].mxu0
    %v1033 = vadd.f32 %v648, %v1032
    %1034 = vmatprep.mubr.f32.mxu0 0.0
    %v1035 = vand.u32 %v194, 4294901760
    %1036 = vmatmul.mubr.f32.gmra.mrb[0].mxu0 %v1035
    %v1037 = vpop.f32.mrb[0].mxu0
    %v1038 = vadd.f32 %v657, %v1037
    %v1039 = vpop.f32.mrb[0].mxu0
    %v1040 = vadd.f32 %v659, %v1039
    %1041 = vmatprep.mubr.f32.mxu0 0.0
    %v1042 = vand.u32 %v197, 4294901760
    %1043 = vmatmul.mubr.f32.gmra.mrb[0].mxu0 %v1042
    %v1044 = vpop.f32.mrb[0].mxu0
    %v1045 = vadd.f32 %v668, %v1044
    %v1046 = vpop.f32.mrb[0].mxu0
    %v1047 = vadd.f32 %v670, %v1046
    %1048 = vdwg.mxu0
    %v1049 = vand.u32 %v49, 4294901760
    %v1050 = vsub.f32 %v49, %v1049
    %1051 = vmatprep.subr.mxu0 %v1050
    %v1052 = vand.u32 %v48, 4294901760
    %v1053 = vsub.f32 %v48, %v1052
    %1054 = vmatpush1.msra.mxu0 %v1053
    %v1055 = vand.u32 %v56, 4294901760
    %v1056 = vsub.f32 %v56, %v1055
    %1057 = vmatprep.subr.mxu0 %v1056
    %v1058 = vand.u32 %v55, 4294901760
    %v1059 = vsub.f32 %v55, %v1058
    %1060 = vmatpush1.msra.mxu0 %v1059
    %v1061 = vand.u32 %v63, 4294901760
    %v1062 = vsub.f32 %v63, %v1061
    %1063 = vmatprep.subr.mxu0 %v1062
    %v1064 = vand.u32 %v62, 4294901760
    %v1065 = vsub.f32 %v62, %v1064
    %1066 = vmatpush1.msra.mxu0 %v1065
    %v1067 = vand.u32 %v70, 4294901760
    %v1068 = vsub.f32 %v70, %v1067
    %1069 = vmatprep.subr.mxu0 %v1068
    %v1070 = vand.u32 %v69, 4294901760
    %v1071 = vsub.f32 %v69, %v1070
    %1072 = vmatpush1.msra.mxu0 %v1071
    %v1073 = vand.u32 %v77, 4294901760
    %v1074 = vsub.f32 %v77, %v1073
    %1075 = vmatprep.subr.mxu0 %v1074
    %v1076 = vand.u32 %v76, 4294901760
    %v1077 = vsub.f32 %v76, %v1076
    %1078 = vmatpush1.msra.mxu0 %v1077
    %v1079 = vand.u32 %v84, 4294901760
    %v1080 = vsub.f32 %v84, %v1079
    %1081 = vmatprep.subr.mxu0 %v1080
    %v1082 = vand.u32 %v83, 4294901760
    %v1083 = vsub.f32 %v83, %v1082
    %1084 = vmatpush1.msra.mxu0 %v1083
    %1085 = vmatprep.subr.mxu0 0.0
    %1086 = vmatpush1.msra.mxu0 0.0
    %1087 = vmatprep.subr.mxu0 0.0
    %1088 = vmatpush1.msra.mxu0 0.0
    %1089 = vmatprep.subr.mxu0 0.0
    %1090 = vmatpush1.msra.mxu0 0.0
    %1091 = vmatprep.subr.mxu0 0.0
    %1092 = vmatpush1.msra.mxu0 0.0
    %1093 = vmatprep.subr.mxu0 0.0
    %1094 = vmatpush1.msra.mxu0 0.0
    %1095 = vmatprep.subr.mxu0 0.0
    %1096 = vmatpush1.msra.mxu0 0.0
    %1097 = vmatprep.subr.mxu0 0.0
    %1098 = vmatpush1.msra.mxu0 0.0
    %1099 = vmatprep.subr.mxu0 0.0
    %1100 = vmatpush1.msra.mxu0 0.0
    %1101 = vmatprep.subr.mxu0 0.0
    %1102 = vmatpush1.msra.mxu0 0.0
    %1103 = vmatprep.subr.mxu0 0.0
    %1104 = vmatpush1.msra.mxu0 0.0
    %1105 = vmatprep.subr.mxu0 0.0
    %1106 = vmatpush1.msra.mxu0 0.0
    %1107 = vmatprep.subr.mxu0 0.0
    %1108 = vmatpush1.msra.mxu0 0.0
    %1109 = vmatprep.subr.mxu0 0.0
    %1110 = vmatpush1.msra.mxu0 0.0
    %1111 = vmatprep.subr.mxu0 0.0
    %1112 = vmatpush1.msra.mxu0 0.0
    %1113 = vmatprep.subr.mxu0 0.0
    %1114 = vmatpush1.msra.mxu0 0.0
    %1115 = vmatprep.subr.mxu0 0.0
    %1116 = vmatpush1.msra.mxu0 0.0
    %1117 = vmatprep.subr.mxu0 0.0
    %1118 = vmatpush1.msra.mxu0 0.0
    %1119 = vmatprep.subr.mxu0 0.0
    %1120 = vmatpush1.msra.mxu0 0.0
    %1121 = vmatprep.subr.mxu0 0.0
    %1122 = vmatpush1.msra.mxu0 0.0
    %1123 = vmatprep.subr.mxu0 0.0
    %1124 = vmatpush1.msra.mxu0 0.0
    %1125 = vmatprep.subr.mxu0 0.0
    %1126 = vmatpush1.msra.mxu0 0.0
    %1127 = vmatprep.subr.mxu0 0.0
    %1128 = vmatpush1.msra.mxu0 0.0
    %1129 = vmatprep.subr.mxu0 0.0
    %1130 = vmatpush1.msra.mxu0 0.0
    %1131 = vmatprep.subr.mxu0 0.0
    %1132 = vmatpush1.msra.mxu0 0.0
    %1133 = vmatprep.subr.mxu0 0.0
    %1134 = vmatpush1.msra.mxu0 0.0
    %1135 = vmatprep.subr.mxu0 0.0
    %1136 = vmatpush1.msra.mxu0 0.0
    %1137 = vmatprep.mubr.f32.mxu0 0.0
    %v1138 = vand.u32 %v92, 4294901760
    %v1139 = vsub.f32 %v92, %v1138
    %1140 = vmatmul.mubr.f32.gmra.mrb[0].mxu0 %v1139
    %v1141 = vpop.f32.mrb[0].mxu0
    %v1142 = vadd.f32 %v800, %v1141
    %v1143 = vpop.f32.mrb[0].mxu0
    %v1144 = vadd.f32 %v802, %v1143
    %1145 = vmatprep.mubr.f32.mxu0 0.0
    %v1146 = vand.u32 %v95, 4294901760
    %v1147 = vsub.f32 %v95, %v1146
    %1148 = vmatmul.mubr.f32.gmra.mrb[0].mxu0 %v1147
    %v1149 = vpop.f32.mrb[0].mxu0
    %v1150 = vadd.f32 %v807, %v1149
    %v1151 = vpop.f32.mrb[0].mxu0
    %v1152 = vadd.f32 %v809, %v1151
    %1153 = vmatprep.mubr.f32.mxu0 0.0
    %v1154 = vand.u32 %v98, 4294901760
    %v1155 = vsub.f32 %v98, %v1154
    %1156 = vmatmul.mubr.f32.gmra.mrb[0].mxu0 %v1155
    %v1157 = vpop.f32.mrb[0].mxu0
    %v1158 = vadd.f32 %v814, %v1157
    %v1159 = vpop.f32.mrb[0].mxu0
    %v1160 = vadd.f32 %v816, %v1159
    %1161 = vmatprep.mubr.f32.mxu0 0.0
    %v1162 = vand.u32 %v101, 4294901760
    %v1163 = vsub.f32 %v101, %v1162
    %1164 = vmatmul.mubr.f32.gmra.mrb[0].mxu0 %v1163
    %v1165 = vpop.f32.mrb[0].mxu0
    %v1166 = vadd.f32 %v821, %v1165
    %v1167 = vpop.f32.mrb[0].mxu0
    %v1168 = vadd.f32 %v823, %v1167
    %1169 = vmatprep.mubr.f32.mxu0 0.0
    %v1170 = vand.u32 %v104, 4294901760
    %v1171 = vsub.f32 %v104, %v1170
    %1172 = vmatmul.mubr.f32.gmra.mrb[0].mxu0 %v1171
    %v1173 = vpop.f32.mrb[0].mxu0
    %v1174 = vadd.f32 %v828, %v1173
    %v1175 = vpop.f32.mrb[0].mxu0
    %v1176 = vadd.f32 %v830, %v1175
    %1177 = vmatprep.mubr.f32.mxu0 0.0
    %v1178 = vand.u32 %v107, 4294901760
    %v1179 = vsub.f32 %v107, %v1178
    %1180 = vmatmul.mubr.f32.gmra.mrb[0].mxu0 %v1179
    %v1181 = vpop.f32.mrb[0].mxu0
    %v1182 = vadd.f32 %v835, %v1181
    %v1183 = vpop.f32.mrb[0].mxu0
    %v1184 = vadd.f32 %v837, %v1183
    %1185 = vmatprep.mubr.f32.mxu0 0.0
    %v1186 = vand.u32 %v110, 4294901760
    %v1187 = vsub.f32 %v110, %v1186
    %1188 = vmatmul.mubr.f32.gmra.mrb[0].mxu0 %v1187
    %v1189 = vpop.f32.mrb[0].mxu0
    %v1190 = vadd.f32 %v842, %v1189
    %v1191 = vpop.f32.mrb[0].mxu0
    %v1192 = vadd.f32 %v844, %v1191
    %1193 = vmatprep.mubr.f32.mxu0 0.0
    %v1194 = vand.u32 %v113, 4294901760
    %v1195 = vsub.f32 %v113, %v1194
    %1196 = vmatmul.mubr.f32.gmra.mrb[0].mxu0 %v1195
    %v1197 = vpop.f32.mrb[0].mxu0
    %v1198 = vadd.f32 %v849, %v1197
    %v1199 = vpop.f32.mrb[0].mxu0
    %v1200 = vadd.f32 %v851, %v1199
    %1201 = vmatprep.mubr.f32.mxu0 0.0
    %v1202 = vand.u32 %v116, 4294901760
    %v1203 = vsub.f32 %v116, %v1202
    %1204 = vmatmul.mubr.f32.gmra.mrb[0].mxu0 %v1203
    %v1205 = vpop.f32.mrb[0].mxu0
    %v1206 = vadd.f32 %v856, %v1205
    %v1207 = vpop.f32.mrb[0].mxu0
    %v1208 = vadd.f32 %v858, %v1207
    %1209 = vmatprep.mubr.f32.mxu0 0.0
    %v1210 = vand.u32 %v119, 4294901760
    %v1211 = vsub.f32 %v119, %v1210
    %1212 = vmatmul.mubr.f32.gmra.mrb[0].mxu0 %v1211
    %v1213 = vpop.f32.mrb[0].mxu0
    %v1214 = vadd.f32 %v863, %v1213
    %v1215 = vpop.f32.mrb[0].mxu0
    %v1216 = vadd.f32 %v865, %v1215
    %1217 = vmatprep.mubr.f32.mxu0 0.0
    %v1218 = vand.u32 %v122, 4294901760
    %v1219 = vsub.f32 %v122, %v1218
    %1220 = vmatmul.mubr.f32.gmra.mrb[0].mxu0 %v1219
    %v1221 = vpop.f32.mrb[0].mxu0
    %v1222 = vadd.f32 %v870, %v1221
    %v1223 = vpop.f32.mrb[0].mxu0
    %v1224 = vadd.f32 %v872, %v1223
    %1225 = vmatprep.mubr.f32.mxu0 0.0
    %v1226 = vand.u32 %v125, 4294901760
    %v1227 = vsub.f32 %v125, %v1226
    %1228 = vmatmul.mubr.f32.gmra.mrb[0].mxu0 %v1227
    %v1229 = vpop.f32.mrb[0].mxu0
    %v1230 = vadd.f32 %v877, %v1229
    %v1231 = vpop.f32.mrb[0].mxu0
    %v1232 = vadd.f32 %v879, %v1231
    %1233 = vmatprep.mubr.f32.mxu0 0.0
    %v1234 = vand.u32 %v128, 4294901760
    %v1235 = vsub.f32 %v128, %v1234
    %1236 = vmatmul.mubr.f32.gmra.mrb[0].mxu0 %v1235
    %v1237 = vpop.f32.mrb[0].mxu0
    %v1238 = vadd.f32 %v884, %v1237
    %v1239 = vpop.f32.mrb[0].mxu0
    %v1240 = vadd.f32 %v886, %v1239
    %1241 = vmatprep.mubr.f32.mxu0 0.0
    %v1242 = vand.u32 %v131, 4294901760
    %v1243 = vsub.f32 %v131, %v1242
    %1244 = vmatmul.mubr.f32.gmra.mrb[0].mxu0 %v1243
    %v1245 = vpop.f32.mrb[0].mxu0
    %v1246 = vadd.f32 %v891, %v1245
    %v1247 = vpop.f32.mrb[0].mxu0
    %v1248 = vadd.f32 %v893, %v1247
    %1249 = vmatprep.mubr.f32.mxu0 0.0
    %v1250 = vand.u32 %v134, 4294901760
    %v1251 = vsub.f32 %v134, %v1250
    %1252 = vmatmul.mubr.f32.gmra.mrb[0].mxu0 %v1251
    %v1253 = vpop.f32.mrb[0].mxu0
    %v1254 = vadd.f32 %v898, %v1253
    %v1255 = vpop.f32.mrb[0].mxu0
    %v1256 = vadd.f32 %v900, %v1255
    %1257 = vmatprep.mubr.f32.mxu0 0.0
    %v1258 = vand.u32 %v137, 4294901760
    %v1259 = vsub.f32 %v137, %v1258
    %1260 = vmatmul.mubr.f32.gmra.mrb[0].mxu0 %v1259
    %v1261 = vpop.f32.mrb[0].mxu0
    %v1262 = vadd.f32 %v905, %v1261
    %v1263 = vpop.f32.mrb[0].mxu0
    %v1264 = vadd.f32 %v907, %v1263
    %1265 = vmatprep.mubr.f32.mxu0 0.0
    %v1266 = vand.u32 %v140, 4294901760
    %v1267 = vsub.f32 %v140, %v1266
    %1268 = vmatmul.mubr.f32.gmra.mrb[0].mxu0 %v1267
    %v1269 = vpop.f32.mrb[0].mxu0
    %v1270 = vadd.f32 %v912, %v1269
    %v1271 = vpop.f32.mrb[0].mxu0
    %v1272 = vadd.f32 %v914, %v1271
    %1273 = vmatprep.mubr.f32.mxu0 0.0
    %v1274 = vand.u32 %v143, 4294901760
    %v1275 = vsub.f32 %v143, %v1274
    %1276 = vmatmul.mubr.f32.gmra.mrb[0].mxu0 %v1275
    %v1277 = vpop.f32.mrb[0].mxu0
    %v1278 = vadd.f32 %v919, %v1277
    %v1279 = vpop.f32.mrb[0].mxu0
    %v1280 = vadd.f32 %v921, %v1279
    %1281 = vmatprep.mubr.f32.mxu0 0.0
    %v1282 = vand.u32 %v146, 4294901760
    %v1283 = vsub.f32 %v146, %v1282
    %1284 = vmatmul.mubr.f32.gmra.mrb[0].mxu0 %v1283
    %v1285 = vpop.f32.mrb[0].mxu0
    %v1286 = vadd.f32 %v926, %v1285
    %v1287 = vpop.f32.mrb[0].mxu0
    %v1288 = vadd.f32 %v928, %v1287
    %1289 = vmatprep.mubr.f32.mxu0 0.0
    %v1290 = vand.u32 %v149, 4294901760
    %v1291 = vsub.f32 %v149, %v1290
    %1292 = vmatmul.mubr.f32.gmra.mrb[0].mxu0 %v1291
    %v1293 = vpop.f32.mrb[0].mxu0
    %v1294 = vadd.f32 %v933, %v1293
    %v1295 = vpop.f32.mrb[0].mxu0
    %v1296 = vadd.f32 %v935, %v1295
    %1297 = vmatprep.mubr.f32.mxu0 0.0
    %v1298 = vand.u32 %v152, 4294901760
    %v1299 = vsub.f32 %v152, %v1298
    %1300 = vmatmul.mubr.f32.gmra.mrb[0].mxu0 %v1299
    %v1301 = vpop.f32.mrb[0].mxu0
    %v1302 = vadd.f32 %v940, %v1301
    %v1303 = vpop.f32.mrb[0].mxu0
    %v1304 = vadd.f32 %v942, %v1303
    %1305 = vmatprep.mubr.f32.mxu0 0.0
    %v1306 = vand.u32 %v155, 4294901760
    %v1307 = vsub.f32 %v155, %v1306
    %1308 = vmatmul.mubr.f32.gmra.mrb[0].mxu0 %v1307
    %v1309 = vpop.f32.mrb[0].mxu0
    %v1310 = vadd.f32 %v947, %v1309
    %v1311 = vpop.f32.mrb[0].mxu0
    %v1312 = vadd.f32 %v949, %v1311
    %1313 = vmatprep.mubr.f32.mxu0 0.0
    %v1314 = vand.u32 %v158, 4294901760
    %v1315 = vsub.f32 %v158, %v1314
    %1316 = vmatmul.mubr.f32.gmra.mrb[0].mxu0 %v1315
    %v1317 = vpop.f32.mrb[0].mxu0
    %v1318 = vadd.f32 %v954, %v1317
    %v1319 = vpop.f32.mrb[0].mxu0
    %v1320 = vadd.f32 %v956, %v1319
    %1321 = vmatprep.mubr.f32.mxu0 0.0
    %v1322 = vand.u32 %v161, 4294901760
    %v1323 = vsub.f32 %v161, %v1322
    %1324 = vmatmul.mubr.f32.gmra.mrb[0].mxu0 %v1323
    %v1325 = vpop.f32.mrb[0].mxu0
    %v1326 = vadd.f32 %v961, %v1325
    %v1327 = vpop.f32.mrb[0].mxu0
    %v1328 = vadd.f32 %v963, %v1327
    %1329 = vmatprep.mubr.f32.mxu0 0.0
    %v1330 = vand.u32 %v164, 4294901760
    %v1331 = vsub.f32 %v164, %v1330
    %1332 = vmatmul.mubr.f32.gmra.mrb[0].mxu0 %v1331
    %v1333 = vpop.f32.mrb[0].mxu0
    %v1334 = vadd.f32 %v968, %v1333
    %v1335 = vpop.f32.mrb[0].mxu0
    %v1336 = vadd.f32 %v970, %v1335
    %1337 = vmatprep.mubr.f32.mxu0 0.0
    %v1338 = vand.u32 %v167, 4294901760
    %v1339 = vsub.f32 %v167, %v1338
    %1340 = vmatmul.mubr.f32.gmra.mrb[0].mxu0 %v1339
    %v1341 = vpop.f32.mrb[0].mxu0
    %v1342 = vadd.f32 %v975, %v1341
    %v1343 = vpop.f32.mrb[0].mxu0
    %v1344 = vadd.f32 %v977, %v1343
    %1345 = vmatprep.mubr.f32.mxu0 0.0
    %v1346 = vand.u32 %v170, 4294901760
    %v1347 = vsub.f32 %v170, %v1346
    %1348 = vmatmul.mubr.f32.gmra.mrb[0].mxu0 %v1347
    %v1349 = vpop.f32.mrb[0].mxu0
    %v1350 = vadd.f32 %v982, %v1349
    %v1351 = vpop.f32.mrb[0].mxu0
    %v1352 = vadd.f32 %v984, %v1351
    %1353 = vmatprep.mubr.f32.mxu0 0.0
    %v1354 = vand.u32 %v173, 4294901760
    %v1355 = vsub.f32 %v173, %v1354
    %1356 = vmatmul.mubr.f32.gmra.mrb[0].mxu0 %v1355
    %v1357 = vpop.f32.mrb[0].mxu0
    %v1358 = vadd.f32 %v989, %v1357
    %v1359 = vpop.f32.mrb[0].mxu0
    %v1360 = vadd.f32 %v991, %v1359
    %1361 = vmatprep.mubr.f32.mxu0 0.0
    %v1362 = vand.u32 %v176, 4294901760
    %v1363 = vsub.f32 %v176, %v1362
    %1364 = vmatmul.mubr.f32.gmra.mrb[0].mxu0 %v1363
    %v1365 = vpop.f32.mrb[0].mxu0
    %v1366 = vadd.f32 %v996, %v1365
    %v1367 = vpop.f32.mrb[0].mxu0
    %v1368 = vadd.f32 %v998, %v1367
    %1369 = vmatprep.mubr.f32.mxu0 0.0
    %v1370 = vand.u32 %v179, 4294901760
    %v1371 = vsub.f32 %v179, %v1370
    %1372 = vmatmul.mubr.f32.gmra.mrb[0].mxu0 %v1371
    %v1373 = vpop.f32.mrb[0].mxu0
    %v1374 = vadd.f32 %v1003, %v1373
    %v1375 = vpop.f32.mrb[0].mxu0
    %v1376 = vadd.f32 %v1005, %v1375
    %1377 = vmatprep.mubr.f32.mxu0 0.0
    %v1378 = vand.u32 %v182, 4294901760
    %v1379 = vsub.f32 %v182, %v1378
    %1380 = vmatmul.mubr.f32.gmra.mrb[0].mxu0 %v1379
    %v1381 = vpop.f32.mrb[0].mxu0
    %v1382 = vadd.f32 %v1010, %v1381
    %v1383 = vpop.f32.mrb[0].mxu0
    %v1384 = vadd.f32 %v1012, %v1383
    %1385 = vmatprep.mubr.f32.mxu0 0.0
    %v1386 = vand.u32 %v185, 4294901760
    %v1387 = vsub.f32 %v185, %v1386
    %1388 = vmatmul.mubr.f32.gmra.mrb[0].mxu0 %v1387
    %v1389 = vpop.f32.mrb[0].mxu0
    %v1390 = vadd.f32 %v1017, %v1389
    %v1391 = vpop.f32.mrb[0].mxu0
    %v1392 = vadd.f32 %v1019, %v1391
    %1393 = vmatprep.mubr.f32.mxu0 0.0
    %v1394 = vand.u32 %v188, 4294901760
    %v1395 = vsub.f32 %v188, %v1394
    %1396 = vmatmul.mubr.f32.gmra.mrb[0].mxu0 %v1395
    %v1397 = vpop.f32.mrb[0].mxu0
    %v1398 = vadd.f32 %v1024, %v1397
    %v1399 = vpop.f32.mrb[0].mxu0
    %v1400 = vadd.f32 %v1026, %v1399
    %1401 = vmatprep.mubr.f32.mxu0 0.0
    %v1402 = vand.u32 %v191, 4294901760
    %v1403 = vsub.f32 %v191, %v1402
    %1404 = vmatmul.mubr.f32.gmra.mrb[0].mxu0 %v1403
    %v1405 = vpop.f32.mrb[0].mxu0
    %v1406 = vadd.f32 %v1031, %v1405
    %v1407 = vpop.f32.mrb[0].mxu0
    %v1408 = vadd.f32 %v1033, %v1407
    %1409 = vmatprep.mubr.f32.mxu0 0.0
    %v1410 = vand.u32 %v194, 4294901760
    %v1411 = vsub.f32 %v194, %v1410
    %1412 = vmatmul.mubr.f32.gmra.mrb[0].mxu0 %v1411
    %v1413 = vpop.f32.mrb[0].mxu0
    %v1414 = vadd.f32 %v1038, %v1413
    %v1415 = vpop.f32.mrb[0].mxu0
    %v1416 = vadd.f32 %v1040, %v1415
    %1417 = vmatprep.mubr.f32.mxu0 0.0
    %v1418 = vand.u32 %v197, 4294901760
    %v1419 = vsub.f32 %v197, %v1418
    %1420 = vmatmul.mubr.f32.gmra.mrb[0].mxu0 %v1419
    %v1421 = vpop.f32.mrb[0].mxu0
    %v1422 = vadd.f32 %v1045, %v1421
    %v1423 = vpop.f32.mrb[0].mxu0
    %v1424 = vadd.f32 %v1047, %v1423
    %1425 = vdwg.mxu0
    %v1426 = vand.u32 %v49, 4294901760
    %1427 = vmatprep.subr.mxu0 %v1426
    %v1428 = vand.u32 %v48, 4294901760
    %1429 = vmatpush1.msra.mxu0 %v1428
    %v1430 = vand.u32 %v56, 4294901760
    %1431 = vmatprep.subr.mxu0 %v1430
    %v1432 = vand.u32 %v55, 4294901760
    %1433 = vmatpush1.msra.mxu0 %v1432
    %v1434 = vand.u32 %v63, 4294901760
    %1435 = vmatprep.subr.mxu0 %v1434
    %v1436 = vand.u32 %v62, 4294901760
    %1437 = vmatpush1.msra.mxu0 %v1436
    %v1438 = vand.u32 %v70, 4294901760
    %1439 = vmatprep.subr.mxu0 %v1438
    %v1440 = vand.u32 %v69, 4294901760
    %1441 = vmatpush1.msra.mxu0 %v1440
    %v1442 = vand.u32 %v77, 4294901760
    %1443 = vmatprep.subr.mxu0 %v1442
    %v1444 = vand.u32 %v76, 4294901760
    %1445 = vmatpush1.msra.mxu0 %v1444
    %v1446 = vand.u32 %v84, 4294901760
    %1447 = vmatprep.subr.mxu0 %v1446
    %v1448 = vand.u32 %v83, 4294901760
    %1449 = vmatpush1.msra.mxu0 %v1448
    %1450 = vmatprep.subr.mxu0 0.0
    %1451 = vmatpush1.msra.mxu0 0.0
    %1452 = vmatprep.subr.mxu0 0.0
    %1453 = vmatpush1.msra.mxu0 0.0
    %1454 = vmatprep.subr.mxu0 0.0
    %1455 = vmatpush1.msra.mxu0 0.0
    %1456 = vmatprep.subr.mxu0 0.0
    %1457 = vmatpush1.msra.mxu0 0.0
    %1458 = vmatprep.subr.mxu0 0.0
    %1459 = vmatpush1.msra.mxu0 0.0
    %1460 = vmatprep.subr.mxu0 0.0
    %1461 = vmatpush1.msra.mxu0 0.0
    %1462 = vmatprep.subr.mxu0 0.0
    %1463 = vmatpush1.msra.mxu0 0.0
    %1464 = vmatprep.subr.mxu0 0.0
    %1465 = vmatpush1.msra.mxu0 0.0
    %1466 = vmatprep.subr.mxu0 0.0
    %1467 = vmatpush1.msra.mxu0 0.0
    %1468 = vmatprep.subr.mxu0 0.0
    %1469 = vmatpush1.msra.mxu0 0.0
    %1470 = vmatprep.subr.mxu0 0.0
    %1471 = vmatpush1.msra.mxu0 0.0
    %1472 = vmatprep.subr.mxu0 0.0
    %1473 = vmatpush1.msra.mxu0 0.0
    %1474 = vmatprep.subr.mxu0 0.0
    %1475 = vmatpush1.msra.mxu0 0.0
    %1476 = vmatprep.subr.mxu0 0.0
    %1477 = vmatpush1.msra.mxu0 0.0
    %1478 = vmatprep.subr.mxu0 0.0
    %1479 = vmatpush1.msra.mxu0 0.0
    %1480 = vmatprep.subr.mxu0 0.0
    %1481 = vmatpush1.msra.mxu0 0.0
    %1482 = vmatprep.subr.mxu0 0.0
    %1483 = vmatpush1.msra.mxu0 0.0
    %1484 = vmatprep.subr.mxu0 0.0
    %1485 = vmatpush1.msra.mxu0 0.0
    %1486 = vmatprep.subr.mxu0 0.0
    %1487 = vmatpush1.msra.mxu0 0.0
    %1488 = vmatprep.subr.mxu0 0.0
    %1489 = vmatpush1.msra.mxu0 0.0
    %1490 = vmatprep.subr.mxu0 0.0
    %1491 = vmatpush1.msra.mxu0 0.0
    %1492 = vmatprep.subr.mxu0 0.0
    %1493 = vmatpush1.msra.mxu0 0.0
    %1494 = vmatprep.subr.mxu0 0.0
    %1495 = vmatpush1.msra.mxu0 0.0
    %1496 = vmatprep.subr.mxu0 0.0
    %1497 = vmatpush1.msra.mxu0 0.0
    %1498 = vmatprep.subr.mxu0 0.0
    %1499 = vmatpush1.msra.mxu0 0.0
    %1500 = vmatprep.subr.mxu0 0.0
    %1501 = vmatpush1.msra.mxu0 0.0
    %1502 = vmatprep.mubr.f32.mxu0 0.0
    %v1503 = vand.u32 %v92, 4294901760
    %v1504 = vsub.f32 %v92, %v1503
    %v1505 = vand.u32 %v1504, 4294901760
    %1506 = vmatmul.mubr.f32.gmra.mrb[0].mxu0 %v1505
    %v1507 = vpop.f32.mrb[0].mxu0
    %v1508 = vadd.f32 %v1142, %v1507
    %v1509 = vpop.f32.mrb[0].mxu0
    %v1510 = vadd.f32 %v1144, %v1509
    %1511 = vmatprep.mubr.f32.mxu0 0.0
    %v1512 = vand.u32 %v95, 4294901760
    %v1513 = vsub.f32 %v95, %v1512
    %v1514 = vand.u32 %v1513, 4294901760
    %1515 = vmatmul.mubr.f32.gmra.mrb[0].mxu0 %v1514
    %v1516 = vpop.f32.mrb[0].mxu0
    %v1517 = vadd.f32 %v1150, %v1516
    %v1518 = vpop.f32.mrb[0].mxu0
    %v1519 = vadd.f32 %v1152, %v1518
    %1520 = vmatprep.mubr.f32.mxu0 0.0
    %v1521 = vand.u32 %v98, 4294901760
    %v1522 = vsub.f32 %v98, %v1521
    %v1523 = vand.u32 %v1522, 4294901760
    %1524 = vmatmul.mubr.f32.gmra.mrb[0].mxu0 %v1523
    %v1525 = vpop.f32.mrb[0].mxu0
    %v1526 = vadd.f32 %v1158, %v1525
    %v1527 = vpop.f32.mrb[0].mxu0
    %v1528 = vadd.f32 %v1160, %v1527
    %1529 = vmatprep.mubr.f32.mxu0 0.0
    %v1530 = vand.u32 %v101, 4294901760
    %v1531 = vsub.f32 %v101, %v1530
    %v1532 = vand.u32 %v1531, 4294901760
    %1533 = vmatmul.mubr.f32.gmra.mrb[0].mxu0 %v1532
    %v1534 = vpop.f32.mrb[0].mxu0
    %v1535 = vadd.f32 %v1166, %v1534
    %v1536 = vpop.f32.mrb[0].mxu0
    %v1537 = vadd.f32 %v1168, %v1536
    %1538 = vmatprep.mubr.f32.mxu0 0.0
    %v1539 = vand.u32 %v104, 4294901760
    %v1540 = vsub.f32 %v104, %v1539
    %v1541 = vand.u32 %v1540, 4294901760
    %1542 = vmatmul.mubr.f32.gmra.mrb[0].mxu0 %v1541
    %v1543 = vpop.f32.mrb[0].mxu0
    %v1544 = vadd.f32 %v1174, %v1543
    %v1545 = vpop.f32.mrb[0].mxu0
    %v1546 = vadd.f32 %v1176, %v1545
    %1547 = vmatprep.mubr.f32.mxu0 0.0
    %v1548 = vand.u32 %v107, 4294901760
    %v1549 = vsub.f32 %v107, %v1548
    %v1550 = vand.u32 %v1549, 4294901760
    %1551 = vmatmul.mubr.f32.gmra.mrb[0].mxu0 %v1550
    %v1552 = vpop.f32.mrb[0].mxu0
    %v1553 = vadd.f32 %v1182, %v1552
    %v1554 = vpop.f32.mrb[0].mxu0
    %v1555 = vadd.f32 %v1184, %v1554
    %1556 = vmatprep.mubr.f32.mxu0 0.0
    %v1557 = vand.u32 %v110, 4294901760
    %v1558 = vsub.f32 %v110, %v1557
    %v1559 = vand.u32 %v1558, 4294901760
    %1560 = vmatmul.mubr.f32.gmra.mrb[0].mxu0 %v1559
    %v1561 = vpop.f32.mrb[0].mxu0
    %v1562 = vadd.f32 %v1190, %v1561
    %v1563 = vpop.f32.mrb[0].mxu0
    %v1564 = vadd.f32 %v1192, %v1563
    %1565 = vmatprep.mubr.f32.mxu0 0.0
    %v1566 = vand.u32 %v113, 4294901760
    %v1567 = vsub.f32 %v113, %v1566
    %v1568 = vand.u32 %v1567, 4294901760
    %1569 = vmatmul.mubr.f32.gmra.mrb[0].mxu0 %v1568
    %v1570 = vpop.f32.mrb[0].mxu0
    %v1571 = vadd.f32 %v1198, %v1570
    %v1572 = vpop.f32.mrb[0].mxu0
    %v1573 = vadd.f32 %v1200, %v1572
    %1574 = vmatprep.mubr.f32.mxu0 0.0
    %v1575 = vand.u32 %v116, 4294901760
    %v1576 = vsub.f32 %v116, %v1575
    %v1577 = vand.u32 %v1576, 4294901760
    %1578 = vmatmul.mubr.f32.gmra.mrb[0].mxu0 %v1577
    %v1579 = vpop.f32.mrb[0].mxu0
    %v1580 = vadd.f32 %v1206, %v1579
    %v1581 = vpop.f32.mrb[0].mxu0
    %v1582 = vadd.f32 %v1208, %v1581
    %1583 = vmatprep.mubr.f32.mxu0 0.0
    %v1584 = vand.u32 %v119, 4294901760
    %v1585 = vsub.f32 %v119, %v1584
    %v1586 = vand.u32 %v1585, 4294901760
    %1587 = vmatmul.mubr.f32.gmra.mrb[0].mxu0 %v1586
    %v1588 = vpop.f32.mrb[0].mxu0
    %v1589 = vadd.f32 %v1214, %v1588
    %v1590 = vpop.f32.mrb[0].mxu0
    %v1591 = vadd.f32 %v1216, %v1590
    %1592 = vmatprep.mubr.f32.mxu0 0.0
    %v1593 = vand.u32 %v122, 4294901760
    %v1594 = vsub.f32 %v122, %v1593
    %v1595 = vand.u32 %v1594, 4294901760
    %1596 = vmatmul.mubr.f32.gmra.mrb[0].mxu0 %v1595
    %v1597 = vpop.f32.mrb[0].mxu0
    %v1598 = vadd.f32 %v1222, %v1597
    %v1599 = vpop.f32.mrb[0].mxu0
    %v1600 = vadd.f32 %v1224, %v1599
    %1601 = vmatprep.mubr.f32.mxu0 0.0
    %v1602 = vand.u32 %v125, 4294901760
    %v1603 = vsub.f32 %v125, %v1602
    %v1604 = vand.u32 %v1603, 4294901760
    %1605 = vmatmul.mubr.f32.gmra.mrb[0].mxu0 %v1604
    %v1606 = vpop.f32.mrb[0].mxu0
    %v1607 = vadd.f32 %v1230, %v1606
    %v1608 = vpop.f32.mrb[0].mxu0
    %v1609 = vadd.f32 %v1232, %v1608
    %1610 = vmatprep.mubr.f32.mxu0 0.0
    %v1611 = vand.u32 %v128, 4294901760
    %v1612 = vsub.f32 %v128, %v1611
    %v1613 = vand.u32 %v1612, 4294901760
    %1614 = vmatmul.mubr.f32.gmra.mrb[0].mxu0 %v1613
    %v1615 = vpop.f32.mrb[0].mxu0
    %v1616 = vadd.f32 %v1238, %v1615
    %v1617 = vpop.f32.mrb[0].mxu0
    %v1618 = vadd.f32 %v1240, %v1617
    %1619 = vmatprep.mubr.f32.mxu0 0.0
    %v1620 = vand.u32 %v131, 4294901760
    %v1621 = vsub.f32 %v131, %v1620
    %v1622 = vand.u32 %v1621, 4294901760
    %1623 = vmatmul.mubr.f32.gmra.mrb[0].mxu0 %v1622
    %v1624 = vpop.f32.mrb[0].mxu0
    %v1625 = vadd.f32 %v1246, %v1624
    %v1626 = vpop.f32.mrb[0].mxu0
    %v1627 = vadd.f32 %v1248, %v1626
    %1628 = vmatprep.mubr.f32.mxu0 0.0
    %v1629 = vand.u32 %v134, 4294901760
    %v1630 = vsub.f32 %v134, %v1629
    %v1631 = vand.u32 %v1630, 4294901760
    %1632 = vmatmul.mubr.f32.gmra.mrb[0].mxu0 %v1631
    %v1633 = vpop.f32.mrb[0].mxu0
    %v1634 = vadd.f32 %v1254, %v1633
    %v1635 = vpop.f32.mrb[0].mxu0
    %v1636 = vadd.f32 %v1256, %v1635
    %1637 = vmatprep.mubr.f32.mxu0 0.0
    %v1638 = vand.u32 %v137, 4294901760
    %v1639 = vsub.f32 %v137, %v1638
    %v1640 = vand.u32 %v1639, 4294901760
    %1641 = vmatmul.mubr.f32.gmra.mrb[0].mxu0 %v1640
    %v1642 = vpop.f32.mrb[0].mxu0
    %v1643 = vadd.f32 %v1262, %v1642
    %v1644 = vpop.f32.mrb[0].mxu0
    %v1645 = vadd.f32 %v1264, %v1644
    %1646 = vmatprep.mubr.f32.mxu0 0.0
    %v1647 = vand.u32 %v140, 4294901760
    %v1648 = vsub.f32 %v140, %v1647
    %v1649 = vand.u32 %v1648, 4294901760
    %1650 = vmatmul.mubr.f32.gmra.mrb[0].mxu0 %v1649
    %v1651 = vpop.f32.mrb[0].mxu0
    %v1652 = vadd.f32 %v1270, %v1651
    %v1653 = vpop.f32.mrb[0].mxu0
    %v1654 = vadd.f32 %v1272, %v1653
    %1655 = vmatprep.mubr.f32.mxu0 0.0
    %v1656 = vand.u32 %v143, 4294901760
    %v1657 = vsub.f32 %v143, %v1656
    %v1658 = vand.u32 %v1657, 4294901760
    %1659 = vmatmul.mubr.f32.gmra.mrb[0].mxu0 %v1658
    %v1660 = vpop.f32.mrb[0].mxu0
    %v1661 = vadd.f32 %v1278, %v1660
    %v1662 = vpop.f32.mrb[0].mxu0
    %v1663 = vadd.f32 %v1280, %v1662
    %1664 = vmatprep.mubr.f32.mxu0 0.0
    %v1665 = vand.u32 %v146, 4294901760
    %v1666 = vsub.f32 %v146, %v1665
    %v1667 = vand.u32 %v1666, 4294901760
    %1668 = vmatmul.mubr.f32.gmra.mrb[0].mxu0 %v1667
    %v1669 = vpop.f32.mrb[0].mxu0
    %v1670 = vadd.f32 %v1286, %v1669
    %v1671 = vpop.f32.mrb[0].mxu0
    %v1672 = vadd.f32 %v1288, %v1671
    %1673 = vmatprep.mubr.f32.mxu0 0.0
    %v1674 = vand.u32 %v149, 4294901760
    %v1675 = vsub.f32 %v149, %v1674
    %v1676 = vand.u32 %v1675, 4294901760
    %1677 = vmatmul.mubr.f32.gmra.mrb[0].mxu0 %v1676
    %v1678 = vpop.f32.mrb[0].mxu0
    %v1679 = vadd.f32 %v1294, %v1678
    %v1680 = vpop.f32.mrb[0].mxu0
    %v1681 = vadd.f32 %v1296, %v1680
    %1682 = vmatprep.mubr.f32.mxu0 0.0
    %v1683 = vand.u32 %v152, 4294901760
    %v1684 = vsub.f32 %v152, %v1683
    %v1685 = vand.u32 %v1684, 4294901760
    %1686 = vmatmul.mubr.f32.gmra.mrb[0].mxu0 %v1685
    %v1687 = vpop.f32.mrb[0].mxu0
    %v1688 = vadd.f32 %v1302, %v1687
    %v1689 = vpop.f32.mrb[0].mxu0
    %v1690 = vadd.f32 %v1304, %v1689
    %1691 = vmatprep.mubr.f32.mxu0 0.0
    %v1692 = vand.u32 %v155, 4294901760
    %v1693 = vsub.f32 %v155, %v1692
    %v1694 = vand.u32 %v1693, 4294901760
    %1695 = vmatmul.mubr.f32.gmra.mrb[0].mxu0 %v1694
    %v1696 = vpop.f32.mrb[0].mxu0
    %v1697 = vadd.f32 %v1310, %v1696
    %v1698 = vpop.f32.mrb[0].mxu0
    %v1699 = vadd.f32 %v1312, %v1698
    %1700 = vmatprep.mubr.f32.mxu0 0.0
    %v1701 = vand.u32 %v158, 4294901760
    %v1702 = vsub.f32 %v158, %v1701
    %v1703 = vand.u32 %v1702, 4294901760
    %1704 = vmatmul.mubr.f32.gmra.mrb[0].mxu0 %v1703
    %v1705 = vpop.f32.mrb[0].mxu0
    %v1706 = vadd.f32 %v1318, %v1705
    %v1707 = vpop.f32.mrb[0].mxu0
    %v1708 = vadd.f32 %v1320, %v1707
    %1709 = vmatprep.mubr.f32.mxu0 0.0
    %v1710 = vand.u32 %v161, 4294901760
    %v1711 = vsub.f32 %v161, %v1710
    %v1712 = vand.u32 %v1711, 4294901760
    %1713 = vmatmul.mubr.f32.gmra.mrb[0].mxu0 %v1712
    %v1714 = vpop.f32.mrb[0].mxu0
    %v1715 = vadd.f32 %v1326, %v1714
    %v1716 = vpop.f32.mrb[0].mxu0
    %v1717 = vadd.f32 %v1328, %v1716
    %1718 = vmatprep.mubr.f32.mxu0 0.0
    %v1719 = vand.u32 %v164, 4294901760
    %v1720 = vsub.f32 %v164, %v1719
    %v1721 = vand.u32 %v1720, 4294901760
    %1722 = vmatmul.mubr.f32.gmra.mrb[0].mxu0 %v1721
    %v1723 = vpop.f32.mrb[0].mxu0
    %v1724 = vadd.f32 %v1334, %v1723
    %v1725 = vpop.f32.mrb[0].mxu0
    %v1726 = vadd.f32 %v1336, %v1725
    %1727 = vmatprep.mubr.f32.mxu0 0.0
    %v1728 = vand.u32 %v167, 4294901760
    %v1729 = vsub.f32 %v167, %v1728
    %v1730 = vand.u32 %v1729, 4294901760
    %1731 = vmatmul.mubr.f32.gmra.mrb[0].mxu0 %v1730
    %v1732 = vpop.f32.mrb[0].mxu0
    %v1733 = vadd.f32 %v1342, %v1732
    %v1734 = vpop.f32.mrb[0].mxu0
    %v1735 = vadd.f32 %v1344, %v1734
    %1736 = vmatprep.mubr.f32.mxu0 0.0
    %v1737 = vand.u32 %v170, 4294901760
    %v1738 = vsub.f32 %v170, %v1737
    %v1739 = vand.u32 %v1738, 4294901760
    %1740 = vmatmul.mubr.f32.gmra.mrb[0].mxu0 %v1739
    %v1741 = vpop.f32.mrb[0].mxu0
    %v1742 = vadd.f32 %v1350, %v1741
    %v1743 = vpop.f32.mrb[0].mxu0
    %v1744 = vadd.f32 %v1352, %v1743
    %1745 = vmatprep.mubr.f32.mxu0 0.0
    %v1746 = vand.u32 %v173, 4294901760
    %v1747 = vsub.f32 %v173, %v1746
    %v1748 = vand.u32 %v1747, 4294901760
    %1749 = vmatmul.mubr.f32.gmra.mrb[0].mxu0 %v1748
    %v1750 = vpop.f32.mrb[0].mxu0
    %v1751 = vadd.f32 %v1358, %v1750
    %v1752 = vpop.f32.mrb[0].mxu0
    %v1753 = vadd.f32 %v1360, %v1752
    %1754 = vmatprep.mubr.f32.mxu0 0.0
    %v1755 = vand.u32 %v176, 4294901760
    %v1756 = vsub.f32 %v176, %v1755
    %v1757 = vand.u32 %v1756, 4294901760
    %1758 = vmatmul.mubr.f32.gmra.mrb[0].mxu0 %v1757
    %v1759 = vpop.f32.mrb[0].mxu0
    %v1760 = vadd.f32 %v1366, %v1759
    %v1761 = vpop.f32.mrb[0].mxu0
    %v1762 = vadd.f32 %v1368, %v1761
    %1763 = vmatprep.mubr.f32.mxu0 0.0
    %v1764 = vand.u32 %v179, 4294901760
    %v1765 = vsub.f32 %v179, %v1764
    %v1766 = vand.u32 %v1765, 4294901760
    %1767 = vmatmul.mubr.f32.gmra.mrb[0].mxu0 %v1766
    %v1768 = vpop.f32.mrb[0].mxu0
    %v1769 = vadd.f32 %v1374, %v1768
    %v1770 = vpop.f32.mrb[0].mxu0
    %v1771 = vadd.f32 %v1376, %v1770
    %1772 = vmatprep.mubr.f32.mxu0 0.0
    %v1773 = vand.u32 %v182, 4294901760
    %v1774 = vsub.f32 %v182, %v1773
    %v1775 = vand.u32 %v1774, 4294901760
    %1776 = vmatmul.mubr.f32.gmra.mrb[0].mxu0 %v1775
    %v1777 = vpop.f32.mrb[0].mxu0
    %v1778 = vadd.f32 %v1382, %v1777
    %v1779 = vpop.f32.mrb[0].mxu0
    %v1780 = vadd.f32 %v1384, %v1779
    %1781 = vmatprep.mubr.f32.mxu0 0.0
    %v1782 = vand.u32 %v185, 4294901760
    %v1783 = vsub.f32 %v185, %v1782
    %v1784 = vand.u32 %v1783, 4294901760
    %1785 = vmatmul.mubr.f32.gmra.mrb[0].mxu0 %v1784
    %v1786 = vpop.f32.mrb[0].mxu0
    %v1787 = vadd.f32 %v1390, %v1786
    %v1788 = vpop.f32.mrb[0].mxu0
    %v1789 = vadd.f32 %v1392, %v1788
    %1790 = vmatprep.mubr.f32.mxu0 0.0
    %v1791 = vand.u32 %v188, 4294901760
    %v1792 = vsub.f32 %v188, %v1791
    %v1793 = vand.u32 %v1792, 4294901760
    %1794 = vmatmul.mubr.f32.gmra.mrb[0].mxu0 %v1793
    %v1795 = vpop.f32.mrb[0].mxu0
    %v1796 = vadd.f32 %v1398, %v1795
    %v1797 = vpop.f32.mrb[0].mxu0
    %v1798 = vadd.f32 %v1400, %v1797
    %1799 = vmatprep.mubr.f32.mxu0 0.0
    %v1800 = vand.u32 %v191, 4294901760
    %v1801 = vsub.f32 %v191, %v1800
    %v1802 = vand.u32 %v1801, 4294901760
    %1803 = vmatmul.mubr.f32.gmra.mrb[0].mxu0 %v1802
    %v1804 = vpop.f32.mrb[0].mxu0
    %v1805 = vadd.f32 %v1406, %v1804
    %v1806 = vpop.f32.mrb[0].mxu0
    %v1807 = vadd.f32 %v1408, %v1806
    %1808 = vmatprep.mubr.f32.mxu0 0.0
    %v1809 = vand.u32 %v194, 4294901760
    %v1810 = vsub.f32 %v194, %v1809
    %v1811 = vand.u32 %v1810, 4294901760
    %1812 = vmatmul.mubr.f32.gmra.mrb[0].mxu0 %v1811
    %v1813 = vpop.f32.mrb[0].mxu0
    %v1814 = vadd.f32 %v1414, %v1813
    %v1815 = vpop.f32.mrb[0].mxu0
    %v1816 = vadd.f32 %v1416, %v1815
    %1817 = vmatprep.mubr.f32.mxu0 0.0
    %v1818 = vand.u32 %v197, 4294901760
    %v1819 = vsub.f32 %v197, %v1818
    %v1820 = vand.u32 %v1819, 4294901760
    %1821 = vmatmul.mubr.f32.gmra.mrb[0].mxu0 %v1820
    %v1822 = vpop.f32.mrb[0].mxu0
    %v1823 = vadd.f32 %v1422, %v1822
    %v1824 = vpop.f32.mrb[0].mxu0
    %v1825 = vadd.f32 %v1424, %v1824
    %1826 = vdwg.mxu0
    %v1827 = vand.u32 %v49, 4294901760
    %v1828 = vsub.f32 %v49, %v1827
    %v1829 = vand.u32 %v1828, 4294901760
    %1830 = vmatprep.subr.mxu0 %v1829
    %v1831 = vand.u32 %v48, 4294901760
    %v1832 = vsub.f32 %v48, %v1831
    %v1833 = vand.u32 %v1832, 4294901760
    %1834 = vmatpush1.msra.mxu0 %v1833
    %v1835 = vand.u32 %v56, 4294901760
    %v1836 = vsub.f32 %v56, %v1835
    %v1837 = vand.u32 %v1836, 4294901760
    %1838 = vmatprep.subr.mxu0 %v1837
    %v1839 = vand.u32 %v55, 4294901760
    %v1840 = vsub.f32 %v55, %v1839
    %v1841 = vand.u32 %v1840, 4294901760
    %1842 = vmatpush1.msra.mxu0 %v1841
    %v1843 = vand.u32 %v63, 4294901760
    %v1844 = vsub.f32 %v63, %v1843
    %v1845 = vand.u32 %v1844, 4294901760
    %1846 = vmatprep.subr.mxu0 %v1845
    %v1847 = vand.u32 %v62, 4294901760
    %v1848 = vsub.f32 %v62, %v1847
    %v1849 = vand.u32 %v1848, 4294901760
    %1850 = vmatpush1.msra.mxu0 %v1849
    %v1851 = vand.u32 %v70, 4294901760
    %v1852 = vsub.f32 %v70, %v1851
    %v1853 = vand.u32 %v1852, 4294901760
    %1854 = vmatprep.subr.mxu0 %v1853
    %v1855 = vand.u32 %v69, 4294901760
    %v1856 = vsub.f32 %v69, %v1855
    %v1857 = vand.u32 %v1856, 4294901760
    %1858 = vmatpush1.msra.mxu0 %v1857
    %v1859 = vand.u32 %v77, 4294901760
    %v1860 = vsub.f32 %v77, %v1859
    %v1861 = vand.u32 %v1860, 4294901760
    %1862 = vmatprep.subr.mxu0 %v1861
    %v1863 = vand.u32 %v76, 4294901760
    %v1864 = vsub.f32 %v76, %v1863
    %v1865 = vand.u32 %v1864, 4294901760
    %1866 = vmatpush1.msra.mxu0 %v1865
    %v1867 = vand.u32 %v84, 4294901760
    %v1868 = vsub.f32 %v84, %v1867
    %v1869 = vand.u32 %v1868, 4294901760
    %1870 = vmatprep.subr.mxu0 %v1869
    %v1871 = vand.u32 %v83, 4294901760
    %v1872 = vsub.f32 %v83, %v1871
    %v1873 = vand.u32 %v1872, 4294901760
    %1874 = vmatpush1.msra.mxu0 %v1873
    %1875 = vmatprep.subr.mxu0 0.0
    %1876 = vmatpush1.msra.mxu0 0.0
    %1877 = vmatprep.subr.mxu0 0.0
    %1878 = vmatpush1.msra.mxu0 0.0
    %1879 = vmatprep.subr.mxu0 0.0
    %1880 = vmatpush1.msra.mxu0 0.0
    %1881 = vmatprep.subr.mxu0 0.0
    %1882 = vmatpush1.msra.mxu0 0.0
    %1883 = vmatprep.subr.mxu0 0.0
    %1884 = vmatpush1.msra.mxu0 0.0
    %1885 = vmatprep.subr.mxu0 0.0
    %1886 = vmatpush1.msra.mxu0 0.0
    %1887 = vmatprep.subr.mxu0 0.0
    %1888 = vmatpush1.msra.mxu0 0.0
    %1889 = vmatprep.subr.mxu0 0.0
    %1890 = vmatpush1.msra.mxu0 0.0
    %1891 = vmatprep.subr.mxu0 0.0
    %1892 = vmatpush1.msra.mxu0 0.0
    %1893 = vmatprep.subr.mxu0 0.0
    %1894 = vmatpush1.msra.mxu0 0.0
    %1895 = vmatprep.subr.mxu0 0.0
    %1896 = vmatpush1.msra.mxu0 0.0
    %1897 = vmatprep.subr.mxu0 0.0
    %1898 = vmatpush1.msra.mxu0 0.0
    %1899 = vmatprep.subr.mxu0 0.0
    %1900 = vmatpush1.msra.mxu0 0.0
    %1901 = vmatprep.subr.mxu0 0.0
    %1902 = vmatpush1.msra.mxu0 0.0
    %1903 = vmatprep.subr.mxu0 0.0
    %1904 = vmatpush1.msra.mxu0 0.0
    %1905 = vmatprep.subr.mxu0 0.0
    %1906 = vmatpush1.msra.mxu0 0.0
    %1907 = vmatprep.subr.mxu0 0.0
    %1908 = vmatpush1.msra.mxu0 0.0
    %1909 = vmatprep.subr.mxu0 0.0
    %1910 = vmatpush1.msra.mxu0 0.0
    %1911 = vmatprep.subr.mxu0 0.0
    %1912 = vmatpush1.msra.mxu0 0.0
    %1913 = vmatprep.subr.mxu0 0.0
    %1914 = vmatpush1.msra.mxu0 0.0
    %1915 = vmatprep.subr.mxu0 0.0
    %1916 = vmatpush1.msra.mxu0 0.0
    %1917 = vmatprep.subr.mxu0 0.0
    %1918 = vmatpush1.msra.mxu0 0.0
    %1919 = vmatprep.subr.mxu0 0.0
    %1920 = vmatpush1.msra.mxu0 0.0
    %1921 = vmatprep.subr.mxu0 0.0
    %1922 = vmatpush1.msra.mxu0 0.0
    %1923 = vmatprep.subr.mxu0 0.0
    %1924 = vmatpush1.msra.mxu0 0.0
    %1925 = vmatprep.subr.mxu0 0.0
    %1926 = vmatpush1.msra.mxu0 0.0
    %1927 = vmatprep.mubr.f32.mxu0 0.0
    %v1928 = vand.u32 %v92, 4294901760
    %1929 = vmatmul.mubr.f32.gmra.mrb[0].mxu0 %v1928
    %v1930 = vpop.f32.mrb[0].mxu0
    %v1931 = vadd.f32 %v1508, %v1930
    %v1932 = vpop.f32.mrb[0].mxu0
    %v1933 = vadd.f32 %v1510, %v1932
    %1934 = vmatprep.mubr.f32.mxu0 0.0
    %v1935 = vand.u32 %v95, 4294901760
    %1936 = vmatmul.mubr.f32.gmra.mrb[0].mxu0 %v1935
    %v1937 = vpop.f32.mrb[0].mxu0
    %v1938 = vadd.f32 %v1517, %v1937
    %v1939 = vpop.f32.mrb[0].mxu0
    %v1940 = vadd.f32 %v1519, %v1939
    %1941 = vmatprep.mubr.f32.mxu0 0.0
    %v1942 = vand.u32 %v98, 4294901760
    %1943 = vmatmul.mubr.f32.gmra.mrb[0].mxu0 %v1942
    %v1944 = vpop.f32.mrb[0].mxu0
    %v1945 = vadd.f32 %v1526, %v1944
    %v1946 = vpop.f32.mrb[0].mxu0
    %v1947 = vadd.f32 %v1528, %v1946
    %1948 = vmatprep.mubr.f32.mxu0 0.0
    %v1949 = vand.u32 %v101, 4294901760
    %1950 = vmatmul.mubr.f32.gmra.mrb[0].mxu0 %v1949
    %v1951 = vpop.f32.mrb[0].mxu0
    %v1952 = vadd.f32 %v1535, %v1951
    %v1953 = vpop.f32.mrb[0].mxu0
    %v1954 = vadd.f32 %v1537, %v1953
    %1955 = vmatprep.mubr.f32.mxu0 0.0
    %v1956 = vand.u32 %v104, 4294901760
    %1957 = vmatmul.mubr.f32.gmra.mrb[0].mxu0 %v1956
    %v1958 = vpop.f32.mrb[0].mxu0
    %v1959 = vadd.f32 %v1544, %v1958
    %v1960 = vpop.f32.mrb[0].mxu0
    %v1961 = vadd.f32 %v1546, %v1960
    %1962 = vmatprep.mubr.f32.mxu0 0.0
    %v1963 = vand.u32 %v107, 4294901760
    %1964 = vmatmul.mubr.f32.gmra.mrb[0].mxu0 %v1963
    %v1965 = vpop.f32.mrb[0].mxu0
    %v1966 = vadd.f32 %v1553, %v1965
    %v1967 = vpop.f32.mrb[0].mxu0
    %v1968 = vadd.f32 %v1555, %v1967
    %1969 = vmatprep.mubr.f32.mxu0 0.0
    %v1970 = vand.u32 %v110, 4294901760
    %1971 = vmatmul.mubr.f32.gmra.mrb[0].mxu0 %v1970
    %v1972 = vpop.f32.mrb[0].mxu0
    %v1973 = vadd.f32 %v1562, %v1972
    %v1974 = vpop.f32.mrb[0].mxu0
    %v1975 = vadd.f32 %v1564, %v1974
    %1976 = vmatprep.mubr.f32.mxu0 0.0
    %v1977 = vand.u32 %v113, 4294901760
    %1978 = vmatmul.mubr.f32.gmra.mrb[0].mxu0 %v1977
    %v1979 = vpop.f32.mrb[0].mxu0
    %v1980 = vadd.f32 %v1571, %v1979
    %v1981 = vpop.f32.mrb[0].mxu0
    %v1982 = vadd.f32 %v1573, %v1981
    %1983 = vmatprep.mubr.f32.mxu0 0.0
    %v1984 = vand.u32 %v116, 4294901760
    %1985 = vmatmul.mubr.f32.gmra.mrb[0].mxu0 %v1984
    %v1986 = vpop.f32.mrb[0].mxu0
    %v1987 = vadd.f32 %v1580, %v1986
    %v1988 = vpop.f32.mrb[0].mxu0
    %v1989 = vadd.f32 %v1582, %v1988
    %1990 = vmatprep.mubr.f32.mxu0 0.0
    %v1991 = vand.u32 %v119, 4294901760
    %1992 = vmatmul.mubr.f32.gmra.mrb[0].mxu0 %v1991
    %v1993 = vpop.f32.mrb[0].mxu0
    %v1994 = vadd.f32 %v1589, %v1993
    %v1995 = vpop.f32.mrb[0].mxu0
    %v1996 = vadd.f32 %v1591, %v1995
    %1997 = vmatprep.mubr.f32.mxu0 0.0
    %v1998 = vand.u32 %v122, 4294901760
    %1999 = vmatmul.mubr.f32.gmra.mrb[0].mxu0 %v1998
    %v2000 = vpop.f32.mrb[0].mxu0
    %v2001 = vadd.f32 %v1598, %v2000
    %v2002 = vpop.f32.mrb[0].mxu0
    %v2003 = vadd.f32 %v1600, %v2002
    %2004 = vmatprep.mubr.f32.mxu0 0.0
    %v2005 = vand.u32 %v125, 4294901760
    %2006 = vmatmul.mubr.f32.gmra.mrb[0].mxu0 %v2005
    %v2007 = vpop.f32.mrb[0].mxu0
    %v2008 = vadd.f32 %v1607, %v2007
    %v2009 = vpop.f32.mrb[0].mxu0
    %v2010 = vadd.f32 %v1609, %v2009
    %2011 = vmatprep.mubr.f32.mxu0 0.0
    %v2012 = vand.u32 %v128, 4294901760
    %2013 = vmatmul.mubr.f32.gmra.mrb[0].mxu0 %v2012
    %v2014 = vpop.f32.mrb[0].mxu0
    %v2015 = vadd.f32 %v1616, %v2014
    %v2016 = vpop.f32.mrb[0].mxu0
    %v2017 = vadd.f32 %v1618, %v2016
    %2018 = vmatprep.mubr.f32.mxu0 0.0
    %v2019 = vand.u32 %v131, 4294901760
    %2020 = vmatmul.mubr.f32.gmra.mrb[0].mxu0 %v2019
    %v2021 = vpop.f32.mrb[0].mxu0
    %v2022 = vadd.f32 %v1625, %v2021
    %v2023 = vpop.f32.mrb[0].mxu0
    %v2024 = vadd.f32 %v1627, %v2023
    %2025 = vmatprep.mubr.f32.mxu0 0.0
    %v2026 = vand.u32 %v134, 4294901760
    %2027 = vmatmul.mubr.f32.gmra.mrb[0].mxu0 %v2026
    %v2028 = vpop.f32.mrb[0].mxu0
    %v2029 = vadd.f32 %v1634, %v2028
    %v2030 = vpop.f32.mrb[0].mxu0
    %v2031 = vadd.f32 %v1636, %v2030
    %2032 = vmatprep.mubr.f32.mxu0 0.0
    %v2033 = vand.u32 %v137, 4294901760
    %2034 = vmatmul.mubr.f32.gmra.mrb[0].mxu0 %v2033
    %v2035 = vpop.f32.mrb[0].mxu0
    %v2036 = vadd.f32 %v1643, %v2035
    %v2037 = vpop.f32.mrb[0].mxu0
    %v2038 = vadd.f32 %v1645, %v2037
    %2039 = vmatprep.mubr.f32.mxu0 0.0
    %v2040 = vand.u32 %v140, 4294901760
    %2041 = vmatmul.mubr.f32.gmra.mrb[0].mxu0 %v2040
    %v2042 = vpop.f32.mrb[0].mxu0
    %v2043 = vadd.f32 %v1652, %v2042
    %v2044 = vpop.f32.mrb[0].mxu0
    %v2045 = vadd.f32 %v1654, %v2044
    %2046 = vmatprep.mubr.f32.mxu0 0.0
    %v2047 = vand.u32 %v143, 4294901760
    %2048 = vmatmul.mubr.f32.gmra.mrb[0].mxu0 %v2047
    %v2049 = vpop.f32.mrb[0].mxu0
    %v2050 = vadd.f32 %v1661, %v2049
    %v2051 = vpop.f32.mrb[0].mxu0
    %v2052 = vadd.f32 %v1663, %v2051
    %2053 = vmatprep.mubr.f32.mxu0 0.0
    %v2054 = vand.u32 %v146, 4294901760
    %2055 = vmatmul.mubr.f32.gmra.mrb[0].mxu0 %v2054
    %v2056 = vpop.f32.mrb[0].mxu0
    %v2057 = vadd.f32 %v1670, %v2056
    %v2058 = vpop.f32.mrb[0].mxu0
    %v2059 = vadd.f32 %v1672, %v2058
    %2060 = vmatprep.mubr.f32.mxu0 0.0
    %v2061 = vand.u32 %v149, 4294901760
    %2062 = vmatmul.mubr.f32.gmra.mrb[0].mxu0 %v2061
    %v2063 = vpop.f32.mrb[0].mxu0
    %v2064 = vadd.f32 %v1679, %v2063
    %v2065 = vpop.f32.mrb[0].mxu0
    %v2066 = vadd.f32 %v1681, %v2065
    %2067 = vmatprep.mubr.f32.mxu0 0.0
    %v2068 = vand.u32 %v152, 4294901760
    %2069 = vmatmul.mubr.f32.gmra.mrb[0].mxu0 %v2068
    %v2070 = vpop.f32.mrb[0].mxu0
    %v2071 = vadd.f32 %v1688, %v2070
    %v2072 = vpop.f32.mrb[0].mxu0
    %v2073 = vadd.f32 %v1690, %v2072
    %2074 = vmatprep.mubr.f32.mxu0 0.0
    %v2075 = vand.u32 %v155, 4294901760
    %2076 = vmatmul.mubr.f32.gmra.mrb[0].mxu0 %v2075
    %v2077 = vpop.f32.mrb[0].mxu0
    %v2078 = vadd.f32 %v1697, %v2077
    %v2079 = vpop.f32.mrb[0].mxu0
    %v2080 = vadd.f32 %v1699, %v2079
    %2081 = vmatprep.mubr.f32.mxu0 0.0
    %v2082 = vand.u32 %v158, 4294901760
    %2083 = vmatmul.mubr.f32.gmra.mrb[0].mxu0 %v2082
    %v2084 = vpop.f32.mrb[0].mxu0
    %v2085 = vadd.f32 %v1706, %v2084
    %v2086 = vpop.f32.mrb[0].mxu0
    %v2087 = vadd.f32 %v1708, %v2086
    %2088 = vmatprep.mubr.f32.mxu0 0.0
    %v2089 = vand.u32 %v161, 4294901760
    %2090 = vmatmul.mubr.f32.gmra.mrb[0].mxu0 %v2089
    %v2091 = vpop.f32.mrb[0].mxu0
    %v2092 = vadd.f32 %v1715, %v2091
    %v2093 = vpop.f32.mrb[0].mxu0
    %v2094 = vadd.f32 %v1717, %v2093
    %2095 = vmatprep.mubr.f32.mxu0 0.0
    %v2096 = vand.u32 %v164, 4294901760
    %2097 = vmatmul.mubr.f32.gmra.mrb[0].mxu0 %v2096
    %v2098 = vpop.f32.mrb[0].mxu0
    %v2099 = vadd.f32 %v1724, %v2098
    %v2100 = vpop.f32.mrb[0].mxu0
    %v2101 = vadd.f32 %v1726, %v2100
    %2102 = vmatprep.mubr.f32.mxu0 0.0
    %v2103 = vand.u32 %v167, 4294901760
    %2104 = vmatmul.mubr.f32.gmra.mrb[0].mxu0 %v2103
    %v2105 = vpop.f32.mrb[0].mxu0
    %v2106 = vadd.f32 %v1733, %v2105
    %v2107 = vpop.f32.mrb[0].mxu0
    %v2108 = vadd.f32 %v1735, %v2107
    %2109 = vmatprep.mubr.f32.mxu0 0.0
    %v2110 = vand.u32 %v170, 4294901760
    %2111 = vmatmul.mubr.f32.gmra.mrb[0].mxu0 %v2110
    %v2112 = vpop.f32.mrb[0].mxu0
    %v2113 = vadd.f32 %v1742, %v2112
    %v2114 = vpop.f32.mrb[0].mxu0
    %v2115 = vadd.f32 %v1744, %v2114
    %2116 = vmatprep.mubr.f32.mxu0 0.0
    %v2117 = vand.u32 %v173, 4294901760
    %2118 = vmatmul.mubr.f32.gmra.mrb[0].mxu0 %v2117
    %v2119 = vpop.f32.mrb[0].mxu0
    %v2120 = vadd.f32 %v1751, %v2119
    %v2121 = vpop.f32.mrb[0].mxu0
    %v2122 = vadd.f32 %v1753, %v2121
    %2123 = vmatprep.mubr.f32.mxu0 0.0
    %v2124 = vand.u32 %v176, 4294901760
    %2125 = vmatmul.mubr.f32.gmra.mrb[0].mxu0 %v2124
    %v2126 = vpop.f32.mrb[0].mxu0
    %v2127 = vadd.f32 %v1760, %v2126
    %v2128 = vpop.f32.mrb[0].mxu0
    %v2129 = vadd.f32 %v1762, %v2128
    %2130 = vmatprep.mubr.f32.mxu0 0.0
    %v2131 = vand.u32 %v179, 4294901760
    %2132 = vmatmul.mubr.f32.gmra.mrb[0].mxu0 %v2131
    %v2133 = vpop.f32.mrb[0].mxu0
    %v2134 = vadd.f32 %v1769, %v2133
    %v2135 = vpop.f32.mrb[0].mxu0
    %v2136 = vadd.f32 %v1771, %v2135
    %2137 = vmatprep.mubr.f32.mxu0 0.0
    %v2138 = vand.u32 %v182, 4294901760
    %2139 = vmatmul.mubr.f32.gmra.mrb[0].mxu0 %v2138
    %v2140 = vpop.f32.mrb[0].mxu0
    %v2141 = vadd.f32 %v1778, %v2140
    %v2142 = vpop.f32.mrb[0].mxu0
    %v2143 = vadd.f32 %v1780, %v2142
    %2144 = vmatprep.mubr.f32.mxu0 0.0
    %v2145 = vand.u32 %v185, 4294901760
    %2146 = vmatmul.mubr.f32.gmra.mrb[0].mxu0 %v2145
    %v2147 = vpop.f32.mrb[0].mxu0
    %v2148 = vadd.f32 %v1787, %v2147
    %v2149 = vpop.f32.mrb[0].mxu0
    %v2150 = vadd.f32 %v1789, %v2149
    %2151 = vmatprep.mubr.f32.mxu0 0.0
    %v2152 = vand.u32 %v188, 4294901760
    %2153 = vmatmul.mubr.f32.gmra.mrb[0].mxu0 %v2152
    %v2154 = vpop.f32.mrb[0].mxu0
    %v2155 = vadd.f32 %v1796, %v2154
    %v2156 = vpop.f32.mrb[0].mxu0
    %v2157 = vadd.f32 %v1798, %v2156
    %2158 = vmatprep.mubr.f32.mxu0 0.0
    %v2159 = vand.u32 %v191, 4294901760
    %2160 = vmatmul.mubr.f32.gmra.mrb[0].mxu0 %v2159
    %v2161 = vpop.f32.mrb[0].mxu0
    %v2162 = vadd.f32 %v1805, %v2161
    %v2163 = vpop.f32.mrb[0].mxu0
    %v2164 = vadd.f32 %v1807, %v2163
    %2165 = vmatprep.mubr.f32.mxu0 0.0
    %v2166 = vand.u32 %v194, 4294901760
    %2167 = vmatmul.mubr.f32.gmra.mrb[0].mxu0 %v2166
    %v2168 = vpop.f32.mrb[0].mxu0
    %v2169 = vadd.f32 %v1814, %v2168
    %v2170 = vpop.f32.mrb[0].mxu0
    %v2171 = vadd.f32 %v1816, %v2170
    %2172 = vmatprep.mubr.f32.mxu0 0.0
    %v2173 = vand.u32 %v197, 4294901760
    %2174 = vmatmul.mubr.f32.gmra.mrb[0].mxu0 %v2173
    %v2175 = vpop.f32.mrb[0].mxu0
    %v2176 = vadd.f32 %v1823, %v2175
    %v2177 = vpop.f32.mrb[0].mxu0
    %v2178 = vadd.f32 %v1825, %v2177
    %2179 = vdwg.mxu0
    %v2180 = vand.u32 %v49, 4294901760
    %2181 = vmatprep.subr.mxu0 %v2180
    %v2182 = vand.u32 %v48, 4294901760
    %2183 = vmatpush1.msra.mxu0 %v2182
    %v2184 = vand.u32 %v56, 4294901760
    %2185 = vmatprep.subr.mxu0 %v2184
    %v2186 = vand.u32 %v55, 4294901760
    %2187 = vmatpush1.msra.mxu0 %v2186
    %v2188 = vand.u32 %v63, 4294901760
    %2189 = vmatprep.subr.mxu0 %v2188
    %v2190 = vand.u32 %v62, 4294901760
    %2191 = vmatpush1.msra.mxu0 %v2190
    %v2192 = vand.u32 %v70, 4294901760
    %2193 = vmatprep.subr.mxu0 %v2192
    %v2194 = vand.u32 %v69, 4294901760
    %2195 = vmatpush1.msra.mxu0 %v2194
    %v2196 = vand.u32 %v77, 4294901760
    %2197 = vmatprep.subr.mxu0 %v2196
    %v2198 = vand.u32 %v76, 4294901760
    %2199 = vmatpush1.msra.mxu0 %v2198
    %v2200 = vand.u32 %v84, 4294901760
    %2201 = vmatprep.subr.mxu0 %v2200
    %v2202 = vand.u32 %v83, 4294901760
    %2203 = vmatpush1.msra.mxu0 %v2202
    %2204 = vmatprep.subr.mxu0 0.0
    %2205 = vmatpush1.msra.mxu0 0.0
    %2206 = vmatprep.subr.mxu0 0.0
    %2207 = vmatpush1.msra.mxu0 0.0
    %2208 = vmatprep.subr.mxu0 0.0
    %2209 = vmatpush1.msra.mxu0 0.0
    %2210 = vmatprep.subr.mxu0 0.0
    %2211 = vmatpush1.msra.mxu0 0.0
    %2212 = vmatprep.subr.mxu0 0.0
    %2213 = vmatpush1.msra.mxu0 0.0
    %2214 = vmatprep.subr.mxu0 0.0
    %2215 = vmatpush1.msra.mxu0 0.0
    %2216 = vmatprep.subr.mxu0 0.0
    %2217 = vmatpush1.msra.mxu0 0.0
    %2218 = vmatprep.subr.mxu0 0.0
    %2219 = vmatpush1.msra.mxu0 0.0
    %2220 = vmatprep.subr.mxu0 0.0
    %2221 = vmatpush1.msra.mxu0 0.0
    %2222 = vmatprep.subr.mxu0 0.0
    %2223 = vmatpush1.msra.mxu0 0.0
    %2224 = vmatprep.subr.mxu0 0.0
    %2225 = vmatpush1.msra.mxu0 0.0
    %2226 = vmatprep.subr.mxu0 0.0
    %2227 = vmatpush1.msra.mxu0 0.0
    %2228 = vmatprep.subr.mxu0 0.0
    %2229 = vmatpush1.msra.mxu0 0.0
    %2230 = vmatprep.subr.mxu0 0.0
    %2231 = vmatpush1.msra.mxu0 0.0
    %2232 = vmatprep.subr.mxu0 0.0
    %2233 = vmatpush1.msra.mxu0 0.0
    %2234 = vmatprep.subr.mxu0 0.0
    %2235 = vmatpush1.msra.mxu0 0.0
    %2236 = vmatprep.subr.mxu0 0.0
    %2237 = vmatpush1.msra.mxu0 0.0
    %2238 = vmatprep.subr.mxu0 0.0
    %2239 = vmatpush1.msra.mxu0 0.0
    %2240 = vmatprep.subr.mxu0 0.0
    %2241 = vmatpush1.msra.mxu0 0.0
    %2242 = vmatprep.subr.mxu0 0.0
    %2243 = vmatpush1.msra.mxu0 0.0
    %2244 = vmatprep.subr.mxu0 0.0
    %2245 = vmatpush1.msra.mxu0 0.0
    %2246 = vmatprep.subr.mxu0 0.0
    %2247 = vmatpush1.msra.mxu0 0.0
    %2248 = vmatprep.subr.mxu0 0.0
    %2249 = vmatpush1.msra.mxu0 0.0
    %2250 = vmatprep.subr.mxu0 0.0
    %2251 = vmatpush1.msra.mxu0 0.0
    %2252 = vmatprep.subr.mxu0 0.0
    %2253 = vmatpush1.msra.mxu0 0.0
    %2254 = vmatprep.subr.mxu0 0.0
    %2255 = vmatpush1.msra.mxu0 0.0
    %2256 = vmatprep.mubr.f32.mxu0 0.0
    %v2257 = vand.u32 %v92, 4294901760
    %2258 = vmatmul.mubr.f32.gmra.mrb[0].mxu0 %v2257
    %v2259 = vpop.f32.mrb[0].mxu0
    %v2260 = vadd.f32 %v1931, %v2259
    %v2261 = vpop.f32.mrb[0].mxu0
    %v2262 = vadd.f32 %v1933, %v2261
    %2263 = vmatprep.mubr.f32.mxu0 0.0
    %v2264 = vand.u32 %v95, 4294901760
    %2265 = vmatmul.mubr.f32.gmra.mrb[0].mxu0 %v2264
    %v2266 = vpop.f32.mrb[0].mxu0
    %v2267 = vadd.f32 %v1938, %v2266
    %v2268 = vpop.f32.mrb[0].mxu0
    %v2269 = vadd.f32 %v1940, %v2268
    %2270 = vmatprep.mubr.f32.mxu0 0.0
    %v2271 = vand.u32 %v98, 4294901760
    %2272 = vmatmul.mubr.f32.gmra.mrb[0].mxu0 %v2271
    %v2273 = vpop.f32.mrb[0].mxu0
    %v2274 = vadd.f32 %v1945, %v2273
    %v2275 = vpop.f32.mrb[0].mxu0
    %v2276 = vadd.f32 %v1947, %v2275
    %2277 = vmatprep.mubr.f32.mxu0 0.0
    %v2278 = vand.u32 %v101, 4294901760
    %2279 = vmatmul.mubr.f32.gmra.mrb[0].mxu0 %v2278
    %v2280 = vpop.f32.mrb[0].mxu0
    %v2281 = vadd.f32 %v1952, %v2280
    %v2282 = vpop.f32.mrb[0].mxu0
    %v2283 = vadd.f32 %v1954, %v2282
    %2284 = vmatprep.mubr.f32.mxu0 0.0
    %v2285 = vand.u32 %v104, 4294901760
    %2286 = vmatmul.mubr.f32.gmra.mrb[0].mxu0 %v2285
    %v2287 = vpop.f32.mrb[0].mxu0
    %v2288 = vadd.f32 %v1959, %v2287
    %v2289 = vpop.f32.mrb[0].mxu0
    %v2290 = vadd.f32 %v1961, %v2289
    %2291 = vmatprep.mubr.f32.mxu0 0.0
    %v2292 = vand.u32 %v107, 4294901760
    %2293 = vmatmul.mubr.f32.gmra.mrb[0].mxu0 %v2292
    %v2294 = vpop.f32.mrb[0].mxu0
    %v2295 = vadd.f32 %v1966, %v2294
    %v2296 = vpop.f32.mrb[0].mxu0
    %v2297 = vadd.f32 %v1968, %v2296
    %2298 = vmatprep.mubr.f32.mxu0 0.0
    %v2299 = vand.u32 %v110, 4294901760
    %2300 = vmatmul.mubr.f32.gmra.mrb[0].mxu0 %v2299
    %v2301 = vpop.f32.mrb[0].mxu0
    %v2302 = vadd.f32 %v1973, %v2301
    %v2303 = vpop.f32.mrb[0].mxu0
    %v2304 = vadd.f32 %v1975, %v2303
    %2305 = vmatprep.mubr.f32.mxu0 0.0
    %v2306 = vand.u32 %v113, 4294901760
    %2307 = vmatmul.mubr.f32.gmra.mrb[0].mxu0 %v2306
    %v2308 = vpop.f32.mrb[0].mxu0
    %v2309 = vadd.f32 %v1980, %v2308
    %v2310 = vpop.f32.mrb[0].mxu0
    %v2311 = vadd.f32 %v1982, %v2310
    %2312 = vmatprep.mubr.f32.mxu0 0.0
    %v2313 = vand.u32 %v116, 4294901760
    %2314 = vmatmul.mubr.f32.gmra.mrb[0].mxu0 %v2313
    %v2315 = vpop.f32.mrb[0].mxu0
    %v2316 = vadd.f32 %v1987, %v2315
    %v2317 = vpop.f32.mrb[0].mxu0
    %v2318 = vadd.f32 %v1989, %v2317
    %2319 = vmatprep.mubr.f32.mxu0 0.0
    %v2320 = vand.u32 %v119, 4294901760
    %2321 = vmatmul.mubr.f32.gmra.mrb[0].mxu0 %v2320
    %v2322 = vpop.f32.mrb[0].mxu0
    %v2323 = vadd.f32 %v1994, %v2322
    %v2324 = vpop.f32.mrb[0].mxu0
    %v2325 = vadd.f32 %v1996, %v2324
    %2326 = vmatprep.mubr.f32.mxu0 0.0
    %v2327 = vand.u32 %v122, 4294901760
    %2328 = vmatmul.mubr.f32.gmra.mrb[0].mxu0 %v2327
    %v2329 = vpop.f32.mrb[0].mxu0
    %v2330 = vadd.f32 %v2001, %v2329
    %v2331 = vpop.f32.mrb[0].mxu0
    %v2332 = vadd.f32 %v2003, %v2331
    %2333 = vmatprep.mubr.f32.mxu0 0.0
    %v2334 = vand.u32 %v125, 4294901760
    %2335 = vmatmul.mubr.f32.gmra.mrb[0].mxu0 %v2334
    %v2336 = vpop.f32.mrb[0].mxu0
    %v2337 = vadd.f32 %v2008, %v2336
    %v2338 = vpop.f32.mrb[0].mxu0
    %v2339 = vadd.f32 %v2010, %v2338
    %2340 = vmatprep.mubr.f32.mxu0 0.0
    %v2341 = vand.u32 %v128, 4294901760
    %2342 = vmatmul.mubr.f32.gmra.mrb[0].mxu0 %v2341
    %v2343 = vpop.f32.mrb[0].mxu0
    %v2344 = vadd.f32 %v2015, %v2343
    %v2345 = vpop.f32.mrb[0].mxu0
    %v2346 = vadd.f32 %v2017, %v2345
    %2347 = vmatprep.mubr.f32.mxu0 0.0
    %v2348 = vand.u32 %v131, 4294901760
    %2349 = vmatmul.mubr.f32.gmra.mrb[0].mxu0 %v2348
    %v2350 = vpop.f32.mrb[0].mxu0
    %v2351 = vadd.f32 %v2022, %v2350
    %v2352 = vpop.f32.mrb[0].mxu0
    %v2353 = vadd.f32 %v2024, %v2352
    %2354 = vmatprep.mubr.f32.mxu0 0.0
    %v2355 = vand.u32 %v134, 4294901760
    %2356 = vmatmul.mubr.f32.gmra.mrb[0].mxu0 %v2355
    %v2357 = vpop.f32.mrb[0].mxu0
    %v2358 = vadd.f32 %v2029, %v2357
    %v2359 = vpop.f32.mrb[0].mxu0
    %v2360 = vadd.f32 %v2031, %v2359
    %2361 = vmatprep.mubr.f32.mxu0 0.0
    %v2362 = vand.u32 %v137, 4294901760
    %2363 = vmatmul.mubr.f32.gmra.mrb[0].mxu0 %v2362
    %v2364 = vpop.f32.mrb[0].mxu0
    %v2365 = vadd.f32 %v2036, %v2364
    %v2366 = vpop.f32.mrb[0].mxu0
    %v2367 = vadd.f32 %v2038, %v2366
    %2368 = vmatprep.mubr.f32.mxu0 0.0
    %v2369 = vand.u32 %v140, 4294901760
    %2370 = vmatmul.mubr.f32.gmra.mrb[0].mxu0 %v2369
    %v2371 = vpop.f32.mrb[0].mxu0
    %v2372 = vadd.f32 %v2043, %v2371
    %v2373 = vpop.f32.mrb[0].mxu0
    %v2374 = vadd.f32 %v2045, %v2373
    %2375 = vmatprep.mubr.f32.mxu0 0.0
    %v2376 = vand.u32 %v143, 4294901760
    %2377 = vmatmul.mubr.f32.gmra.mrb[0].mxu0 %v2376
    %v2378 = vpop.f32.mrb[0].mxu0
    %v2379 = vadd.f32 %v2050, %v2378
    %v2380 = vpop.f32.mrb[0].mxu0
    %v2381 = vadd.f32 %v2052, %v2380
    %2382 = vmatprep.mubr.f32.mxu0 0.0
    %v2383 = vand.u32 %v146, 4294901760
    %2384 = vmatmul.mubr.f32.gmra.mrb[0].mxu0 %v2383
    %v2385 = vpop.f32.mrb[0].mxu0
    %v2386 = vadd.f32 %v2057, %v2385
    %v2387 = vpop.f32.mrb[0].mxu0
    %v2388 = vadd.f32 %v2059, %v2387
    %2389 = vmatprep.mubr.f32.mxu0 0.0
    %v2390 = vand.u32 %v149, 4294901760
    %2391 = vmatmul.mubr.f32.gmra.mrb[0].mxu0 %v2390
    %v2392 = vpop.f32.mrb[0].mxu0
    %v2393 = vadd.f32 %v2064, %v2392
    %v2394 = vpop.f32.mrb[0].mxu0
    %v2395 = vadd.f32 %v2066, %v2394
    %2396 = vmatprep.mubr.f32.mxu0 0.0
    %v2397 = vand.u32 %v152, 4294901760
    %2398 = vmatmul.mubr.f32.gmra.mrb[0].mxu0 %v2397
    %v2399 = vpop.f32.mrb[0].mxu0
    %v2400 = vadd.f32 %v2071, %v2399
    %v2401 = vpop.f32.mrb[0].mxu0
    %v2402 = vadd.f32 %v2073, %v2401
    %2403 = vmatprep.mubr.f32.mxu0 0.0
    %v2404 = vand.u32 %v155, 4294901760
    %2405 = vmatmul.mubr.f32.gmra.mrb[0].mxu0 %v2404
    %v2406 = vpop.f32.mrb[0].mxu0
    %v2407 = vadd.f32 %v2078, %v2406
    %v2408 = vpop.f32.mrb[0].mxu0
    %v2409 = vadd.f32 %v2080, %v2408
    %2410 = vmatprep.mubr.f32.mxu0 0.0
    %v2411 = vand.u32 %v158, 4294901760
    %2412 = vmatmul.mubr.f32.gmra.mrb[0].mxu0 %v2411
    %v2413 = vpop.f32.mrb[0].mxu0
    %v2414 = vadd.f32 %v2085, %v2413
    %v2415 = vpop.f32.mrb[0].mxu0
    %v2416 = vadd.f32 %v2087, %v2415
    %2417 = vmatprep.mubr.f32.mxu0 0.0
    %v2418 = vand.u32 %v161, 4294901760
    %2419 = vmatmul.mubr.f32.gmra.mrb[0].mxu0 %v2418
    %v2420 = vpop.f32.mrb[0].mxu0
    %v2421 = vadd.f32 %v2092, %v2420
    %v2422 = vpop.f32.mrb[0].mxu0
    %v2423 = vadd.f32 %v2094, %v2422
    %2424 = vmatprep.mubr.f32.mxu0 0.0
    %v2425 = vand.u32 %v164, 4294901760
    %2426 = vmatmul.mubr.f32.gmra.mrb[0].mxu0 %v2425
    %v2427 = vpop.f32.mrb[0].mxu0
    %v2428 = vadd.f32 %v2099, %v2427
    %v2429 = vpop.f32.mrb[0].mxu0
    %v2430 = vadd.f32 %v2101, %v2429
    %2431 = vmatprep.mubr.f32.mxu0 0.0
    %v2432 = vand.u32 %v167, 4294901760
    %2433 = vmatmul.mubr.f32.gmra.mrb[0].mxu0 %v2432
    %v2434 = vpop.f32.mrb[0].mxu0
    %v2435 = vadd.f32 %v2106, %v2434
    %v2436 = vpop.f32.mrb[0].mxu0
    %v2437 = vadd.f32 %v2108, %v2436
    %2438 = vmatprep.mubr.f32.mxu0 0.0
    %v2439 = vand.u32 %v170, 4294901760
    %2440 = vmatmul.mubr.f32.gmra.mrb[0].mxu0 %v2439
    %v2441 = vpop.f32.mrb[0].mxu0
    %v2442 = vadd.f32 %v2113, %v2441
    %v2443 = vpop.f32.mrb[0].mxu0
    %v2444 = vadd.f32 %v2115, %v2443
    %2445 = vmatprep.mubr.f32.mxu0 0.0
    %v2446 = vand.u32 %v173, 4294901760
    %2447 = vmatmul.mubr.f32.gmra.mrb[0].mxu0 %v2446
    %v2448 = vpop.f32.mrb[0].mxu0
    %v2449 = vadd.f32 %v2120, %v2448
    %v2450 = vpop.f32.mrb[0].mxu0
    %v2451 = vadd.f32 %v2122, %v2450
    %2452 = vmatprep.mubr.f32.mxu0 0.0
    %v2453 = vand.u32 %v176, 4294901760
    %2454 = vmatmul.mubr.f32.gmra.mrb[0].mxu0 %v2453
    %v2455 = vpop.f32.mrb[0].mxu0
    %v2456 = vadd.f32 %v2127, %v2455
    %v2457 = vpop.f32.mrb[0].mxu0
    %v2458 = vadd.f32 %v2129, %v2457
    %2459 = vmatprep.mubr.f32.mxu0 0.0
    %v2460 = vand.u32 %v179, 4294901760
    %2461 = vmatmul.mubr.f32.gmra.mrb[0].mxu0 %v2460
    %v2462 = vpop.f32.mrb[0].mxu0
    %v2463 = vadd.f32 %v2134, %v2462
    %v2464 = vpop.f32.mrb[0].mxu0
    %v2465 = vadd.f32 %v2136, %v2464
    %2466 = vmatprep.mubr.f32.mxu0 0.0
    %v2467 = vand.u32 %v182, 4294901760
    %2468 = vmatmul.mubr.f32.gmra.mrb[0].mxu0 %v2467
    %v2469 = vpop.f32.mrb[0].mxu0
    %v2470 = vadd.f32 %v2141, %v2469
    %v2471 = vpop.f32.mrb[0].mxu0
    %v2472 = vadd.f32 %v2143, %v2471
    %2473 = vmatprep.mubr.f32.mxu0 0.0
    %v2474 = vand.u32 %v185, 4294901760
    %2475 = vmatmul.mubr.f32.gmra.mrb[0].mxu0 %v2474
    %v2476 = vpop.f32.mrb[0].mxu0
    %v2477 = vadd.f32 %v2148, %v2476
    %v2478 = vpop.f32.mrb[0].mxu0
    %v2479 = vadd.f32 %v2150, %v2478
    %2480 = vmatprep.mubr.f32.mxu0 0.0
    %v2481 = vand.u32 %v188, 4294901760
    %2482 = vmatmul.mubr.f32.gmra.mrb[0].mxu0 %v2481
    %v2483 = vpop.f32.mrb[0].mxu0
    %v2484 = vadd.f32 %v2155, %v2483
    %v2485 = vpop.f32.mrb[0].mxu0
    %v2486 = vadd.f32 %v2157, %v2485
    %2487 = vmatprep.mubr.f32.mxu0 0.0
    %v2488 = vand.u32 %v191, 4294901760
    %2489 = vmatmul.mubr.f32.gmra.mrb[0].mxu0 %v2488
    %v2490 = vpop.f32.mrb[0].mxu0
    %v2491 = vadd.f32 %v2162, %v2490
    %v2492 = vpop.f32.mrb[0].mxu0
    %v2493 = vadd.f32 %v2164, %v2492
    %2494 = vmatprep.mubr.f32.mxu0 0.0
    %v2495 = vand.u32 %v194, 4294901760
    %2496 = vmatmul.mubr.f32.gmra.mrb[0].mxu0 %v2495
    %v2497 = vpop.f32.mrb[0].mxu0
    %v2498 = vadd.f32 %v2169, %v2497
    %v2499 = vpop.f32.mrb[0].mxu0
    %v2500 = vadd.f32 %v2171, %v2499
    %2501 = vmatprep.mubr.f32.mxu0 0.0
    %v2502 = vand.u32 %v197, 4294901760
    %2503 = vmatmul.mubr.f32.gmra.mrb[0].mxu0 %v2502
    %v2504 = vpop.f32.mrb[0].mxu0
    %v2505 = vadd.f32 %v2176, %v2504
    %v2506 = vpop.f32.mrb[0].mxu0
    %v2507 = vadd.f32 %v2178, %v2506
    %2508 = vdwg.mxu0
    %v2509 = vand.u32 %v51, 4294901760
    %2510 = vmatprep.subr.mxu0 %v2509
    %v2511 = vand.u32 %v50, 4294901760
    %2512 = vmatpush1.msra.mxu0 %v2511
    %v2513 = vand.u32 %v58, 4294901760
    %2514 = vmatprep.subr.mxu0 %v2513
    %v2515 = vand.u32 %v57, 4294901760
    %2516 = vmatpush1.msra.mxu0 %v2515
    %v2517 = vand.u32 %v65, 4294901760
    %2518 = vmatprep.subr.mxu0 %v2517
    %v2519 = vand.u32 %v64, 4294901760
    %2520 = vmatpush1.msra.mxu0 %v2519
    %v2521 = vand.u32 %v72, 4294901760
    %2522 = vmatprep.subr.mxu0 %v2521
    %v2523 = vand.u32 %v71, 4294901760
    %2524 = vmatpush1.msra.mxu0 %v2523
    %v2525 = vand.u32 %v79, 4294901760
    %2526 = vmatprep.subr.mxu0 %v2525
    %v2527 = vand.u32 %v78, 4294901760
    %2528 = vmatpush1.msra.mxu0 %v2527
    %v2529 = vand.u32 %v86, 4294901760
    %2530 = vmatprep.subr.mxu0 %v2529
    %v2531 = vand.u32 %v85, 4294901760
    %2532 = vmatpush1.msra.mxu0 %v2531
    %2533 = vmatprep.subr.mxu0 0.0
    %2534 = vmatpush1.msra.mxu0 0.0
    %2535 = vmatprep.subr.mxu0 0.0
    %2536 = vmatpush1.msra.mxu0 0.0
    %2537 = vmatprep.subr.mxu0 0.0
    %2538 = vmatpush1.msra.mxu0 0.0
    %2539 = vmatprep.subr.mxu0 0.0
    %2540 = vmatpush1.msra.mxu0 0.0
    %2541 = vmatprep.subr.mxu0 0.0
    %2542 = vmatpush1.msra.mxu0 0.0
    %2543 = vmatprep.subr.mxu0 0.0
    %2544 = vmatpush1.msra.mxu0 0.0
    %2545 = vmatprep.subr.mxu0 0.0
    %2546 = vmatpush1.msra.mxu0 0.0
    %2547 = vmatprep.subr.mxu0 0.0
    %2548 = vmatpush1.msra.mxu0 0.0
    %2549 = vmatprep.subr.mxu0 0.0
    %2550 = vmatpush1.msra.mxu0 0.0
    %2551 = vmatprep.subr.mxu0 0.0
    %2552 = vmatpush1.msra.mxu0 0.0
    %2553 = vmatprep.subr.mxu0 0.0
    %2554 = vmatpush1.msra.mxu0 0.0
    %2555 = vmatprep.subr.mxu0 0.0
    %2556 = vmatpush1.msra.mxu0 0.0
    %2557 = vmatprep.subr.mxu0 0.0
    %2558 = vmatpush1.msra.mxu0 0.0
    %2559 = vmatprep.subr.mxu0 0.0
    %2560 = vmatpush1.msra.mxu0 0.0
    %2561 = vmatprep.subr.mxu0 0.0
    %2562 = vmatpush1.msra.mxu0 0.0
    %2563 = vmatprep.subr.mxu0 0.0
    %2564 = vmatpush1.msra.mxu0 0.0
    %2565 = vmatprep.subr.mxu0 0.0
    %2566 = vmatpush1.msra.mxu0 0.0
    %2567 = vmatprep.subr.mxu0 0.0
    %2568 = vmatpush1.msra.mxu0 0.0
    %2569 = vmatprep.subr.mxu0 0.0
    %2570 = vmatpush1.msra.mxu0 0.0
    %2571 = vmatprep.subr.mxu0 0.0
    %2572 = vmatpush1.msra.mxu0 0.0
    %2573 = vmatprep.subr.mxu0 0.0
    %2574 = vmatpush1.msra.mxu0 0.0
    %2575 = vmatprep.subr.mxu0 0.0
    %2576 = vmatpush1.msra.mxu0 0.0
    %2577 = vmatprep.subr.mxu0 0.0
    %2578 = vmatpush1.msra.mxu0 0.0
    %2579 = vmatprep.subr.mxu0 0.0
    %2580 = vmatpush1.msra.mxu0 0.0
    %2581 = vmatprep.subr.mxu0 0.0
    %2582 = vmatpush1.msra.mxu0 0.0
    %2583 = vmatprep.subr.mxu0 0.0
    %2584 = vmatpush1.msra.mxu0 0.0
    %2585 = vmatprep.mubr.f32.mxu0 0.0
    %v2586 = vand.u32 %v92, 4294901760
    %v2587 = vsub.f32 %v92, %v2586
    %v2588 = vand.u32 %v2587, 4294901760
    %v2589 = vsub.f32 %v2587, %v2588
    %v2590 = vand.u32 %v2589, 4294901760
    %2591 = vmatmul.mubr.f32.gmra.mrb[0].mxu0 %v2590
    %v2592 = vpop.f32.mrb[0].mxu0
    %v2593 = vadd.f32 0.0, %v2592
    %v2594 = vpop.f32.mrb[0].mxu0
    %v2595 = vadd.f32 0.0, %v2594
    %2596 = vmatprep.mubr.f32.mxu0 0.0
    %v2597 = vand.u32 %v95, 4294901760
    %v2598 = vsub.f32 %v95, %v2597
    %v2599 = vand.u32 %v2598, 4294901760
    %v2600 = vsub.f32 %v2598, %v2599
    %v2601 = vand.u32 %v2600, 4294901760
    %2602 = vmatmul.mubr.f32.gmra.mrb[0].mxu0 %v2601
    %v2603 = vpop.f32.mrb[0].mxu0
    %v2604 = vadd.f32 0.0, %v2603
    %v2605 = vpop.f32.mrb[0].mxu0
    %v2606 = vadd.f32 0.0, %v2605
    %2607 = vmatprep.mubr.f32.mxu0 0.0
    %v2608 = vand.u32 %v98, 4294901760
    %v2609 = vsub.f32 %v98, %v2608
    %v2610 = vand.u32 %v2609, 4294901760
    %v2611 = vsub.f32 %v2609, %v2610
    %v2612 = vand.u32 %v2611, 4294901760
    %2613 = vmatmul.mubr.f32.gmra.mrb[0].mxu0 %v2612
    %v2614 = vpop.f32.mrb[0].mxu0
    %v2615 = vadd.f32 0.0, %v2614
    %v2616 = vpop.f32.mrb[0].mxu0
    %v2617 = vadd.f32 0.0, %v2616
    %2618 = vmatprep.mubr.f32.mxu0 0.0
    %v2619 = vand.u32 %v101, 4294901760
    %v2620 = vsub.f32 %v101, %v2619
    %v2621 = vand.u32 %v2620, 4294901760
    %v2622 = vsub.f32 %v2620, %v2621
    %v2623 = vand.u32 %v2622, 4294901760
    %2624 = vmatmul.mubr.f32.gmra.mrb[0].mxu0 %v2623
    %v2625 = vpop.f32.mrb[0].mxu0
    %v2626 = vadd.f32 0.0, %v2625
    %v2627 = vpop.f32.mrb[0].mxu0
    %v2628 = vadd.f32 0.0, %v2627
    %2629 = vmatprep.mubr.f32.mxu0 0.0
    %v2630 = vand.u32 %v104, 4294901760
    %v2631 = vsub.f32 %v104, %v2630
    %v2632 = vand.u32 %v2631, 4294901760
    %v2633 = vsub.f32 %v2631, %v2632
    %v2634 = vand.u32 %v2633, 4294901760
    %2635 = vmatmul.mubr.f32.gmra.mrb[0].mxu0 %v2634
    %v2636 = vpop.f32.mrb[0].mxu0
    %v2637 = vadd.f32 0.0, %v2636
    %v2638 = vpop.f32.mrb[0].mxu0
    %v2639 = vadd.f32 0.0, %v2638
    %2640 = vmatprep.mubr.f32.mxu0 0.0
    %v2641 = vand.u32 %v107, 4294901760
    %v2642 = vsub.f32 %v107, %v2641
    %v2643 = vand.u32 %v2642, 4294901760
    %v2644 = vsub.f32 %v2642, %v2643
    %v2645 = vand.u32 %v2644, 4294901760
    %2646 = vmatmul.mubr.f32.gmra.mrb[0].mxu0 %v2645
    %v2647 = vpop.f32.mrb[0].mxu0
    %v2648 = vadd.f32 0.0, %v2647
    %v2649 = vpop.f32.mrb[0].mxu0
    %v2650 = vadd.f32 0.0, %v2649
    %2651 = vmatprep.mubr.f32.mxu0 0.0
    %v2652 = vand.u32 %v110, 4294901760
    %v2653 = vsub.f32 %v110, %v2652
    %v2654 = vand.u32 %v2653, 4294901760
    %v2655 = vsub.f32 %v2653, %v2654
    %v2656 = vand.u32 %v2655, 4294901760
    %2657 = vmatmul.mubr.f32.gmra.mrb[0].mxu0 %v2656
    %v2658 = vpop.f32.mrb[0].mxu0
    %v2659 = vadd.f32 0.0, %v2658
    %v2660 = vpop.f32.mrb[0].mxu0
    %v2661 = vadd.f32 0.0, %v2660
    %2662 = vmatprep.mubr.f32.mxu0 0.0
    %v2663 = vand.u32 %v113, 4294901760
    %v2664 = vsub.f32 %v113, %v2663
    %v2665 = vand.u32 %v2664, 4294901760
    %v2666 = vsub.f32 %v2664, %v2665
    %v2667 = vand.u32 %v2666, 4294901760
    %2668 = vmatmul.mubr.f32.gmra.mrb[0].mxu0 %v2667
    %v2669 = vpop.f32.mrb[0].mxu0
    %v2670 = vadd.f32 0.0, %v2669
    %v2671 = vpop.f32.mrb[0].mxu0
    %v2672 = vadd.f32 0.0, %v2671
    %2673 = vmatprep.mubr.f32.mxu0 0.0
    %v2674 = vand.u32 %v116, 4294901760
    %v2675 = vsub.f32 %v116, %v2674
    %v2676 = vand.u32 %v2675, 4294901760
    %v2677 = vsub.f32 %v2675, %v2676
    %v2678 = vand.u32 %v2677, 4294901760
    %2679 = vmatmul.mubr.f32.gmra.mrb[0].mxu0 %v2678
    %v2680 = vpop.f32.mrb[0].mxu0
    %v2681 = vadd.f32 0.0, %v2680
    %v2682 = vpop.f32.mrb[0].mxu0
    %v2683 = vadd.f32 0.0, %v2682
    %2684 = vmatprep.mubr.f32.mxu0 0.0
    %v2685 = vand.u32 %v119, 4294901760
    %v2686 = vsub.f32 %v119, %v2685
    %v2687 = vand.u32 %v2686, 4294901760
    %v2688 = vsub.f32 %v2686, %v2687
    %v2689 = vand.u32 %v2688, 4294901760
    %2690 = vmatmul.mubr.f32.gmra.mrb[0].mxu0 %v2689
    %v2691 = vpop.f32.mrb[0].mxu0
    %v2692 = vadd.f32 0.0, %v2691
    %v2693 = vpop.f32.mrb[0].mxu0
    %v2694 = vadd.f32 0.0, %v2693
    %2695 = vmatprep.mubr.f32.mxu0 0.0
    %v2696 = vand.u32 %v122, 4294901760
    %v2697 = vsub.f32 %v122, %v2696
    %v2698 = vand.u32 %v2697, 4294901760
    %v2699 = vsub.f32 %v2697, %v2698
    %v2700 = vand.u32 %v2699, 4294901760
    %2701 = vmatmul.mubr.f32.gmra.mrb[0].mxu0 %v2700
    %v2702 = vpop.f32.mrb[0].mxu0
    %v2703 = vadd.f32 0.0, %v2702
    %v2704 = vpop.f32.mrb[0].mxu0
    %v2705 = vadd.f32 0.0, %v2704
    %2706 = vmatprep.mubr.f32.mxu0 0.0
    %v2707 = vand.u32 %v125, 4294901760
    %v2708 = vsub.f32 %v125, %v2707
    %v2709 = vand.u32 %v2708, 4294901760
    %v2710 = vsub.f32 %v2708, %v2709
    %v2711 = vand.u32 %v2710, 4294901760
    %2712 = vmatmul.mubr.f32.gmra.mrb[0].mxu0 %v2711
    %v2713 = vpop.f32.mrb[0].mxu0
    %v2714 = vadd.f32 0.0, %v2713
    %v2715 = vpop.f32.mrb[0].mxu0
    %v2716 = vadd.f32 0.0, %v2715
    %2717 = vmatprep.mubr.f32.mxu0 0.0
    %v2718 = vand.u32 %v128, 4294901760
    %v2719 = vsub.f32 %v128, %v2718
    %v2720 = vand.u32 %v2719, 4294901760
    %v2721 = vsub.f32 %v2719, %v2720
    %v2722 = vand.u32 %v2721, 4294901760
    %2723 = vmatmul.mubr.f32.gmra.mrb[0].mxu0 %v2722
    %v2724 = vpop.f32.mrb[0].mxu0
    %v2725 = vadd.f32 0.0, %v2724
    %v2726 = vpop.f32.mrb[0].mxu0
    %v2727 = vadd.f32 0.0, %v2726
    %2728 = vmatprep.mubr.f32.mxu0 0.0
    %v2729 = vand.u32 %v131, 4294901760
    %v2730 = vsub.f32 %v131, %v2729
    %v2731 = vand.u32 %v2730, 4294901760
    %v2732 = vsub.f32 %v2730, %v2731
    %v2733 = vand.u32 %v2732, 4294901760
    %2734 = vmatmul.mubr.f32.gmra.mrb[0].mxu0 %v2733
    %v2735 = vpop.f32.mrb[0].mxu0
    %v2736 = vadd.f32 0.0, %v2735
    %v2737 = vpop.f32.mrb[0].mxu0
    %v2738 = vadd.f32 0.0, %v2737
    %2739 = vmatprep.mubr.f32.mxu0 0.0
    %v2740 = vand.u32 %v134, 4294901760
    %v2741 = vsub.f32 %v134, %v2740
    %v2742 = vand.u32 %v2741, 4294901760
    %v2743 = vsub.f32 %v2741, %v2742
    %v2744 = vand.u32 %v2743, 4294901760
    %2745 = vmatmul.mubr.f32.gmra.mrb[0].mxu0 %v2744
    %v2746 = vpop.f32.mrb[0].mxu0
    %v2747 = vadd.f32 0.0, %v2746
    %v2748 = vpop.f32.mrb[0].mxu0
    %v2749 = vadd.f32 0.0, %v2748
    %2750 = vmatprep.mubr.f32.mxu0 0.0
    %v2751 = vand.u32 %v137, 4294901760
    %v2752 = vsub.f32 %v137, %v2751
    %v2753 = vand.u32 %v2752, 4294901760
    %v2754 = vsub.f32 %v2752, %v2753
    %v2755 = vand.u32 %v2754, 4294901760
    %2756 = vmatmul.mubr.f32.gmra.mrb[0].mxu0 %v2755
    %v2757 = vpop.f32.mrb[0].mxu0
    %v2758 = vadd.f32 0.0, %v2757
    %v2759 = vpop.f32.mrb[0].mxu0
    %v2760 = vadd.f32 0.0, %v2759
    %2761 = vmatprep.mubr.f32.mxu0 0.0
    %v2762 = vand.u32 %v140, 4294901760
    %v2763 = vsub.f32 %v140, %v2762
    %v2764 = vand.u32 %v2763, 4294901760
    %v2765 = vsub.f32 %v2763, %v2764
    %v2766 = vand.u32 %v2765, 4294901760
    %2767 = vmatmul.mubr.f32.gmra.mrb[0].mxu0 %v2766
    %v2768 = vpop.f32.mrb[0].mxu0
    %v2769 = vadd.f32 0.0, %v2768
    %v2770 = vpop.f32.mrb[0].mxu0
    %v2771 = vadd.f32 0.0, %v2770
    %2772 = vmatprep.mubr.f32.mxu0 0.0
    %v2773 = vand.u32 %v143, 4294901760
    %v2774 = vsub.f32 %v143, %v2773
    %v2775 = vand.u32 %v2774, 4294901760
    %v2776 = vsub.f32 %v2774, %v2775
    %v2777 = vand.u32 %v2776, 4294901760
    %2778 = vmatmul.mubr.f32.gmra.mrb[0].mxu0 %v2777
    %v2779 = vpop.f32.mrb[0].mxu0
    %v2780 = vadd.f32 0.0, %v2779
    %v2781 = vpop.f32.mrb[0].mxu0
    %v2782 = vadd.f32 0.0, %v2781
    %2783 = vmatprep.mubr.f32.mxu0 0.0
    %v2784 = vand.u32 %v146, 4294901760
    %v2785 = vsub.f32 %v146, %v2784
    %v2786 = vand.u32 %v2785, 4294901760
    %v2787 = vsub.f32 %v2785, %v2786
    %v2788 = vand.u32 %v2787, 4294901760
    %2789 = vmatmul.mubr.f32.gmra.mrb[0].mxu0 %v2788
    %v2790 = vpop.f32.mrb[0].mxu0
    %v2791 = vadd.f32 0.0, %v2790
    %v2792 = vpop.f32.mrb[0].mxu0
    %v2793 = vadd.f32 0.0, %v2792
    %2794 = vmatprep.mubr.f32.mxu0 0.0
    %v2795 = vand.u32 %v149, 4294901760
    %v2796 = vsub.f32 %v149, %v2795
    %v2797 = vand.u32 %v2796, 4294901760
    %v2798 = vsub.f32 %v2796, %v2797
    %v2799 = vand.u32 %v2798, 4294901760
    %2800 = vmatmul.mubr.f32.gmra.mrb[0].mxu0 %v2799
    %v2801 = vpop.f32.mrb[0].mxu0
    %v2802 = vadd.f32 0.0, %v2801
    %v2803 = vpop.f32.mrb[0].mxu0
    %v2804 = vadd.f32 0.0, %v2803
    %2805 = vmatprep.mubr.f32.mxu0 0.0
    %v2806 = vand.u32 %v152, 4294901760
    %v2807 = vsub.f32 %v152, %v2806
    %v2808 = vand.u32 %v2807, 4294901760
    %v2809 = vsub.f32 %v2807, %v2808
    %v2810 = vand.u32 %v2809, 4294901760
    %2811 = vmatmul.mubr.f32.gmra.mrb[0].mxu0 %v2810
    %v2812 = vpop.f32.mrb[0].mxu0
    %v2813 = vadd.f32 0.0, %v2812
    %v2814 = vpop.f32.mrb[0].mxu0
    %v2815 = vadd.f32 0.0, %v2814
    %2816 = vmatprep.mubr.f32.mxu0 0.0
    %v2817 = vand.u32 %v155, 4294901760
    %v2818 = vsub.f32 %v155, %v2817
    %v2819 = vand.u32 %v2818, 4294901760
    %v2820 = vsub.f32 %v2818, %v2819
    %v2821 = vand.u32 %v2820, 4294901760
    %2822 = vmatmul.mubr.f32.gmra.mrb[0].mxu0 %v2821
    %v2823 = vpop.f32.mrb[0].mxu0
    %v2824 = vadd.f32 0.0, %v2823
    %v2825 = vpop.f32.mrb[0].mxu0
    %v2826 = vadd.f32 0.0, %v2825
    %2827 = vmatprep.mubr.f32.mxu0 0.0
    %v2828 = vand.u32 %v158, 4294901760
    %v2829 = vsub.f32 %v158, %v2828
    %v2830 = vand.u32 %v2829, 4294901760
    %v2831 = vsub.f32 %v2829, %v2830
    %v2832 = vand.u32 %v2831, 4294901760
    %2833 = vmatmul.mubr.f32.gmra.mrb[0].mxu0 %v2832
    %v2834 = vpop.f32.mrb[0].mxu0
    %v2835 = vadd.f32 0.0, %v2834
    %v2836 = vpop.f32.mrb[0].mxu0
    %v2837 = vadd.f32 0.0, %v2836
    %2838 = vmatprep.mubr.f32.mxu0 0.0
    %v2839 = vand.u32 %v161, 4294901760
    %v2840 = vsub.f32 %v161, %v2839
    %v2841 = vand.u32 %v2840, 4294901760
    %v2842 = vsub.f32 %v2840, %v2841
    %v2843 = vand.u32 %v2842, 4294901760
    %2844 = vmatmul.mubr.f32.gmra.mrb[0].mxu0 %v2843
    %v2845 = vpop.f32.mrb[0].mxu0
    %v2846 = vadd.f32 0.0, %v2845
    %v2847 = vpop.f32.mrb[0].mxu0
    %v2848 = vadd.f32 0.0, %v2847
    %2849 = vmatprep.mubr.f32.mxu0 0.0
    %v2850 = vand.u32 %v164, 4294901760
    %v2851 = vsub.f32 %v164, %v2850
    %v2852 = vand.u32 %v2851, 4294901760
    %v2853 = vsub.f32 %v2851, %v2852
    %v2854 = vand.u32 %v2853, 4294901760
    %2855 = vmatmul.mubr.f32.gmra.mrb[0].mxu0 %v2854
    %v2856 = vpop.f32.mrb[0].mxu0
    %v2857 = vadd.f32 0.0, %v2856
    %v2858 = vpop.f32.mrb[0].mxu0
    %v2859 = vadd.f32 0.0, %v2858
    %2860 = vmatprep.mubr.f32.mxu0 0.0
    %v2861 = vand.u32 %v167, 4294901760
    %v2862 = vsub.f32 %v167, %v2861
    %v2863 = vand.u32 %v2862, 4294901760
    %v2864 = vsub.f32 %v2862, %v2863
    %v2865 = vand.u32 %v2864, 4294901760
    %2866 = vmatmul.mubr.f32.gmra.mrb[0].mxu0 %v2865
    %v2867 = vpop.f32.mrb[0].mxu0
    %v2868 = vadd.f32 0.0, %v2867
    %v2869 = vpop.f32.mrb[0].mxu0
    %v2870 = vadd.f32 0.0, %v2869
    %2871 = vmatprep.mubr.f32.mxu0 0.0
    %v2872 = vand.u32 %v170, 4294901760
    %v2873 = vsub.f32 %v170, %v2872
    %v2874 = vand.u32 %v2873, 4294901760
    %v2875 = vsub.f32 %v2873, %v2874
    %v2876 = vand.u32 %v2875, 4294901760
    %2877 = vmatmul.mubr.f32.gmra.mrb[0].mxu0 %v2876
    %v2878 = vpop.f32.mrb[0].mxu0
    %v2879 = vadd.f32 0.0, %v2878
    %v2880 = vpop.f32.mrb[0].mxu0
    %v2881 = vadd.f32 0.0, %v2880
    %2882 = vmatprep.mubr.f32.mxu0 0.0
    %v2883 = vand.u32 %v173, 4294901760
    %v2884 = vsub.f32 %v173, %v2883
    %v2885 = vand.u32 %v2884, 4294901760
    %v2886 = vsub.f32 %v2884, %v2885
    %v2887 = vand.u32 %v2886, 4294901760
    %2888 = vmatmul.mubr.f32.gmra.mrb[0].mxu0 %v2887
    %v2889 = vpop.f32.mrb[0].mxu0
    %v2890 = vadd.f32 0.0, %v2889
    %v2891 = vpop.f32.mrb[0].mxu0
    %v2892 = vadd.f32 0.0, %v2891
    %2893 = vmatprep.mubr.f32.mxu0 0.0
    %v2894 = vand.u32 %v176, 4294901760
    %v2895 = vsub.f32 %v176, %v2894
    %v2896 = vand.u32 %v2895, 4294901760
    %v2897 = vsub.f32 %v2895, %v2896
    %v2898 = vand.u32 %v2897, 4294901760
    %2899 = vmatmul.mubr.f32.gmra.mrb[0].mxu0 %v2898
    %v2900 = vpop.f32.mrb[0].mxu0
    %v2901 = vadd.f32 0.0, %v2900
    %v2902 = vpop.f32.mrb[0].mxu0
    %v2903 = vadd.f32 0.0, %v2902
    %2904 = vmatprep.mubr.f32.mxu0 0.0
    %v2905 = vand.u32 %v179, 4294901760
    %v2906 = vsub.f32 %v179, %v2905
    %v2907 = vand.u32 %v2906, 4294901760
    %v2908 = vsub.f32 %v2906, %v2907
    %v2909 = vand.u32 %v2908, 4294901760
    %2910 = vmatmul.mubr.f32.gmra.mrb[0].mxu0 %v2909
    %v2911 = vpop.f32.mrb[0].mxu0
    %v2912 = vadd.f32 0.0, %v2911
    %v2913 = vpop.f32.mrb[0].mxu0
    %v2914 = vadd.f32 0.0, %v2913
    %2915 = vmatprep.mubr.f32.mxu0 0.0
    %v2916 = vand.u32 %v182, 4294901760
    %v2917 = vsub.f32 %v182, %v2916
    %v2918 = vand.u32 %v2917, 4294901760
    %v2919 = vsub.f32 %v2917, %v2918
    %v2920 = vand.u32 %v2919, 4294901760
    %2921 = vmatmul.mubr.f32.gmra.mrb[0].mxu0 %v2920
    %v2922 = vpop.f32.mrb[0].mxu0
    %v2923 = vadd.f32 0.0, %v2922
    %v2924 = vpop.f32.mrb[0].mxu0
    %v2925 = vadd.f32 0.0, %v2924
    %2926 = vmatprep.mubr.f32.mxu0 0.0
    %v2927 = vand.u32 %v185, 4294901760
    %v2928 = vsub.f32 %v185, %v2927
    %v2929 = vand.u32 %v2928, 4294901760
    %v2930 = vsub.f32 %v2928, %v2929
    %v2931 = vand.u32 %v2930, 4294901760
    %2932 = vmatmul.mubr.f32.gmra.mrb[0].mxu0 %v2931
    %v2933 = vpop.f32.mrb[0].mxu0
    %v2934 = vadd.f32 0.0, %v2933
    %v2935 = vpop.f32.mrb[0].mxu0
    %v2936 = vadd.f32 0.0, %v2935
    %2937 = vmatprep.mubr.f32.mxu0 0.0
    %v2938 = vand.u32 %v188, 4294901760
    %v2939 = vsub.f32 %v188, %v2938
    %v2940 = vand.u32 %v2939, 4294901760
    %v2941 = vsub.f32 %v2939, %v2940
    %v2942 = vand.u32 %v2941, 4294901760
    %2943 = vmatmul.mubr.f32.gmra.mrb[0].mxu0 %v2942
    %v2944 = vpop.f32.mrb[0].mxu0
    %v2945 = vadd.f32 0.0, %v2944
    %v2946 = vpop.f32.mrb[0].mxu0
    %v2947 = vadd.f32 0.0, %v2946
    %2948 = vmatprep.mubr.f32.mxu0 0.0
    %v2949 = vand.u32 %v191, 4294901760
    %v2950 = vsub.f32 %v191, %v2949
    %v2951 = vand.u32 %v2950, 4294901760
    %v2952 = vsub.f32 %v2950, %v2951
    %v2953 = vand.u32 %v2952, 4294901760
    %2954 = vmatmul.mubr.f32.gmra.mrb[0].mxu0 %v2953
    %v2955 = vpop.f32.mrb[0].mxu0
    %v2956 = vadd.f32 0.0, %v2955
    %v2957 = vpop.f32.mrb[0].mxu0
    %v2958 = vadd.f32 0.0, %v2957
    %2959 = vmatprep.mubr.f32.mxu0 0.0
    %v2960 = vand.u32 %v194, 4294901760
    %v2961 = vsub.f32 %v194, %v2960
    %v2962 = vand.u32 %v2961, 4294901760
    %v2963 = vsub.f32 %v2961, %v2962
    %v2964 = vand.u32 %v2963, 4294901760
    %2965 = vmatmul.mubr.f32.gmra.mrb[0].mxu0 %v2964
    %v2966 = vpop.f32.mrb[0].mxu0
    %v2967 = vadd.f32 0.0, %v2966
    %v2968 = vpop.f32.mrb[0].mxu0
    %v2969 = vadd.f32 0.0, %v2968
    %2970 = vmatprep.mubr.f32.mxu0 0.0
    %v2971 = vand.u32 %v197, 4294901760
    %v2972 = vsub.f32 %v197, %v2971
    %v2973 = vand.u32 %v2972, 4294901760
    %v2974 = vsub.f32 %v2972, %v2973
    %v2975 = vand.u32 %v2974, 4294901760
    %2976 = vmatmul.mubr.f32.gmra.mrb[0].mxu0 %v2975
    %v2977 = vpop.f32.mrb[0].mxu0
    %v2978 = vadd.f32 0.0, %v2977
    %v2979 = vpop.f32.mrb[0].mxu0
    %v2980 = vadd.f32 0.0, %v2979
    %2981 = vdwg.mxu0
    %v2982 = vand.u32 %v51, 4294901760
    %v2983 = vsub.f32 %v51, %v2982
    %v2984 = vand.u32 %v2983, 4294901760
    %v2985 = vsub.f32 %v2983, %v2984
    %v2986 = vand.u32 %v2985, 4294901760
    %2987 = vmatprep.subr.mxu0 %v2986
    %v2988 = vand.u32 %v50, 4294901760
    %v2989 = vsub.f32 %v50, %v2988
    %v2990 = vand.u32 %v2989, 4294901760
    %v2991 = vsub.f32 %v2989, %v2990
    %v2992 = vand.u32 %v2991, 4294901760
    %2993 = vmatpush1.msra.mxu0 %v2992
    %v2994 = vand.u32 %v58, 4294901760
    %v2995 = vsub.f32 %v58, %v2994
    %v2996 = vand.u32 %v2995, 4294901760
    %v2997 = vsub.f32 %v2995, %v2996
    %v2998 = vand.u32 %v2997, 4294901760
    %2999 = vmatprep.subr.mxu0 %v2998
    %v3000 = vand.u32 %v57, 4294901760
    %v3001 = vsub.f32 %v57, %v3000
    %v3002 = vand.u32 %v3001, 4294901760
    %v3003 = vsub.f32 %v3001, %v3002
    %v3004 = vand.u32 %v3003, 4294901760
    %3005 = vmatpush1.msra.mxu0 %v3004
    %v3006 = vand.u32 %v65, 4294901760
    %v3007 = vsub.f32 %v65, %v3006
    %v3008 = vand.u32 %v3007, 4294901760
    %v3009 = vsub.f32 %v3007, %v3008
    %v3010 = vand.u32 %v3009, 4294901760
    %3011 = vmatprep.subr.mxu0 %v3010
    %v3012 = vand.u32 %v64, 4294901760
    %v3013 = vsub.f32 %v64, %v3012
    %v3014 = vand.u32 %v3013, 4294901760
    %v3015 = vsub.f32 %v3013, %v3014
    %v3016 = vand.u32 %v3015, 4294901760
    %3017 = vmatpush1.msra.mxu0 %v3016
    %v3018 = vand.u32 %v72, 4294901760
    %v3019 = vsub.f32 %v72, %v3018
    %v3020 = vand.u32 %v3019, 4294901760
    %v3021 = vsub.f32 %v3019, %v3020
    %v3022 = vand.u32 %v3021, 4294901760
    %3023 = vmatprep.subr.mxu0 %v3022
    %v3024 = vand.u32 %v71, 4294901760
    %v3025 = vsub.f32 %v71, %v3024
    %v3026 = vand.u32 %v3025, 4294901760
    %v3027 = vsub.f32 %v3025, %v3026
    %v3028 = vand.u32 %v3027, 4294901760
    %3029 = vmatpush1.msra.mxu0 %v3028
    %v3030 = vand.u32 %v79, 4294901760
    %v3031 = vsub.f32 %v79, %v3030
    %v3032 = vand.u32 %v3031, 4294901760
    %v3033 = vsub.f32 %v3031, %v3032
    %v3034 = vand.u32 %v3033, 4294901760
    %3035 = vmatprep.subr.mxu0 %v3034
    %v3036 = vand.u32 %v78, 4294901760
    %v3037 = vsub.f32 %v78, %v3036
    %v3038 = vand.u32 %v3037, 4294901760
    %v3039 = vsub.f32 %v3037, %v3038
    %v3040 = vand.u32 %v3039, 4294901760
    %3041 = vmatpush1.msra.mxu0 %v3040
    %v3042 = vand.u32 %v86, 4294901760
    %v3043 = vsub.f32 %v86, %v3042
    %v3044 = vand.u32 %v3043, 4294901760
    %v3045 = vsub.f32 %v3043, %v3044
    %v3046 = vand.u32 %v3045, 4294901760
    %3047 = vmatprep.subr.mxu0 %v3046
    %v3048 = vand.u32 %v85, 4294901760
    %v3049 = vsub.f32 %v85, %v3048
    %v3050 = vand.u32 %v3049, 4294901760
    %v3051 = vsub.f32 %v3049, %v3050
    %v3052 = vand.u32 %v3051, 4294901760
    %3053 = vmatpush1.msra.mxu0 %v3052
    %3054 = vmatprep.subr.mxu0 0.0
    %3055 = vmatpush1.msra.mxu0 0.0
    %3056 = vmatprep.subr.mxu0 0.0
    %3057 = vmatpush1.msra.mxu0 0.0
    %3058 = vmatprep.subr.mxu0 0.0
    %3059 = vmatpush1.msra.mxu0 0.0
    %3060 = vmatprep.subr.mxu0 0.0
    %3061 = vmatpush1.msra.mxu0 0.0
    %3062 = vmatprep.subr.mxu0 0.0
    %3063 = vmatpush1.msra.mxu0 0.0
    %3064 = vmatprep.subr.mxu0 0.0
    %3065 = vmatpush1.msra.mxu0 0.0
    %3066 = vmatprep.subr.mxu0 0.0
    %3067 = vmatpush1.msra.mxu0 0.0
    %3068 = vmatprep.subr.mxu0 0.0
    %3069 = vmatpush1.msra.mxu0 0.0
    %3070 = vmatprep.subr.mxu0 0.0
    %3071 = vmatpush1.msra.mxu0 0.0
    %3072 = vmatprep.subr.mxu0 0.0
    %3073 = vmatpush1.msra.mxu0 0.0
    %3074 = vmatprep.subr.mxu0 0.0
    %3075 = vmatpush1.msra.mxu0 0.0
    %3076 = vmatprep.subr.mxu0 0.0
    %3077 = vmatpush1.msra.mxu0 0.0
    %3078 = vmatprep.subr.mxu0 0.0
    %3079 = vmatpush1.msra.mxu0 0.0
    %3080 = vmatprep.subr.mxu0 0.0
    %3081 = vmatpush1.msra.mxu0 0.0
    %3082 = vmatprep.subr.mxu0 0.0
    %3083 = vmatpush1.msra.mxu0 0.0
    %3084 = vmatprep.subr.mxu0 0.0
    %3085 = vmatpush1.msra.mxu0 0.0
    %3086 = vmatprep.subr.mxu0 0.0
    %3087 = vmatpush1.msra.mxu0 0.0
    %3088 = vmatprep.subr.mxu0 0.0
    %3089 = vmatpush1.msra.mxu0 0.0
    %3090 = vmatprep.subr.mxu0 0.0
    %3091 = vmatpush1.msra.mxu0 0.0
    %3092 = vmatprep.subr.mxu0 0.0
    %3093 = vmatpush1.msra.mxu0 0.0
    %3094 = vmatprep.subr.mxu0 0.0
    %3095 = vmatpush1.msra.mxu0 0.0
    %3096 = vmatprep.subr.mxu0 0.0
    %3097 = vmatpush1.msra.mxu0 0.0
    %3098 = vmatprep.subr.mxu0 0.0
    %3099 = vmatpush1.msra.mxu0 0.0
    %3100 = vmatprep.subr.mxu0 0.0
    %3101 = vmatpush1.msra.mxu0 0.0
    %3102 = vmatprep.subr.mxu0 0.0
    %3103 = vmatpush1.msra.mxu0 0.0
    %3104 = vmatprep.subr.mxu0 0.0
    %3105 = vmatpush1.msra.mxu0 0.0
    %3106 = vmatprep.mubr.f32.mxu0 0.0
    %v3107 = vand.u32 %v92, 4294901760
    %3108 = vmatmul.mubr.f32.gmra.mrb[0].mxu0 %v3107
    %v3109 = vpop.f32.mrb[0].mxu0
    %v3110 = vadd.f32 %v2593, %v3109
    %v3111 = vpop.f32.mrb[0].mxu0
    %v3112 = vadd.f32 %v2595, %v3111
    %3113 = vmatprep.mubr.f32.mxu0 0.0
    %v3114 = vand.u32 %v95, 4294901760
    %3115 = vmatmul.mubr.f32.gmra.mrb[0].mxu0 %v3114
    %v3116 = vpop.f32.mrb[0].mxu0
    %v3117 = vadd.f32 %v2604, %v3116
    %v3118 = vpop.f32.mrb[0].mxu0
    %v3119 = vadd.f32 %v2606, %v3118
    %3120 = vmatprep.mubr.f32.mxu0 0.0
    %v3121 = vand.u32 %v98, 4294901760
    %3122 = vmatmul.mubr.f32.gmra.mrb[0].mxu0 %v3121
    %v3123 = vpop.f32.mrb[0].mxu0
    %v3124 = vadd.f32 %v2615, %v3123
    %v3125 = vpop.f32.mrb[0].mxu0
    %v3126 = vadd.f32 %v2617, %v3125
    %3127 = vmatprep.mubr.f32.mxu0 0.0
    %v3128 = vand.u32 %v101, 4294901760
    %3129 = vmatmul.mubr.f32.gmra.mrb[0].mxu0 %v3128
    %v3130 = vpop.f32.mrb[0].mxu0
    %v3131 = vadd.f32 %v2626, %v3130
    %v3132 = vpop.f32.mrb[0].mxu0
    %v3133 = vadd.f32 %v2628, %v3132
    %3134 = vmatprep.mubr.f32.mxu0 0.0
    %v3135 = vand.u32 %v104, 4294901760
    %3136 = vmatmul.mubr.f32.gmra.mrb[0].mxu0 %v3135
    %v3137 = vpop.f32.mrb[0].mxu0
    %v3138 = vadd.f32 %v2637, %v3137
    %v3139 = vpop.f32.mrb[0].mxu0
    %v3140 = vadd.f32 %v2639, %v3139
    %3141 = vmatprep.mubr.f32.mxu0 0.0
    %v3142 = vand.u32 %v107, 4294901760
    %3143 = vmatmul.mubr.f32.gmra.mrb[0].mxu0 %v3142
    %v3144 = vpop.f32.mrb[0].mxu0
    %v3145 = vadd.f32 %v2648, %v3144
    %v3146 = vpop.f32.mrb[0].mxu0
    %v3147 = vadd.f32 %v2650, %v3146
    %3148 = vmatprep.mubr.f32.mxu0 0.0
    %v3149 = vand.u32 %v110, 4294901760
    %3150 = vmatmul.mubr.f32.gmra.mrb[0].mxu0 %v3149
    %v3151 = vpop.f32.mrb[0].mxu0
    %v3152 = vadd.f32 %v2659, %v3151
    %v3153 = vpop.f32.mrb[0].mxu0
    %v3154 = vadd.f32 %v2661, %v3153
    %3155 = vmatprep.mubr.f32.mxu0 0.0
    %v3156 = vand.u32 %v113, 4294901760
    %3157 = vmatmul.mubr.f32.gmra.mrb[0].mxu0 %v3156
    %v3158 = vpop.f32.mrb[0].mxu0
    %v3159 = vadd.f32 %v2670, %v3158
    %v3160 = vpop.f32.mrb[0].mxu0
    %v3161 = vadd.f32 %v2672, %v3160
    %3162 = vmatprep.mubr.f32.mxu0 0.0
    %v3163 = vand.u32 %v116, 4294901760
    %3164 = vmatmul.mubr.f32.gmra.mrb[0].mxu0 %v3163
    %v3165 = vpop.f32.mrb[0].mxu0
    %v3166 = vadd.f32 %v2681, %v3165
    %v3167 = vpop.f32.mrb[0].mxu0
    %v3168 = vadd.f32 %v2683, %v3167
    %3169 = vmatprep.mubr.f32.mxu0 0.0
    %v3170 = vand.u32 %v119, 4294901760
    %3171 = vmatmul.mubr.f32.gmra.mrb[0].mxu0 %v3170
    %v3172 = vpop.f32.mrb[0].mxu0
    %v3173 = vadd.f32 %v2692, %v3172
    %v3174 = vpop.f32.mrb[0].mxu0
    %v3175 = vadd.f32 %v2694, %v3174
    %3176 = vmatprep.mubr.f32.mxu0 0.0
    %v3177 = vand.u32 %v122, 4294901760
    %3178 = vmatmul.mubr.f32.gmra.mrb[0].mxu0 %v3177
    %v3179 = vpop.f32.mrb[0].mxu0
    %v3180 = vadd.f32 %v2703, %v3179
    %v3181 = vpop.f32.mrb[0].mxu0
    %v3182 = vadd.f32 %v2705, %v3181
    %3183 = vmatprep.mubr.f32.mxu0 0.0
    %v3184 = vand.u32 %v125, 4294901760
    %3185 = vmatmul.mubr.f32.gmra.mrb[0].mxu0 %v3184
    %v3186 = vpop.f32.mrb[0].mxu0
    %v3187 = vadd.f32 %v2714, %v3186
    %v3188 = vpop.f32.mrb[0].mxu0
    %v3189 = vadd.f32 %v2716, %v3188
    %3190 = vmatprep.mubr.f32.mxu0 0.0
    %v3191 = vand.u32 %v128, 4294901760
    %3192 = vmatmul.mubr.f32.gmra.mrb[0].mxu0 %v3191
    %v3193 = vpop.f32.mrb[0].mxu0
    %v3194 = vadd.f32 %v2725, %v3193
    %v3195 = vpop.f32.mrb[0].mxu0
    %v3196 = vadd.f32 %v2727, %v3195
    %3197 = vmatprep.mubr.f32.mxu0 0.0
    %v3198 = vand.u32 %v131, 4294901760
    %3199 = vmatmul.mubr.f32.gmra.mrb[0].mxu0 %v3198
    %v3200 = vpop.f32.mrb[0].mxu0
    %v3201 = vadd.f32 %v2736, %v3200
    %v3202 = vpop.f32.mrb[0].mxu0
    %v3203 = vadd.f32 %v2738, %v3202
    %3204 = vmatprep.mubr.f32.mxu0 0.0
    %v3205 = vand.u32 %v134, 4294901760
    %3206 = vmatmul.mubr.f32.gmra.mrb[0].mxu0 %v3205
    %v3207 = vpop.f32.mrb[0].mxu0
    %v3208 = vadd.f32 %v2747, %v3207
    %v3209 = vpop.f32.mrb[0].mxu0
    %v3210 = vadd.f32 %v2749, %v3209
    %3211 = vmatprep.mubr.f32.mxu0 0.0
    %v3212 = vand.u32 %v137, 4294901760
    %3213 = vmatmul.mubr.f32.gmra.mrb[0].mxu0 %v3212
    %v3214 = vpop.f32.mrb[0].mxu0
    %v3215 = vadd.f32 %v2758, %v3214
    %v3216 = vpop.f32.mrb[0].mxu0
    %v3217 = vadd.f32 %v2760, %v3216
    %3218 = vmatprep.mubr.f32.mxu0 0.0
    %v3219 = vand.u32 %v140, 4294901760
    %3220 = vmatmul.mubr.f32.gmra.mrb[0].mxu0 %v3219
    %v3221 = vpop.f32.mrb[0].mxu0
    %v3222 = vadd.f32 %v2769, %v3221
    %v3223 = vpop.f32.mrb[0].mxu0
    %v3224 = vadd.f32 %v2771, %v3223
    %3225 = vmatprep.mubr.f32.mxu0 0.0
    %v3226 = vand.u32 %v143, 4294901760
    %3227 = vmatmul.mubr.f32.gmra.mrb[0].mxu0 %v3226
    %v3228 = vpop.f32.mrb[0].mxu0
    %v3229 = vadd.f32 %v2780, %v3228
    %v3230 = vpop.f32.mrb[0].mxu0
    %v3231 = vadd.f32 %v2782, %v3230
    %3232 = vmatprep.mubr.f32.mxu0 0.0
    %v3233 = vand.u32 %v146, 4294901760
    %3234 = vmatmul.mubr.f32.gmra.mrb[0].mxu0 %v3233
    %v3235 = vpop.f32.mrb[0].mxu0
    %v3236 = vadd.f32 %v2791, %v3235
    %v3237 = vpop.f32.mrb[0].mxu0
    %v3238 = vadd.f32 %v2793, %v3237
    %3239 = vmatprep.mubr.f32.mxu0 0.0
    %v3240 = vand.u32 %v149, 4294901760
    %3241 = vmatmul.mubr.f32.gmra.mrb[0].mxu0 %v3240
    %v3242 = vpop.f32.mrb[0].mxu0
    %v3243 = vadd.f32 %v2802, %v3242
    %v3244 = vpop.f32.mrb[0].mxu0
    %v3245 = vadd.f32 %v2804, %v3244
    %3246 = vmatprep.mubr.f32.mxu0 0.0
    %v3247 = vand.u32 %v152, 4294901760
    %3248 = vmatmul.mubr.f32.gmra.mrb[0].mxu0 %v3247
    %v3249 = vpop.f32.mrb[0].mxu0
    %v3250 = vadd.f32 %v2813, %v3249
    %v3251 = vpop.f32.mrb[0].mxu0
    %v3252 = vadd.f32 %v2815, %v3251
    %3253 = vmatprep.mubr.f32.mxu0 0.0
    %v3254 = vand.u32 %v155, 4294901760
    %3255 = vmatmul.mubr.f32.gmra.mrb[0].mxu0 %v3254
    %v3256 = vpop.f32.mrb[0].mxu0
    %v3257 = vadd.f32 %v2824, %v3256
    %v3258 = vpop.f32.mrb[0].mxu0
    %v3259 = vadd.f32 %v2826, %v3258
    %3260 = vmatprep.mubr.f32.mxu0 0.0
    %v3261 = vand.u32 %v158, 4294901760
    %3262 = vmatmul.mubr.f32.gmra.mrb[0].mxu0 %v3261
    %v3263 = vpop.f32.mrb[0].mxu0
    %v3264 = vadd.f32 %v2835, %v3263
    %v3265 = vpop.f32.mrb[0].mxu0
    %v3266 = vadd.f32 %v2837, %v3265
    %3267 = vmatprep.mubr.f32.mxu0 0.0
    %v3268 = vand.u32 %v161, 4294901760
    %3269 = vmatmul.mubr.f32.gmra.mrb[0].mxu0 %v3268
    %v3270 = vpop.f32.mrb[0].mxu0
    %v3271 = vadd.f32 %v2846, %v3270
    %v3272 = vpop.f32.mrb[0].mxu0
    %v3273 = vadd.f32 %v2848, %v3272
    %3274 = vmatprep.mubr.f32.mxu0 0.0
    %v3275 = vand.u32 %v164, 4294901760
    %3276 = vmatmul.mubr.f32.gmra.mrb[0].mxu0 %v3275
    %v3277 = vpop.f32.mrb[0].mxu0
    %v3278 = vadd.f32 %v2857, %v3277
    %v3279 = vpop.f32.mrb[0].mxu0
    %v3280 = vadd.f32 %v2859, %v3279
    %3281 = vmatprep.mubr.f32.mxu0 0.0
    %v3282 = vand.u32 %v167, 4294901760
    %3283 = vmatmul.mubr.f32.gmra.mrb[0].mxu0 %v3282
    %v3284 = vpop.f32.mrb[0].mxu0
    %v3285 = vadd.f32 %v2868, %v3284
    %v3286 = vpop.f32.mrb[0].mxu0
    %v3287 = vadd.f32 %v2870, %v3286
    %3288 = vmatprep.mubr.f32.mxu0 0.0
    %v3289 = vand.u32 %v170, 4294901760
    %3290 = vmatmul.mubr.f32.gmra.mrb[0].mxu0 %v3289
    %v3291 = vpop.f32.mrb[0].mxu0
    %v3292 = vadd.f32 %v2879, %v3291
    %v3293 = vpop.f32.mrb[0].mxu0
    %v3294 = vadd.f32 %v2881, %v3293
    %3295 = vmatprep.mubr.f32.mxu0 0.0
    %v3296 = vand.u32 %v173, 4294901760
    %3297 = vmatmul.mubr.f32.gmra.mrb[0].mxu0 %v3296
    %v3298 = vpop.f32.mrb[0].mxu0
    %v3299 = vadd.f32 %v2890, %v3298
    %v3300 = vpop.f32.mrb[0].mxu0
    %v3301 = vadd.f32 %v2892, %v3300
    %3302 = vmatprep.mubr.f32.mxu0 0.0
    %v3303 = vand.u32 %v176, 4294901760
    %3304 = vmatmul.mubr.f32.gmra.mrb[0].mxu0 %v3303
    %v3305 = vpop.f32.mrb[0].mxu0
    %v3306 = vadd.f32 %v2901, %v3305
    %v3307 = vpop.f32.mrb[0].mxu0
    %v3308 = vadd.f32 %v2903, %v3307
    %3309 = vmatprep.mubr.f32.mxu0 0.0
    %v3310 = vand.u32 %v179, 4294901760
    %3311 = vmatmul.mubr.f32.gmra.mrb[0].mxu0 %v3310
    %v3312 = vpop.f32.mrb[0].mxu0
    %v3313 = vadd.f32 %v2912, %v3312
    %v3314 = vpop.f32.mrb[0].mxu0
    %v3315 = vadd.f32 %v2914, %v3314
    %3316 = vmatprep.mubr.f32.mxu0 0.0
    %v3317 = vand.u32 %v182, 4294901760
    %3318 = vmatmul.mubr.f32.gmra.mrb[0].mxu0 %v3317
    %v3319 = vpop.f32.mrb[0].mxu0
    %v3320 = vadd.f32 %v2923, %v3319
    %v3321 = vpop.f32.mrb[0].mxu0
    %v3322 = vadd.f32 %v2925, %v3321
    %3323 = vmatprep.mubr.f32.mxu0 0.0
    %v3324 = vand.u32 %v185, 4294901760
    %3325 = vmatmul.mubr.f32.gmra.mrb[0].mxu0 %v3324
    %v3326 = vpop.f32.mrb[0].mxu0
    %v3327 = vadd.f32 %v2934, %v3326
    %v3328 = vpop.f32.mrb[0].mxu0
    %v3329 = vadd.f32 %v2936, %v3328
    %3330 = vmatprep.mubr.f32.mxu0 0.0
    %v3331 = vand.u32 %v188, 4294901760
    %3332 = vmatmul.mubr.f32.gmra.mrb[0].mxu0 %v3331
    %v3333 = vpop.f32.mrb[0].mxu0
    %v3334 = vadd.f32 %v2945, %v3333
    %v3335 = vpop.f32.mrb[0].mxu0
    %v3336 = vadd.f32 %v2947, %v3335
    %3337 = vmatprep.mubr.f32.mxu0 0.0
    %v3338 = vand.u32 %v191, 4294901760
    %3339 = vmatmul.mubr.f32.gmra.mrb[0].mxu0 %v3338
    %v3340 = vpop.f32.mrb[0].mxu0
    %v3341 = vadd.f32 %v2956, %v3340
    %v3342 = vpop.f32.mrb[0].mxu0
    %v3343 = vadd.f32 %v2958, %v3342
    %3344 = vmatprep.mubr.f32.mxu0 0.0
    %v3345 = vand.u32 %v194, 4294901760
    %3346 = vmatmul.mubr.f32.gmra.mrb[0].mxu0 %v3345
    %v3347 = vpop.f32.mrb[0].mxu0
    %v3348 = vadd.f32 %v2967, %v3347
    %v3349 = vpop.f32.mrb[0].mxu0
    %v3350 = vadd.f32 %v2969, %v3349
    %3351 = vmatprep.mubr.f32.mxu0 0.0
    %v3352 = vand.u32 %v197, 4294901760
    %3353 = vmatmul.mubr.f32.gmra.mrb[0].mxu0 %v3352
    %v3354 = vpop.f32.mrb[0].mxu0
    %v3355 = vadd.f32 %v2978, %v3354
    %v3356 = vpop.f32.mrb[0].mxu0
    %v3357 = vadd.f32 %v2980, %v3356
    %3358 = vdwg.mxu0
    %v3359 = vand.u32 %v51, 4294901760
    %v3360 = vsub.f32 %v51, %v3359
    %3361 = vmatprep.subr.mxu0 %v3360
    %v3362 = vand.u32 %v50, 4294901760
    %v3363 = vsub.f32 %v50, %v3362
    %3364 = vmatpush1.msra.mxu0 %v3363
    %v3365 = vand.u32 %v58, 4294901760
    %v3366 = vsub.f32 %v58, %v3365
    %3367 = vmatprep.subr.mxu0 %v3366
    %v3368 = vand.u32 %v57, 4294901760
    %v3369 = vsub.f32 %v57, %v3368
    %3370 = vmatpush1.msra.mxu0 %v3369
    %v3371 = vand.u32 %v65, 4294901760
    %v3372 = vsub.f32 %v65, %v3371
    %3373 = vmatprep.subr.mxu0 %v3372
    %v3374 = vand.u32 %v64, 4294901760
    %v3375 = vsub.f32 %v64, %v3374
    %3376 = vmatpush1.msra.mxu0 %v3375
    %v3377 = vand.u32 %v72, 4294901760
    %v3378 = vsub.f32 %v72, %v3377
    %3379 = vmatprep.subr.mxu0 %v3378
    %v3380 = vand.u32 %v71, 4294901760
    %v3381 = vsub.f32 %v71, %v3380
    %3382 = vmatpush1.msra.mxu0 %v3381
    %v3383 = vand.u32 %v79, 4294901760
    %v3384 = vsub.f32 %v79, %v3383
    %3385 = vmatprep.subr.mxu0 %v3384
    %v3386 = vand.u32 %v78, 4294901760
    %v3387 = vsub.f32 %v78, %v3386
    %3388 = vmatpush1.msra.mxu0 %v3387
    %v3389 = vand.u32 %v86, 4294901760
    %v3390 = vsub.f32 %v86, %v3389
    %3391 = vmatprep.subr.mxu0 %v3390
    %v3392 = vand.u32 %v85, 4294901760
    %v3393 = vsub.f32 %v85, %v3392
    %3394 = vmatpush1.msra.mxu0 %v3393
    %3395 = vmatprep.subr.mxu0 0.0
    %3396 = vmatpush1.msra.mxu0 0.0
    %3397 = vmatprep.subr.mxu0 0.0
    %3398 = vmatpush1.msra.mxu0 0.0
    %3399 = vmatprep.subr.mxu0 0.0
    %3400 = vmatpush1.msra.mxu0 0.0
    %3401 = vmatprep.subr.mxu0 0.0
    %3402 = vmatpush1.msra.mxu0 0.0
    %3403 = vmatprep.subr.mxu0 0.0
    %3404 = vmatpush1.msra.mxu0 0.0
    %3405 = vmatprep.subr.mxu0 0.0
    %3406 = vmatpush1.msra.mxu0 0.0
    %3407 = vmatprep.subr.mxu0 0.0
    %3408 = vmatpush1.msra.mxu0 0.0
    %3409 = vmatprep.subr.mxu0 0.0
    %3410 = vmatpush1.msra.mxu0 0.0
    %3411 = vmatprep.subr.mxu0 0.0
    %3412 = vmatpush1.msra.mxu0 0.0
    %3413 = vmatprep.subr.mxu0 0.0
    %3414 = vmatpush1.msra.mxu0 0.0
    %3415 = vmatprep.subr.mxu0 0.0
    %3416 = vmatpush1.msra.mxu0 0.0
    %3417 = vmatprep.subr.mxu0 0.0
    %3418 = vmatpush1.msra.mxu0 0.0
    %3419 = vmatprep.subr.mxu0 0.0
    %3420 = vmatpush1.msra.mxu0 0.0
    %3421 = vmatprep.subr.mxu0 0.0
    %3422 = vmatpush1.msra.mxu0 0.0
    %3423 = vmatprep.subr.mxu0 0.0
    %3424 = vmatpush1.msra.mxu0 0.0
    %3425 = vmatprep.subr.mxu0 0.0
    %3426 = vmatpush1.msra.mxu0 0.0
    %3427 = vmatprep.subr.mxu0 0.0
    %3428 = vmatpush1.msra.mxu0 0.0
    %3429 = vmatprep.subr.mxu0 0.0
    %3430 = vmatpush1.msra.mxu0 0.0
    %3431 = vmatprep.subr.mxu0 0.0
    %3432 = vmatpush1.msra.mxu0 0.0
    %3433 = vmatprep.subr.mxu0 0.0
    %3434 = vmatpush1.msra.mxu0 0.0
    %3435 = vmatprep.subr.mxu0 0.0
    %3436 = vmatpush1.msra.mxu0 0.0
    %3437 = vmatprep.subr.mxu0 0.0
    %3438 = vmatpush1.msra.mxu0 0.0
    %3439 = vmatprep.subr.mxu0 0.0
    %3440 = vmatpush1.msra.mxu0 0.0
    %3441 = vmatprep.subr.mxu0 0.0
    %3442 = vmatpush1.msra.mxu0 0.0
    %3443 = vmatprep.subr.mxu0 0.0
    %3444 = vmatpush1.msra.mxu0 0.0
    %3445 = vmatprep.subr.mxu0 0.0
    %3446 = vmatpush1.msra.mxu0 0.0
    %3447 = vmatprep.mubr.f32.mxu0 0.0
    %v3448 = vand.u32 %v92, 4294901760
    %v3449 = vsub.f32 %v92, %v3448
    %3450 = vmatmul.mubr.f32.gmra.mrb[0].mxu0 %v3449
    %v3451 = vpop.f32.mrb[0].mxu0
    %v3452 = vadd.f32 %v3110, %v3451
    %v3453 = vpop.f32.mrb[0].mxu0
    %v3454 = vadd.f32 %v3112, %v3453
    %3455 = vmatprep.mubr.f32.mxu0 0.0
    %v3456 = vand.u32 %v95, 4294901760
    %v3457 = vsub.f32 %v95, %v3456
    %3458 = vmatmul.mubr.f32.gmra.mrb[0].mxu0 %v3457
    %v3459 = vpop.f32.mrb[0].mxu0
    %v3460 = vadd.f32 %v3117, %v3459
    %v3461 = vpop.f32.mrb[0].mxu0
    %v3462 = vadd.f32 %v3119, %v3461
    %3463 = vmatprep.mubr.f32.mxu0 0.0
    %v3464 = vand.u32 %v98, 4294901760
    %v3465 = vsub.f32 %v98, %v3464
    %3466 = vmatmul.mubr.f32.gmra.mrb[0].mxu0 %v3465
    %v3467 = vpop.f32.mrb[0].mxu0
    %v3468 = vadd.f32 %v3124, %v3467
    %v3469 = vpop.f32.mrb[0].mxu0
    %v3470 = vadd.f32 %v3126, %v3469
    %3471 = vmatprep.mubr.f32.mxu0 0.0
    %v3472 = vand.u32 %v101, 4294901760
    %v3473 = vsub.f32 %v101, %v3472
    %3474 = vmatmul.mubr.f32.gmra.mrb[0].mxu0 %v3473
    %v3475 = vpop.f32.mrb[0].mxu0
    %v3476 = vadd.f32 %v3131, %v3475
    %v3477 = vpop.f32.mrb[0].mxu0
    %v3478 = vadd.f32 %v3133, %v3477
    %3479 = vmatprep.mubr.f32.mxu0 0.0
    %v3480 = vand.u32 %v104, 4294901760
    %v3481 = vsub.f32 %v104, %v3480
    %3482 = vmatmul.mubr.f32.gmra.mrb[0].mxu0 %v3481
    %v3483 = vpop.f32.mrb[0].mxu0
    %v3484 = vadd.f32 %v3138, %v3483
    %v3485 = vpop.f32.mrb[0].mxu0
    %v3486 = vadd.f32 %v3140, %v3485
    %3487 = vmatprep.mubr.f32.mxu0 0.0
    %v3488 = vand.u32 %v107, 4294901760
    %v3489 = vsub.f32 %v107, %v3488
    %3490 = vmatmul.mubr.f32.gmra.mrb[0].mxu0 %v3489
    %v3491 = vpop.f32.mrb[0].mxu0
    %v3492 = vadd.f32 %v3145, %v3491
    %v3493 = vpop.f32.mrb[0].mxu0
    %v3494 = vadd.f32 %v3147, %v3493
    %3495 = vmatprep.mubr.f32.mxu0 0.0
    %v3496 = vand.u32 %v110, 4294901760
    %v3497 = vsub.f32 %v110, %v3496
    %3498 = vmatmul.mubr.f32.gmra.mrb[0].mxu0 %v3497
    %v3499 = vpop.f32.mrb[0].mxu0
    %v3500 = vadd.f32 %v3152, %v3499
    %v3501 = vpop.f32.mrb[0].mxu0
    %v3502 = vadd.f32 %v3154, %v3501
    %3503 = vmatprep.mubr.f32.mxu0 0.0
    %v3504 = vand.u32 %v113, 4294901760
    %v3505 = vsub.f32 %v113, %v3504
    %3506 = vmatmul.mubr.f32.gmra.mrb[0].mxu0 %v3505
    %v3507 = vpop.f32.mrb[0].mxu0
    %v3508 = vadd.f32 %v3159, %v3507
    %v3509 = vpop.f32.mrb[0].mxu0
    %v3510 = vadd.f32 %v3161, %v3509
    %3511 = vmatprep.mubr.f32.mxu0 0.0
    %v3512 = vand.u32 %v116, 4294901760
    %v3513 = vsub.f32 %v116, %v3512
    %3514 = vmatmul.mubr.f32.gmra.mrb[0].mxu0 %v3513
    %v3515 = vpop.f32.mrb[0].mxu0
    %v3516 = vadd.f32 %v3166, %v3515
    %v3517 = vpop.f32.mrb[0].mxu0
    %v3518 = vadd.f32 %v3168, %v3517
    %3519 = vmatprep.mubr.f32.mxu0 0.0
    %v3520 = vand.u32 %v119, 4294901760
    %v3521 = vsub.f32 %v119, %v3520
    %3522 = vmatmul.mubr.f32.gmra.mrb[0].mxu0 %v3521
    %v3523 = vpop.f32.mrb[0].mxu0
    %v3524 = vadd.f32 %v3173, %v3523
    %v3525 = vpop.f32.mrb[0].mxu0
    %v3526 = vadd.f32 %v3175, %v3525
    %3527 = vmatprep.mubr.f32.mxu0 0.0
    %v3528 = vand.u32 %v122, 4294901760
    %v3529 = vsub.f32 %v122, %v3528
    %3530 = vmatmul.mubr.f32.gmra.mrb[0].mxu0 %v3529
    %v3531 = vpop.f32.mrb[0].mxu0
    %v3532 = vadd.f32 %v3180, %v3531
    %v3533 = vpop.f32.mrb[0].mxu0
    %v3534 = vadd.f32 %v3182, %v3533
    %3535 = vmatprep.mubr.f32.mxu0 0.0
    %v3536 = vand.u32 %v125, 4294901760
    %v3537 = vsub.f32 %v125, %v3536
    %3538 = vmatmul.mubr.f32.gmra.mrb[0].mxu0 %v3537
    %v3539 = vpop.f32.mrb[0].mxu0
    %v3540 = vadd.f32 %v3187, %v3539
    %v3541 = vpop.f32.mrb[0].mxu0
    %v3542 = vadd.f32 %v3189, %v3541
    %3543 = vmatprep.mubr.f32.mxu0 0.0
    %v3544 = vand.u32 %v128, 4294901760
    %v3545 = vsub.f32 %v128, %v3544
    %3546 = vmatmul.mubr.f32.gmra.mrb[0].mxu0 %v3545
    %v3547 = vpop.f32.mrb[0].mxu0
    %v3548 = vadd.f32 %v3194, %v3547
    %v3549 = vpop.f32.mrb[0].mxu0
    %v3550 = vadd.f32 %v3196, %v3549
    %3551 = vmatprep.mubr.f32.mxu0 0.0
    %v3552 = vand.u32 %v131, 4294901760
    %v3553 = vsub.f32 %v131, %v3552
    %3554 = vmatmul.mubr.f32.gmra.mrb[0].mxu0 %v3553
    %v3555 = vpop.f32.mrb[0].mxu0
    %v3556 = vadd.f32 %v3201, %v3555
    %v3557 = vpop.f32.mrb[0].mxu0
    %v3558 = vadd.f32 %v3203, %v3557
    %3559 = vmatprep.mubr.f32.mxu0 0.0
    %v3560 = vand.u32 %v134, 4294901760
    %v3561 = vsub.f32 %v134, %v3560
    %3562 = vmatmul.mubr.f32.gmra.mrb[0].mxu0 %v3561
    %v3563 = vpop.f32.mrb[0].mxu0
    %v3564 = vadd.f32 %v3208, %v3563
    %v3565 = vpop.f32.mrb[0].mxu0
    %v3566 = vadd.f32 %v3210, %v3565
    %3567 = vmatprep.mubr.f32.mxu0 0.0
    %v3568 = vand.u32 %v137, 4294901760
    %v3569 = vsub.f32 %v137, %v3568
    %3570 = vmatmul.mubr.f32.gmra.mrb[0].mxu0 %v3569
    %v3571 = vpop.f32.mrb[0].mxu0
    %v3572 = vadd.f32 %v3215, %v3571
    %v3573 = vpop.f32.mrb[0].mxu0
    %v3574 = vadd.f32 %v3217, %v3573
    %3575 = vmatprep.mubr.f32.mxu0 0.0
    %v3576 = vand.u32 %v140, 4294901760
    %v3577 = vsub.f32 %v140, %v3576
    %3578 = vmatmul.mubr.f32.gmra.mrb[0].mxu0 %v3577
    %v3579 = vpop.f32.mrb[0].mxu0
    %v3580 = vadd.f32 %v3222, %v3579
    %v3581 = vpop.f32.mrb[0].mxu0
    %v3582 = vadd.f32 %v3224, %v3581
    %3583 = vmatprep.mubr.f32.mxu0 0.0
    %v3584 = vand.u32 %v143, 4294901760
    %v3585 = vsub.f32 %v143, %v3584
    %3586 = vmatmul.mubr.f32.gmra.mrb[0].mxu0 %v3585
    %v3587 = vpop.f32.mrb[0].mxu0
    %v3588 = vadd.f32 %v3229, %v3587
    %v3589 = vpop.f32.mrb[0].mxu0
    %v3590 = vadd.f32 %v3231, %v3589
    %3591 = vmatprep.mubr.f32.mxu0 0.0
    %v3592 = vand.u32 %v146, 4294901760
    %v3593 = vsub.f32 %v146, %v3592
    %3594 = vmatmul.mubr.f32.gmra.mrb[0].mxu0 %v3593
    %v3595 = vpop.f32.mrb[0].mxu0
    %v3596 = vadd.f32 %v3236, %v3595
    %v3597 = vpop.f32.mrb[0].mxu0
    %v3598 = vadd.f32 %v3238, %v3597
    %3599 = vmatprep.mubr.f32.mxu0 0.0
    %v3600 = vand.u32 %v149, 4294901760
    %v3601 = vsub.f32 %v149, %v3600
    %3602 = vmatmul.mubr.f32.gmra.mrb[0].mxu0 %v3601
    %v3603 = vpop.f32.mrb[0].mxu0
    %v3604 = vadd.f32 %v3243, %v3603
    %v3605 = vpop.f32.mrb[0].mxu0
    %v3606 = vadd.f32 %v3245, %v3605
    %3607 = vmatprep.mubr.f32.mxu0 0.0
    %v3608 = vand.u32 %v152, 4294901760
    %v3609 = vsub.f32 %v152, %v3608
    %3610 = vmatmul.mubr.f32.gmra.mrb[0].mxu0 %v3609
    %v3611 = vpop.f32.mrb[0].mxu0
    %v3612 = vadd.f32 %v3250, %v3611
    %v3613 = vpop.f32.mrb[0].mxu0
    %v3614 = vadd.f32 %v3252, %v3613
    %3615 = vmatprep.mubr.f32.mxu0 0.0
    %v3616 = vand.u32 %v155, 4294901760
    %v3617 = vsub.f32 %v155, %v3616
    %3618 = vmatmul.mubr.f32.gmra.mrb[0].mxu0 %v3617
    %v3619 = vpop.f32.mrb[0].mxu0
    %v3620 = vadd.f32 %v3257, %v3619
    %v3621 = vpop.f32.mrb[0].mxu0
    %v3622 = vadd.f32 %v3259, %v3621
    %3623 = vmatprep.mubr.f32.mxu0 0.0
    %v3624 = vand.u32 %v158, 4294901760
    %v3625 = vsub.f32 %v158, %v3624
    %3626 = vmatmul.mubr.f32.gmra.mrb[0].mxu0 %v3625
    %v3627 = vpop.f32.mrb[0].mxu0
    %v3628 = vadd.f32 %v3264, %v3627
    %v3629 = vpop.f32.mrb[0].mxu0
    %v3630 = vadd.f32 %v3266, %v3629
    %3631 = vmatprep.mubr.f32.mxu0 0.0
    %v3632 = vand.u32 %v161, 4294901760
    %v3633 = vsub.f32 %v161, %v3632
    %3634 = vmatmul.mubr.f32.gmra.mrb[0].mxu0 %v3633
    %v3635 = vpop.f32.mrb[0].mxu0
    %v3636 = vadd.f32 %v3271, %v3635
    %v3637 = vpop.f32.mrb[0].mxu0
    %v3638 = vadd.f32 %v3273, %v3637
    %3639 = vmatprep.mubr.f32.mxu0 0.0
    %v3640 = vand.u32 %v164, 4294901760
    %v3641 = vsub.f32 %v164, %v3640
    %3642 = vmatmul.mubr.f32.gmra.mrb[0].mxu0 %v3641
    %v3643 = vpop.f32.mrb[0].mxu0
    %v3644 = vadd.f32 %v3278, %v3643
    %v3645 = vpop.f32.mrb[0].mxu0
    %v3646 = vadd.f32 %v3280, %v3645
    %3647 = vmatprep.mubr.f32.mxu0 0.0
    %v3648 = vand.u32 %v167, 4294901760
    %v3649 = vsub.f32 %v167, %v3648
    %3650 = vmatmul.mubr.f32.gmra.mrb[0].mxu0 %v3649
    %v3651 = vpop.f32.mrb[0].mxu0
    %v3652 = vadd.f32 %v3285, %v3651
    %v3653 = vpop.f32.mrb[0].mxu0
    %v3654 = vadd.f32 %v3287, %v3653
    %3655 = vmatprep.mubr.f32.mxu0 0.0
    %v3656 = vand.u32 %v170, 4294901760
    %v3657 = vsub.f32 %v170, %v3656
    %3658 = vmatmul.mubr.f32.gmra.mrb[0].mxu0 %v3657
    %v3659 = vpop.f32.mrb[0].mxu0
    %v3660 = vadd.f32 %v3292, %v3659
    %v3661 = vpop.f32.mrb[0].mxu0
    %v3662 = vadd.f32 %v3294, %v3661
    %3663 = vmatprep.mubr.f32.mxu0 0.0
    %v3664 = vand.u32 %v173, 4294901760
    %v3665 = vsub.f32 %v173, %v3664
    %3666 = vmatmul.mubr.f32.gmra.mrb[0].mxu0 %v3665
    %v3667 = vpop.f32.mrb[0].mxu0
    %v3668 = vadd.f32 %v3299, %v3667
    %v3669 = vpop.f32.mrb[0].mxu0
    %v3670 = vadd.f32 %v3301, %v3669
    %3671 = vmatprep.mubr.f32.mxu0 0.0
    %v3672 = vand.u32 %v176, 4294901760
    %v3673 = vsub.f32 %v176, %v3672
    %3674 = vmatmul.mubr.f32.gmra.mrb[0].mxu0 %v3673
    %v3675 = vpop.f32.mrb[0].mxu0
    %v3676 = vadd.f32 %v3306, %v3675
    %v3677 = vpop.f32.mrb[0].mxu0
    %v3678 = vadd.f32 %v3308, %v3677
    %3679 = vmatprep.mubr.f32.mxu0 0.0
    %v3680 = vand.u32 %v179, 4294901760
    %v3681 = vsub.f32 %v179, %v3680
    %3682 = vmatmul.mubr.f32.gmra.mrb[0].mxu0 %v3681
    %v3683 = vpop.f32.mrb[0].mxu0
    %v3684 = vadd.f32 %v3313, %v3683
    %v3685 = vpop.f32.mrb[0].mxu0
    %v3686 = vadd.f32 %v3315, %v3685
    %3687 = vmatprep.mubr.f32.mxu0 0.0
    %v3688 = vand.u32 %v182, 4294901760
    %v3689 = vsub.f32 %v182, %v3688
    %3690 = vmatmul.mubr.f32.gmra.mrb[0].mxu0 %v3689
    %v3691 = vpop.f32.mrb[0].mxu0
    %v3692 = vadd.f32 %v3320, %v3691
    %v3693 = vpop.f32.mrb[0].mxu0
    %v3694 = vadd.f32 %v3322, %v3693
    %3695 = vmatprep.mubr.f32.mxu0 0.0
    %v3696 = vand.u32 %v185, 4294901760
    %v3697 = vsub.f32 %v185, %v3696
    %3698 = vmatmul.mubr.f32.gmra.mrb[0].mxu0 %v3697
    %v3699 = vpop.f32.mrb[0].mxu0
    %v3700 = vadd.f32 %v3327, %v3699
    %v3701 = vpop.f32.mrb[0].mxu0
    %v3702 = vadd.f32 %v3329, %v3701
    %3703 = vmatprep.mubr.f32.mxu0 0.0
    %v3704 = vand.u32 %v188, 4294901760
    %v3705 = vsub.f32 %v188, %v3704
    %3706 = vmatmul.mubr.f32.gmra.mrb[0].mxu0 %v3705
    %v3707 = vpop.f32.mrb[0].mxu0
    %v3708 = vadd.f32 %v3334, %v3707
    %v3709 = vpop.f32.mrb[0].mxu0
    %v3710 = vadd.f32 %v3336, %v3709
    %3711 = vmatprep.mubr.f32.mxu0 0.0
    %v3712 = vand.u32 %v191, 4294901760
    %v3713 = vsub.f32 %v191, %v3712
    %3714 = vmatmul.mubr.f32.gmra.mrb[0].mxu0 %v3713
    %v3715 = vpop.f32.mrb[0].mxu0
    %v3716 = vadd.f32 %v3341, %v3715
    %v3717 = vpop.f32.mrb[0].mxu0
    %v3718 = vadd.f32 %v3343, %v3717
    %3719 = vmatprep.mubr.f32.mxu0 0.0
    %v3720 = vand.u32 %v194, 4294901760
    %v3721 = vsub.f32 %v194, %v3720
    %3722 = vmatmul.mubr.f32.gmra.mrb[0].mxu0 %v3721
    %v3723 = vpop.f32.mrb[0].mxu0
    %v3724 = vadd.f32 %v3348, %v3723
    %v3725 = vpop.f32.mrb[0].mxu0
    %v3726 = vadd.f32 %v3350, %v3725
    %3727 = vmatprep.mubr.f32.mxu0 0.0
    %v3728 = vand.u32 %v197, 4294901760
    %v3729 = vsub.f32 %v197, %v3728
    %3730 = vmatmul.mubr.f32.gmra.mrb[0].mxu0 %v3729
    %v3731 = vpop.f32.mrb[0].mxu0
    %v3732 = vadd.f32 %v3355, %v3731
    %v3733 = vpop.f32.mrb[0].mxu0
    %v3734 = vadd.f32 %v3357, %v3733
    %3735 = vdwg.mxu0
    %v3736 = vand.u32 %v51, 4294901760
    %3737 = vmatprep.subr.mxu0 %v3736
    %v3738 = vand.u32 %v50, 4294901760
    %3739 = vmatpush1.msra.mxu0 %v3738
    %v3740 = vand.u32 %v58, 4294901760
    %3741 = vmatprep.subr.mxu0 %v3740
    %v3742 = vand.u32 %v57, 4294901760
    %3743 = vmatpush1.msra.mxu0 %v3742
    %v3744 = vand.u32 %v65, 4294901760
    %3745 = vmatprep.subr.mxu0 %v3744
    %v3746 = vand.u32 %v64, 4294901760
    %3747 = vmatpush1.msra.mxu0 %v3746
    %v3748 = vand.u32 %v72, 4294901760
    %3749 = vmatprep.subr.mxu0 %v3748
    %v3750 = vand.u32 %v71, 4294901760
    %3751 = vmatpush1.msra.mxu0 %v3750
    %v3752 = vand.u32 %v79, 4294901760
    %3753 = vmatprep.subr.mxu0 %v3752
    %v3754 = vand.u32 %v78, 4294901760
    %3755 = vmatpush1.msra.mxu0 %v3754
    %v3756 = vand.u32 %v86, 4294901760
    %3757 = vmatprep.subr.mxu0 %v3756
    %v3758 = vand.u32 %v85, 4294901760
    %3759 = vmatpush1.msra.mxu0 %v3758
    %3760 = vmatprep.subr.mxu0 0.0
    %3761 = vmatpush1.msra.mxu0 0.0
    %3762 = vmatprep.subr.mxu0 0.0
    %3763 = vmatpush1.msra.mxu0 0.0
    %3764 = vmatprep.subr.mxu0 0.0
    %3765 = vmatpush1.msra.mxu0 0.0
    %3766 = vmatprep.subr.mxu0 0.0
    %3767 = vmatpush1.msra.mxu0 0.0
    %3768 = vmatprep.subr.mxu0 0.0
    %3769 = vmatpush1.msra.mxu0 0.0
    %3770 = vmatprep.subr.mxu0 0.0
    %3771 = vmatpush1.msra.mxu0 0.0
    %3772 = vmatprep.subr.mxu0 0.0
    %3773 = vmatpush1.msra.mxu0 0.0
    %3774 = vmatprep.subr.mxu0 0.0
    %3775 = vmatpush1.msra.mxu0 0.0
    %3776 = vmatprep.subr.mxu0 0.0
    %3777 = vmatpush1.msra.mxu0 0.0
    %3778 = vmatprep.subr.mxu0 0.0
    %3779 = vmatpush1.msra.mxu0 0.0
    %3780 = vmatprep.subr.mxu0 0.0
    %3781 = vmatpush1.msra.mxu0 0.0
    %3782 = vmatprep.subr.mxu0 0.0
    %3783 = vmatpush1.msra.mxu0 0.0
    %3784 = vmatprep.subr.mxu0 0.0
    %3785 = vmatpush1.msra.mxu0 0.0
    %3786 = vmatprep.subr.mxu0 0.0
    %3787 = vmatpush1.msra.mxu0 0.0
    %3788 = vmatprep.subr.mxu0 0.0
    %3789 = vmatpush1.msra.mxu0 0.0
    %3790 = vmatprep.subr.mxu0 0.0
    %3791 = vmatpush1.msra.mxu0 0.0
    %3792 = vmatprep.subr.mxu0 0.0
    %3793 = vmatpush1.msra.mxu0 0.0
    %3794 = vmatprep.subr.mxu0 0.0
    %3795 = vmatpush1.msra.mxu0 0.0
    %3796 = vmatprep.subr.mxu0 0.0
    %3797 = vmatpush1.msra.mxu0 0.0
    %3798 = vmatprep.subr.mxu0 0.0
    %3799 = vmatpush1.msra.mxu0 0.0
    %3800 = vmatprep.subr.mxu0 0.0
    %3801 = vmatpush1.msra.mxu0 0.0
    %3802 = vmatprep.subr.mxu0 0.0
    %3803 = vmatpush1.msra.mxu0 0.0
    %3804 = vmatprep.subr.mxu0 0.0
    %3805 = vmatpush1.msra.mxu0 0.0
    %3806 = vmatprep.subr.mxu0 0.0
    %3807 = vmatpush1.msra.mxu0 0.0
    %3808 = vmatprep.subr.mxu0 0.0
    %3809 = vmatpush1.msra.mxu0 0.0
    %3810 = vmatprep.subr.mxu0 0.0
    %3811 = vmatpush1.msra.mxu0 0.0
    %3812 = vmatprep.mubr.f32.mxu0 0.0
    %v3813 = vand.u32 %v92, 4294901760
    %v3814 = vsub.f32 %v92, %v3813
    %v3815 = vand.u32 %v3814, 4294901760
    %3816 = vmatmul.mubr.f32.gmra.mrb[0].mxu0 %v3815
    %v3817 = vpop.f32.mrb[0].mxu0
    %v3818 = vadd.f32 %v3452, %v3817
    %v3819 = vpop.f32.mrb[0].mxu0
    %v3820 = vadd.f32 %v3454, %v3819
    %3821 = vmatprep.mubr.f32.mxu0 0.0
    %v3822 = vand.u32 %v95, 4294901760
    %v3823 = vsub.f32 %v95, %v3822
    %v3824 = vand.u32 %v3823, 4294901760
    %3825 = vmatmul.mubr.f32.gmra.mrb[0].mxu0 %v3824
    %v3826 = vpop.f32.mrb[0].mxu0
    %v3827 = vadd.f32 %v3460, %v3826
    %v3828 = vpop.f32.mrb[0].mxu0
    %v3829 = vadd.f32 %v3462, %v3828
    %3830 = vmatprep.mubr.f32.mxu0 0.0
    %v3831 = vand.u32 %v98, 4294901760
    %v3832 = vsub.f32 %v98, %v3831
    %v3833 = vand.u32 %v3832, 4294901760
    %3834 = vmatmul.mubr.f32.gmra.mrb[0].mxu0 %v3833
    %v3835 = vpop.f32.mrb[0].mxu0
    %v3836 = vadd.f32 %v3468, %v3835
    %v3837 = vpop.f32.mrb[0].mxu0
    %v3838 = vadd.f32 %v3470, %v3837
    %3839 = vmatprep.mubr.f32.mxu0 0.0
    %v3840 = vand.u32 %v101, 4294901760
    %v3841 = vsub.f32 %v101, %v3840
    %v3842 = vand.u32 %v3841, 4294901760
    %3843 = vmatmul.mubr.f32.gmra.mrb[0].mxu0 %v3842
    %v3844 = vpop.f32.mrb[0].mxu0
    %v3845 = vadd.f32 %v3476, %v3844
    %v3846 = vpop.f32.mrb[0].mxu0
    %v3847 = vadd.f32 %v3478, %v3846
    %3848 = vmatprep.mubr.f32.mxu0 0.0
    %v3849 = vand.u32 %v104, 4294901760
    %v3850 = vsub.f32 %v104, %v3849
    %v3851 = vand.u32 %v3850, 4294901760
    %3852 = vmatmul.mubr.f32.gmra.mrb[0].mxu0 %v3851
    %v3853 = vpop.f32.mrb[0].mxu0
    %v3854 = vadd.f32 %v3484, %v3853
    %v3855 = vpop.f32.mrb[0].mxu0
    %v3856 = vadd.f32 %v3486, %v3855
    %3857 = vmatprep.mubr.f32.mxu0 0.0
    %v3858 = vand.u32 %v107, 4294901760
    %v3859 = vsub.f32 %v107, %v3858
    %v3860 = vand.u32 %v3859, 4294901760
    %3861 = vmatmul.mubr.f32.gmra.mrb[0].mxu0 %v3860
    %v3862 = vpop.f32.mrb[0].mxu0
    %v3863 = vadd.f32 %v3492, %v3862
    %v3864 = vpop.f32.mrb[0].mxu0
    %v3865 = vadd.f32 %v3494, %v3864
    %3866 = vmatprep.mubr.f32.mxu0 0.0
    %v3867 = vand.u32 %v110, 4294901760
    %v3868 = vsub.f32 %v110, %v3867
    %v3869 = vand.u32 %v3868, 4294901760
    %3870 = vmatmul.mubr.f32.gmra.mrb[0].mxu0 %v3869
    %v3871 = vpop.f32.mrb[0].mxu0
    %v3872 = vadd.f32 %v3500, %v3871
    %v3873 = vpop.f32.mrb[0].mxu0
    %v3874 = vadd.f32 %v3502, %v3873
    %3875 = vmatprep.mubr.f32.mxu0 0.0
    %v3876 = vand.u32 %v113, 4294901760
    %v3877 = vsub.f32 %v113, %v3876
    %v3878 = vand.u32 %v3877, 4294901760
    %3879 = vmatmul.mubr.f32.gmra.mrb[0].mxu0 %v3878
    %v3880 = vpop.f32.mrb[0].mxu0
    %v3881 = vadd.f32 %v3508, %v3880
    %v3882 = vpop.f32.mrb[0].mxu0
    %v3883 = vadd.f32 %v3510, %v3882
    %3884 = vmatprep.mubr.f32.mxu0 0.0
    %v3885 = vand.u32 %v116, 4294901760
    %v3886 = vsub.f32 %v116, %v3885
    %v3887 = vand.u32 %v3886, 4294901760
    %3888 = vmatmul.mubr.f32.gmra.mrb[0].mxu0 %v3887
    %v3889 = vpop.f32.mrb[0].mxu0
    %v3890 = vadd.f32 %v3516, %v3889
    %v3891 = vpop.f32.mrb[0].mxu0
    %v3892 = vadd.f32 %v3518, %v3891
    %3893 = vmatprep.mubr.f32.mxu0 0.0
    %v3894 = vand.u32 %v119, 4294901760
    %v3895 = vsub.f32 %v119, %v3894
    %v3896 = vand.u32 %v3895, 4294901760
    %3897 = vmatmul.mubr.f32.gmra.mrb[0].mxu0 %v3896
    %v3898 = vpop.f32.mrb[0].mxu0
    %v3899 = vadd.f32 %v3524, %v3898
    %v3900 = vpop.f32.mrb[0].mxu0
    %v3901 = vadd.f32 %v3526, %v3900
    %3902 = vmatprep.mubr.f32.mxu0 0.0
    %v3903 = vand.u32 %v122, 4294901760
    %v3904 = vsub.f32 %v122, %v3903
    %v3905 = vand.u32 %v3904, 4294901760
    %3906 = vmatmul.mubr.f32.gmra.mrb[0].mxu0 %v3905
    %v3907 = vpop.f32.mrb[0].mxu0
    %v3908 = vadd.f32 %v3532, %v3907
    %v3909 = vpop.f32.mrb[0].mxu0
    %v3910 = vadd.f32 %v3534, %v3909
    %3911 = vmatprep.mubr.f32.mxu0 0.0
    %v3912 = vand.u32 %v125, 4294901760
    %v3913 = vsub.f32 %v125, %v3912
    %v3914 = vand.u32 %v3913, 4294901760
    %3915 = vmatmul.mubr.f32.gmra.mrb[0].mxu0 %v3914
    %v3916 = vpop.f32.mrb[0].mxu0
    %v3917 = vadd.f32 %v3540, %v3916
    %v3918 = vpop.f32.mrb[0].mxu0
    %v3919 = vadd.f32 %v3542, %v3918
    %3920 = vmatprep.mubr.f32.mxu0 0.0
    %v3921 = vand.u32 %v128, 4294901760
    %v3922 = vsub.f32 %v128, %v3921
    %v3923 = vand.u32 %v3922, 4294901760
    %3924 = vmatmul.mubr.f32.gmra.mrb[0].mxu0 %v3923
    %v3925 = vpop.f32.mrb[0].mxu0
    %v3926 = vadd.f32 %v3548, %v3925
    %v3927 = vpop.f32.mrb[0].mxu0
    %v3928 = vadd.f32 %v3550, %v3927
    %3929 = vmatprep.mubr.f32.mxu0 0.0
    %v3930 = vand.u32 %v131, 4294901760
    %v3931 = vsub.f32 %v131, %v3930
    %v3932 = vand.u32 %v3931, 4294901760
    %3933 = vmatmul.mubr.f32.gmra.mrb[0].mxu0 %v3932
    %v3934 = vpop.f32.mrb[0].mxu0
    %v3935 = vadd.f32 %v3556, %v3934
    %v3936 = vpop.f32.mrb[0].mxu0
    %v3937 = vadd.f32 %v3558, %v3936
    %3938 = vmatprep.mubr.f32.mxu0 0.0
    %v3939 = vand.u32 %v134, 4294901760
    %v3940 = vsub.f32 %v134, %v3939
    %v3941 = vand.u32 %v3940, 4294901760
    %3942 = vmatmul.mubr.f32.gmra.mrb[0].mxu0 %v3941
    %v3943 = vpop.f32.mrb[0].mxu0
    %v3944 = vadd.f32 %v3564, %v3943
    %v3945 = vpop.f32.mrb[0].mxu0
    %v3946 = vadd.f32 %v3566, %v3945
    %3947 = vmatprep.mubr.f32.mxu0 0.0
    %v3948 = vand.u32 %v137, 4294901760
    %v3949 = vsub.f32 %v137, %v3948
    %v3950 = vand.u32 %v3949, 4294901760
    %3951 = vmatmul.mubr.f32.gmra.mrb[0].mxu0 %v3950
    %v3952 = vpop.f32.mrb[0].mxu0
    %v3953 = vadd.f32 %v3572, %v3952
    %v3954 = vpop.f32.mrb[0].mxu0
    %v3955 = vadd.f32 %v3574, %v3954
    %3956 = vmatprep.mubr.f32.mxu0 0.0
    %v3957 = vand.u32 %v140, 4294901760
    %v3958 = vsub.f32 %v140, %v3957
    %v3959 = vand.u32 %v3958, 4294901760
    %3960 = vmatmul.mubr.f32.gmra.mrb[0].mxu0 %v3959
    %v3961 = vpop.f32.mrb[0].mxu0
    %v3962 = vadd.f32 %v3580, %v3961
    %v3963 = vpop.f32.mrb[0].mxu0
    %v3964 = vadd.f32 %v3582, %v3963
    %3965 = vmatprep.mubr.f32.mxu0 0.0
    %v3966 = vand.u32 %v143, 4294901760
    %v3967 = vsub.f32 %v143, %v3966
    %v3968 = vand.u32 %v3967, 4294901760
    %3969 = vmatmul.mubr.f32.gmra.mrb[0].mxu0 %v3968
    %v3970 = vpop.f32.mrb[0].mxu0
    %v3971 = vadd.f32 %v3588, %v3970
    %v3972 = vpop.f32.mrb[0].mxu0
    %v3973 = vadd.f32 %v3590, %v3972
    %3974 = vmatprep.mubr.f32.mxu0 0.0
    %v3975 = vand.u32 %v146, 4294901760
    %v3976 = vsub.f32 %v146, %v3975
    %v3977 = vand.u32 %v3976, 4294901760
    %3978 = vmatmul.mubr.f32.gmra.mrb[0].mxu0 %v3977
    %v3979 = vpop.f32.mrb[0].mxu0
    %v3980 = vadd.f32 %v3596, %v3979
    %v3981 = vpop.f32.mrb[0].mxu0
    %v3982 = vadd.f32 %v3598, %v3981
    %3983 = vmatprep.mubr.f32.mxu0 0.0
    %v3984 = vand.u32 %v149, 4294901760
    %v3985 = vsub.f32 %v149, %v3984
    %v3986 = vand.u32 %v3985, 4294901760
    %3987 = vmatmul.mubr.f32.gmra.mrb[0].mxu0 %v3986
    %v3988 = vpop.f32.mrb[0].mxu0
    %v3989 = vadd.f32 %v3604, %v3988
    %v3990 = vpop.f32.mrb[0].mxu0
    %v3991 = vadd.f32 %v3606, %v3990
    %3992 = vmatprep.mubr.f32.mxu0 0.0
    %v3993 = vand.u32 %v152, 4294901760
    %v3994 = vsub.f32 %v152, %v3993
    %v3995 = vand.u32 %v3994, 4294901760
    %3996 = vmatmul.mubr.f32.gmra.mrb[0].mxu0 %v3995
    %v3997 = vpop.f32.mrb[0].mxu0
    %v3998 = vadd.f32 %v3612, %v3997
    %v3999 = vpop.f32.mrb[0].mxu0
    %v4000 = vadd.f32 %v3614, %v3999
    %4001 = vmatprep.mubr.f32.mxu0 0.0
    %v4002 = vand.u32 %v155, 4294901760
    %v4003 = vsub.f32 %v155, %v4002
    %v4004 = vand.u32 %v4003, 4294901760
    %4005 = vmatmul.mubr.f32.gmra.mrb[0].mxu0 %v4004
    %v4006 = vpop.f32.mrb[0].mxu0
    %v4007 = vadd.f32 %v3620, %v4006
    %v4008 = vpop.f32.mrb[0].mxu0
    %v4009 = vadd.f32 %v3622, %v4008
    %4010 = vmatprep.mubr.f32.mxu0 0.0
    %v4011 = vand.u32 %v158, 4294901760
    %v4012 = vsub.f32 %v158, %v4011
    %v4013 = vand.u32 %v4012, 4294901760
    %4014 = vmatmul.mubr.f32.gmra.mrb[0].mxu0 %v4013
    %v4015 = vpop.f32.mrb[0].mxu0
    %v4016 = vadd.f32 %v3628, %v4015
    %v4017 = vpop.f32.mrb[0].mxu0
    %v4018 = vadd.f32 %v3630, %v4017
    %4019 = vmatprep.mubr.f32.mxu0 0.0
    %v4020 = vand.u32 %v161, 4294901760
    %v4021 = vsub.f32 %v161, %v4020
    %v4022 = vand.u32 %v4021, 4294901760
    %4023 = vmatmul.mubr.f32.gmra.mrb[0].mxu0 %v4022
    %v4024 = vpop.f32.mrb[0].mxu0
    %v4025 = vadd.f32 %v3636, %v4024
    %v4026 = vpop.f32.mrb[0].mxu0
    %v4027 = vadd.f32 %v3638, %v4026
    %4028 = vmatprep.mubr.f32.mxu0 0.0
    %v4029 = vand.u32 %v164, 4294901760
    %v4030 = vsub.f32 %v164, %v4029
    %v4031 = vand.u32 %v4030, 4294901760
    %4032 = vmatmul.mubr.f32.gmra.mrb[0].mxu0 %v4031
    %v4033 = vpop.f32.mrb[0].mxu0
    %v4034 = vadd.f32 %v3644, %v4033
    %v4035 = vpop.f32.mrb[0].mxu0
    %v4036 = vadd.f32 %v3646, %v4035
    %4037 = vmatprep.mubr.f32.mxu0 0.0
    %v4038 = vand.u32 %v167, 4294901760
    %v4039 = vsub.f32 %v167, %v4038
    %v4040 = vand.u32 %v4039, 4294901760
    %4041 = vmatmul.mubr.f32.gmra.mrb[0].mxu0 %v4040
    %v4042 = vpop.f32.mrb[0].mxu0
    %v4043 = vadd.f32 %v3652, %v4042
    %v4044 = vpop.f32.mrb[0].mxu0
    %v4045 = vadd.f32 %v3654, %v4044
    %4046 = vmatprep.mubr.f32.mxu0 0.0
    %v4047 = vand.u32 %v170, 4294901760
    %v4048 = vsub.f32 %v170, %v4047
    %v4049 = vand.u32 %v4048, 4294901760
    %4050 = vmatmul.mubr.f32.gmra.mrb[0].mxu0 %v4049
    %v4051 = vpop.f32.mrb[0].mxu0
    %v4052 = vadd.f32 %v3660, %v4051
    %v4053 = vpop.f32.mrb[0].mxu0
    %v4054 = vadd.f32 %v3662, %v4053
    %4055 = vmatprep.mubr.f32.mxu0 0.0
    %v4056 = vand.u32 %v173, 4294901760
    %v4057 = vsub.f32 %v173, %v4056
    %v4058 = vand.u32 %v4057, 4294901760
    %4059 = vmatmul.mubr.f32.gmra.mrb[0].mxu0 %v4058
    %v4060 = vpop.f32.mrb[0].mxu0
    %v4061 = vadd.f32 %v3668, %v4060
    %v4062 = vpop.f32.mrb[0].mxu0
    %v4063 = vadd.f32 %v3670, %v4062
    %4064 = vmatprep.mubr.f32.mxu0 0.0
    %v4065 = vand.u32 %v176, 4294901760
    %v4066 = vsub.f32 %v176, %v4065
    %v4067 = vand.u32 %v4066, 4294901760
    %4068 = vmatmul.mubr.f32.gmra.mrb[0].mxu0 %v4067
    %v4069 = vpop.f32.mrb[0].mxu0
    %v4070 = vadd.f32 %v3676, %v4069
    %v4071 = vpop.f32.mrb[0].mxu0
    %v4072 = vadd.f32 %v3678, %v4071
    %4073 = vmatprep.mubr.f32.mxu0 0.0
    %v4074 = vand.u32 %v179, 4294901760
    %v4075 = vsub.f32 %v179, %v4074
    %v4076 = vand.u32 %v4075, 4294901760
    %4077 = vmatmul.mubr.f32.gmra.mrb[0].mxu0 %v4076
    %v4078 = vpop.f32.mrb[0].mxu0
    %v4079 = vadd.f32 %v3684, %v4078
    %v4080 = vpop.f32.mrb[0].mxu0
    %v4081 = vadd.f32 %v3686, %v4080
    %4082 = vmatprep.mubr.f32.mxu0 0.0
    %v4083 = vand.u32 %v182, 4294901760
    %v4084 = vsub.f32 %v182, %v4083
    %v4085 = vand.u32 %v4084, 4294901760
    %4086 = vmatmul.mubr.f32.gmra.mrb[0].mxu0 %v4085
    %v4087 = vpop.f32.mrb[0].mxu0
    %v4088 = vadd.f32 %v3692, %v4087
    %v4089 = vpop.f32.mrb[0].mxu0
    %v4090 = vadd.f32 %v3694, %v4089
    %4091 = vmatprep.mubr.f32.mxu0 0.0
    %v4092 = vand.u32 %v185, 4294901760
    %v4093 = vsub.f32 %v185, %v4092
    %v4094 = vand.u32 %v4093, 4294901760
    %4095 = vmatmul.mubr.f32.gmra.mrb[0].mxu0 %v4094
    %v4096 = vpop.f32.mrb[0].mxu0
    %v4097 = vadd.f32 %v3700, %v4096
    %v4098 = vpop.f32.mrb[0].mxu0
    %v4099 = vadd.f32 %v3702, %v4098
    %4100 = vmatprep.mubr.f32.mxu0 0.0
    %v4101 = vand.u32 %v188, 4294901760
    %v4102 = vsub.f32 %v188, %v4101
    %v4103 = vand.u32 %v4102, 4294901760
    %4104 = vmatmul.mubr.f32.gmra.mrb[0].mxu0 %v4103
    %v4105 = vpop.f32.mrb[0].mxu0
    %v4106 = vadd.f32 %v3708, %v4105
    %v4107 = vpop.f32.mrb[0].mxu0
    %v4108 = vadd.f32 %v3710, %v4107
    %4109 = vmatprep.mubr.f32.mxu0 0.0
    %v4110 = vand.u32 %v191, 4294901760
    %v4111 = vsub.f32 %v191, %v4110
    %v4112 = vand.u32 %v4111, 4294901760
    %4113 = vmatmul.mubr.f32.gmra.mrb[0].mxu0 %v4112
    %v4114 = vpop.f32.mrb[0].mxu0
    %v4115 = vadd.f32 %v3716, %v4114
    %v4116 = vpop.f32.mrb[0].mxu0
    %v4117 = vadd.f32 %v3718, %v4116
    %4118 = vmatprep.mubr.f32.mxu0 0.0
    %v4119 = vand.u32 %v194, 4294901760
    %v4120 = vsub.f32 %v194, %v4119
    %v4121 = vand.u32 %v4120, 4294901760
    %4122 = vmatmul.mubr.f32.gmra.mrb[0].mxu0 %v4121
    %v4123 = vpop.f32.mrb[0].mxu0
    %v4124 = vadd.f32 %v3724, %v4123
    %v4125 = vpop.f32.mrb[0].mxu0
    %v4126 = vadd.f32 %v3726, %v4125
    %4127 = vmatprep.mubr.f32.mxu0 0.0
    %v4128 = vand.u32 %v197, 4294901760
    %v4129 = vsub.f32 %v197, %v4128
    %v4130 = vand.u32 %v4129, 4294901760
    %4131 = vmatmul.mubr.f32.gmra.mrb[0].mxu0 %v4130
    %v4132 = vpop.f32.mrb[0].mxu0
    %v4133 = vadd.f32 %v3732, %v4132
    %v4134 = vpop.f32.mrb[0].mxu0
    %v4135 = vadd.f32 %v3734, %v4134
    %4136 = vdwg.mxu0
    %v4137 = vand.u32 %v51, 4294901760
    %v4138 = vsub.f32 %v51, %v4137
    %v4139 = vand.u32 %v4138, 4294901760
    %4140 = vmatprep.subr.mxu0 %v4139
    %v4141 = vand.u32 %v50, 4294901760
    %v4142 = vsub.f32 %v50, %v4141
    %v4143 = vand.u32 %v4142, 4294901760
    %4144 = vmatpush1.msra.mxu0 %v4143
    %v4145 = vand.u32 %v58, 4294901760
    %v4146 = vsub.f32 %v58, %v4145
    %v4147 = vand.u32 %v4146, 4294901760
    %4148 = vmatprep.subr.mxu0 %v4147
    %v4149 = vand.u32 %v57, 4294901760
    %v4150 = vsub.f32 %v57, %v4149
    %v4151 = vand.u32 %v4150, 4294901760
    %4152 = vmatpush1.msra.mxu0 %v4151
    %v4153 = vand.u32 %v65, 4294901760
    %v4154 = vsub.f32 %v65, %v4153
    %v4155 = vand.u32 %v4154, 4294901760
    %4156 = vmatprep.subr.mxu0 %v4155
    %v4157 = vand.u32 %v64, 4294901760
    %v4158 = vsub.f32 %v64, %v4157
    %v4159 = vand.u32 %v4158, 4294901760
    %4160 = vmatpush1.msra.mxu0 %v4159
    %v4161 = vand.u32 %v72, 4294901760
    %v4162 = vsub.f32 %v72, %v4161
    %v4163 = vand.u32 %v4162, 4294901760
    %4164 = vmatprep.subr.mxu0 %v4163
    %v4165 = vand.u32 %v71, 4294901760
    %v4166 = vsub.f32 %v71, %v4165
    %v4167 = vand.u32 %v4166, 4294901760
    %4168 = vmatpush1.msra.mxu0 %v4167
    %v4169 = vand.u32 %v79, 4294901760
    %v4170 = vsub.f32 %v79, %v4169
    %v4171 = vand.u32 %v4170, 4294901760
    %4172 = vmatprep.subr.mxu0 %v4171
    %v4173 = vand.u32 %v78, 4294901760
    %v4174 = vsub.f32 %v78, %v4173
    %v4175 = vand.u32 %v4174, 4294901760
    %4176 = vmatpush1.msra.mxu0 %v4175
    %v4177 = vand.u32 %v86, 4294901760
    %v4178 = vsub.f32 %v86, %v4177
    %v4179 = vand.u32 %v4178, 4294901760
    %4180 = vmatprep.subr.mxu0 %v4179
    %v4181 = vand.u32 %v85, 4294901760
    %v4182 = vsub.f32 %v85, %v4181
    %v4183 = vand.u32 %v4182, 4294901760
    %4184 = vmatpush1.msra.mxu0 %v4183
    %4185 = vmatprep.subr.mxu0 0.0
    %4186 = vmatpush1.msra.mxu0 0.0
    %4187 = vmatprep.subr.mxu0 0.0
    %4188 = vmatpush1.msra.mxu0 0.0
    %4189 = vmatprep.subr.mxu0 0.0
    %4190 = vmatpush1.msra.mxu0 0.0
    %4191 = vmatprep.subr.mxu0 0.0
    %4192 = vmatpush1.msra.mxu0 0.0
    %4193 = vmatprep.subr.mxu0 0.0
    %4194 = vmatpush1.msra.mxu0 0.0
    %4195 = vmatprep.subr.mxu0 0.0
    %4196 = vmatpush1.msra.mxu0 0.0
    %4197 = vmatprep.subr.mxu0 0.0
    %4198 = vmatpush1.msra.mxu0 0.0
    %4199 = vmatprep.subr.mxu0 0.0
    %4200 = vmatpush1.msra.mxu0 0.0
    %4201 = vmatprep.subr.mxu0 0.0
    %4202 = vmatpush1.msra.mxu0 0.0
    %4203 = vmatprep.subr.mxu0 0.0
    %4204 = vmatpush1.msra.mxu0 0.0
    %4205 = vmatprep.subr.mxu0 0.0
    %4206 = vmatpush1.msra.mxu0 0.0
    %4207 = vmatprep.subr.mxu0 0.0
    %4208 = vmatpush1.msra.mxu0 0.0
    %4209 = vmatprep.subr.mxu0 0.0
    %4210 = vmatpush1.msra.mxu0 0.0
    %4211 = vmatprep.subr.mxu0 0.0
    %4212 = vmatpush1.msra.mxu0 0.0
    %4213 = vmatprep.subr.mxu0 0.0
    %4214 = vmatpush1.msra.mxu0 0.0
    %4215 = vmatprep.subr.mxu0 0.0
    %4216 = vmatpush1.msra.mxu0 0.0
    %4217 = vmatprep.subr.mxu0 0.0
    %4218 = vmatpush1.msra.mxu0 0.0
    %4219 = vmatprep.subr.mxu0 0.0
    %4220 = vmatpush1.msra.mxu0 0.0
    %4221 = vmatprep.subr.mxu0 0.0
    %4222 = vmatpush1.msra.mxu0 0.0
    %4223 = vmatprep.subr.mxu0 0.0
    %4224 = vmatpush1.msra.mxu0 0.0
    %4225 = vmatprep.subr.mxu0 0.0
    %4226 = vmatpush1.msra.mxu0 0.0
    %4227 = vmatprep.subr.mxu0 0.0
    %4228 = vmatpush1.msra.mxu0 0.0
    %4229 = vmatprep.subr.mxu0 0.0
    %4230 = vmatpush1.msra.mxu0 0.0
    %4231 = vmatprep.subr.mxu0 0.0
    %4232 = vmatpush1.msra.mxu0 0.0
    %4233 = vmatprep.subr.mxu0 0.0
    %4234 = vmatpush1.msra.mxu0 0.0
    %4235 = vmatprep.subr.mxu0 0.0
    %4236 = vmatpush1.msra.mxu0 0.0
    %4237 = vmatprep.mubr.f32.mxu0 0.0
    %v4238 = vand.u32 %v92, 4294901760
    %4239 = vmatmul.mubr.f32.gmra.mrb[0].mxu0 %v4238
    %v4240 = vpop.f32.mrb[0].mxu0
    %v4241 = vadd.f32 %v3818, %v4240
    %v4242 = vpop.f32.mrb[0].mxu0
    %v4243 = vadd.f32 %v3820, %v4242
    %4244 = vmatprep.mubr.f32.mxu0 0.0
    %v4245 = vand.u32 %v95, 4294901760
    %4246 = vmatmul.mubr.f32.gmra.mrb[0].mxu0 %v4245
    %v4247 = vpop.f32.mrb[0].mxu0
    %v4248 = vadd.f32 %v3827, %v4247
    %v4249 = vpop.f32.mrb[0].mxu0
    %v4250 = vadd.f32 %v3829, %v4249
    %4251 = vmatprep.mubr.f32.mxu0 0.0
    %v4252 = vand.u32 %v98, 4294901760
    %4253 = vmatmul.mubr.f32.gmra.mrb[0].mxu0 %v4252
    %v4254 = vpop.f32.mrb[0].mxu0
    %v4255 = vadd.f32 %v3836, %v4254
    %v4256 = vpop.f32.mrb[0].mxu0
    %v4257 = vadd.f32 %v3838, %v4256
    %4258 = vmatprep.mubr.f32.mxu0 0.0
    %v4259 = vand.u32 %v101, 4294901760
    %4260 = vmatmul.mubr.f32.gmra.mrb[0].mxu0 %v4259
    %v4261 = vpop.f32.mrb[0].mxu0
    %v4262 = vadd.f32 %v3845, %v4261
    %v4263 = vpop.f32.mrb[0].mxu0
    %v4264 = vadd.f32 %v3847, %v4263
    %4265 = vmatprep.mubr.f32.mxu0 0.0
    %v4266 = vand.u32 %v104, 4294901760
    %4267 = vmatmul.mubr.f32.gmra.mrb[0].mxu0 %v4266
    %v4268 = vpop.f32.mrb[0].mxu0
    %v4269 = vadd.f32 %v3854, %v4268
    %v4270 = vpop.f32.mrb[0].mxu0
    %v4271 = vadd.f32 %v3856, %v4270
    %4272 = vmatprep.mubr.f32.mxu0 0.0
    %v4273 = vand.u32 %v107, 4294901760
    %4274 = vmatmul.mubr.f32.gmra.mrb[0].mxu0 %v4273
    %v4275 = vpop.f32.mrb[0].mxu0
    %v4276 = vadd.f32 %v3863, %v4275
    %v4277 = vpop.f32.mrb[0].mxu0
    %v4278 = vadd.f32 %v3865, %v4277
    %4279 = vmatprep.mubr.f32.mxu0 0.0
    %v4280 = vand.u32 %v110, 4294901760
    %4281 = vmatmul.mubr.f32.gmra.mrb[0].mxu0 %v4280
    %v4282 = vpop.f32.mrb[0].mxu0
    %v4283 = vadd.f32 %v3872, %v4282
    %v4284 = vpop.f32.mrb[0].mxu0
    %v4285 = vadd.f32 %v3874, %v4284
    %4286 = vmatprep.mubr.f32.mxu0 0.0
    %v4287 = vand.u32 %v113, 4294901760
    %4288 = vmatmul.mubr.f32.gmra.mrb[0].mxu0 %v4287
    %v4289 = vpop.f32.mrb[0].mxu0
    %v4290 = vadd.f32 %v3881, %v4289
    %v4291 = vpop.f32.mrb[0].mxu0
    %v4292 = vadd.f32 %v3883, %v4291
    %4293 = vmatprep.mubr.f32.mxu0 0.0
    %v4294 = vand.u32 %v116, 4294901760
    %4295 = vmatmul.mubr.f32.gmra.mrb[0].mxu0 %v4294
    %v4296 = vpop.f32.mrb[0].mxu0
    %v4297 = vadd.f32 %v3890, %v4296
    %v4298 = vpop.f32.mrb[0].mxu0
    %v4299 = vadd.f32 %v3892, %v4298
    %4300 = vmatprep.mubr.f32.mxu0 0.0
    %v4301 = vand.u32 %v119, 4294901760
    %4302 = vmatmul.mubr.f32.gmra.mrb[0].mxu0 %v4301
    %v4303 = vpop.f32.mrb[0].mxu0
    %v4304 = vadd.f32 %v3899, %v4303
    %v4305 = vpop.f32.mrb[0].mxu0
    %v4306 = vadd.f32 %v3901, %v4305
    %4307 = vmatprep.mubr.f32.mxu0 0.0
    %v4308 = vand.u32 %v122, 4294901760
    %4309 = vmatmul.mubr.f32.gmra.mrb[0].mxu0 %v4308
    %v4310 = vpop.f32.mrb[0].mxu0
    %v4311 = vadd.f32 %v3908, %v4310
    %v4312 = vpop.f32.mrb[0].mxu0
    %v4313 = vadd.f32 %v3910, %v4312
    %4314 = vmatprep.mubr.f32.mxu0 0.0
    %v4315 = vand.u32 %v125, 4294901760
    %4316 = vmatmul.mubr.f32.gmra.mrb[0].mxu0 %v4315
    %v4317 = vpop.f32.mrb[0].mxu0
    %v4318 = vadd.f32 %v3917, %v4317
    %v4319 = vpop.f32.mrb[0].mxu0
    %v4320 = vadd.f32 %v3919, %v4319
    %4321 = vmatprep.mubr.f32.mxu0 0.0
    %v4322 = vand.u32 %v128, 4294901760
    %4323 = vmatmul.mubr.f32.gmra.mrb[0].mxu0 %v4322
    %v4324 = vpop.f32.mrb[0].mxu0
    %v4325 = vadd.f32 %v3926, %v4324
    %v4326 = vpop.f32.mrb[0].mxu0
    %v4327 = vadd.f32 %v3928, %v4326
    %4328 = vmatprep.mubr.f32.mxu0 0.0
    %v4329 = vand.u32 %v131, 4294901760
    %4330 = vmatmul.mubr.f32.gmra.mrb[0].mxu0 %v4329
    %v4331 = vpop.f32.mrb[0].mxu0
    %v4332 = vadd.f32 %v3935, %v4331
    %v4333 = vpop.f32.mrb[0].mxu0
    %v4334 = vadd.f32 %v3937, %v4333
    %4335 = vmatprep.mubr.f32.mxu0 0.0
    %v4336 = vand.u32 %v134, 4294901760
    %4337 = vmatmul.mubr.f32.gmra.mrb[0].mxu0 %v4336
    %v4338 = vpop.f32.mrb[0].mxu0
    %v4339 = vadd.f32 %v3944, %v4338
    %v4340 = vpop.f32.mrb[0].mxu0
    %v4341 = vadd.f32 %v3946, %v4340
    %4342 = vmatprep.mubr.f32.mxu0 0.0
    %v4343 = vand.u32 %v137, 4294901760
    %4344 = vmatmul.mubr.f32.gmra.mrb[0].mxu0 %v4343
    %v4345 = vpop.f32.mrb[0].mxu0
    %v4346 = vadd.f32 %v3953, %v4345
    %v4347 = vpop.f32.mrb[0].mxu0
    %v4348 = vadd.f32 %v3955, %v4347
    %4349 = vmatprep.mubr.f32.mxu0 0.0
    %v4350 = vand.u32 %v140, 4294901760
    %4351 = vmatmul.mubr.f32.gmra.mrb[0].mxu0 %v4350
    %v4352 = vpop.f32.mrb[0].mxu0
    %v4353 = vadd.f32 %v3962, %v4352
    %v4354 = vpop.f32.mrb[0].mxu0
    %v4355 = vadd.f32 %v3964, %v4354
    %4356 = vmatprep.mubr.f32.mxu0 0.0
    %v4357 = vand.u32 %v143, 4294901760
    %4358 = vmatmul.mubr.f32.gmra.mrb[0].mxu0 %v4357
    %v4359 = vpop.f32.mrb[0].mxu0
    %v4360 = vadd.f32 %v3971, %v4359
    %v4361 = vpop.f32.mrb[0].mxu0
    %v4362 = vadd.f32 %v3973, %v4361
    %4363 = vmatprep.mubr.f32.mxu0 0.0
    %v4364 = vand.u32 %v146, 4294901760
    %4365 = vmatmul.mubr.f32.gmra.mrb[0].mxu0 %v4364
    %v4366 = vpop.f32.mrb[0].mxu0
    %v4367 = vadd.f32 %v3980, %v4366
    %v4368 = vpop.f32.mrb[0].mxu0
    %v4369 = vadd.f32 %v3982, %v4368
    %4370 = vmatprep.mubr.f32.mxu0 0.0
    %v4371 = vand.u32 %v149, 4294901760
    %4372 = vmatmul.mubr.f32.gmra.mrb[0].mxu0 %v4371
    %v4373 = vpop.f32.mrb[0].mxu0
    %v4374 = vadd.f32 %v3989, %v4373
    %v4375 = vpop.f32.mrb[0].mxu0
    %v4376 = vadd.f32 %v3991, %v4375
    %4377 = vmatprep.mubr.f32.mxu0 0.0
    %v4378 = vand.u32 %v152, 4294901760
    %4379 = vmatmul.mubr.f32.gmra.mrb[0].mxu0 %v4378
    %v4380 = vpop.f32.mrb[0].mxu0
    %v4381 = vadd.f32 %v3998, %v4380
    %v4382 = vpop.f32.mrb[0].mxu0
    %v4383 = vadd.f32 %v4000, %v4382
    %4384 = vmatprep.mubr.f32.mxu0 0.0
    %v4385 = vand.u32 %v155, 4294901760
    %4386 = vmatmul.mubr.f32.gmra.mrb[0].mxu0 %v4385
    %v4387 = vpop.f32.mrb[0].mxu0
    %v4388 = vadd.f32 %v4007, %v4387
    %v4389 = vpop.f32.mrb[0].mxu0
    %v4390 = vadd.f32 %v4009, %v4389
    %4391 = vmatprep.mubr.f32.mxu0 0.0
    %v4392 = vand.u32 %v158, 4294901760
    %4393 = vmatmul.mubr.f32.gmra.mrb[0].mxu0 %v4392
    %v4394 = vpop.f32.mrb[0].mxu0
    %v4395 = vadd.f32 %v4016, %v4394
    %v4396 = vpop.f32.mrb[0].mxu0
    %v4397 = vadd.f32 %v4018, %v4396
    %4398 = vmatprep.mubr.f32.mxu0 0.0
    %v4399 = vand.u32 %v161, 4294901760
    %4400 = vmatmul.mubr.f32.gmra.mrb[0].mxu0 %v4399
    %v4401 = vpop.f32.mrb[0].mxu0
    %v4402 = vadd.f32 %v4025, %v4401
    %v4403 = vpop.f32.mrb[0].mxu0
    %v4404 = vadd.f32 %v4027, %v4403
    %4405 = vmatprep.mubr.f32.mxu0 0.0
    %v4406 = vand.u32 %v164, 4294901760
    %4407 = vmatmul.mubr.f32.gmra.mrb[0].mxu0 %v4406
    %v4408 = vpop.f32.mrb[0].mxu0
    %v4409 = vadd.f32 %v4034, %v4408
    %v4410 = vpop.f32.mrb[0].mxu0
    %v4411 = vadd.f32 %v4036, %v4410
    %4412 = vmatprep.mubr.f32.mxu0 0.0
    %v4413 = vand.u32 %v167, 4294901760
    %4414 = vmatmul.mubr.f32.gmra.mrb[0].mxu0 %v4413
    %v4415 = vpop.f32.mrb[0].mxu0
    %v4416 = vadd.f32 %v4043, %v4415
    %v4417 = vpop.f32.mrb[0].mxu0
    %v4418 = vadd.f32 %v4045, %v4417
    %4419 = vmatprep.mubr.f32.mxu0 0.0
    %v4420 = vand.u32 %v170, 4294901760
    %4421 = vmatmul.mubr.f32.gmra.mrb[0].mxu0 %v4420
    %v4422 = vpop.f32.mrb[0].mxu0
    %v4423 = vadd.f32 %v4052, %v4422
    %v4424 = vpop.f32.mrb[0].mxu0
    %v4425 = vadd.f32 %v4054, %v4424
    %4426 = vmatprep.mubr.f32.mxu0 0.0
    %v4427 = vand.u32 %v173, 4294901760
    %4428 = vmatmul.mubr.f32.gmra.mrb[0].mxu0 %v4427
    %v4429 = vpop.f32.mrb[0].mxu0
    %v4430 = vadd.f32 %v4061, %v4429
    %v4431 = vpop.f32.mrb[0].mxu0
    %v4432 = vadd.f32 %v4063, %v4431
    %4433 = vmatprep.mubr.f32.mxu0 0.0
    %v4434 = vand.u32 %v176, 4294901760
    %4435 = vmatmul.mubr.f32.gmra.mrb[0].mxu0 %v4434
    %v4436 = vpop.f32.mrb[0].mxu0
    %v4437 = vadd.f32 %v4070, %v4436
    %v4438 = vpop.f32.mrb[0].mxu0
    %v4439 = vadd.f32 %v4072, %v4438
    %4440 = vmatprep.mubr.f32.mxu0 0.0
    %v4441 = vand.u32 %v179, 4294901760
    %4442 = vmatmul.mubr.f32.gmra.mrb[0].mxu0 %v4441
    %v4443 = vpop.f32.mrb[0].mxu0
    %v4444 = vadd.f32 %v4079, %v4443
    %v4445 = vpop.f32.mrb[0].mxu0
    %v4446 = vadd.f32 %v4081, %v4445
    %4447 = vmatprep.mubr.f32.mxu0 0.0
    %v4448 = vand.u32 %v182, 4294901760
    %4449 = vmatmul.mubr.f32.gmra.mrb[0].mxu0 %v4448
    %v4450 = vpop.f32.mrb[0].mxu0
    %v4451 = vadd.f32 %v4088, %v4450
    %v4452 = vpop.f32.mrb[0].mxu0
    %v4453 = vadd.f32 %v4090, %v4452
    %4454 = vmatprep.mubr.f32.mxu0 0.0
    %v4455 = vand.u32 %v185, 4294901760
    %4456 = vmatmul.mubr.f32.gmra.mrb[0].mxu0 %v4455
    %v4457 = vpop.f32.mrb[0].mxu0
    %v4458 = vadd.f32 %v4097, %v4457
    %v4459 = vpop.f32.mrb[0].mxu0
    %v4460 = vadd.f32 %v4099, %v4459
    %4461 = vmatprep.mubr.f32.mxu0 0.0
    %v4462 = vand.u32 %v188, 4294901760
    %4463 = vmatmul.mubr.f32.gmra.mrb[0].mxu0 %v4462
    %v4464 = vpop.f32.mrb[0].mxu0
    %v4465 = vadd.f32 %v4106, %v4464
    %v4466 = vpop.f32.mrb[0].mxu0
    %v4467 = vadd.f32 %v4108, %v4466
    %4468 = vmatprep.mubr.f32.mxu0 0.0
    %v4469 = vand.u32 %v191, 4294901760
    %4470 = vmatmul.mubr.f32.gmra.mrb[0].mxu0 %v4469
    %v4471 = vpop.f32.mrb[0].mxu0
    %v4472 = vadd.f32 %v4115, %v4471
    %v4473 = vpop.f32.mrb[0].mxu0
    %v4474 = vadd.f32 %v4117, %v4473
    %4475 = vmatprep.mubr.f32.mxu0 0.0
    %v4476 = vand.u32 %v194, 4294901760
    %4477 = vmatmul.mubr.f32.gmra.mrb[0].mxu0 %v4476
    %v4478 = vpop.f32.mrb[0].mxu0
    %v4479 = vadd.f32 %v4124, %v4478
    %v4480 = vpop.f32.mrb[0].mxu0
    %v4481 = vadd.f32 %v4126, %v4480
    %4482 = vmatprep.mubr.f32.mxu0 0.0
    %v4483 = vand.u32 %v197, 4294901760
    %4484 = vmatmul.mubr.f32.gmra.mrb[0].mxu0 %v4483
    %v4485 = vpop.f32.mrb[0].mxu0
    %v4486 = vadd.f32 %v4133, %v4485
    %v4487 = vpop.f32.mrb[0].mxu0
    %v4488 = vadd.f32 %v4135, %v4487
    %4489 = vdwg.mxu0
    %v4490 = vand.u32 %v51, 4294901760
    %4491 = vmatprep.subr.mxu0 %v4490
    %v4492 = vand.u32 %v50, 4294901760
    %4493 = vmatpush1.msra.mxu0 %v4492
    %v4494 = vand.u32 %v58, 4294901760
    %4495 = vmatprep.subr.mxu0 %v4494
    %v4496 = vand.u32 %v57, 4294901760
    %4497 = vmatpush1.msra.mxu0 %v4496
    %v4498 = vand.u32 %v65, 4294901760
    %4499 = vmatprep.subr.mxu0 %v4498
    %v4500 = vand.u32 %v64, 4294901760
    %4501 = vmatpush1.msra.mxu0 %v4500
    %v4502 = vand.u32 %v72, 4294901760
    %4503 = vmatprep.subr.mxu0 %v4502
    %v4504 = vand.u32 %v71, 4294901760
    %4505 = vmatpush1.msra.mxu0 %v4504
    %v4506 = vand.u32 %v79, 4294901760
    %4507 = vmatprep.subr.mxu0 %v4506
    %v4508 = vand.u32 %v78, 4294901760
    %4509 = vmatpush1.msra.mxu0 %v4508
    %v4510 = vand.u32 %v86, 4294901760
    %4511 = vmatprep.subr.mxu0 %v4510
    %v4512 = vand.u32 %v85, 4294901760
    %4513 = vmatpush1.msra.mxu0 %v4512
    %4514 = vmatprep.subr.mxu0 0.0
    %4515 = vmatpush1.msra.mxu0 0.0
    %4516 = vmatprep.subr.mxu0 0.0
    %4517 = vmatpush1.msra.mxu0 0.0
    %4518 = vmatprep.subr.mxu0 0.0
    %4519 = vmatpush1.msra.mxu0 0.0
    %4520 = vmatprep.subr.mxu0 0.0
    %4521 = vmatpush1.msra.mxu0 0.0
    %4522 = vmatprep.subr.mxu0 0.0
    %4523 = vmatpush1.msra.mxu0 0.0
    %4524 = vmatprep.subr.mxu0 0.0
    %4525 = vmatpush1.msra.mxu0 0.0
    %4526 = vmatprep.subr.mxu0 0.0
    %4527 = vmatpush1.msra.mxu0 0.0
    %4528 = vmatprep.subr.mxu0 0.0
    %4529 = vmatpush1.msra.mxu0 0.0
    %4530 = vmatprep.subr.mxu0 0.0
    %4531 = vmatpush1.msra.mxu0 0.0
    %4532 = vmatprep.subr.mxu0 0.0
    %4533 = vmatpush1.msra.mxu0 0.0
    %4534 = vmatprep.subr.mxu0 0.0
    %4535 = vmatpush1.msra.mxu0 0.0
    %4536 = vmatprep.subr.mxu0 0.0
    %4537 = vmatpush1.msra.mxu0 0.0
    %4538 = vmatprep.subr.mxu0 0.0
    %4539 = vmatpush1.msra.mxu0 0.0
    %4540 = vmatprep.subr.mxu0 0.0
    %4541 = vmatpush1.msra.mxu0 0.0
    %4542 = vmatprep.subr.mxu0 0.0
    %4543 = vmatpush1.msra.mxu0 0.0
    %4544 = vmatprep.subr.mxu0 0.0
    %4545 = vmatpush1.msra.mxu0 0.0
    %4546 = vmatprep.subr.mxu0 0.0
    %4547 = vmatpush1.msra.mxu0 0.0
    %4548 = vmatprep.subr.mxu0 0.0
    %4549 = vmatpush1.msra.mxu0 0.0
    %4550 = vmatprep.subr.mxu0 0.0
    %4551 = vmatpush1.msra.mxu0 0.0
    %4552 = vmatprep.subr.mxu0 0.0
    %4553 = vmatpush1.msra.mxu0 0.0
    %4554 = vmatprep.subr.mxu0 0.0
    %4555 = vmatpush1.msra.mxu0 0.0
    %4556 = vmatprep.subr.mxu0 0.0
    %4557 = vmatpush1.msra.mxu0 0.0
    %4558 = vmatprep.subr.mxu0 0.0
    %4559 = vmatpush1.msra.mxu0 0.0
    %4560 = vmatprep.subr.mxu0 0.0
    %4561 = vmatpush1.msra.mxu0 0.0
    %4562 = vmatprep.subr.mxu0 0.0
    %4563 = vmatpush1.msra.mxu0 0.0
    %4564 = vmatprep.subr.mxu0 0.0
    %4565 = vmatpush1.msra.mxu0 0.0
    %4566 = vmatprep.mubr.f32.mxu0 0.0
    %v4567 = vand.u32 %v92, 4294901760
    %4568 = vmatmul.mubr.f32.gmra.mrb[0].mxu0 %v4567
    %v4569 = vpop.f32.mrb[0].mxu0
    %v4570 = vadd.f32 %v4241, %v4569
    %v4571 = vpop.f32.mrb[0].mxu0
    %v4572 = vadd.f32 %v4243, %v4571
    %4573 = vmatprep.mubr.f32.mxu0 0.0
    %v4574 = vand.u32 %v95, 4294901760
    %4575 = vmatmul.mubr.f32.gmra.mrb[0].mxu0 %v4574
    %v4576 = vpop.f32.mrb[0].mxu0
    %v4577 = vadd.f32 %v4248, %v4576
    %v4578 = vpop.f32.mrb[0].mxu0
    %v4579 = vadd.f32 %v4250, %v4578
    %4580 = vmatprep.mubr.f32.mxu0 0.0
    %v4581 = vand.u32 %v98, 4294901760
    %4582 = vmatmul.mubr.f32.gmra.mrb[0].mxu0 %v4581
    %v4583 = vpop.f32.mrb[0].mxu0
    %v4584 = vadd.f32 %v4255, %v4583
    %v4585 = vpop.f32.mrb[0].mxu0
    %v4586 = vadd.f32 %v4257, %v4585
    %4587 = vmatprep.mubr.f32.mxu0 0.0
    %v4588 = vand.u32 %v101, 4294901760
    %4589 = vmatmul.mubr.f32.gmra.mrb[0].mxu0 %v4588
    %v4590 = vpop.f32.mrb[0].mxu0
    %v4591 = vadd.f32 %v4262, %v4590
    %v4592 = vpop.f32.mrb[0].mxu0
    %v4593 = vadd.f32 %v4264, %v4592
    %4594 = vmatprep.mubr.f32.mxu0 0.0
    %v4595 = vand.u32 %v104, 4294901760
    %4596 = vmatmul.mubr.f32.gmra.mrb[0].mxu0 %v4595
    %v4597 = vpop.f32.mrb[0].mxu0
    %v4598 = vadd.f32 %v4269, %v4597
    %v4599 = vpop.f32.mrb[0].mxu0
    %v4600 = vadd.f32 %v4271, %v4599
    %4601 = vmatprep.mubr.f32.mxu0 0.0
    %v4602 = vand.u32 %v107, 4294901760
    %4603 = vmatmul.mubr.f32.gmra.mrb[0].mxu0 %v4602
    %v4604 = vpop.f32.mrb[0].mxu0
    %v4605 = vadd.f32 %v4276, %v4604
    %v4606 = vpop.f32.mrb[0].mxu0
    %v4607 = vadd.f32 %v4278, %v4606
    %4608 = vmatprep.mubr.f32.mxu0 0.0
    %v4609 = vand.u32 %v110, 4294901760
    %4610 = vmatmul.mubr.f32.gmra.mrb[0].mxu0 %v4609
    %v4611 = vpop.f32.mrb[0].mxu0
    %v4612 = vadd.f32 %v4283, %v4611
    %v4613 = vpop.f32.mrb[0].mxu0
    %v4614 = vadd.f32 %v4285, %v4613
    %4615 = vmatprep.mubr.f32.mxu0 0.0
    %v4616 = vand.u32 %v113, 4294901760
    %4617 = vmatmul.mubr.f32.gmra.mrb[0].mxu0 %v4616
    %v4618 = vpop.f32.mrb[0].mxu0
    %v4619 = vadd.f32 %v4290, %v4618
    %v4620 = vpop.f32.mrb[0].mxu0
    %v4621 = vadd.f32 %v4292, %v4620
    %4622 = vmatprep.mubr.f32.mxu0 0.0
    %v4623 = vand.u32 %v116, 4294901760
    %4624 = vmatmul.mubr.f32.gmra.mrb[0].mxu0 %v4623
    %v4625 = vpop.f32.mrb[0].mxu0
    %v4626 = vadd.f32 %v4297, %v4625
    %v4627 = vpop.f32.mrb[0].mxu0
    %v4628 = vadd.f32 %v4299, %v4627
    %4629 = vmatprep.mubr.f32.mxu0 0.0
    %v4630 = vand.u32 %v119, 4294901760
    %4631 = vmatmul.mubr.f32.gmra.mrb[0].mxu0 %v4630
    %v4632 = vpop.f32.mrb[0].mxu0
    %v4633 = vadd.f32 %v4304, %v4632
    %v4634 = vpop.f32.mrb[0].mxu0
    %v4635 = vadd.f32 %v4306, %v4634
    %4636 = vmatprep.mubr.f32.mxu0 0.0
    %v4637 = vand.u32 %v122, 4294901760
    %4638 = vmatmul.mubr.f32.gmra.mrb[0].mxu0 %v4637
    %v4639 = vpop.f32.mrb[0].mxu0
    %v4640 = vadd.f32 %v4311, %v4639
    %v4641 = vpop.f32.mrb[0].mxu0
    %v4642 = vadd.f32 %v4313, %v4641
    %4643 = vmatprep.mubr.f32.mxu0 0.0
    %v4644 = vand.u32 %v125, 4294901760
    %4645 = vmatmul.mubr.f32.gmra.mrb[0].mxu0 %v4644
    %v4646 = vpop.f32.mrb[0].mxu0
    %v4647 = vadd.f32 %v4318, %v4646
    %v4648 = vpop.f32.mrb[0].mxu0
    %v4649 = vadd.f32 %v4320, %v4648
    %4650 = vmatprep.mubr.f32.mxu0 0.0
    %v4651 = vand.u32 %v128, 4294901760
    %4652 = vmatmul.mubr.f32.gmra.mrb[0].mxu0 %v4651
    %v4653 = vpop.f32.mrb[0].mxu0
    %v4654 = vadd.f32 %v4325, %v4653
    %v4655 = vpop.f32.mrb[0].mxu0
    %v4656 = vadd.f32 %v4327, %v4655
    %4657 = vmatprep.mubr.f32.mxu0 0.0
    %v4658 = vand.u32 %v131, 4294901760
    %4659 = vmatmul.mubr.f32.gmra.mrb[0].mxu0 %v4658
    %v4660 = vpop.f32.mrb[0].mxu0
    %v4661 = vadd.f32 %v4332, %v4660
    %v4662 = vpop.f32.mrb[0].mxu0
    %v4663 = vadd.f32 %v4334, %v4662
    %4664 = vmatprep.mubr.f32.mxu0 0.0
    %v4665 = vand.u32 %v134, 4294901760
    %4666 = vmatmul.mubr.f32.gmra.mrb[0].mxu0 %v4665
    %v4667 = vpop.f32.mrb[0].mxu0
    %v4668 = vadd.f32 %v4339, %v4667
    %v4669 = vpop.f32.mrb[0].mxu0
    %v4670 = vadd.f32 %v4341, %v4669
    %4671 = vmatprep.mubr.f32.mxu0 0.0
    %v4672 = vand.u32 %v137, 4294901760
    %4673 = vmatmul.mubr.f32.gmra.mrb[0].mxu0 %v4672
    %v4674 = vpop.f32.mrb[0].mxu0
    %v4675 = vadd.f32 %v4346, %v4674
    %v4676 = vpop.f32.mrb[0].mxu0
    %v4677 = vadd.f32 %v4348, %v4676
    %4678 = vmatprep.mubr.f32.mxu0 0.0
    %v4679 = vand.u32 %v140, 4294901760
    %4680 = vmatmul.mubr.f32.gmra.mrb[0].mxu0 %v4679
    %v4681 = vpop.f32.mrb[0].mxu0
    %v4682 = vadd.f32 %v4353, %v4681
    %v4683 = vpop.f32.mrb[0].mxu0
    %v4684 = vadd.f32 %v4355, %v4683
    %4685 = vmatprep.mubr.f32.mxu0 0.0
    %v4686 = vand.u32 %v143, 4294901760
    %4687 = vmatmul.mubr.f32.gmra.mrb[0].mxu0 %v4686
    %v4688 = vpop.f32.mrb[0].mxu0
    %v4689 = vadd.f32 %v4360, %v4688
    %v4690 = vpop.f32.mrb[0].mxu0
    %v4691 = vadd.f32 %v4362, %v4690
    %4692 = vmatprep.mubr.f32.mxu0 0.0
    %v4693 = vand.u32 %v146, 4294901760
    %4694 = vmatmul.mubr.f32.gmra.mrb[0].mxu0 %v4693
    %v4695 = vpop.f32.mrb[0].mxu0
    %v4696 = vadd.f32 %v4367, %v4695
    %v4697 = vpop.f32.mrb[0].mxu0
    %v4698 = vadd.f32 %v4369, %v4697
    %4699 = vmatprep.mubr.f32.mxu0 0.0
    %v4700 = vand.u32 %v149, 4294901760
    %4701 = vmatmul.mubr.f32.gmra.mrb[0].mxu0 %v4700
    %v4702 = vpop.f32.mrb[0].mxu0
    %v4703 = vadd.f32 %v4374, %v4702
    %v4704 = vpop.f32.mrb[0].mxu0
    %v4705 = vadd.f32 %v4376, %v4704
    %4706 = vmatprep.mubr.f32.mxu0 0.0
    %v4707 = vand.u32 %v152, 4294901760
    %4708 = vmatmul.mubr.f32.gmra.mrb[0].mxu0 %v4707
    %v4709 = vpop.f32.mrb[0].mxu0
    %v4710 = vadd.f32 %v4381, %v4709
    %v4711 = vpop.f32.mrb[0].mxu0
    %v4712 = vadd.f32 %v4383, %v4711
    %4713 = vmatprep.mubr.f32.mxu0 0.0
    %v4714 = vand.u32 %v155, 4294901760
    %4715 = vmatmul.mubr.f32.gmra.mrb[0].mxu0 %v4714
    %v4716 = vpop.f32.mrb[0].mxu0
    %v4717 = vadd.f32 %v4388, %v4716
    %v4718 = vpop.f32.mrb[0].mxu0
    %v4719 = vadd.f32 %v4390, %v4718
    %4720 = vmatprep.mubr.f32.mxu0 0.0
    %v4721 = vand.u32 %v158, 4294901760
    %4722 = vmatmul.mubr.f32.gmra.mrb[0].mxu0 %v4721
    %v4723 = vpop.f32.mrb[0].mxu0
    %v4724 = vadd.f32 %v4395, %v4723
    %v4725 = vpop.f32.mrb[0].mxu0
    %v4726 = vadd.f32 %v4397, %v4725
    %4727 = vmatprep.mubr.f32.mxu0 0.0
    %v4728 = vand.u32 %v161, 4294901760
    %4729 = vmatmul.mubr.f32.gmra.mrb[0].mxu0 %v4728
    %v4730 = vpop.f32.mrb[0].mxu0
    %v4731 = vadd.f32 %v4402, %v4730
    %v4732 = vpop.f32.mrb[0].mxu0
    %v4733 = vadd.f32 %v4404, %v4732
    %4734 = vmatprep.mubr.f32.mxu0 0.0
    %v4735 = vand.u32 %v164, 4294901760
    %4736 = vmatmul.mubr.f32.gmra.mrb[0].mxu0 %v4735
    %v4737 = vpop.f32.mrb[0].mxu0
    %v4738 = vadd.f32 %v4409, %v4737
    %v4739 = vpop.f32.mrb[0].mxu0
    %v4740 = vadd.f32 %v4411, %v4739
    %4741 = vmatprep.mubr.f32.mxu0 0.0
    %v4742 = vand.u32 %v167, 4294901760
    %4743 = vmatmul.mubr.f32.gmra.mrb[0].mxu0 %v4742
    %v4744 = vpop.f32.mrb[0].mxu0
    %v4745 = vadd.f32 %v4416, %v4744
    %v4746 = vpop.f32.mrb[0].mxu0
    %v4747 = vadd.f32 %v4418, %v4746
    %4748 = vmatprep.mubr.f32.mxu0 0.0
    %v4749 = vand.u32 %v170, 4294901760
    %4750 = vmatmul.mubr.f32.gmra.mrb[0].mxu0 %v4749
    %v4751 = vpop.f32.mrb[0].mxu0
    %v4752 = vadd.f32 %v4423, %v4751
    %v4753 = vpop.f32.mrb[0].mxu0
    %v4754 = vadd.f32 %v4425, %v4753
    %4755 = vmatprep.mubr.f32.mxu0 0.0
    %v4756 = vand.u32 %v173, 4294901760
    %4757 = vmatmul.mubr.f32.gmra.mrb[0].mxu0 %v4756
    %v4758 = vpop.f32.mrb[0].mxu0
    %v4759 = vadd.f32 %v4430, %v4758
    %v4760 = vpop.f32.mrb[0].mxu0
    %v4761 = vadd.f32 %v4432, %v4760
    %4762 = vmatprep.mubr.f32.mxu0 0.0
    %v4763 = vand.u32 %v176, 4294901760
    %4764 = vmatmul.mubr.f32.gmra.mrb[0].mxu0 %v4763
    %v4765 = vpop.f32.mrb[0].mxu0
    %v4766 = vadd.f32 %v4437, %v4765
    %v4767 = vpop.f32.mrb[0].mxu0
    %v4768 = vadd.f32 %v4439, %v4767
    %4769 = vmatprep.mubr.f32.mxu0 0.0
    %v4770 = vand.u32 %v179, 4294901760
    %4771 = vmatmul.mubr.f32.gmra.mrb[0].mxu0 %v4770
    %v4772 = vpop.f32.mrb[0].mxu0
    %v4773 = vadd.f32 %v4444, %v4772
    %v4774 = vpop.f32.mrb[0].mxu0
    %v4775 = vadd.f32 %v4446, %v4774
    %4776 = vmatprep.mubr.f32.mxu0 0.0
    %v4777 = vand.u32 %v182, 4294901760
    %4778 = vmatmul.mubr.f32.gmra.mrb[0].mxu0 %v4777
    %v4779 = vpop.f32.mrb[0].mxu0
    %v4780 = vadd.f32 %v4451, %v4779
    %v4781 = vpop.f32.mrb[0].mxu0
    %v4782 = vadd.f32 %v4453, %v4781
    %4783 = vmatprep.mubr.f32.mxu0 0.0
    %v4784 = vand.u32 %v185, 4294901760
    %4785 = vmatmul.mubr.f32.gmra.mrb[0].mxu0 %v4784
    %v4786 = vpop.f32.mrb[0].mxu0
    %v4787 = vadd.f32 %v4458, %v4786
    %v4788 = vpop.f32.mrb[0].mxu0
    %v4789 = vadd.f32 %v4460, %v4788
    %4790 = vmatprep.mubr.f32.mxu0 0.0
    %v4791 = vand.u32 %v188, 4294901760
    %4792 = vmatmul.mubr.f32.gmra.mrb[0].mxu0 %v4791
    %v4793 = vpop.f32.mrb[0].mxu0
    %v4794 = vadd.f32 %v4465, %v4793
    %v4795 = vpop.f32.mrb[0].mxu0
    %v4796 = vadd.f32 %v4467, %v4795
    %4797 = vmatprep.mubr.f32.mxu0 0.0
    %v4798 = vand.u32 %v191, 4294901760
    %4799 = vmatmul.mubr.f32.gmra.mrb[0].mxu0 %v4798
    %v4800 = vpop.f32.mrb[0].mxu0
    %v4801 = vadd.f32 %v4472, %v4800
    %v4802 = vpop.f32.mrb[0].mxu0
    %v4803 = vadd.f32 %v4474, %v4802
    %4804 = vmatprep.mubr.f32.mxu0 0.0
    %v4805 = vand.u32 %v194, 4294901760
    %4806 = vmatmul.mubr.f32.gmra.mrb[0].mxu0 %v4805
    %v4807 = vpop.f32.mrb[0].mxu0
    %v4808 = vadd.f32 %v4479, %v4807
    %v4809 = vpop.f32.mrb[0].mxu0
    %v4810 = vadd.f32 %v4481, %v4809
    %4811 = vmatprep.mubr.f32.mxu0 0.0
    %v4812 = vand.u32 %v197, 4294901760
    %4813 = vmatmul.mubr.f32.gmra.mrb[0].mxu0 %v4812
    %v4814 = vpop.f32.mrb[0].mxu0
    %v4815 = vadd.f32 %v4486, %v4814
    %v4816 = vpop.f32.mrb[0].mxu0
    %v4817 = vadd.f32 %v4488, %v4816
    %4818 = vdwg.mxu0
    %v4819 = vand.u32 %v53, 4294901760
    %4820 = vmatprep.subr.mxu0 %v4819
    %v4821 = vand.u32 %v52, 4294901760
    %4822 = vmatpush1.msra.mxu0 %v4821
    %v4823 = vand.u32 %v60, 4294901760
    %4824 = vmatprep.subr.mxu0 %v4823
    %v4825 = vand.u32 %v59, 4294901760
    %4826 = vmatpush1.msra.mxu0 %v4825
    %v4827 = vand.u32 %v67, 4294901760
    %4828 = vmatprep.subr.mxu0 %v4827
    %v4829 = vand.u32 %v66, 4294901760
    %4830 = vmatpush1.msra.mxu0 %v4829
    %v4831 = vand.u32 %v74, 4294901760
    %4832 = vmatprep.subr.mxu0 %v4831
    %v4833 = vand.u32 %v73, 4294901760
    %4834 = vmatpush1.msra.mxu0 %v4833
    %v4835 = vand.u32 %v81, 4294901760
    %4836 = vmatprep.subr.mxu0 %v4835
    %v4837 = vand.u32 %v80, 4294901760
    %4838 = vmatpush1.msra.mxu0 %v4837
    %v4839 = vand.u32 %v88, 4294901760
    %4840 = vmatprep.subr.mxu0 %v4839
    %v4841 = vand.u32 %v87, 4294901760
    %4842 = vmatpush1.msra.mxu0 %v4841
    %4843 = vmatprep.subr.mxu0 0.0
    %4844 = vmatpush1.msra.mxu0 0.0
    %4845 = vmatprep.subr.mxu0 0.0
    %4846 = vmatpush1.msra.mxu0 0.0
    %4847 = vmatprep.subr.mxu0 0.0
    %4848 = vmatpush1.msra.mxu0 0.0
    %4849 = vmatprep.subr.mxu0 0.0
    %4850 = vmatpush1.msra.mxu0 0.0
    %4851 = vmatprep.subr.mxu0 0.0
    %4852 = vmatpush1.msra.mxu0 0.0
    %4853 = vmatprep.subr.mxu0 0.0
    %4854 = vmatpush1.msra.mxu0 0.0
    %4855 = vmatprep.subr.mxu0 0.0
    %4856 = vmatpush1.msra.mxu0 0.0
    %4857 = vmatprep.subr.mxu0 0.0
    %4858 = vmatpush1.msra.mxu0 0.0
    %4859 = vmatprep.subr.mxu0 0.0
    %4860 = vmatpush1.msra.mxu0 0.0
    %4861 = vmatprep.subr.mxu0 0.0
    %4862 = vmatpush1.msra.mxu0 0.0
    %4863 = vmatprep.subr.mxu0 0.0
    %4864 = vmatpush1.msra.mxu0 0.0
    %4865 = vmatprep.subr.mxu0 0.0
    %4866 = vmatpush1.msra.mxu0 0.0
    %4867 = vmatprep.subr.mxu0 0.0
    %4868 = vmatpush1.msra.mxu0 0.0
    %4869 = vmatprep.subr.mxu0 0.0
    %4870 = vmatpush1.msra.mxu0 0.0
    %4871 = vmatprep.subr.mxu0 0.0
    %4872 = vmatpush1.msra.mxu0 0.0
    %4873 = vmatprep.subr.mxu0 0.0
    %4874 = vmatpush1.msra.mxu0 0.0
    %4875 = vmatprep.subr.mxu0 0.0
    %4876 = vmatpush1.msra.mxu0 0.0
    %4877 = vmatprep.subr.mxu0 0.0
    %4878 = vmatpush1.msra.mxu0 0.0
    %4879 = vmatprep.subr.mxu0 0.0
    %4880 = vmatpush1.msra.mxu0 0.0
    %4881 = vmatprep.subr.mxu0 0.0
    %4882 = vmatpush1.msra.mxu0 0.0
    %4883 = vmatprep.subr.mxu0 0.0
    %4884 = vmatpush1.msra.mxu0 0.0
    %4885 = vmatprep.subr.mxu0 0.0
    %4886 = vmatpush1.msra.mxu0 0.0
    %4887 = vmatprep.subr.mxu0 0.0
    %4888 = vmatpush1.msra.mxu0 0.0
    %4889 = vmatprep.subr.mxu0 0.0
    %4890 = vmatpush1.msra.mxu0 0.0
    %4891 = vmatprep.subr.mxu0 0.0
    %4892 = vmatpush1.msra.mxu0 0.0
    %4893 = vmatprep.subr.mxu0 0.0
    %4894 = vmatpush1.msra.mxu0 0.0
    %4895 = vmatprep.mubr.f32.mxu0 0.0
    %v4896 = vand.u32 %v92, 4294901760
    %v4897 = vsub.f32 %v92, %v4896
    %v4898 = vand.u32 %v4897, 4294901760
    %v4899 = vsub.f32 %v4897, %v4898
    %v4900 = vand.u32 %v4899, 4294901760
    %4901 = vmatmul.mubr.f32.gmra.mrb[0].mxu0 %v4900
    %v4902 = vpop.f32.mrb[0].mxu0
    %v4903 = vadd.f32 0.0, %v4902
    %v4904 = vpop.f32.mrb[0].mxu0
    %v4905 = vadd.f32 0.0, %v4904
    %4906 = vmatprep.mubr.f32.mxu0 0.0
    %v4907 = vand.u32 %v95, 4294901760
    %v4908 = vsub.f32 %v95, %v4907
    %v4909 = vand.u32 %v4908, 4294901760
    %v4910 = vsub.f32 %v4908, %v4909
    %v4911 = vand.u32 %v4910, 4294901760
    %4912 = vmatmul.mubr.f32.gmra.mrb[0].mxu0 %v4911
    %v4913 = vpop.f32.mrb[0].mxu0
    %v4914 = vadd.f32 0.0, %v4913
    %v4915 = vpop.f32.mrb[0].mxu0
    %v4916 = vadd.f32 0.0, %v4915
    %4917 = vmatprep.mubr.f32.mxu0 0.0
    %v4918 = vand.u32 %v98, 4294901760
    %v4919 = vsub.f32 %v98, %v4918
    %v4920 = vand.u32 %v4919, 4294901760
    %v4921 = vsub.f32 %v4919, %v4920
    %v4922 = vand.u32 %v4921, 4294901760
    %4923 = vmatmul.mubr.f32.gmra.mrb[0].mxu0 %v4922
    %v4924 = vpop.f32.mrb[0].mxu0
    %v4925 = vadd.f32 0.0, %v4924
    %v4926 = vpop.f32.mrb[0].mxu0
    %v4927 = vadd.f32 0.0, %v4926
    %4928 = vmatprep.mubr.f32.mxu0 0.0
    %v4929 = vand.u32 %v101, 4294901760
    %v4930 = vsub.f32 %v101, %v4929
    %v4931 = vand.u32 %v4930, 4294901760
    %v4932 = vsub.f32 %v4930, %v4931
    %v4933 = vand.u32 %v4932, 4294901760
    %4934 = vmatmul.mubr.f32.gmra.mrb[0].mxu0 %v4933
    %v4935 = vpop.f32.mrb[0].mxu0
    %v4936 = vadd.f32 0.0, %v4935
    %v4937 = vpop.f32.mrb[0].mxu0
    %v4938 = vadd.f32 0.0, %v4937
    %4939 = vmatprep.mubr.f32.mxu0 0.0
    %v4940 = vand.u32 %v104, 4294901760
    %v4941 = vsub.f32 %v104, %v4940
    %v4942 = vand.u32 %v4941, 4294901760
    %v4943 = vsub.f32 %v4941, %v4942
    %v4944 = vand.u32 %v4943, 4294901760
    %4945 = vmatmul.mubr.f32.gmra.mrb[0].mxu0 %v4944
    %v4946 = vpop.f32.mrb[0].mxu0
    %v4947 = vadd.f32 0.0, %v4946
    %v4948 = vpop.f32.mrb[0].mxu0
    %v4949 = vadd.f32 0.0, %v4948
    %4950 = vmatprep.mubr.f32.mxu0 0.0
    %v4951 = vand.u32 %v107, 4294901760
    %v4952 = vsub.f32 %v107, %v4951
    %v4953 = vand.u32 %v4952, 4294901760
    %v4954 = vsub.f32 %v4952, %v4953
    %v4955 = vand.u32 %v4954, 4294901760
    %4956 = vmatmul.mubr.f32.gmra.mrb[0].mxu0 %v4955
    %v4957 = vpop.f32.mrb[0].mxu0
    %v4958 = vadd.f32 0.0, %v4957
    %v4959 = vpop.f32.mrb[0].mxu0
    %v4960 = vadd.f32 0.0, %v4959
    %4961 = vmatprep.mubr.f32.mxu0 0.0
    %v4962 = vand.u32 %v110, 4294901760
    %v4963 = vsub.f32 %v110, %v4962
    %v4964 = vand.u32 %v4963, 4294901760
    %v4965 = vsub.f32 %v4963, %v4964
    %v4966 = vand.u32 %v4965, 4294901760
    %4967 = vmatmul.mubr.f32.gmra.mrb[0].mxu0 %v4966
    %v4968 = vpop.f32.mrb[0].mxu0
    %v4969 = vadd.f32 0.0, %v4968
    %v4970 = vpop.f32.mrb[0].mxu0
    %v4971 = vadd.f32 0.0, %v4970
    %4972 = vmatprep.mubr.f32.mxu0 0.0
    %v4973 = vand.u32 %v113, 4294901760
    %v4974 = vsub.f32 %v113, %v4973
    %v4975 = vand.u32 %v4974, 4294901760
    %v4976 = vsub.f32 %v4974, %v4975
    %v4977 = vand.u32 %v4976, 4294901760
    %4978 = vmatmul.mubr.f32.gmra.mrb[0].mxu0 %v4977
    %v4979 = vpop.f32.mrb[0].mxu0
    %v4980 = vadd.f32 0.0, %v4979
    %v4981 = vpop.f32.mrb[0].mxu0
    %v4982 = vadd.f32 0.0, %v4981
    %4983 = vmatprep.mubr.f32.mxu0 0.0
    %v4984 = vand.u32 %v116, 4294901760
    %v4985 = vsub.f32 %v116, %v4984
    %v4986 = vand.u32 %v4985, 4294901760
    %v4987 = vsub.f32 %v4985, %v4986
    %v4988 = vand.u32 %v4987, 4294901760
    %4989 = vmatmul.mubr.f32.gmra.mrb[0].mxu0 %v4988
    %v4990 = vpop.f32.mrb[0].mxu0
    %v4991 = vadd.f32 0.0, %v4990
    %v4992 = vpop.f32.mrb[0].mxu0
    %v4993 = vadd.f32 0.0, %v4992
    %4994 = vmatprep.mubr.f32.mxu0 0.0
    %v4995 = vand.u32 %v119, 4294901760
    %v4996 = vsub.f32 %v119, %v4995
    %v4997 = vand.u32 %v4996, 4294901760
    %v4998 = vsub.f32 %v4996, %v4997
    %v4999 = vand.u32 %v4998, 4294901760
    %5000 = vmatmul.mubr.f32.gmra.mrb[0].mxu0 %v4999
    %v5001 = vpop.f32.mrb[0].mxu0
    %v5002 = vadd.f32 0.0, %v5001
    %v5003 = vpop.f32.mrb[0].mxu0
    %v5004 = vadd.f32 0.0, %v5003
    %5005 = vmatprep.mubr.f32.mxu0 0.0
    %v5006 = vand.u32 %v122, 4294901760
    %v5007 = vsub.f32 %v122, %v5006
    %v5008 = vand.u32 %v5007, 4294901760
    %v5009 = vsub.f32 %v5007, %v5008
    %v5010 = vand.u32 %v5009, 4294901760
    %5011 = vmatmul.mubr.f32.gmra.mrb[0].mxu0 %v5010
    %v5012 = vpop.f32.mrb[0].mxu0
    %v5013 = vadd.f32 0.0, %v5012
    %v5014 = vpop.f32.mrb[0].mxu0
    %v5015 = vadd.f32 0.0, %v5014
    %5016 = vmatprep.mubr.f32.mxu0 0.0
    %v5017 = vand.u32 %v125, 4294901760
    %v5018 = vsub.f32 %v125, %v5017
    %v5019 = vand.u32 %v5018, 4294901760
    %v5020 = vsub.f32 %v5018, %v5019
    %v5021 = vand.u32 %v5020, 4294901760
    %5022 = vmatmul.mubr.f32.gmra.mrb[0].mxu0 %v5021
    %v5023 = vpop.f32.mrb[0].mxu0
    %v5024 = vadd.f32 0.0, %v5023
    %v5025 = vpop.f32.mrb[0].mxu0
    %v5026 = vadd.f32 0.0, %v5025
    %5027 = vmatprep.mubr.f32.mxu0 0.0
    %v5028 = vand.u32 %v128, 4294901760
    %v5029 = vsub.f32 %v128, %v5028
    %v5030 = vand.u32 %v5029, 4294901760
    %v5031 = vsub.f32 %v5029, %v5030
    %v5032 = vand.u32 %v5031, 4294901760
    %5033 = vmatmul.mubr.f32.gmra.mrb[0].mxu0 %v5032
    %v5034 = vpop.f32.mrb[0].mxu0
    %v5035 = vadd.f32 0.0, %v5034
    %v5036 = vpop.f32.mrb[0].mxu0
    %v5037 = vadd.f32 0.0, %v5036
    %5038 = vmatprep.mubr.f32.mxu0 0.0
    %v5039 = vand.u32 %v131, 4294901760
    %v5040 = vsub.f32 %v131, %v5039
    %v5041 = vand.u32 %v5040, 4294901760
    %v5042 = vsub.f32 %v5040, %v5041
    %v5043 = vand.u32 %v5042, 4294901760
    %5044 = vmatmul.mubr.f32.gmra.mrb[0].mxu0 %v5043
    %v5045 = vpop.f32.mrb[0].mxu0
    %v5046 = vadd.f32 0.0, %v5045
    %v5047 = vpop.f32.mrb[0].mxu0
    %v5048 = vadd.f32 0.0, %v5047
    %5049 = vmatprep.mubr.f32.mxu0 0.0
    %v5050 = vand.u32 %v134, 4294901760
    %v5051 = vsub.f32 %v134, %v5050
    %v5052 = vand.u32 %v5051, 4294901760
    %v5053 = vsub.f32 %v5051, %v5052
    %v5054 = vand.u32 %v5053, 4294901760
    %5055 = vmatmul.mubr.f32.gmra.mrb[0].mxu0 %v5054
    %v5056 = vpop.f32.mrb[0].mxu0
    %v5057 = vadd.f32 0.0, %v5056
    %v5058 = vpop.f32.mrb[0].mxu0
    %v5059 = vadd.f32 0.0, %v5058
    %5060 = vmatprep.mubr.f32.mxu0 0.0
    %v5061 = vand.u32 %v137, 4294901760
    %v5062 = vsub.f32 %v137, %v5061
    %v5063 = vand.u32 %v5062, 4294901760
    %v5064 = vsub.f32 %v5062, %v5063
    %v5065 = vand.u32 %v5064, 4294901760
    %5066 = vmatmul.mubr.f32.gmra.mrb[0].mxu0 %v5065
    %v5067 = vpop.f32.mrb[0].mxu0
    %v5068 = vadd.f32 0.0, %v5067
    %v5069 = vpop.f32.mrb[0].mxu0
    %v5070 = vadd.f32 0.0, %v5069
    %5071 = vmatprep.mubr.f32.mxu0 0.0
    %v5072 = vand.u32 %v140, 4294901760
    %v5073 = vsub.f32 %v140, %v5072
    %v5074 = vand.u32 %v5073, 4294901760
    %v5075 = vsub.f32 %v5073, %v5074
    %v5076 = vand.u32 %v5075, 4294901760
    %5077 = vmatmul.mubr.f32.gmra.mrb[0].mxu0 %v5076
    %v5078 = vpop.f32.mrb[0].mxu0
    %v5079 = vadd.f32 0.0, %v5078
    %v5080 = vpop.f32.mrb[0].mxu0
    %v5081 = vadd.f32 0.0, %v5080
    %5082 = vmatprep.mubr.f32.mxu0 0.0
    %v5083 = vand.u32 %v143, 4294901760
    %v5084 = vsub.f32 %v143, %v5083
    %v5085 = vand.u32 %v5084, 4294901760
    %v5086 = vsub.f32 %v5084, %v5085
    %v5087 = vand.u32 %v5086, 4294901760
    %5088 = vmatmul.mubr.f32.gmra.mrb[0].mxu0 %v5087
    %v5089 = vpop.f32.mrb[0].mxu0
    %v5090 = vadd.f32 0.0, %v5089
    %v5091 = vpop.f32.mrb[0].mxu0
    %v5092 = vadd.f32 0.0, %v5091
    %5093 = vmatprep.mubr.f32.mxu0 0.0
    %v5094 = vand.u32 %v146, 4294901760
    %v5095 = vsub.f32 %v146, %v5094
    %v5096 = vand.u32 %v5095, 4294901760
    %v5097 = vsub.f32 %v5095, %v5096
    %v5098 = vand.u32 %v5097, 4294901760
    %5099 = vmatmul.mubr.f32.gmra.mrb[0].mxu0 %v5098
    %v5100 = vpop.f32.mrb[0].mxu0
    %v5101 = vadd.f32 0.0, %v5100
    %v5102 = vpop.f32.mrb[0].mxu0
    %v5103 = vadd.f32 0.0, %v5102
    %5104 = vmatprep.mubr.f32.mxu0 0.0
    %v5105 = vand.u32 %v149, 4294901760
    %v5106 = vsub.f32 %v149, %v5105
    %v5107 = vand.u32 %v5106, 4294901760
    %v5108 = vsub.f32 %v5106, %v5107
    %v5109 = vand.u32 %v5108, 4294901760
    %5110 = vmatmul.mubr.f32.gmra.mrb[0].mxu0 %v5109
    %v5111 = vpop.f32.mrb[0].mxu0
    %v5112 = vadd.f32 0.0, %v5111
    %v5113 = vpop.f32.mrb[0].mxu0
    %v5114 = vadd.f32 0.0, %v5113
    %5115 = vmatprep.mubr.f32.mxu0 0.0
    %v5116 = vand.u32 %v152, 4294901760
    %v5117 = vsub.f32 %v152, %v5116
    %v5118 = vand.u32 %v5117, 4294901760
    %v5119 = vsub.f32 %v5117, %v5118
    %v5120 = vand.u32 %v5119, 4294901760
    %5121 = vmatmul.mubr.f32.gmra.mrb[0].mxu0 %v5120
    %v5122 = vpop.f32.mrb[0].mxu0
    %v5123 = vadd.f32 0.0, %v5122
    %v5124 = vpop.f32.mrb[0].mxu0
    %v5125 = vadd.f32 0.0, %v5124
    %5126 = vmatprep.mubr.f32.mxu0 0.0
    %v5127 = vand.u32 %v155, 4294901760
    %v5128 = vsub.f32 %v155, %v5127
    %v5129 = vand.u32 %v5128, 4294901760
    %v5130 = vsub.f32 %v5128, %v5129
    %v5131 = vand.u32 %v5130, 4294901760
    %5132 = vmatmul.mubr.f32.gmra.mrb[0].mxu0 %v5131
    %v5133 = vpop.f32.mrb[0].mxu0
    %v5134 = vadd.f32 0.0, %v5133
    %v5135 = vpop.f32.mrb[0].mxu0
    %v5136 = vadd.f32 0.0, %v5135
    %5137 = vmatprep.mubr.f32.mxu0 0.0
    %v5138 = vand.u32 %v158, 4294901760
    %v5139 = vsub.f32 %v158, %v5138
    %v5140 = vand.u32 %v5139, 4294901760
    %v5141 = vsub.f32 %v5139, %v5140
    %v5142 = vand.u32 %v5141, 4294901760
    %5143 = vmatmul.mubr.f32.gmra.mrb[0].mxu0 %v5142
    %v5144 = vpop.f32.mrb[0].mxu0
    %v5145 = vadd.f32 0.0, %v5144
    %v5146 = vpop.f32.mrb[0].mxu0
    %v5147 = vadd.f32 0.0, %v5146
    %5148 = vmatprep.mubr.f32.mxu0 0.0
    %v5149 = vand.u32 %v161, 4294901760
    %v5150 = vsub.f32 %v161, %v5149
    %v5151 = vand.u32 %v5150, 4294901760
    %v5152 = vsub.f32 %v5150, %v5151
    %v5153 = vand.u32 %v5152, 4294901760
    %5154 = vmatmul.mubr.f32.gmra.mrb[0].mxu0 %v5153
    %v5155 = vpop.f32.mrb[0].mxu0
    %v5156 = vadd.f32 0.0, %v5155
    %v5157 = vpop.f32.mrb[0].mxu0
    %v5158 = vadd.f32 0.0, %v5157
    %5159 = vmatprep.mubr.f32.mxu0 0.0
    %v5160 = vand.u32 %v164, 4294901760
    %v5161 = vsub.f32 %v164, %v5160
    %v5162 = vand.u32 %v5161, 4294901760
    %v5163 = vsub.f32 %v5161, %v5162
    %v5164 = vand.u32 %v5163, 4294901760
    %5165 = vmatmul.mubr.f32.gmra.mrb[0].mxu0 %v5164
    %v5166 = vpop.f32.mrb[0].mxu0
    %v5167 = vadd.f32 0.0, %v5166
    %v5168 = vpop.f32.mrb[0].mxu0
    %v5169 = vadd.f32 0.0, %v5168
    %5170 = vmatprep.mubr.f32.mxu0 0.0
    %v5171 = vand.u32 %v167, 4294901760
    %v5172 = vsub.f32 %v167, %v5171
    %v5173 = vand.u32 %v5172, 4294901760
    %v5174 = vsub.f32 %v5172, %v5173
    %v5175 = vand.u32 %v5174, 4294901760
    %5176 = vmatmul.mubr.f32.gmra.mrb[0].mxu0 %v5175
    %v5177 = vpop.f32.mrb[0].mxu0
    %v5178 = vadd.f32 0.0, %v5177
    %v5179 = vpop.f32.mrb[0].mxu0
    %v5180 = vadd.f32 0.0, %v5179
    %5181 = vmatprep.mubr.f32.mxu0 0.0
    %v5182 = vand.u32 %v170, 4294901760
    %v5183 = vsub.f32 %v170, %v5182
    %v5184 = vand.u32 %v5183, 4294901760
    %v5185 = vsub.f32 %v5183, %v5184
    %v5186 = vand.u32 %v5185, 4294901760
    %5187 = vmatmul.mubr.f32.gmra.mrb[0].mxu0 %v5186
    %v5188 = vpop.f32.mrb[0].mxu0
    %v5189 = vadd.f32 0.0, %v5188
    %v5190 = vpop.f32.mrb[0].mxu0
    %v5191 = vadd.f32 0.0, %v5190
    %5192 = vmatprep.mubr.f32.mxu0 0.0
    %v5193 = vand.u32 %v173, 4294901760
    %v5194 = vsub.f32 %v173, %v5193
    %v5195 = vand.u32 %v5194, 4294901760
    %v5196 = vsub.f32 %v5194, %v5195
    %v5197 = vand.u32 %v5196, 4294901760
    %5198 = vmatmul.mubr.f32.gmra.mrb[0].mxu0 %v5197
    %v5199 = vpop.f32.mrb[0].mxu0
    %v5200 = vadd.f32 0.0, %v5199
    %v5201 = vpop.f32.mrb[0].mxu0
    %v5202 = vadd.f32 0.0, %v5201
    %5203 = vmatprep.mubr.f32.mxu0 0.0
    %v5204 = vand.u32 %v176, 4294901760
    %v5205 = vsub.f32 %v176, %v5204
    %v5206 = vand.u32 %v5205, 4294901760
    %v5207 = vsub.f32 %v5205, %v5206
    %v5208 = vand.u32 %v5207, 4294901760
    %5209 = vmatmul.mubr.f32.gmra.mrb[0].mxu0 %v5208
    %v5210 = vpop.f32.mrb[0].mxu0
    %v5211 = vadd.f32 0.0, %v5210
    %v5212 = vpop.f32.mrb[0].mxu0
    %v5213 = vadd.f32 0.0, %v5212
    %5214 = vmatprep.mubr.f32.mxu0 0.0
    %v5215 = vand.u32 %v179, 4294901760
    %v5216 = vsub.f32 %v179, %v5215
    %v5217 = vand.u32 %v5216, 4294901760
    %v5218 = vsub.f32 %v5216, %v5217
    %v5219 = vand.u32 %v5218, 4294901760
    %5220 = vmatmul.mubr.f32.gmra.mrb[0].mxu0 %v5219
    %v5221 = vpop.f32.mrb[0].mxu0
    %v5222 = vadd.f32 0.0, %v5221
    %v5223 = vpop.f32.mrb[0].mxu0
    %v5224 = vadd.f32 0.0, %v5223
    %5225 = vmatprep.mubr.f32.mxu0 0.0
    %v5226 = vand.u32 %v182, 4294901760
    %v5227 = vsub.f32 %v182, %v5226
    %v5228 = vand.u32 %v5227, 4294901760
    %v5229 = vsub.f32 %v5227, %v5228
    %v5230 = vand.u32 %v5229, 4294901760
    %5231 = vmatmul.mubr.f32.gmra.mrb[0].mxu0 %v5230
    %v5232 = vpop.f32.mrb[0].mxu0
    %v5233 = vadd.f32 0.0, %v5232
    %v5234 = vpop.f32.mrb[0].mxu0
    %v5235 = vadd.f32 0.0, %v5234
    %5236 = vmatprep.mubr.f32.mxu0 0.0
    %v5237 = vand.u32 %v185, 4294901760
    %v5238 = vsub.f32 %v185, %v5237
    %v5239 = vand.u32 %v5238, 4294901760
    %v5240 = vsub.f32 %v5238, %v5239
    %v5241 = vand.u32 %v5240, 4294901760
    %5242 = vmatmul.mubr.f32.gmra.mrb[0].mxu0 %v5241
    %v5243 = vpop.f32.mrb[0].mxu0
    %v5244 = vadd.f32 0.0, %v5243
    %v5245 = vpop.f32.mrb[0].mxu0
    %v5246 = vadd.f32 0.0, %v5245
    %5247 = vmatprep.mubr.f32.mxu0 0.0
    %v5248 = vand.u32 %v188, 4294901760
    %v5249 = vsub.f32 %v188, %v5248
    %v5250 = vand.u32 %v5249, 4294901760
    %v5251 = vsub.f32 %v5249, %v5250
    %v5252 = vand.u32 %v5251, 4294901760
    %5253 = vmatmul.mubr.f32.gmra.mrb[0].mxu0 %v5252
    %v5254 = vpop.f32.mrb[0].mxu0
    %v5255 = vadd.f32 0.0, %v5254
    %v5256 = vpop.f32.mrb[0].mxu0
    %v5257 = vadd.f32 0.0, %v5256
    %5258 = vmatprep.mubr.f32.mxu0 0.0
    %v5259 = vand.u32 %v191, 4294901760
    %v5260 = vsub.f32 %v191, %v5259
    %v5261 = vand.u32 %v5260, 4294901760
    %v5262 = vsub.f32 %v5260, %v5261
    %v5263 = vand.u32 %v5262, 4294901760
    %5264 = vmatmul.mubr.f32.gmra.mrb[0].mxu0 %v5263
    %v5265 = vpop.f32.mrb[0].mxu0
    %v5266 = vadd.f32 0.0, %v5265
    %v5267 = vpop.f32.mrb[0].mxu0
    %v5268 = vadd.f32 0.0, %v5267
    %5269 = vmatprep.mubr.f32.mxu0 0.0
    %v5270 = vand.u32 %v194, 4294901760
    %v5271 = vsub.f32 %v194, %v5270
    %v5272 = vand.u32 %v5271, 4294901760
    %v5273 = vsub.f32 %v5271, %v5272
    %v5274 = vand.u32 %v5273, 4294901760
    %5275 = vmatmul.mubr.f32.gmra.mrb[0].mxu0 %v5274
    %v5276 = vpop.f32.mrb[0].mxu0
    %v5277 = vadd.f32 0.0, %v5276
    %v5278 = vpop.f32.mrb[0].mxu0
    %v5279 = vadd.f32 0.0, %v5278
    %5280 = vmatprep.mubr.f32.mxu0 0.0
    %v5281 = vand.u32 %v197, 4294901760
    %v5282 = vsub.f32 %v197, %v5281
    %v5283 = vand.u32 %v5282, 4294901760
    %v5284 = vsub.f32 %v5282, %v5283
    %v5285 = vand.u32 %v5284, 4294901760
    %5286 = vmatmul.mubr.f32.gmra.mrb[0].mxu0 %v5285
    %v5287 = vpop.f32.mrb[0].mxu0
    %v5288 = vadd.f32 0.0, %v5287
    %v5289 = vpop.f32.mrb[0].mxu0
    %v5290 = vadd.f32 0.0, %v5289
    %5291 = vdwg.mxu0
    %v5292 = vand.u32 %v53, 4294901760
    %v5293 = vsub.f32 %v53, %v5292
    %v5294 = vand.u32 %v5293, 4294901760
    %v5295 = vsub.f32 %v5293, %v5294
    %v5296 = vand.u32 %v5295, 4294901760
    %5297 = vmatprep.subr.mxu0 %v5296
    %v5298 = vand.u32 %v52, 4294901760
    %v5299 = vsub.f32 %v52, %v5298
    %v5300 = vand.u32 %v5299, 4294901760
    %v5301 = vsub.f32 %v5299, %v5300
    %v5302 = vand.u32 %v5301, 4294901760
    %5303 = vmatpush1.msra.mxu0 %v5302
    %v5304 = vand.u32 %v60, 4294901760
    %v5305 = vsub.f32 %v60, %v5304
    %v5306 = vand.u32 %v5305, 4294901760
    %v5307 = vsub.f32 %v5305, %v5306
    %v5308 = vand.u32 %v5307, 4294901760
    %5309 = vmatprep.subr.mxu0 %v5308
    %v5310 = vand.u32 %v59, 4294901760
    %v5311 = vsub.f32 %v59, %v5310
    %v5312 = vand.u32 %v5311, 4294901760
    %v5313 = vsub.f32 %v5311, %v5312
    %v5314 = vand.u32 %v5313, 4294901760
    %5315 = vmatpush1.msra.mxu0 %v5314
    %v5316 = vand.u32 %v67, 4294901760
    %v5317 = vsub.f32 %v67, %v5316
    %v5318 = vand.u32 %v5317, 4294901760
    %v5319 = vsub.f32 %v5317, %v5318
    %v5320 = vand.u32 %v5319, 4294901760
    %5321 = vmatprep.subr.mxu0 %v5320
    %v5322 = vand.u32 %v66, 4294901760
    %v5323 = vsub.f32 %v66, %v5322
    %v5324 = vand.u32 %v5323, 4294901760
    %v5325 = vsub.f32 %v5323, %v5324
    %v5326 = vand.u32 %v5325, 4294901760
    %5327 = vmatpush1.msra.mxu0 %v5326
    %v5328 = vand.u32 %v74, 4294901760
    %v5329 = vsub.f32 %v74, %v5328
    %v5330 = vand.u32 %v5329, 4294901760
    %v5331 = vsub.f32 %v5329, %v5330
    %v5332 = vand.u32 %v5331, 4294901760
    %5333 = vmatprep.subr.mxu0 %v5332
    %v5334 = vand.u32 %v73, 4294901760
    %v5335 = vsub.f32 %v73, %v5334
    %v5336 = vand.u32 %v5335, 4294901760
    %v5337 = vsub.f32 %v5335, %v5336
    %v5338 = vand.u32 %v5337, 4294901760
    %5339 = vmatpush1.msra.mxu0 %v5338
    %v5340 = vand.u32 %v81, 4294901760
    %v5341 = vsub.f32 %v81, %v5340
    %v5342 = vand.u32 %v5341, 4294901760
    %v5343 = vsub.f32 %v5341, %v5342
    %v5344 = vand.u32 %v5343, 4294901760
    %5345 = vmatprep.subr.mxu0 %v5344
    %v5346 = vand.u32 %v80, 4294901760
    %v5347 = vsub.f32 %v80, %v5346
    %v5348 = vand.u32 %v5347, 4294901760
    %v5349 = vsub.f32 %v5347, %v5348
    %v5350 = vand.u32 %v5349, 4294901760
    %5351 = vmatpush1.msra.mxu0 %v5350
    %v5352 = vand.u32 %v88, 4294901760
    %v5353 = vsub.f32 %v88, %v5352
    %v5354 = vand.u32 %v5353, 4294901760
    %v5355 = vsub.f32 %v5353, %v5354
    %v5356 = vand.u32 %v5355, 4294901760
    %5357 = vmatprep.subr.mxu0 %v5356
    %v5358 = vand.u32 %v87, 4294901760
    %v5359 = vsub.f32 %v87, %v5358
    %v5360 = vand.u32 %v5359, 4294901760
    %v5361 = vsub.f32 %v5359, %v5360
    %v5362 = vand.u32 %v5361, 4294901760
    %5363 = vmatpush1.msra.mxu0 %v5362
    %5364 = vmatprep.subr.mxu0 0.0
    %5365 = vmatpush1.msra.mxu0 0.0
    %5366 = vmatprep.subr.mxu0 0.0
    %5367 = vmatpush1.msra.mxu0 0.0
    %5368 = vmatprep.subr.mxu0 0.0
    %5369 = vmatpush1.msra.mxu0 0.0
    %5370 = vmatprep.subr.mxu0 0.0
    %5371 = vmatpush1.msra.mxu0 0.0
    %5372 = vmatprep.subr.mxu0 0.0
    %5373 = vmatpush1.msra.mxu0 0.0
    %5374 = vmatprep.subr.mxu0 0.0
    %5375 = vmatpush1.msra.mxu0 0.0
    %5376 = vmatprep.subr.mxu0 0.0
    %5377 = vmatpush1.msra.mxu0 0.0
    %5378 = vmatprep.subr.mxu0 0.0
    %5379 = vmatpush1.msra.mxu0 0.0
    %5380 = vmatprep.subr.mxu0 0.0
    %5381 = vmatpush1.msra.mxu0 0.0
    %5382 = vmatprep.subr.mxu0 0.0
    %5383 = vmatpush1.msra.mxu0 0.0
    %5384 = vmatprep.subr.mxu0 0.0
    %5385 = vmatpush1.msra.mxu0 0.0
    %5386 = vmatprep.subr.mxu0 0.0
    %5387 = vmatpush1.msra.mxu0 0.0
    %5388 = vmatprep.subr.mxu0 0.0
    %5389 = vmatpush1.msra.mxu0 0.0
    %5390 = vmatprep.subr.mxu0 0.0
    %5391 = vmatpush1.msra.mxu0 0.0
    %5392 = vmatprep.subr.mxu0 0.0
    %5393 = vmatpush1.msra.mxu0 0.0
    %5394 = vmatprep.subr.mxu0 0.0
    %5395 = vmatpush1.msra.mxu0 0.0
    %5396 = vmatprep.subr.mxu0 0.0
    %5397 = vmatpush1.msra.mxu0 0.0
    %5398 = vmatprep.subr.mxu0 0.0
    %5399 = vmatpush1.msra.mxu0 0.0
    %5400 = vmatprep.subr.mxu0 0.0
    %5401 = vmatpush1.msra.mxu0 0.0
    %5402 = vmatprep.subr.mxu0 0.0
    %5403 = vmatpush1.msra.mxu0 0.0
    %5404 = vmatprep.subr.mxu0 0.0
    %5405 = vmatpush1.msra.mxu0 0.0
    %5406 = vmatprep.subr.mxu0 0.0
    %5407 = vmatpush1.msra.mxu0 0.0
    %5408 = vmatprep.subr.mxu0 0.0
    %5409 = vmatpush1.msra.mxu0 0.0
    %5410 = vmatprep.subr.mxu0 0.0
    %5411 = vmatpush1.msra.mxu0 0.0
    %5412 = vmatprep.subr.mxu0 0.0
    %5413 = vmatpush1.msra.mxu0 0.0
    %5414 = vmatprep.subr.mxu0 0.0
    %5415 = vmatpush1.msra.mxu0 0.0
    %5416 = vmatprep.mubr.f32.mxu0 0.0
    %v5417 = vand.u32 %v92, 4294901760
    %5418 = vmatmul.mubr.f32.gmra.mrb[0].mxu0 %v5417
    %v5419 = vpop.f32.mrb[0].mxu0
    %v5420 = vadd.f32 %v4903, %v5419
    %v5421 = vpop.f32.mrb[0].mxu0
    %v5422 = vadd.f32 %v4905, %v5421
    %5423 = vmatprep.mubr.f32.mxu0 0.0
    %v5424 = vand.u32 %v95, 4294901760
    %5425 = vmatmul.mubr.f32.gmra.mrb[0].mxu0 %v5424
    %v5426 = vpop.f32.mrb[0].mxu0
    %v5427 = vadd.f32 %v4914, %v5426
    %v5428 = vpop.f32.mrb[0].mxu0
    %v5429 = vadd.f32 %v4916, %v5428
    %5430 = vmatprep.mubr.f32.mxu0 0.0
    %v5431 = vand.u32 %v98, 4294901760
    %5432 = vmatmul.mubr.f32.gmra.mrb[0].mxu0 %v5431
    %v5433 = vpop.f32.mrb[0].mxu0
    %v5434 = vadd.f32 %v4925, %v5433
    %v5435 = vpop.f32.mrb[0].mxu0
    %v5436 = vadd.f32 %v4927, %v5435
    %5437 = vmatprep.mubr.f32.mxu0 0.0
    %v5438 = vand.u32 %v101, 4294901760
    %5439 = vmatmul.mubr.f32.gmra.mrb[0].mxu0 %v5438
    %v5440 = vpop.f32.mrb[0].mxu0
    %v5441 = vadd.f32 %v4936, %v5440
    %v5442 = vpop.f32.mrb[0].mxu0
    %v5443 = vadd.f32 %v4938, %v5442
    %5444 = vmatprep.mubr.f32.mxu0 0.0
    %v5445 = vand.u32 %v104, 4294901760
    %5446 = vmatmul.mubr.f32.gmra.mrb[0].mxu0 %v5445
    %v5447 = vpop.f32.mrb[0].mxu0
    %v5448 = vadd.f32 %v4947, %v5447
    %v5449 = vpop.f32.mrb[0].mxu0
    %v5450 = vadd.f32 %v4949, %v5449
    %5451 = vmatprep.mubr.f32.mxu0 0.0
    %v5452 = vand.u32 %v107, 4294901760
    %5453 = vmatmul.mubr.f32.gmra.mrb[0].mxu0 %v5452
    %v5454 = vpop.f32.mrb[0].mxu0
    %v5455 = vadd.f32 %v4958, %v5454
    %v5456 = vpop.f32.mrb[0].mxu0
    %v5457 = vadd.f32 %v4960, %v5456
    %5458 = vmatprep.mubr.f32.mxu0 0.0
    %v5459 = vand.u32 %v110, 4294901760
    %5460 = vmatmul.mubr.f32.gmra.mrb[0].mxu0 %v5459
    %v5461 = vpop.f32.mrb[0].mxu0
    %v5462 = vadd.f32 %v4969, %v5461
    %v5463 = vpop.f32.mrb[0].mxu0
    %v5464 = vadd.f32 %v4971, %v5463
    %5465 = vmatprep.mubr.f32.mxu0 0.0
    %v5466 = vand.u32 %v113, 4294901760
    %5467 = vmatmul.mubr.f32.gmra.mrb[0].mxu0 %v5466
    %v5468 = vpop.f32.mrb[0].mxu0
    %v5469 = vadd.f32 %v4980, %v5468
    %v5470 = vpop.f32.mrb[0].mxu0
    %v5471 = vadd.f32 %v4982, %v5470
    %5472 = vmatprep.mubr.f32.mxu0 0.0
    %v5473 = vand.u32 %v116, 4294901760
    %5474 = vmatmul.mubr.f32.gmra.mrb[0].mxu0 %v5473
    %v5475 = vpop.f32.mrb[0].mxu0
    %v5476 = vadd.f32 %v4991, %v5475
    %v5477 = vpop.f32.mrb[0].mxu0
    %v5478 = vadd.f32 %v4993, %v5477
    %5479 = vmatprep.mubr.f32.mxu0 0.0
    %v5480 = vand.u32 %v119, 4294901760
    %5481 = vmatmul.mubr.f32.gmra.mrb[0].mxu0 %v5480
    %v5482 = vpop.f32.mrb[0].mxu0
    %v5483 = vadd.f32 %v5002, %v5482
    %v5484 = vpop.f32.mrb[0].mxu0
    %v5485 = vadd.f32 %v5004, %v5484
    %5486 = vmatprep.mubr.f32.mxu0 0.0
    %v5487 = vand.u32 %v122, 4294901760
    %5488 = vmatmul.mubr.f32.gmra.mrb[0].mxu0 %v5487
    %v5489 = vpop.f32.mrb[0].mxu0
    %v5490 = vadd.f32 %v5013, %v5489
    %v5491 = vpop.f32.mrb[0].mxu0
    %v5492 = vadd.f32 %v5015, %v5491
    %5493 = vmatprep.mubr.f32.mxu0 0.0
    %v5494 = vand.u32 %v125, 4294901760
    %5495 = vmatmul.mubr.f32.gmra.mrb[0].mxu0 %v5494
    %v5496 = vpop.f32.mrb[0].mxu0
    %v5497 = vadd.f32 %v5024, %v5496
    %v5498 = vpop.f32.mrb[0].mxu0
    %v5499 = vadd.f32 %v5026, %v5498
    %5500 = vmatprep.mubr.f32.mxu0 0.0
    %v5501 = vand.u32 %v128, 4294901760
    %5502 = vmatmul.mubr.f32.gmra.mrb[0].mxu0 %v5501
    %v5503 = vpop.f32.mrb[0].mxu0
    %v5504 = vadd.f32 %v5035, %v5503
    %v5505 = vpop.f32.mrb[0].mxu0
    %v5506 = vadd.f32 %v5037, %v5505
    %5507 = vmatprep.mubr.f32.mxu0 0.0
    %v5508 = vand.u32 %v131, 4294901760
    %5509 = vmatmul.mubr.f32.gmra.mrb[0].mxu0 %v5508
    %v5510 = vpop.f32.mrb[0].mxu0
    %v5511 = vadd.f32 %v5046, %v5510
    %v5512 = vpop.f32.mrb[0].mxu0
    %v5513 = vadd.f32 %v5048, %v5512
    %5514 = vmatprep.mubr.f32.mxu0 0.0
    %v5515 = vand.u32 %v134, 4294901760
    %5516 = vmatmul.mubr.f32.gmra.mrb[0].mxu0 %v5515
    %v5517 = vpop.f32.mrb[0].mxu0
    %v5518 = vadd.f32 %v5057, %v5517
    %v5519 = vpop.f32.mrb[0].mxu0
    %v5520 = vadd.f32 %v5059, %v5519
    %5521 = vmatprep.mubr.f32.mxu0 0.0
    %v5522 = vand.u32 %v137, 4294901760
    %5523 = vmatmul.mubr.f32.gmra.mrb[0].mxu0 %v5522
    %v5524 = vpop.f32.mrb[0].mxu0
    %v5525 = vadd.f32 %v5068, %v5524
    %v5526 = vpop.f32.mrb[0].mxu0
    %v5527 = vadd.f32 %v5070, %v5526
    %5528 = vmatprep.mubr.f32.mxu0 0.0
    %v5529 = vand.u32 %v140, 4294901760
    %5530 = vmatmul.mubr.f32.gmra.mrb[0].mxu0 %v5529
    %v5531 = vpop.f32.mrb[0].mxu0
    %v5532 = vadd.f32 %v5079, %v5531
    %v5533 = vpop.f32.mrb[0].mxu0
    %v5534 = vadd.f32 %v5081, %v5533
    %5535 = vmatprep.mubr.f32.mxu0 0.0
    %v5536 = vand.u32 %v143, 4294901760
    %5537 = vmatmul.mubr.f32.gmra.mrb[0].mxu0 %v5536
    %v5538 = vpop.f32.mrb[0].mxu0
    %v5539 = vadd.f32 %v5090, %v5538
    %v5540 = vpop.f32.mrb[0].mxu0
    %v5541 = vadd.f32 %v5092, %v5540
    %5542 = vmatprep.mubr.f32.mxu0 0.0
    %v5543 = vand.u32 %v146, 4294901760
    %5544 = vmatmul.mubr.f32.gmra.mrb[0].mxu0 %v5543
    %v5545 = vpop.f32.mrb[0].mxu0
    %v5546 = vadd.f32 %v5101, %v5545
    %v5547 = vpop.f32.mrb[0].mxu0
    %v5548 = vadd.f32 %v5103, %v5547
    %5549 = vmatprep.mubr.f32.mxu0 0.0
    %v5550 = vand.u32 %v149, 4294901760
    %5551 = vmatmul.mubr.f32.gmra.mrb[0].mxu0 %v5550
    %v5552 = vpop.f32.mrb[0].mxu0
    %v5553 = vadd.f32 %v5112, %v5552
    %v5554 = vpop.f32.mrb[0].mxu0
    %v5555 = vadd.f32 %v5114, %v5554
    %5556 = vmatprep.mubr.f32.mxu0 0.0
    %v5557 = vand.u32 %v152, 4294901760
    %5558 = vmatmul.mubr.f32.gmra.mrb[0].mxu0 %v5557
    %v5559 = vpop.f32.mrb[0].mxu0
    %v5560 = vadd.f32 %v5123, %v5559
    %v5561 = vpop.f32.mrb[0].mxu0
    %v5562 = vadd.f32 %v5125, %v5561
    %5563 = vmatprep.mubr.f32.mxu0 0.0
    %v5564 = vand.u32 %v155, 4294901760
    %5565 = vmatmul.mubr.f32.gmra.mrb[0].mxu0 %v5564
    %v5566 = vpop.f32.mrb[0].mxu0
    %v5567 = vadd.f32 %v5134, %v5566
    %v5568 = vpop.f32.mrb[0].mxu0
    %v5569 = vadd.f32 %v5136, %v5568
    %5570 = vmatprep.mubr.f32.mxu0 0.0
    %v5571 = vand.u32 %v158, 4294901760
    %5572 = vmatmul.mubr.f32.gmra.mrb[0].mxu0 %v5571
    %v5573 = vpop.f32.mrb[0].mxu0
    %v5574 = vadd.f32 %v5145, %v5573
    %v5575 = vpop.f32.mrb[0].mxu0
    %v5576 = vadd.f32 %v5147, %v5575
    %5577 = vmatprep.mubr.f32.mxu0 0.0
    %v5578 = vand.u32 %v161, 4294901760
    %5579 = vmatmul.mubr.f32.gmra.mrb[0].mxu0 %v5578
    %v5580 = vpop.f32.mrb[0].mxu0
    %v5581 = vadd.f32 %v5156, %v5580
    %v5582 = vpop.f32.mrb[0].mxu0
    %v5583 = vadd.f32 %v5158, %v5582
    %5584 = vmatprep.mubr.f32.mxu0 0.0
    %v5585 = vand.u32 %v164, 4294901760
    %5586 = vmatmul.mubr.f32.gmra.mrb[0].mxu0 %v5585
    %v5587 = vpop.f32.mrb[0].mxu0
    %v5588 = vadd.f32 %v5167, %v5587
    %v5589 = vpop.f32.mrb[0].mxu0
    %v5590 = vadd.f32 %v5169, %v5589
    %5591 = vmatprep.mubr.f32.mxu0 0.0
    %v5592 = vand.u32 %v167, 4294901760
    %5593 = vmatmul.mubr.f32.gmra.mrb[0].mxu0 %v5592
    %v5594 = vpop.f32.mrb[0].mxu0
    %v5595 = vadd.f32 %v5178, %v5594
    %v5596 = vpop.f32.mrb[0].mxu0
    %v5597 = vadd.f32 %v5180, %v5596
    %5598 = vmatprep.mubr.f32.mxu0 0.0
    %v5599 = vand.u32 %v170, 4294901760
    %5600 = vmatmul.mubr.f32.gmra.mrb[0].mxu0 %v5599
    %v5601 = vpop.f32.mrb[0].mxu0
    %v5602 = vadd.f32 %v5189, %v5601
    %v5603 = vpop.f32.mrb[0].mxu0
    %v5604 = vadd.f32 %v5191, %v5603
    %5605 = vmatprep.mubr.f32.mxu0 0.0
    %v5606 = vand.u32 %v173, 4294901760
    %5607 = vmatmul.mubr.f32.gmra.mrb[0].mxu0 %v5606
    %v5608 = vpop.f32.mrb[0].mxu0
    %v5609 = vadd.f32 %v5200, %v5608
    %v5610 = vpop.f32.mrb[0].mxu0
    %v5611 = vadd.f32 %v5202, %v5610
    %5612 = vmatprep.mubr.f32.mxu0 0.0
    %v5613 = vand.u32 %v176, 4294901760
    %5614 = vmatmul.mubr.f32.gmra.mrb[0].mxu0 %v5613
    %v5615 = vpop.f32.mrb[0].mxu0
    %v5616 = vadd.f32 %v5211, %v5615
    %v5617 = vpop.f32.mrb[0].mxu0
    %v5618 = vadd.f32 %v5213, %v5617
    %5619 = vmatprep.mubr.f32.mxu0 0.0
    %v5620 = vand.u32 %v179, 4294901760
    %5621 = vmatmul.mubr.f32.gmra.mrb[0].mxu0 %v5620
    %v5622 = vpop.f32.mrb[0].mxu0
    %v5623 = vadd.f32 %v5222, %v5622
    %v5624 = vpop.f32.mrb[0].mxu0
    %v5625 = vadd.f32 %v5224, %v5624
    %5626 = vmatprep.mubr.f32.mxu0 0.0
    %v5627 = vand.u32 %v182, 4294901760
    %5628 = vmatmul.mubr.f32.gmra.mrb[0].mxu0 %v5627
    %v5629 = vpop.f32.mrb[0].mxu0
    %v5630 = vadd.f32 %v5233, %v5629
    %v5631 = vpop.f32.mrb[0].mxu0
    %v5632 = vadd.f32 %v5235, %v5631
    %5633 = vmatprep.mubr.f32.mxu0 0.0
    %v5634 = vand.u32 %v185, 4294901760
    %5635 = vmatmul.mubr.f32.gmra.mrb[0].mxu0 %v5634
    %v5636 = vpop.f32.mrb[0].mxu0
    %v5637 = vadd.f32 %v5244, %v5636
    %v5638 = vpop.f32.mrb[0].mxu0
    %v5639 = vadd.f32 %v5246, %v5638
    %5640 = vmatprep.mubr.f32.mxu0 0.0
    %v5641 = vand.u32 %v188, 4294901760
    %5642 = vmatmul.mubr.f32.gmra.mrb[0].mxu0 %v5641
    %v5643 = vpop.f32.mrb[0].mxu0
    %v5644 = vadd.f32 %v5255, %v5643
    %v5645 = vpop.f32.mrb[0].mxu0
    %v5646 = vadd.f32 %v5257, %v5645
    %5647 = vmatprep.mubr.f32.mxu0 0.0
    %v5648 = vand.u32 %v191, 4294901760
    %5649 = vmatmul.mubr.f32.gmra.mrb[0].mxu0 %v5648
    %v5650 = vpop.f32.mrb[0].mxu0
    %v5651 = vadd.f32 %v5266, %v5650
    %v5652 = vpop.f32.mrb[0].mxu0
    %v5653 = vadd.f32 %v5268, %v5652
    %5654 = vmatprep.mubr.f32.mxu0 0.0
    %v5655 = vand.u32 %v194, 4294901760
    %5656 = vmatmul.mubr.f32.gmra.mrb[0].mxu0 %v5655
    %v5657 = vpop.f32.mrb[0].mxu0
    %v5658 = vadd.f32 %v5277, %v5657
    %v5659 = vpop.f32.mrb[0].mxu0
    %v5660 = vadd.f32 %v5279, %v5659
    %5661 = vmatprep.mubr.f32.mxu0 0.0
    %v5662 = vand.u32 %v197, 4294901760
    %5663 = vmatmul.mubr.f32.gmra.mrb[0].mxu0 %v5662
    %v5664 = vpop.f32.mrb[0].mxu0
    %v5665 = vadd.f32 %v5288, %v5664
    %v5666 = vpop.f32.mrb[0].mxu0
    %v5667 = vadd.f32 %v5290, %v5666
    %5668 = vdwg.mxu0
    %v5669 = vand.u32 %v53, 4294901760
    %v5670 = vsub.f32 %v53, %v5669
    %5671 = vmatprep.subr.mxu0 %v5670
    %v5672 = vand.u32 %v52, 4294901760
    %v5673 = vsub.f32 %v52, %v5672
    %5674 = vmatpush1.msra.mxu0 %v5673
    %v5675 = vand.u32 %v60, 4294901760
    %v5676 = vsub.f32 %v60, %v5675
    %5677 = vmatprep.subr.mxu0 %v5676
    %v5678 = vand.u32 %v59, 4294901760
    %v5679 = vsub.f32 %v59, %v5678
    %5680 = vmatpush1.msra.mxu0 %v5679
    %v5681 = vand.u32 %v67, 4294901760
    %v5682 = vsub.f32 %v67, %v5681
    %5683 = vmatprep.subr.mxu0 %v5682
    %v5684 = vand.u32 %v66, 4294901760
    %v5685 = vsub.f32 %v66, %v5684
    %5686 = vmatpush1.msra.mxu0 %v5685
    %v5687 = vand.u32 %v74, 4294901760
    %v5688 = vsub.f32 %v74, %v5687
    %5689 = vmatprep.subr.mxu0 %v5688
    %v5690 = vand.u32 %v73, 4294901760
    %v5691 = vsub.f32 %v73, %v5690
    %5692 = vmatpush1.msra.mxu0 %v5691
    %v5693 = vand.u32 %v81, 4294901760
    %v5694 = vsub.f32 %v81, %v5693
    %5695 = vmatprep.subr.mxu0 %v5694
    %v5696 = vand.u32 %v80, 4294901760
    %v5697 = vsub.f32 %v80, %v5696
    %5698 = vmatpush1.msra.mxu0 %v5697
    %v5699 = vand.u32 %v88, 4294901760
    %v5700 = vsub.f32 %v88, %v5699
    %5701 = vmatprep.subr.mxu0 %v5700
    %v5702 = vand.u32 %v87, 4294901760
    %v5703 = vsub.f32 %v87, %v5702
    %5704 = vmatpush1.msra.mxu0 %v5703
    %5705 = vmatprep.subr.mxu0 0.0
    %5706 = vmatpush1.msra.mxu0 0.0
    %5707 = vmatprep.subr.mxu0 0.0
    %5708 = vmatpush1.msra.mxu0 0.0
    %5709 = vmatprep.subr.mxu0 0.0
    %5710 = vmatpush1.msra.mxu0 0.0
    %5711 = vmatprep.subr.mxu0 0.0
    %5712 = vmatpush1.msra.mxu0 0.0
    %5713 = vmatprep.subr.mxu0 0.0
    %5714 = vmatpush1.msra.mxu0 0.0
    %5715 = vmatprep.subr.mxu0 0.0
    %5716 = vmatpush1.msra.mxu0 0.0
    %5717 = vmatprep.subr.mxu0 0.0
    %5718 = vmatpush1.msra.mxu0 0.0
    %5719 = vmatprep.subr.mxu0 0.0
    %5720 = vmatpush1.msra.mxu0 0.0
    %5721 = vmatprep.subr.mxu0 0.0
    %5722 = vmatpush1.msra.mxu0 0.0
    %5723 = vmatprep.subr.mxu0 0.0
    %5724 = vmatpush1.msra.mxu0 0.0
    %5725 = vmatprep.subr.mxu0 0.0
    %5726 = vmatpush1.msra.mxu0 0.0
    %5727 = vmatprep.subr.mxu0 0.0
    %5728 = vmatpush1.msra.mxu0 0.0
    %5729 = vmatprep.subr.mxu0 0.0
    %5730 = vmatpush1.msra.mxu0 0.0
    %5731 = vmatprep.subr.mxu0 0.0
    %5732 = vmatpush1.msra.mxu0 0.0
    %5733 = vmatprep.subr.mxu0 0.0
    %5734 = vmatpush1.msra.mxu0 0.0
    %5735 = vmatprep.subr.mxu0 0.0
    %5736 = vmatpush1.msra.mxu0 0.0
    %5737 = vmatprep.subr.mxu0 0.0
    %5738 = vmatpush1.msra.mxu0 0.0
    %5739 = vmatprep.subr.mxu0 0.0
    %5740 = vmatpush1.msra.mxu0 0.0
    %5741 = vmatprep.subr.mxu0 0.0
    %5742 = vmatpush1.msra.mxu0 0.0
    %5743 = vmatprep.subr.mxu0 0.0
    %5744 = vmatpush1.msra.mxu0 0.0
    %5745 = vmatprep.subr.mxu0 0.0
    %5746 = vmatpush1.msra.mxu0 0.0
    %5747 = vmatprep.subr.mxu0 0.0
    %5748 = vmatpush1.msra.mxu0 0.0
    %5749 = vmatprep.subr.mxu0 0.0
    %5750 = vmatpush1.msra.mxu0 0.0
    %5751 = vmatprep.subr.mxu0 0.0
    %5752 = vmatpush1.msra.mxu0 0.0
    %5753 = vmatprep.subr.mxu0 0.0
    %5754 = vmatpush1.msra.mxu0 0.0
    %5755 = vmatprep.subr.mxu0 0.0
    %5756 = vmatpush1.msra.mxu0 0.0
    %5757 = vmatprep.mubr.f32.mxu0 0.0
    %v5758 = vand.u32 %v92, 4294901760
    %v5759 = vsub.f32 %v92, %v5758
    %5760 = vmatmul.mubr.f32.gmra.mrb[0].mxu0 %v5759
    %v5761 = vpop.f32.mrb[0].mxu0
    %v5762 = vadd.f32 %v5420, %v5761
    %v5763 = vpop.f32.mrb[0].mxu0
    %v5764 = vadd.f32 %v5422, %v5763
    %5765 = vmatprep.mubr.f32.mxu0 0.0
    %v5766 = vand.u32 %v95, 4294901760
    %v5767 = vsub.f32 %v95, %v5766
    %5768 = vmatmul.mubr.f32.gmra.mrb[0].mxu0 %v5767
    %v5769 = vpop.f32.mrb[0].mxu0
    %v5770 = vadd.f32 %v5427, %v5769
    %v5771 = vpop.f32.mrb[0].mxu0
    %v5772 = vadd.f32 %v5429, %v5771
    %5773 = vmatprep.mubr.f32.mxu0 0.0
    %v5774 = vand.u32 %v98, 4294901760
    %v5775 = vsub.f32 %v98, %v5774
    %5776 = vmatmul.mubr.f32.gmra.mrb[0].mxu0 %v5775
    %v5777 = vpop.f32.mrb[0].mxu0
    %v5778 = vadd.f32 %v5434, %v5777
    %v5779 = vpop.f32.mrb[0].mxu0
    %v5780 = vadd.f32 %v5436, %v5779
    %5781 = vmatprep.mubr.f32.mxu0 0.0
    %v5782 = vand.u32 %v101, 4294901760
    %v5783 = vsub.f32 %v101, %v5782
    %5784 = vmatmul.mubr.f32.gmra.mrb[0].mxu0 %v5783
    %v5785 = vpop.f32.mrb[0].mxu0
    %v5786 = vadd.f32 %v5441, %v5785
    %v5787 = vpop.f32.mrb[0].mxu0
    %v5788 = vadd.f32 %v5443, %v5787
    %5789 = vmatprep.mubr.f32.mxu0 0.0
    %v5790 = vand.u32 %v104, 4294901760
    %v5791 = vsub.f32 %v104, %v5790
    %5792 = vmatmul.mubr.f32.gmra.mrb[0].mxu0 %v5791
    %v5793 = vpop.f32.mrb[0].mxu0
    %v5794 = vadd.f32 %v5448, %v5793
    %v5795 = vpop.f32.mrb[0].mxu0
    %v5796 = vadd.f32 %v5450, %v5795
    %5797 = vmatprep.mubr.f32.mxu0 0.0
    %v5798 = vand.u32 %v107, 4294901760
    %v5799 = vsub.f32 %v107, %v5798
    %5800 = vmatmul.mubr.f32.gmra.mrb[0].mxu0 %v5799
    %v5801 = vpop.f32.mrb[0].mxu0
    %v5802 = vadd.f32 %v5455, %v5801
    %v5803 = vpop.f32.mrb[0].mxu0
    %v5804 = vadd.f32 %v5457, %v5803
    %5805 = vmatprep.mubr.f32.mxu0 0.0
    %v5806 = vand.u32 %v110, 4294901760
    %v5807 = vsub.f32 %v110, %v5806
    %5808 = vmatmul.mubr.f32.gmra.mrb[0].mxu0 %v5807
    %v5809 = vpop.f32.mrb[0].mxu0
    %v5810 = vadd.f32 %v5462, %v5809
    %v5811 = vpop.f32.mrb[0].mxu0
    %v5812 = vadd.f32 %v5464, %v5811
    %5813 = vmatprep.mubr.f32.mxu0 0.0
    %v5814 = vand.u32 %v113, 4294901760
    %v5815 = vsub.f32 %v113, %v5814
    %5816 = vmatmul.mubr.f32.gmra.mrb[0].mxu0 %v5815
    %v5817 = vpop.f32.mrb[0].mxu0
    %v5818 = vadd.f32 %v5469, %v5817
    %v5819 = vpop.f32.mrb[0].mxu0
    %v5820 = vadd.f32 %v5471, %v5819
    %5821 = vmatprep.mubr.f32.mxu0 0.0
    %v5822 = vand.u32 %v116, 4294901760
    %v5823 = vsub.f32 %v116, %v5822
    %5824 = vmatmul.mubr.f32.gmra.mrb[0].mxu0 %v5823
    %v5825 = vpop.f32.mrb[0].mxu0
    %v5826 = vadd.f32 %v5476, %v5825
    %v5827 = vpop.f32.mrb[0].mxu0
    %v5828 = vadd.f32 %v5478, %v5827
    %5829 = vmatprep.mubr.f32.mxu0 0.0
    %v5830 = vand.u32 %v119, 4294901760
    %v5831 = vsub.f32 %v119, %v5830
    %5832 = vmatmul.mubr.f32.gmra.mrb[0].mxu0 %v5831
    %v5833 = vpop.f32.mrb[0].mxu0
    %v5834 = vadd.f32 %v5483, %v5833
    %v5835 = vpop.f32.mrb[0].mxu0
    %v5836 = vadd.f32 %v5485, %v5835
    %5837 = vmatprep.mubr.f32.mxu0 0.0
    %v5838 = vand.u32 %v122, 4294901760
    %v5839 = vsub.f32 %v122, %v5838
    %5840 = vmatmul.mubr.f32.gmra.mrb[0].mxu0 %v5839
    %v5841 = vpop.f32.mrb[0].mxu0
    %v5842 = vadd.f32 %v5490, %v5841
    %v5843 = vpop.f32.mrb[0].mxu0
    %v5844 = vadd.f32 %v5492, %v5843
    %5845 = vmatprep.mubr.f32.mxu0 0.0
    %v5846 = vand.u32 %v125, 4294901760
    %v5847 = vsub.f32 %v125, %v5846
    %5848 = vmatmul.mubr.f32.gmra.mrb[0].mxu0 %v5847
    %v5849 = vpop.f32.mrb[0].mxu0
    %v5850 = vadd.f32 %v5497, %v5849
    %v5851 = vpop.f32.mrb[0].mxu0
    %v5852 = vadd.f32 %v5499, %v5851
    %5853 = vmatprep.mubr.f32.mxu0 0.0
    %v5854 = vand.u32 %v128, 4294901760
    %v5855 = vsub.f32 %v128, %v5854
    %5856 = vmatmul.mubr.f32.gmra.mrb[0].mxu0 %v5855
    %v5857 = vpop.f32.mrb[0].mxu0
    %v5858 = vadd.f32 %v5504, %v5857
    %v5859 = vpop.f32.mrb[0].mxu0
    %v5860 = vadd.f32 %v5506, %v5859
    %5861 = vmatprep.mubr.f32.mxu0 0.0
    %v5862 = vand.u32 %v131, 4294901760
    %v5863 = vsub.f32 %v131, %v5862
    %5864 = vmatmul.mubr.f32.gmra.mrb[0].mxu0 %v5863
    %v5865 = vpop.f32.mrb[0].mxu0
    %v5866 = vadd.f32 %v5511, %v5865
    %v5867 = vpop.f32.mrb[0].mxu0
    %v5868 = vadd.f32 %v5513, %v5867
    %5869 = vmatprep.mubr.f32.mxu0 0.0
    %v5870 = vand.u32 %v134, 4294901760
    %v5871 = vsub.f32 %v134, %v5870
    %5872 = vmatmul.mubr.f32.gmra.mrb[0].mxu0 %v5871
    %v5873 = vpop.f32.mrb[0].mxu0
    %v5874 = vadd.f32 %v5518, %v5873
    %v5875 = vpop.f32.mrb[0].mxu0
    %v5876 = vadd.f32 %v5520, %v5875
    %5877 = vmatprep.mubr.f32.mxu0 0.0
    %v5878 = vand.u32 %v137, 4294901760
    %v5879 = vsub.f32 %v137, %v5878
    %5880 = vmatmul.mubr.f32.gmra.mrb[0].mxu0 %v5879
    %v5881 = vpop.f32.mrb[0].mxu0
    %v5882 = vadd.f32 %v5525, %v5881
    %v5883 = vpop.f32.mrb[0].mxu0
    %v5884 = vadd.f32 %v5527, %v5883
    %5885 = vmatprep.mubr.f32.mxu0 0.0
    %v5886 = vand.u32 %v140, 4294901760
    %v5887 = vsub.f32 %v140, %v5886
    %5888 = vmatmul.mubr.f32.gmra.mrb[0].mxu0 %v5887
    %v5889 = vpop.f32.mrb[0].mxu0
    %v5890 = vadd.f32 %v5532, %v5889
    %v5891 = vpop.f32.mrb[0].mxu0
    %v5892 = vadd.f32 %v5534, %v5891
    %5893 = vmatprep.mubr.f32.mxu0 0.0
    %v5894 = vand.u32 %v143, 4294901760
    %v5895 = vsub.f32 %v143, %v5894
    %5896 = vmatmul.mubr.f32.gmra.mrb[0].mxu0 %v5895
    %v5897 = vpop.f32.mrb[0].mxu0
    %v5898 = vadd.f32 %v5539, %v5897
    %v5899 = vpop.f32.mrb[0].mxu0
    %v5900 = vadd.f32 %v5541, %v5899
    %5901 = vmatprep.mubr.f32.mxu0 0.0
    %v5902 = vand.u32 %v146, 4294901760
    %v5903 = vsub.f32 %v146, %v5902
    %5904 = vmatmul.mubr.f32.gmra.mrb[0].mxu0 %v5903
    %v5905 = vpop.f32.mrb[0].mxu0
    %v5906 = vadd.f32 %v5546, %v5905
    %v5907 = vpop.f32.mrb[0].mxu0
    %v5908 = vadd.f32 %v5548, %v5907
    %5909 = vmatprep.mubr.f32.mxu0 0.0
    %v5910 = vand.u32 %v149, 4294901760
    %v5911 = vsub.f32 %v149, %v5910
    %5912 = vmatmul.mubr.f32.gmra.mrb[0].mxu0 %v5911
    %v5913 = vpop.f32.mrb[0].mxu0
    %v5914 = vadd.f32 %v5553, %v5913
    %v5915 = vpop.f32.mrb[0].mxu0
    %v5916 = vadd.f32 %v5555, %v5915
    %5917 = vmatprep.mubr.f32.mxu0 0.0
    %v5918 = vand.u32 %v152, 4294901760
    %v5919 = vsub.f32 %v152, %v5918
    %5920 = vmatmul.mubr.f32.gmra.mrb[0].mxu0 %v5919
    %v5921 = vpop.f32.mrb[0].mxu0
    %v5922 = vadd.f32 %v5560, %v5921
    %v5923 = vpop.f32.mrb[0].mxu0
    %v5924 = vadd.f32 %v5562, %v5923
    %5925 = vmatprep.mubr.f32.mxu0 0.0
    %v5926 = vand.u32 %v155, 4294901760
    %v5927 = vsub.f32 %v155, %v5926
    %5928 = vmatmul.mubr.f32.gmra.mrb[0].mxu0 %v5927
    %v5929 = vpop.f32.mrb[0].mxu0
    %v5930 = vadd.f32 %v5567, %v5929
    %v5931 = vpop.f32.mrb[0].mxu0
    %v5932 = vadd.f32 %v5569, %v5931
    %5933 = vmatprep.mubr.f32.mxu0 0.0
    %v5934 = vand.u32 %v158, 4294901760
    %v5935 = vsub.f32 %v158, %v5934
    %5936 = vmatmul.mubr.f32.gmra.mrb[0].mxu0 %v5935
    %v5937 = vpop.f32.mrb[0].mxu0
    %v5938 = vadd.f32 %v5574, %v5937
    %v5939 = vpop.f32.mrb[0].mxu0
    %v5940 = vadd.f32 %v5576, %v5939
    %5941 = vmatprep.mubr.f32.mxu0 0.0
    %v5942 = vand.u32 %v161, 4294901760
    %v5943 = vsub.f32 %v161, %v5942
    %5944 = vmatmul.mubr.f32.gmra.mrb[0].mxu0 %v5943
    %v5945 = vpop.f32.mrb[0].mxu0
    %v5946 = vadd.f32 %v5581, %v5945
    %v5947 = vpop.f32.mrb[0].mxu0
    %v5948 = vadd.f32 %v5583, %v5947
    %5949 = vmatprep.mubr.f32.mxu0 0.0
    %v5950 = vand.u32 %v164, 4294901760
    %v5951 = vsub.f32 %v164, %v5950
    %5952 = vmatmul.mubr.f32.gmra.mrb[0].mxu0 %v5951
    %v5953 = vpop.f32.mrb[0].mxu0
    %v5954 = vadd.f32 %v5588, %v5953
    %v5955 = vpop.f32.mrb[0].mxu0
    %v5956 = vadd.f32 %v5590, %v5955
    %5957 = vmatprep.mubr.f32.mxu0 0.0
    %v5958 = vand.u32 %v167, 4294901760
    %v5959 = vsub.f32 %v167, %v5958
    %5960 = vmatmul.mubr.f32.gmra.mrb[0].mxu0 %v5959
    %v5961 = vpop.f32.mrb[0].mxu0
    %v5962 = vadd.f32 %v5595, %v5961
    %v5963 = vpop.f32.mrb[0].mxu0
    %v5964 = vadd.f32 %v5597, %v5963
    %5965 = vmatprep.mubr.f32.mxu0 0.0
    %v5966 = vand.u32 %v170, 4294901760
    %v5967 = vsub.f32 %v170, %v5966
    %5968 = vmatmul.mubr.f32.gmra.mrb[0].mxu0 %v5967
    %v5969 = vpop.f32.mrb[0].mxu0
    %v5970 = vadd.f32 %v5602, %v5969
    %v5971 = vpop.f32.mrb[0].mxu0
    %v5972 = vadd.f32 %v5604, %v5971
    %5973 = vmatprep.mubr.f32.mxu0 0.0
    %v5974 = vand.u32 %v173, 4294901760
    %v5975 = vsub.f32 %v173, %v5974
    %5976 = vmatmul.mubr.f32.gmra.mrb[0].mxu0 %v5975
    %v5977 = vpop.f32.mrb[0].mxu0
    %v5978 = vadd.f32 %v5609, %v5977
    %v5979 = vpop.f32.mrb[0].mxu0
    %v5980 = vadd.f32 %v5611, %v5979
    %5981 = vmatprep.mubr.f32.mxu0 0.0
    %v5982 = vand.u32 %v176, 4294901760
    %v5983 = vsub.f32 %v176, %v5982
    %5984 = vmatmul.mubr.f32.gmra.mrb[0].mxu0 %v5983
    %v5985 = vpop.f32.mrb[0].mxu0
    %v5986 = vadd.f32 %v5616, %v5985
    %v5987 = vpop.f32.mrb[0].mxu0
    %v5988 = vadd.f32 %v5618, %v5987
    %5989 = vmatprep.mubr.f32.mxu0 0.0
    %v5990 = vand.u32 %v179, 4294901760
    %v5991 = vsub.f32 %v179, %v5990
    %5992 = vmatmul.mubr.f32.gmra.mrb[0].mxu0 %v5991
    %v5993 = vpop.f32.mrb[0].mxu0
    %v5994 = vadd.f32 %v5623, %v5993
    %v5995 = vpop.f32.mrb[0].mxu0
    %v5996 = vadd.f32 %v5625, %v5995
    %5997 = vmatprep.mubr.f32.mxu0 0.0
    %v5998 = vand.u32 %v182, 4294901760
    %v5999 = vsub.f32 %v182, %v5998
    %6000 = vmatmul.mubr.f32.gmra.mrb[0].mxu0 %v5999
    %v6001 = vpop.f32.mrb[0].mxu0
    %v6002 = vadd.f32 %v5630, %v6001
    %v6003 = vpop.f32.mrb[0].mxu0
    %v6004 = vadd.f32 %v5632, %v6003
    %6005 = vmatprep.mubr.f32.mxu0 0.0
    %v6006 = vand.u32 %v185, 4294901760
    %v6007 = vsub.f32 %v185, %v6006
    %6008 = vmatmul.mubr.f32.gmra.mrb[0].mxu0 %v6007
    %v6009 = vpop.f32.mrb[0].mxu0
    %v6010 = vadd.f32 %v5637, %v6009
    %v6011 = vpop.f32.mrb[0].mxu0
    %v6012 = vadd.f32 %v5639, %v6011
    %6013 = vmatprep.mubr.f32.mxu0 0.0
    %v6014 = vand.u32 %v188, 4294901760
    %v6015 = vsub.f32 %v188, %v6014
    %6016 = vmatmul.mubr.f32.gmra.mrb[0].mxu0 %v6015
    %v6017 = vpop.f32.mrb[0].mxu0
    %v6018 = vadd.f32 %v5644, %v6017
    %v6019 = vpop.f32.mrb[0].mxu0
    %v6020 = vadd.f32 %v5646, %v6019
    %6021 = vmatprep.mubr.f32.mxu0 0.0
    %v6022 = vand.u32 %v191, 4294901760
    %v6023 = vsub.f32 %v191, %v6022
    %6024 = vmatmul.mubr.f32.gmra.mrb[0].mxu0 %v6023
    %v6025 = vpop.f32.mrb[0].mxu0
    %v6026 = vadd.f32 %v5651, %v6025
    %v6027 = vpop.f32.mrb[0].mxu0
    %v6028 = vadd.f32 %v5653, %v6027
    %6029 = vmatprep.mubr.f32.mxu0 0.0
    %v6030 = vand.u32 %v194, 4294901760
    %v6031 = vsub.f32 %v194, %v6030
    %6032 = vmatmul.mubr.f32.gmra.mrb[0].mxu0 %v6031
    %v6033 = vpop.f32.mrb[0].mxu0
    %v6034 = vadd.f32 %v5658, %v6033
    %v6035 = vpop.f32.mrb[0].mxu0
    %v6036 = vadd.f32 %v5660, %v6035
    %6037 = vmatprep.mubr.f32.mxu0 0.0
    %v6038 = vand.u32 %v197, 4294901760
    %v6039 = vsub.f32 %v197, %v6038
    %6040 = vmatmul.mubr.f32.gmra.mrb[0].mxu0 %v6039
    %v6041 = vpop.f32.mrb[0].mxu0
    %v6042 = vadd.f32 %v5665, %v6041
    %v6043 = vpop.f32.mrb[0].mxu0
    %v6044 = vadd.f32 %v5667, %v6043
    %6045 = vdwg.mxu0
    %v6046 = vand.u32 %v53, 4294901760
    %6047 = vmatprep.subr.mxu0 %v6046
    %v6048 = vand.u32 %v52, 4294901760
    %6049 = vmatpush1.msra.mxu0 %v6048
    %v6050 = vand.u32 %v60, 4294901760
    %6051 = vmatprep.subr.mxu0 %v6050
    %v6052 = vand.u32 %v59, 4294901760
    %6053 = vmatpush1.msra.mxu0 %v6052
    %v6054 = vand.u32 %v67, 4294901760
    %6055 = vmatprep.subr.mxu0 %v6054
    %v6056 = vand.u32 %v66, 4294901760
    %6057 = vmatpush1.msra.mxu0 %v6056
    %v6058 = vand.u32 %v74, 4294901760
    %6059 = vmatprep.subr.mxu0 %v6058
    %v6060 = vand.u32 %v73, 4294901760
    %6061 = vmatpush1.msra.mxu0 %v6060
    %v6062 = vand.u32 %v81, 4294901760
    %6063 = vmatprep.subr.mxu0 %v6062
    %v6064 = vand.u32 %v80, 4294901760
    %6065 = vmatpush1.msra.mxu0 %v6064
    %v6066 = vand.u32 %v88, 4294901760
    %6067 = vmatprep.subr.mxu0 %v6066
    %v6068 = vand.u32 %v87, 4294901760
    %6069 = vmatpush1.msra.mxu0 %v6068
    %6070 = vmatprep.subr.mxu0 0.0
    %6071 = vmatpush1.msra.mxu0 0.0
    %6072 = vmatprep.subr.mxu0 0.0
    %6073 = vmatpush1.msra.mxu0 0.0
    %6074 = vmatprep.subr.mxu0 0.0
    %6075 = vmatpush1.msra.mxu0 0.0
    %6076 = vmatprep.subr.mxu0 0.0
    %6077 = vmatpush1.msra.mxu0 0.0
    %6078 = vmatprep.subr.mxu0 0.0
    %6079 = vmatpush1.msra.mxu0 0.0
    %6080 = vmatprep.subr.mxu0 0.0
    %6081 = vmatpush1.msra.mxu0 0.0
    %6082 = vmatprep.subr.mxu0 0.0
    %6083 = vmatpush1.msra.mxu0 0.0
    %6084 = vmatprep.subr.mxu0 0.0
    %6085 = vmatpush1.msra.mxu0 0.0
    %6086 = vmatprep.subr.mxu0 0.0
    %6087 = vmatpush1.msra.mxu0 0.0
    %6088 = vmatprep.subr.mxu0 0.0
    %6089 = vmatpush1.msra.mxu0 0.0
    %6090 = vmatprep.subr.mxu0 0.0
    %6091 = vmatpush1.msra.mxu0 0.0
    %6092 = vmatprep.subr.mxu0 0.0
    %6093 = vmatpush1.msra.mxu0 0.0
    %6094 = vmatprep.subr.mxu0 0.0
    %6095 = vmatpush1.msra.mxu0 0.0
    %6096 = vmatprep.subr.mxu0 0.0
    %6097 = vmatpush1.msra.mxu0 0.0
    %6098 = vmatprep.subr.mxu0 0.0
    %6099 = vmatpush1.msra.mxu0 0.0
    %6100 = vmatprep.subr.mxu0 0.0
    %6101 = vmatpush1.msra.mxu0 0.0
    %6102 = vmatprep.subr.mxu0 0.0
    %6103 = vmatpush1.msra.mxu0 0.0
    %6104 = vmatprep.subr.mxu0 0.0
    %6105 = vmatpush1.msra.mxu0 0.0
    %6106 = vmatprep.subr.mxu0 0.0
    %6107 = vmatpush1.msra.mxu0 0.0
    %6108 = vmatprep.subr.mxu0 0.0
    %6109 = vmatpush1.msra.mxu0 0.0
    %6110 = vmatprep.subr.mxu0 0.0
    %6111 = vmatpush1.msra.mxu0 0.0
    %6112 = vmatprep.subr.mxu0 0.0
    %6113 = vmatpush1.msra.mxu0 0.0
    %6114 = vmatprep.subr.mxu0 0.0
    %6115 = vmatpush1.msra.mxu0 0.0
    %6116 = vmatprep.subr.mxu0 0.0
    %6117 = vmatpush1.msra.mxu0 0.0
    %6118 = vmatprep.subr.mxu0 0.0
    %6119 = vmatpush1.msra.mxu0 0.0
    %6120 = vmatprep.subr.mxu0 0.0
    %6121 = vmatpush1.msra.mxu0 0.0
    %6122 = vmatprep.mubr.f32.mxu0 0.0
    %v6123 = vand.u32 %v92, 4294901760
    %v6124 = vsub.f32 %v92, %v6123
    %v6125 = vand.u32 %v6124, 4294901760
    %6126 = vmatmul.mubr.f32.gmra.mrb[0].mxu0 %v6125
    %v6127 = vpop.f32.mrb[0].mxu0
    %v6128 = vadd.f32 %v5762, %v6127
    %v6129 = vpop.f32.mrb[0].mxu0
    %v6130 = vadd.f32 %v5764, %v6129
    %6131 = vmatprep.mubr.f32.mxu0 0.0
    %v6132 = vand.u32 %v95, 4294901760
    %v6133 = vsub.f32 %v95, %v6132
    %v6134 = vand.u32 %v6133, 4294901760
    %6135 = vmatmul.mubr.f32.gmra.mrb[0].mxu0 %v6134
    %v6136 = vpop.f32.mrb[0].mxu0
    %v6137 = vadd.f32 %v5770, %v6136
    %v6138 = vpop.f32.mrb[0].mxu0
    %v6139 = vadd.f32 %v5772, %v6138
    %6140 = vmatprep.mubr.f32.mxu0 0.0
    %v6141 = vand.u32 %v98, 4294901760
    %v6142 = vsub.f32 %v98, %v6141
    %v6143 = vand.u32 %v6142, 4294901760
    %6144 = vmatmul.mubr.f32.gmra.mrb[0].mxu0 %v6143
    %v6145 = vpop.f32.mrb[0].mxu0
    %v6146 = vadd.f32 %v5778, %v6145
    %v6147 = vpop.f32.mrb[0].mxu0
    %v6148 = vadd.f32 %v5780, %v6147
    %6149 = vmatprep.mubr.f32.mxu0 0.0
    %v6150 = vand.u32 %v101, 4294901760
    %v6151 = vsub.f32 %v101, %v6150
    %v6152 = vand.u32 %v6151, 4294901760
    %6153 = vmatmul.mubr.f32.gmra.mrb[0].mxu0 %v6152
    %v6154 = vpop.f32.mrb[0].mxu0
    %v6155 = vadd.f32 %v5786, %v6154
    %v6156 = vpop.f32.mrb[0].mxu0
    %v6157 = vadd.f32 %v5788, %v6156
    %6158 = vmatprep.mubr.f32.mxu0 0.0
    %v6159 = vand.u32 %v104, 4294901760
    %v6160 = vsub.f32 %v104, %v6159
    %v6161 = vand.u32 %v6160, 4294901760
    %6162 = vmatmul.mubr.f32.gmra.mrb[0].mxu0 %v6161
    %v6163 = vpop.f32.mrb[0].mxu0
    %v6164 = vadd.f32 %v5794, %v6163
    %v6165 = vpop.f32.mrb[0].mxu0
    %v6166 = vadd.f32 %v5796, %v6165
    %6167 = vmatprep.mubr.f32.mxu0 0.0
    %v6168 = vand.u32 %v107, 4294901760
    %v6169 = vsub.f32 %v107, %v6168
    %v6170 = vand.u32 %v6169, 4294901760
    %6171 = vmatmul.mubr.f32.gmra.mrb[0].mxu0 %v6170
    %v6172 = vpop.f32.mrb[0].mxu0
    %v6173 = vadd.f32 %v5802, %v6172
    %v6174 = vpop.f32.mrb[0].mxu0
    %v6175 = vadd.f32 %v5804, %v6174
    %6176 = vmatprep.mubr.f32.mxu0 0.0
    %v6177 = vand.u32 %v110, 4294901760
    %v6178 = vsub.f32 %v110, %v6177
    %v6179 = vand.u32 %v6178, 4294901760
    %6180 = vmatmul.mubr.f32.gmra.mrb[0].mxu0 %v6179
    %v6181 = vpop.f32.mrb[0].mxu0
    %v6182 = vadd.f32 %v5810, %v6181
    %v6183 = vpop.f32.mrb[0].mxu0
    %v6184 = vadd.f32 %v5812, %v6183
    %6185 = vmatprep.mubr.f32.mxu0 0.0
    %v6186 = vand.u32 %v113, 4294901760
    %v6187 = vsub.f32 %v113, %v6186
    %v6188 = vand.u32 %v6187, 4294901760
    %6189 = vmatmul.mubr.f32.gmra.mrb[0].mxu0 %v6188
    %v6190 = vpop.f32.mrb[0].mxu0
    %v6191 = vadd.f32 %v5818, %v6190
    %v6192 = vpop.f32.mrb[0].mxu0
    %v6193 = vadd.f32 %v5820, %v6192
    %6194 = vmatprep.mubr.f32.mxu0 0.0
    %v6195 = vand.u32 %v116, 4294901760
    %v6196 = vsub.f32 %v116, %v6195
    %v6197 = vand.u32 %v6196, 4294901760
    %6198 = vmatmul.mubr.f32.gmra.mrb[0].mxu0 %v6197
    %v6199 = vpop.f32.mrb[0].mxu0
    %v6200 = vadd.f32 %v5826, %v6199
    %v6201 = vpop.f32.mrb[0].mxu0
    %v6202 = vadd.f32 %v5828, %v6201
    %6203 = vmatprep.mubr.f32.mxu0 0.0
    %v6204 = vand.u32 %v119, 4294901760
    %v6205 = vsub.f32 %v119, %v6204
    %v6206 = vand.u32 %v6205, 4294901760
    %6207 = vmatmul.mubr.f32.gmra.mrb[0].mxu0 %v6206
    %v6208 = vpop.f32.mrb[0].mxu0
    %v6209 = vadd.f32 %v5834, %v6208
    %v6210 = vpop.f32.mrb[0].mxu0
    %v6211 = vadd.f32 %v5836, %v6210
    %6212 = vmatprep.mubr.f32.mxu0 0.0
    %v6213 = vand.u32 %v122, 4294901760
    %v6214 = vsub.f32 %v122, %v6213
    %v6215 = vand.u32 %v6214, 4294901760
    %6216 = vmatmul.mubr.f32.gmra.mrb[0].mxu0 %v6215
    %v6217 = vpop.f32.mrb[0].mxu0
    %v6218 = vadd.f32 %v5842, %v6217
    %v6219 = vpop.f32.mrb[0].mxu0
    %v6220 = vadd.f32 %v5844, %v6219
    %6221 = vmatprep.mubr.f32.mxu0 0.0
    %v6222 = vand.u32 %v125, 4294901760
    %v6223 = vsub.f32 %v125, %v6222
    %v6224 = vand.u32 %v6223, 4294901760
    %6225 = vmatmul.mubr.f32.gmra.mrb[0].mxu0 %v6224
    %v6226 = vpop.f32.mrb[0].mxu0
    %v6227 = vadd.f32 %v5850, %v6226
    %v6228 = vpop.f32.mrb[0].mxu0
    %v6229 = vadd.f32 %v5852, %v6228
    %6230 = vmatprep.mubr.f32.mxu0 0.0
    %v6231 = vand.u32 %v128, 4294901760
    %v6232 = vsub.f32 %v128, %v6231
    %v6233 = vand.u32 %v6232, 4294901760
    %6234 = vmatmul.mubr.f32.gmra.mrb[0].mxu0 %v6233
    %v6235 = vpop.f32.mrb[0].mxu0
    %v6236 = vadd.f32 %v5858, %v6235
    %v6237 = vpop.f32.mrb[0].mxu0
    %v6238 = vadd.f32 %v5860, %v6237
    %6239 = vmatprep.mubr.f32.mxu0 0.0
    %v6240 = vand.u32 %v131, 4294901760
    %v6241 = vsub.f32 %v131, %v6240
    %v6242 = vand.u32 %v6241, 4294901760
    %6243 = vmatmul.mubr.f32.gmra.mrb[0].mxu0 %v6242
    %v6244 = vpop.f32.mrb[0].mxu0
    %v6245 = vadd.f32 %v5866, %v6244
    %v6246 = vpop.f32.mrb[0].mxu0
    %v6247 = vadd.f32 %v5868, %v6246
    %6248 = vmatprep.mubr.f32.mxu0 0.0
    %v6249 = vand.u32 %v134, 4294901760
    %v6250 = vsub.f32 %v134, %v6249
    %v6251 = vand.u32 %v6250, 4294901760
    %6252 = vmatmul.mubr.f32.gmra.mrb[0].mxu0 %v6251
    %v6253 = vpop.f32.mrb[0].mxu0
    %v6254 = vadd.f32 %v5874, %v6253
    %v6255 = vpop.f32.mrb[0].mxu0
    %v6256 = vadd.f32 %v5876, %v6255
    %6257 = vmatprep.mubr.f32.mxu0 0.0
    %v6258 = vand.u32 %v137, 4294901760
    %v6259 = vsub.f32 %v137, %v6258
    %v6260 = vand.u32 %v6259, 4294901760
    %6261 = vmatmul.mubr.f32.gmra.mrb[0].mxu0 %v6260
    %v6262 = vpop.f32.mrb[0].mxu0
    %v6263 = vadd.f32 %v5882, %v6262
    %v6264 = vpop.f32.mrb[0].mxu0
    %v6265 = vadd.f32 %v5884, %v6264
    %6266 = vmatprep.mubr.f32.mxu0 0.0
    %v6267 = vand.u32 %v140, 4294901760
    %v6268 = vsub.f32 %v140, %v6267
    %v6269 = vand.u32 %v6268, 4294901760
    %6270 = vmatmul.mubr.f32.gmra.mrb[0].mxu0 %v6269
    %v6271 = vpop.f32.mrb[0].mxu0
    %v6272 = vadd.f32 %v5890, %v6271
    %v6273 = vpop.f32.mrb[0].mxu0
    %v6274 = vadd.f32 %v5892, %v6273
    %6275 = vmatprep.mubr.f32.mxu0 0.0
    %v6276 = vand.u32 %v143, 4294901760
    %v6277 = vsub.f32 %v143, %v6276
    %v6278 = vand.u32 %v6277, 4294901760
    %6279 = vmatmul.mubr.f32.gmra.mrb[0].mxu0 %v6278
    %v6280 = vpop.f32.mrb[0].mxu0
    %v6281 = vadd.f32 %v5898, %v6280
    %v6282 = vpop.f32.mrb[0].mxu0
    %v6283 = vadd.f32 %v5900, %v6282
    %6284 = vmatprep.mubr.f32.mxu0 0.0
    %v6285 = vand.u32 %v146, 4294901760
    %v6286 = vsub.f32 %v146, %v6285
    %v6287 = vand.u32 %v6286, 4294901760
    %6288 = vmatmul.mubr.f32.gmra.mrb[0].mxu0 %v6287
    %v6289 = vpop.f32.mrb[0].mxu0
    %v6290 = vadd.f32 %v5906, %v6289
    %v6291 = vpop.f32.mrb[0].mxu0
    %v6292 = vadd.f32 %v5908, %v6291
    %6293 = vmatprep.mubr.f32.mxu0 0.0
    %v6294 = vand.u32 %v149, 4294901760
    %v6295 = vsub.f32 %v149, %v6294
    %v6296 = vand.u32 %v6295, 4294901760
    %6297 = vmatmul.mubr.f32.gmra.mrb[0].mxu0 %v6296
    %v6298 = vpop.f32.mrb[0].mxu0
    %v6299 = vadd.f32 %v5914, %v6298
    %v6300 = vpop.f32.mrb[0].mxu0
    %v6301 = vadd.f32 %v5916, %v6300
    %6302 = vmatprep.mubr.f32.mxu0 0.0
    %v6303 = vand.u32 %v152, 4294901760
    %v6304 = vsub.f32 %v152, %v6303
    %v6305 = vand.u32 %v6304, 4294901760
    %6306 = vmatmul.mubr.f32.gmra.mrb[0].mxu0 %v6305
    %v6307 = vpop.f32.mrb[0].mxu0
    %v6308 = vadd.f32 %v5922, %v6307
    %v6309 = vpop.f32.mrb[0].mxu0
    %v6310 = vadd.f32 %v5924, %v6309
    %6311 = vmatprep.mubr.f32.mxu0 0.0
    %v6312 = vand.u32 %v155, 4294901760
    %v6313 = vsub.f32 %v155, %v6312
    %v6314 = vand.u32 %v6313, 4294901760
    %6315 = vmatmul.mubr.f32.gmra.mrb[0].mxu0 %v6314
    %v6316 = vpop.f32.mrb[0].mxu0
    %v6317 = vadd.f32 %v5930, %v6316
    %v6318 = vpop.f32.mrb[0].mxu0
    %v6319 = vadd.f32 %v5932, %v6318
    %6320 = vmatprep.mubr.f32.mxu0 0.0
    %v6321 = vand.u32 %v158, 4294901760
    %v6322 = vsub.f32 %v158, %v6321
    %v6323 = vand.u32 %v6322, 4294901760
    %6324 = vmatmul.mubr.f32.gmra.mrb[0].mxu0 %v6323
    %v6325 = vpop.f32.mrb[0].mxu0
    %v6326 = vadd.f32 %v5938, %v6325
    %v6327 = vpop.f32.mrb[0].mxu0
    %v6328 = vadd.f32 %v5940, %v6327
    %6329 = vmatprep.mubr.f32.mxu0 0.0
    %v6330 = vand.u32 %v161, 4294901760
    %v6331 = vsub.f32 %v161, %v6330
    %v6332 = vand.u32 %v6331, 4294901760
    %6333 = vmatmul.mubr.f32.gmra.mrb[0].mxu0 %v6332
    %v6334 = vpop.f32.mrb[0].mxu0
    %v6335 = vadd.f32 %v5946, %v6334
    %v6336 = vpop.f32.mrb[0].mxu0
    %v6337 = vadd.f32 %v5948, %v6336
    %6338 = vmatprep.mubr.f32.mxu0 0.0
    %v6339 = vand.u32 %v164, 4294901760
    %v6340 = vsub.f32 %v164, %v6339
    %v6341 = vand.u32 %v6340, 4294901760
    %6342 = vmatmul.mubr.f32.gmra.mrb[0].mxu0 %v6341
    %v6343 = vpop.f32.mrb[0].mxu0
    %v6344 = vadd.f32 %v5954, %v6343
    %v6345 = vpop.f32.mrb[0].mxu0
    %v6346 = vadd.f32 %v5956, %v6345
    %6347 = vmatprep.mubr.f32.mxu0 0.0
    %v6348 = vand.u32 %v167, 4294901760
    %v6349 = vsub.f32 %v167, %v6348
    %v6350 = vand.u32 %v6349, 4294901760
    %6351 = vmatmul.mubr.f32.gmra.mrb[0].mxu0 %v6350
    %v6352 = vpop.f32.mrb[0].mxu0
    %v6353 = vadd.f32 %v5962, %v6352
    %v6354 = vpop.f32.mrb[0].mxu0
    %v6355 = vadd.f32 %v5964, %v6354
    %6356 = vmatprep.mubr.f32.mxu0 0.0
    %v6357 = vand.u32 %v170, 4294901760
    %v6358 = vsub.f32 %v170, %v6357
    %v6359 = vand.u32 %v6358, 4294901760
    %6360 = vmatmul.mubr.f32.gmra.mrb[0].mxu0 %v6359
    %v6361 = vpop.f32.mrb[0].mxu0
    %v6362 = vadd.f32 %v5970, %v6361
    %v6363 = vpop.f32.mrb[0].mxu0
    %v6364 = vadd.f32 %v5972, %v6363
    %6365 = vmatprep.mubr.f32.mxu0 0.0
    %v6366 = vand.u32 %v173, 4294901760
    %v6367 = vsub.f32 %v173, %v6366
    %v6368 = vand.u32 %v6367, 4294901760
    %6369 = vmatmul.mubr.f32.gmra.mrb[0].mxu0 %v6368
    %v6370 = vpop.f32.mrb[0].mxu0
    %v6371 = vadd.f32 %v5978, %v6370
    %v6372 = vpop.f32.mrb[0].mxu0
    %v6373 = vadd.f32 %v5980, %v6372
    %6374 = vmatprep.mubr.f32.mxu0 0.0
    %v6375 = vand.u32 %v176, 4294901760
    %v6376 = vsub.f32 %v176, %v6375
    %v6377 = vand.u32 %v6376, 4294901760
    %6378 = vmatmul.mubr.f32.gmra.mrb[0].mxu0 %v6377
    %v6379 = vpop.f32.mrb[0].mxu0
    %v6380 = vadd.f32 %v5986, %v6379
    %v6381 = vpop.f32.mrb[0].mxu0
    %v6382 = vadd.f32 %v5988, %v6381
    %6383 = vmatprep.mubr.f32.mxu0 0.0
    %v6384 = vand.u32 %v179, 4294901760
    %v6385 = vsub.f32 %v179, %v6384
    %v6386 = vand.u32 %v6385, 4294901760
    %6387 = vmatmul.mubr.f32.gmra.mrb[0].mxu0 %v6386
    %v6388 = vpop.f32.mrb[0].mxu0
    %v6389 = vadd.f32 %v5994, %v6388
    %v6390 = vpop.f32.mrb[0].mxu0
    %v6391 = vadd.f32 %v5996, %v6390
    %6392 = vmatprep.mubr.f32.mxu0 0.0
    %v6393 = vand.u32 %v182, 4294901760
    %v6394 = vsub.f32 %v182, %v6393
    %v6395 = vand.u32 %v6394, 4294901760
    %6396 = vmatmul.mubr.f32.gmra.mrb[0].mxu0 %v6395
    %v6397 = vpop.f32.mrb[0].mxu0
    %v6398 = vadd.f32 %v6002, %v6397
    %v6399 = vpop.f32.mrb[0].mxu0
    %v6400 = vadd.f32 %v6004, %v6399
    %6401 = vmatprep.mubr.f32.mxu0 0.0
    %v6402 = vand.u32 %v185, 4294901760
    %v6403 = vsub.f32 %v185, %v6402
    %v6404 = vand.u32 %v6403, 4294901760
    %6405 = vmatmul.mubr.f32.gmra.mrb[0].mxu0 %v6404
    %v6406 = vpop.f32.mrb[0].mxu0
    %v6407 = vadd.f32 %v6010, %v6406
    %v6408 = vpop.f32.mrb[0].mxu0
    %v6409 = vadd.f32 %v6012, %v6408
    %6410 = vmatprep.mubr.f32.mxu0 0.0
    %v6411 = vand.u32 %v188, 4294901760
    %v6412 = vsub.f32 %v188, %v6411
    %v6413 = vand.u32 %v6412, 4294901760
    %6414 = vmatmul.mubr.f32.gmra.mrb[0].mxu0 %v6413
    %v6415 = vpop.f32.mrb[0].mxu0
    %v6416 = vadd.f32 %v6018, %v6415
    %v6417 = vpop.f32.mrb[0].mxu0
    %v6418 = vadd.f32 %v6020, %v6417
    %6419 = vmatprep.mubr.f32.mxu0 0.0
    %v6420 = vand.u32 %v191, 4294901760
    %v6421 = vsub.f32 %v191, %v6420
    %v6422 = vand.u32 %v6421, 4294901760
    %6423 = vmatmul.mubr.f32.gmra.mrb[0].mxu0 %v6422
    %v6424 = vpop.f32.mrb[0].mxu0
    %v6425 = vadd.f32 %v6026, %v6424
    %v6426 = vpop.f32.mrb[0].mxu0
    %v6427 = vadd.f32 %v6028, %v6426
    %6428 = vmatprep.mubr.f32.mxu0 0.0
    %v6429 = vand.u32 %v194, 4294901760
    %v6430 = vsub.f32 %v194, %v6429
    %v6431 = vand.u32 %v6430, 4294901760
    %6432 = vmatmul.mubr.f32.gmra.mrb[0].mxu0 %v6431
    %v6433 = vpop.f32.mrb[0].mxu0
    %v6434 = vadd.f32 %v6034, %v6433
    %v6435 = vpop.f32.mrb[0].mxu0
    %v6436 = vadd.f32 %v6036, %v6435
    %6437 = vmatprep.mubr.f32.mxu0 0.0
    %v6438 = vand.u32 %v197, 4294901760
    %v6439 = vsub.f32 %v197, %v6438
    %v6440 = vand.u32 %v6439, 4294901760
    %6441 = vmatmul.mubr.f32.gmra.mrb[0].mxu0 %v6440
    %v6442 = vpop.f32.mrb[0].mxu0
    %v6443 = vadd.f32 %v6042, %v6442
    %v6444 = vpop.f32.mrb[0].mxu0
    %v6445 = vadd.f32 %v6044, %v6444
    %6446 = vdwg.mxu0
    %v6447 = vand.u32 %v53, 4294901760
    %v6448 = vsub.f32 %v53, %v6447
    %v6449 = vand.u32 %v6448, 4294901760
    %6450 = vmatprep.subr.mxu0 %v6449
    %v6451 = vand.u32 %v52, 4294901760
    %v6452 = vsub.f32 %v52, %v6451
    %v6453 = vand.u32 %v6452, 4294901760
    %6454 = vmatpush1.msra.mxu0 %v6453
    %v6455 = vand.u32 %v60, 4294901760
    %v6456 = vsub.f32 %v60, %v6455
    %v6457 = vand.u32 %v6456, 4294901760
    %6458 = vmatprep.subr.mxu0 %v6457
    %v6459 = vand.u32 %v59, 4294901760
    %v6460 = vsub.f32 %v59, %v6459
    %v6461 = vand.u32 %v6460, 4294901760
    %6462 = vmatpush1.msra.mxu0 %v6461
    %v6463 = vand.u32 %v67, 4294901760
    %v6464 = vsub.f32 %v67, %v6463
    %v6465 = vand.u32 %v6464, 4294901760
    %6466 = vmatprep.subr.mxu0 %v6465
    %v6467 = vand.u32 %v66, 4294901760
    %v6468 = vsub.f32 %v66, %v6467
    %v6469 = vand.u32 %v6468, 4294901760
    %6470 = vmatpush1.msra.mxu0 %v6469
    %v6471 = vand.u32 %v74, 4294901760
    %v6472 = vsub.f32 %v74, %v6471
    %v6473 = vand.u32 %v6472, 4294901760
    %6474 = vmatprep.subr.mxu0 %v6473
    %v6475 = vand.u32 %v73, 4294901760
    %v6476 = vsub.f32 %v73, %v6475
    %v6477 = vand.u32 %v6476, 4294901760
    %6478 = vmatpush1.msra.mxu0 %v6477
    %v6479 = vand.u32 %v81, 4294901760
    %v6480 = vsub.f32 %v81, %v6479
    %v6481 = vand.u32 %v6480, 4294901760
    %6482 = vmatprep.subr.mxu0 %v6481
    %v6483 = vand.u32 %v80, 4294901760
    %v6484 = vsub.f32 %v80, %v6483
    %v6485 = vand.u32 %v6484, 4294901760
    %6486 = vmatpush1.msra.mxu0 %v6485
    %v6487 = vand.u32 %v88, 4294901760
    %v6488 = vsub.f32 %v88, %v6487
    %v6489 = vand.u32 %v6488, 4294901760
    %6490 = vmatprep.subr.mxu0 %v6489
    %v6491 = vand.u32 %v87, 4294901760
    %v6492 = vsub.f32 %v87, %v6491
    %v6493 = vand.u32 %v6492, 4294901760
    %6494 = vmatpush1.msra.mxu0 %v6493
    %6495 = vmatprep.subr.mxu0 0.0
    %6496 = vmatpush1.msra.mxu0 0.0
    %6497 = vmatprep.subr.mxu0 0.0
    %6498 = vmatpush1.msra.mxu0 0.0
    %6499 = vmatprep.subr.mxu0 0.0
    %6500 = vmatpush1.msra.mxu0 0.0
    %6501 = vmatprep.subr.mxu0 0.0
    %6502 = vmatpush1.msra.mxu0 0.0
    %6503 = vmatprep.subr.mxu0 0.0
    %6504 = vmatpush1.msra.mxu0 0.0
    %6505 = vmatprep.subr.mxu0 0.0
    %6506 = vmatpush1.msra.mxu0 0.0
    %6507 = vmatprep.subr.mxu0 0.0
    %6508 = vmatpush1.msra.mxu0 0.0
    %6509 = vmatprep.subr.mxu0 0.0
    %6510 = vmatpush1.msra.mxu0 0.0
    %6511 = vmatprep.subr.mxu0 0.0
    %6512 = vmatpush1.msra.mxu0 0.0
    %6513 = vmatprep.subr.mxu0 0.0
    %6514 = vmatpush1.msra.mxu0 0.0
    %6515 = vmatprep.subr.mxu0 0.0
    %6516 = vmatpush1.msra.mxu0 0.0
    %6517 = vmatprep.subr.mxu0 0.0
    %6518 = vmatpush1.msra.mxu0 0.0
    %6519 = vmatprep.subr.mxu0 0.0
    %6520 = vmatpush1.msra.mxu0 0.0
    %6521 = vmatprep.subr.mxu0 0.0
    %6522 = vmatpush1.msra.mxu0 0.0
    %6523 = vmatprep.subr.mxu0 0.0
    %6524 = vmatpush1.msra.mxu0 0.0
    %6525 = vmatprep.subr.mxu0 0.0
    %6526 = vmatpush1.msra.mxu0 0.0
    %6527 = vmatprep.subr.mxu0 0.0
    %6528 = vmatpush1.msra.mxu0 0.0
    %6529 = vmatprep.subr.mxu0 0.0
    %6530 = vmatpush1.msra.mxu0 0.0
    %6531 = vmatprep.subr.mxu0 0.0
    %6532 = vmatpush1.msra.mxu0 0.0
    %6533 = vmatprep.subr.mxu0 0.0
    %6534 = vmatpush1.msra.mxu0 0.0
    %6535 = vmatprep.subr.mxu0 0.0
    %6536 = vmatpush1.msra.mxu0 0.0
    %6537 = vmatprep.subr.mxu0 0.0
    %6538 = vmatpush1.msra.mxu0 0.0
    %6539 = vmatprep.subr.mxu0 0.0
    %6540 = vmatpush1.msra.mxu0 0.0
    %6541 = vmatprep.subr.mxu0 0.0
    %6542 = vmatpush1.msra.mxu0 0.0
    %6543 = vmatprep.subr.mxu0 0.0
    %6544 = vmatpush1.msra.mxu0 0.0
    %6545 = vmatprep.subr.mxu0 0.0
    %6546 = vmatpush1.msra.mxu0 0.0
    %6547 = vmatprep.mubr.f32.mxu0 0.0
    %v6548 = vand.u32 %v92, 4294901760
    %6549 = vmatmul.mubr.f32.gmra.mrb[0].mxu0 %v6548
    %v6550 = vpop.f32.mrb[0].mxu0
    %v6551 = vadd.f32 %v6128, %v6550
    %v6552 = vpop.f32.mrb[0].mxu0
    %v6553 = vadd.f32 %v6130, %v6552
    %6554 = vmatprep.mubr.f32.mxu0 0.0
    %v6555 = vand.u32 %v95, 4294901760
    %6556 = vmatmul.mubr.f32.gmra.mrb[0].mxu0 %v6555
    %v6557 = vpop.f32.mrb[0].mxu0
    %v6558 = vadd.f32 %v6137, %v6557
    %v6559 = vpop.f32.mrb[0].mxu0
    %v6560 = vadd.f32 %v6139, %v6559
    %6561 = vmatprep.mubr.f32.mxu0 0.0
    %v6562 = vand.u32 %v98, 4294901760
    %6563 = vmatmul.mubr.f32.gmra.mrb[0].mxu0 %v6562
    %v6564 = vpop.f32.mrb[0].mxu0
    %v6565 = vadd.f32 %v6146, %v6564
    %v6566 = vpop.f32.mrb[0].mxu0
    %v6567 = vadd.f32 %v6148, %v6566
    %6568 = vmatprep.mubr.f32.mxu0 0.0
    %v6569 = vand.u32 %v101, 4294901760
    %6570 = vmatmul.mubr.f32.gmra.mrb[0].mxu0 %v6569
    %v6571 = vpop.f32.mrb[0].mxu0
    %v6572 = vadd.f32 %v6155, %v6571
    %v6573 = vpop.f32.mrb[0].mxu0
    %v6574 = vadd.f32 %v6157, %v6573
    %6575 = vmatprep.mubr.f32.mxu0 0.0
    %v6576 = vand.u32 %v104, 4294901760
    %6577 = vmatmul.mubr.f32.gmra.mrb[0].mxu0 %v6576
    %v6578 = vpop.f32.mrb[0].mxu0
    %v6579 = vadd.f32 %v6164, %v6578
    %v6580 = vpop.f32.mrb[0].mxu0
    %v6581 = vadd.f32 %v6166, %v6580
    %6582 = vmatprep.mubr.f32.mxu0 0.0
    %v6583 = vand.u32 %v107, 4294901760
    %6584 = vmatmul.mubr.f32.gmra.mrb[0].mxu0 %v6583
    %v6585 = vpop.f32.mrb[0].mxu0
    %v6586 = vadd.f32 %v6173, %v6585
    %v6587 = vpop.f32.mrb[0].mxu0
    %v6588 = vadd.f32 %v6175, %v6587
    %6589 = vmatprep.mubr.f32.mxu0 0.0
    %v6590 = vand.u32 %v110, 4294901760
    %6591 = vmatmul.mubr.f32.gmra.mrb[0].mxu0 %v6590
    %v6592 = vpop.f32.mrb[0].mxu0
    %v6593 = vadd.f32 %v6182, %v6592
    %v6594 = vpop.f32.mrb[0].mxu0
    %v6595 = vadd.f32 %v6184, %v6594
    %6596 = vmatprep.mubr.f32.mxu0 0.0
    %v6597 = vand.u32 %v113, 4294901760
    %6598 = vmatmul.mubr.f32.gmra.mrb[0].mxu0 %v6597
    %v6599 = vpop.f32.mrb[0].mxu0
    %v6600 = vadd.f32 %v6191, %v6599
    %v6601 = vpop.f32.mrb[0].mxu0
    %v6602 = vadd.f32 %v6193, %v6601
    %6603 = vmatprep.mubr.f32.mxu0 0.0
    %v6604 = vand.u32 %v116, 4294901760
    %6605 = vmatmul.mubr.f32.gmra.mrb[0].mxu0 %v6604
    %v6606 = vpop.f32.mrb[0].mxu0
    %v6607 = vadd.f32 %v6200, %v6606
    %v6608 = vpop.f32.mrb[0].mxu0
    %v6609 = vadd.f32 %v6202, %v6608
    %6610 = vmatprep.mubr.f32.mxu0 0.0
    %v6611 = vand.u32 %v119, 4294901760
    %6612 = vmatmul.mubr.f32.gmra.mrb[0].mxu0 %v6611
    %v6613 = vpop.f32.mrb[0].mxu0
    %v6614 = vadd.f32 %v6209, %v6613
    %v6615 = vpop.f32.mrb[0].mxu0
    %v6616 = vadd.f32 %v6211, %v6615
    %6617 = vmatprep.mubr.f32.mxu0 0.0
    %v6618 = vand.u32 %v122, 4294901760
    %6619 = vmatmul.mubr.f32.gmra.mrb[0].mxu0 %v6618
    %v6620 = vpop.f32.mrb[0].mxu0
    %v6621 = vadd.f32 %v6218, %v6620
    %v6622 = vpop.f32.mrb[0].mxu0
    %v6623 = vadd.f32 %v6220, %v6622
    %6624 = vmatprep.mubr.f32.mxu0 0.0
    %v6625 = vand.u32 %v125, 4294901760
    %6626 = vmatmul.mubr.f32.gmra.mrb[0].mxu0 %v6625
    %v6627 = vpop.f32.mrb[0].mxu0
    %v6628 = vadd.f32 %v6227, %v6627
    %v6629 = vpop.f32.mrb[0].mxu0
    %v6630 = vadd.f32 %v6229, %v6629
    %6631 = vmatprep.mubr.f32.mxu0 0.0
    %v6632 = vand.u32 %v128, 4294901760
    %6633 = vmatmul.mubr.f32.gmra.mrb[0].mxu0 %v6632
    %v6634 = vpop.f32.mrb[0].mxu0
    %v6635 = vadd.f32 %v6236, %v6634
    %v6636 = vpop.f32.mrb[0].mxu0
    %v6637 = vadd.f32 %v6238, %v6636
    %6638 = vmatprep.mubr.f32.mxu0 0.0
    %v6639 = vand.u32 %v131, 4294901760
    %6640 = vmatmul.mubr.f32.gmra.mrb[0].mxu0 %v6639
    %v6641 = vpop.f32.mrb[0].mxu0
    %v6642 = vadd.f32 %v6245, %v6641
    %v6643 = vpop.f32.mrb[0].mxu0
    %v6644 = vadd.f32 %v6247, %v6643
    %6645 = vmatprep.mubr.f32.mxu0 0.0
    %v6646 = vand.u32 %v134, 4294901760
    %6647 = vmatmul.mubr.f32.gmra.mrb[0].mxu0 %v6646
    %v6648 = vpop.f32.mrb[0].mxu0
    %v6649 = vadd.f32 %v6254, %v6648
    %v6650 = vpop.f32.mrb[0].mxu0
    %v6651 = vadd.f32 %v6256, %v6650
    %6652 = vmatprep.mubr.f32.mxu0 0.0
    %v6653 = vand.u32 %v137, 4294901760
    %6654 = vmatmul.mubr.f32.gmra.mrb[0].mxu0 %v6653
    %v6655 = vpop.f32.mrb[0].mxu0
    %v6656 = vadd.f32 %v6263, %v6655
    %v6657 = vpop.f32.mrb[0].mxu0
    %v6658 = vadd.f32 %v6265, %v6657
    %6659 = vmatprep.mubr.f32.mxu0 0.0
    %v6660 = vand.u32 %v140, 4294901760
    %6661 = vmatmul.mubr.f32.gmra.mrb[0].mxu0 %v6660
    %v6662 = vpop.f32.mrb[0].mxu0
    %v6663 = vadd.f32 %v6272, %v6662
    %v6664 = vpop.f32.mrb[0].mxu0
    %v6665 = vadd.f32 %v6274, %v6664
    %6666 = vmatprep.mubr.f32.mxu0 0.0
    %v6667 = vand.u32 %v143, 4294901760
    %6668 = vmatmul.mubr.f32.gmra.mrb[0].mxu0 %v6667
    %v6669 = vpop.f32.mrb[0].mxu0
    %v6670 = vadd.f32 %v6281, %v6669
    %v6671 = vpop.f32.mrb[0].mxu0
    %v6672 = vadd.f32 %v6283, %v6671
    %6673 = vmatprep.mubr.f32.mxu0 0.0
    %v6674 = vand.u32 %v146, 4294901760
    %6675 = vmatmul.mubr.f32.gmra.mrb[0].mxu0 %v6674
    %v6676 = vpop.f32.mrb[0].mxu0
    %v6677 = vadd.f32 %v6290, %v6676
    %v6678 = vpop.f32.mrb[0].mxu0
    %v6679 = vadd.f32 %v6292, %v6678
    %6680 = vmatprep.mubr.f32.mxu0 0.0
    %v6681 = vand.u32 %v149, 4294901760
    %6682 = vmatmul.mubr.f32.gmra.mrb[0].mxu0 %v6681
    %v6683 = vpop.f32.mrb[0].mxu0
    %v6684 = vadd.f32 %v6299, %v6683
    %v6685 = vpop.f32.mrb[0].mxu0
    %v6686 = vadd.f32 %v6301, %v6685
    %6687 = vmatprep.mubr.f32.mxu0 0.0
    %v6688 = vand.u32 %v152, 4294901760
    %6689 = vmatmul.mubr.f32.gmra.mrb[0].mxu0 %v6688
    %v6690 = vpop.f32.mrb[0].mxu0
    %v6691 = vadd.f32 %v6308, %v6690
    %v6692 = vpop.f32.mrb[0].mxu0
    %v6693 = vadd.f32 %v6310, %v6692
    %6694 = vmatprep.mubr.f32.mxu0 0.0
    %v6695 = vand.u32 %v155, 4294901760
    %6696 = vmatmul.mubr.f32.gmra.mrb[0].mxu0 %v6695
    %v6697 = vpop.f32.mrb[0].mxu0
    %v6698 = vadd.f32 %v6317, %v6697
    %v6699 = vpop.f32.mrb[0].mxu0
    %v6700 = vadd.f32 %v6319, %v6699
    %6701 = vmatprep.mubr.f32.mxu0 0.0
    %v6702 = vand.u32 %v158, 4294901760
    %6703 = vmatmul.mubr.f32.gmra.mrb[0].mxu0 %v6702
    %v6704 = vpop.f32.mrb[0].mxu0
    %v6705 = vadd.f32 %v6326, %v6704
    %v6706 = vpop.f32.mrb[0].mxu0
    %v6707 = vadd.f32 %v6328, %v6706
    %6708 = vmatprep.mubr.f32.mxu0 0.0
    %v6709 = vand.u32 %v161, 4294901760
    %6710 = vmatmul.mubr.f32.gmra.mrb[0].mxu0 %v6709
    %v6711 = vpop.f32.mrb[0].mxu0
    %v6712 = vadd.f32 %v6335, %v6711
    %v6713 = vpop.f32.mrb[0].mxu0
    %v6714 = vadd.f32 %v6337, %v6713
    %6715 = vmatprep.mubr.f32.mxu0 0.0
    %v6716 = vand.u32 %v164, 4294901760
    %6717 = vmatmul.mubr.f32.gmra.mrb[0].mxu0 %v6716
    %v6718 = vpop.f32.mrb[0].mxu0
    %v6719 = vadd.f32 %v6344, %v6718
    %v6720 = vpop.f32.mrb[0].mxu0
    %v6721 = vadd.f32 %v6346, %v6720
    %6722 = vmatprep.mubr.f32.mxu0 0.0
    %v6723 = vand.u32 %v167, 4294901760
    %6724 = vmatmul.mubr.f32.gmra.mrb[0].mxu0 %v6723
    %v6725 = vpop.f32.mrb[0].mxu0
    %v6726 = vadd.f32 %v6353, %v6725
    %v6727 = vpop.f32.mrb[0].mxu0
    %v6728 = vadd.f32 %v6355, %v6727
    %6729 = vmatprep.mubr.f32.mxu0 0.0
    %v6730 = vand.u32 %v170, 4294901760
    %6731 = vmatmul.mubr.f32.gmra.mrb[0].mxu0 %v6730
    %v6732 = vpop.f32.mrb[0].mxu0
    %v6733 = vadd.f32 %v6362, %v6732
    %v6734 = vpop.f32.mrb[0].mxu0
    %v6735 = vadd.f32 %v6364, %v6734
    %6736 = vmatprep.mubr.f32.mxu0 0.0
    %v6737 = vand.u32 %v173, 4294901760
    %6738 = vmatmul.mubr.f32.gmra.mrb[0].mxu0 %v6737
    %v6739 = vpop.f32.mrb[0].mxu0
    %v6740 = vadd.f32 %v6371, %v6739
    %v6741 = vpop.f32.mrb[0].mxu0
    %v6742 = vadd.f32 %v6373, %v6741
    %6743 = vmatprep.mubr.f32.mxu0 0.0
    %v6744 = vand.u32 %v176, 4294901760
    %6745 = vmatmul.mubr.f32.gmra.mrb[0].mxu0 %v6744
    %v6746 = vpop.f32.mrb[0].mxu0
    %v6747 = vadd.f32 %v6380, %v6746
    %v6748 = vpop.f32.mrb[0].mxu0
    %v6749 = vadd.f32 %v6382, %v6748
    %6750 = vmatprep.mubr.f32.mxu0 0.0
    %v6751 = vand.u32 %v179, 4294901760
    %6752 = vmatmul.mubr.f32.gmra.mrb[0].mxu0 %v6751
    %v6753 = vpop.f32.mrb[0].mxu0
    %v6754 = vadd.f32 %v6389, %v6753
    %v6755 = vpop.f32.mrb[0].mxu0
    %v6756 = vadd.f32 %v6391, %v6755
    %6757 = vmatprep.mubr.f32.mxu0 0.0
    %v6758 = vand.u32 %v182, 4294901760
    %6759 = vmatmul.mubr.f32.gmra.mrb[0].mxu0 %v6758
    %v6760 = vpop.f32.mrb[0].mxu0
    %v6761 = vadd.f32 %v6398, %v6760
    %v6762 = vpop.f32.mrb[0].mxu0
    %v6763 = vadd.f32 %v6400, %v6762
    %6764 = vmatprep.mubr.f32.mxu0 0.0
    %v6765 = vand.u32 %v185, 4294901760
    %6766 = vmatmul.mubr.f32.gmra.mrb[0].mxu0 %v6765
    %v6767 = vpop.f32.mrb[0].mxu0
    %v6768 = vadd.f32 %v6407, %v6767
    %v6769 = vpop.f32.mrb[0].mxu0
    %v6770 = vadd.f32 %v6409, %v6769
    %6771 = vmatprep.mubr.f32.mxu0 0.0
    %v6772 = vand.u32 %v188, 4294901760
    %6773 = vmatmul.mubr.f32.gmra.mrb[0].mxu0 %v6772
    %v6774 = vpop.f32.mrb[0].mxu0
    %v6775 = vadd.f32 %v6416, %v6774
    %v6776 = vpop.f32.mrb[0].mxu0
    %v6777 = vadd.f32 %v6418, %v6776
    %6778 = vmatprep.mubr.f32.mxu0 0.0
    %v6779 = vand.u32 %v191, 4294901760
    %6780 = vmatmul.mubr.f32.gmra.mrb[0].mxu0 %v6779
    %v6781 = vpop.f32.mrb[0].mxu0
    %v6782 = vadd.f32 %v6425, %v6781
    %v6783 = vpop.f32.mrb[0].mxu0
    %v6784 = vadd.f32 %v6427, %v6783
    %6785 = vmatprep.mubr.f32.mxu0 0.0
    %v6786 = vand.u32 %v194, 4294901760
    %6787 = vmatmul.mubr.f32.gmra.mrb[0].mxu0 %v6786
    %v6788 = vpop.f32.mrb[0].mxu0
    %v6789 = vadd.f32 %v6434, %v6788
    %v6790 = vpop.f32.mrb[0].mxu0
    %v6791 = vadd.f32 %v6436, %v6790
    %6792 = vmatprep.mubr.f32.mxu0 0.0
    %v6793 = vand.u32 %v197, 4294901760
    %6794 = vmatmul.mubr.f32.gmra.mrb[0].mxu0 %v6793
    %v6795 = vpop.f32.mrb[0].mxu0
    %v6796 = vadd.f32 %v6443, %v6795
    %v6797 = vpop.f32.mrb[0].mxu0
    %v6798 = vadd.f32 %v6445, %v6797
    %6799 = vdwg.mxu0
    %v6800 = vand.u32 %v53, 4294901760
    %6801 = vmatprep.subr.mxu0 %v6800
    %v6802 = vand.u32 %v52, 4294901760
    %6803 = vmatpush1.msra.mxu0 %v6802
    %v6804 = vand.u32 %v60, 4294901760
    %6805 = vmatprep.subr.mxu0 %v6804
    %v6806 = vand.u32 %v59, 4294901760
    %6807 = vmatpush1.msra.mxu0 %v6806
    %v6808 = vand.u32 %v67, 4294901760
    %6809 = vmatprep.subr.mxu0 %v6808
    %v6810 = vand.u32 %v66, 4294901760
    %6811 = vmatpush1.msra.mxu0 %v6810
    %v6812 = vand.u32 %v74, 4294901760
    %6813 = vmatprep.subr.mxu0 %v6812
    %v6814 = vand.u32 %v73, 4294901760
    %6815 = vmatpush1.msra.mxu0 %v6814
    %v6816 = vand.u32 %v81, 4294901760
    %6817 = vmatprep.subr.mxu0 %v6816
    %v6818 = vand.u32 %v80, 4294901760
    %6819 = vmatpush1.msra.mxu0 %v6818
    %v6820 = vand.u32 %v88, 4294901760
    %6821 = vmatprep.subr.mxu0 %v6820
    %v6822 = vand.u32 %v87, 4294901760
    %6823 = vmatpush1.msra.mxu0 %v6822
    %6824 = vmatprep.subr.mxu0 0.0
    %6825 = vmatpush1.msra.mxu0 0.0
    %6826 = vmatprep.subr.mxu0 0.0
    %6827 = vmatpush1.msra.mxu0 0.0
    %6828 = vmatprep.subr.mxu0 0.0
    %6829 = vmatpush1.msra.mxu0 0.0
    %6830 = vmatprep.subr.mxu0 0.0
    %6831 = vmatpush1.msra.mxu0 0.0
    %6832 = vmatprep.subr.mxu0 0.0
    %6833 = vmatpush1.msra.mxu0 0.0
    %6834 = vmatprep.subr.mxu0 0.0
    %6835 = vmatpush1.msra.mxu0 0.0
    %6836 = vmatprep.subr.mxu0 0.0
    %6837 = vmatpush1.msra.mxu0 0.0
    %6838 = vmatprep.subr.mxu0 0.0
    %6839 = vmatpush1.msra.mxu0 0.0
    %6840 = vmatprep.subr.mxu0 0.0
    %6841 = vmatpush1.msra.mxu0 0.0
    %6842 = vmatprep.subr.mxu0 0.0
    %6843 = vmatpush1.msra.mxu0 0.0
    %6844 = vmatprep.subr.mxu0 0.0
    %6845 = vmatpush1.msra.mxu0 0.0
    %6846 = vmatprep.subr.mxu0 0.0
    %6847 = vmatpush1.msra.mxu0 0.0
    %6848 = vmatprep.subr.mxu0 0.0
    %6849 = vmatpush1.msra.mxu0 0.0
    %6850 = vmatprep.subr.mxu0 0.0
    %6851 = vmatpush1.msra.mxu0 0.0
    %6852 = vmatprep.subr.mxu0 0.0
    %6853 = vmatpush1.msra.mxu0 0.0
    %6854 = vmatprep.subr.mxu0 0.0
    %6855 = vmatpush1.msra.mxu0 0.0
    %6856 = vmatprep.subr.mxu0 0.0
    %6857 = vmatpush1.msra.mxu0 0.0
    %6858 = vmatprep.subr.mxu0 0.0
    %6859 = vmatpush1.msra.mxu0 0.0
    %6860 = vmatprep.subr.mxu0 0.0
    %6861 = vmatpush1.msra.mxu0 0.0
    %6862 = vmatprep.subr.mxu0 0.0
    %6863 = vmatpush1.msra.mxu0 0.0
    %6864 = vmatprep.subr.mxu0 0.0
    %6865 = vmatpush1.msra.mxu0 0.0
    %6866 = vmatprep.subr.mxu0 0.0
    %6867 = vmatpush1.msra.mxu0 0.0
    %6868 = vmatprep.subr.mxu0 0.0
    %6869 = vmatpush1.msra.mxu0 0.0
    %6870 = vmatprep.subr.mxu0 0.0
    %6871 = vmatpush1.msra.mxu0 0.0
    %6872 = vmatprep.subr.mxu0 0.0
    %6873 = vmatpush1.msra.mxu0 0.0
    %6874 = vmatprep.subr.mxu0 0.0
    %6875 = vmatpush1.msra.mxu0 0.0
    %6876 = vmatprep.mubr.f32.mxu0 0.0
    %v6877 = vand.u32 %v92, 4294901760
    %6878 = vmatmul.mubr.f32.gmra.mrb[0].mxu0 %v6877
    %v6879 = vpop.f32.mrb[0].mxu0
    %v6880 = vadd.f32 %v6551, %v6879
    %v6881 = vpop.f32.mrb[0].mxu0
    %v6882 = vadd.f32 %v6553, %v6881
    %6883 = vmatprep.mubr.f32.mxu0 0.0
    %v6884 = vand.u32 %v95, 4294901760
    %6885 = vmatmul.mubr.f32.gmra.mrb[0].mxu0 %v6884
    %v6886 = vpop.f32.mrb[0].mxu0
    %v6887 = vadd.f32 %v6558, %v6886
    %v6888 = vpop.f32.mrb[0].mxu0
    %v6889 = vadd.f32 %v6560, %v6888
    %6890 = vmatprep.mubr.f32.mxu0 0.0
    %v6891 = vand.u32 %v98, 4294901760
    %6892 = vmatmul.mubr.f32.gmra.mrb[0].mxu0 %v6891
    %v6893 = vpop.f32.mrb[0].mxu0
    %v6894 = vadd.f32 %v6565, %v6893
    %v6895 = vpop.f32.mrb[0].mxu0
    %v6896 = vadd.f32 %v6567, %v6895
    %6897 = vmatprep.mubr.f32.mxu0 0.0
    %v6898 = vand.u32 %v101, 4294901760
    %6899 = vmatmul.mubr.f32.gmra.mrb[0].mxu0 %v6898
    %v6900 = vpop.f32.mrb[0].mxu0
    %v6901 = vadd.f32 %v6572, %v6900
    %v6902 = vpop.f32.mrb[0].mxu0
    %v6903 = vadd.f32 %v6574, %v6902
    %6904 = vmatprep.mubr.f32.mxu0 0.0
    %v6905 = vand.u32 %v104, 4294901760
    %6906 = vmatmul.mubr.f32.gmra.mrb[0].mxu0 %v6905
    %v6907 = vpop.f32.mrb[0].mxu0
    %v6908 = vadd.f32 %v6579, %v6907
    %v6909 = vpop.f32.mrb[0].mxu0
    %v6910 = vadd.f32 %v6581, %v6909
    %6911 = vmatprep.mubr.f32.mxu0 0.0
    %v6912 = vand.u32 %v107, 4294901760
    %6913 = vmatmul.mubr.f32.gmra.mrb[0].mxu0 %v6912
    %v6914 = vpop.f32.mrb[0].mxu0
    %v6915 = vadd.f32 %v6586, %v6914
    %v6916 = vpop.f32.mrb[0].mxu0
    %v6917 = vadd.f32 %v6588, %v6916
    %6918 = vmatprep.mubr.f32.mxu0 0.0
    %v6919 = vand.u32 %v110, 4294901760
    %6920 = vmatmul.mubr.f32.gmra.mrb[0].mxu0 %v6919
    %v6921 = vpop.f32.mrb[0].mxu0
    %v6922 = vadd.f32 %v6593, %v6921
    %v6923 = vpop.f32.mrb[0].mxu0
    %v6924 = vadd.f32 %v6595, %v6923
    %6925 = vmatprep.mubr.f32.mxu0 0.0
    %v6926 = vand.u32 %v113, 4294901760
    %6927 = vmatmul.mubr.f32.gmra.mrb[0].mxu0 %v6926
    %v6928 = vpop.f32.mrb[0].mxu0
    %v6929 = vadd.f32 %v6600, %v6928
    %v6930 = vpop.f32.mrb[0].mxu0
    %v6931 = vadd.f32 %v6602, %v6930
    %6932 = vmatprep.mubr.f32.mxu0 0.0
    %v6933 = vand.u32 %v116, 4294901760
    %6934 = vmatmul.mubr.f32.gmra.mrb[0].mxu0 %v6933
    %v6935 = vpop.f32.mrb[0].mxu0
    %v6936 = vadd.f32 %v6607, %v6935
    %v6937 = vpop.f32.mrb[0].mxu0
    %v6938 = vadd.f32 %v6609, %v6937
    %6939 = vmatprep.mubr.f32.mxu0 0.0
    %v6940 = vand.u32 %v119, 4294901760
    %6941 = vmatmul.mubr.f32.gmra.mrb[0].mxu0 %v6940
    %v6942 = vpop.f32.mrb[0].mxu0
    %v6943 = vadd.f32 %v6614, %v6942
    %v6944 = vpop.f32.mrb[0].mxu0
    %v6945 = vadd.f32 %v6616, %v6944
    %6946 = vmatprep.mubr.f32.mxu0 0.0
    %v6947 = vand.u32 %v122, 4294901760
    %6948 = vmatmul.mubr.f32.gmra.mrb[0].mxu0 %v6947
    %v6949 = vpop.f32.mrb[0].mxu0
    %v6950 = vadd.f32 %v6621, %v6949
    %v6951 = vpop.f32.mrb[0].mxu0
    %v6952 = vadd.f32 %v6623, %v6951
    %6953 = vmatprep.mubr.f32.mxu0 0.0
    %v6954 = vand.u32 %v125, 4294901760
    %6955 = vmatmul.mubr.f32.gmra.mrb[0].mxu0 %v6954
    %v6956 = vpop.f32.mrb[0].mxu0
    %v6957 = vadd.f32 %v6628, %v6956
    %v6958 = vpop.f32.mrb[0].mxu0
    %v6959 = vadd.f32 %v6630, %v6958
    %6960 = vmatprep.mubr.f32.mxu0 0.0
    %v6961 = vand.u32 %v128, 4294901760
    %6962 = vmatmul.mubr.f32.gmra.mrb[0].mxu0 %v6961
    %v6963 = vpop.f32.mrb[0].mxu0
    %v6964 = vadd.f32 %v6635, %v6963
    %v6965 = vpop.f32.mrb[0].mxu0
    %v6966 = vadd.f32 %v6637, %v6965
    %6967 = vmatprep.mubr.f32.mxu0 0.0
    %v6968 = vand.u32 %v131, 4294901760
    %6969 = vmatmul.mubr.f32.gmra.mrb[0].mxu0 %v6968
    %v6970 = vpop.f32.mrb[0].mxu0
    %v6971 = vadd.f32 %v6642, %v6970
    %v6972 = vpop.f32.mrb[0].mxu0
    %v6973 = vadd.f32 %v6644, %v6972
    %6974 = vmatprep.mubr.f32.mxu0 0.0
    %v6975 = vand.u32 %v134, 4294901760
    %6976 = vmatmul.mubr.f32.gmra.mrb[0].mxu0 %v6975
    %v6977 = vpop.f32.mrb[0].mxu0
    %v6978 = vadd.f32 %v6649, %v6977
    %v6979 = vpop.f32.mrb[0].mxu0
    %v6980 = vadd.f32 %v6651, %v6979
    %6981 = vmatprep.mubr.f32.mxu0 0.0
    %v6982 = vand.u32 %v137, 4294901760
    %6983 = vmatmul.mubr.f32.gmra.mrb[0].mxu0 %v6982
    %v6984 = vpop.f32.mrb[0].mxu0
    %v6985 = vadd.f32 %v6656, %v6984
    %v6986 = vpop.f32.mrb[0].mxu0
    %v6987 = vadd.f32 %v6658, %v6986
    %6988 = vmatprep.mubr.f32.mxu0 0.0
    %v6989 = vand.u32 %v140, 4294901760
    %6990 = vmatmul.mubr.f32.gmra.mrb[0].mxu0 %v6989
    %v6991 = vpop.f32.mrb[0].mxu0
    %v6992 = vadd.f32 %v6663, %v6991
    %v6993 = vpop.f32.mrb[0].mxu0
    %v6994 = vadd.f32 %v6665, %v6993
    %6995 = vmatprep.mubr.f32.mxu0 0.0
    %v6996 = vand.u32 %v143, 4294901760
    %6997 = vmatmul.mubr.f32.gmra.mrb[0].mxu0 %v6996
    %v6998 = vpop.f32.mrb[0].mxu0
    %v6999 = vadd.f32 %v6670, %v6998
    %v7000 = vpop.f32.mrb[0].mxu0
    %v7001 = vadd.f32 %v6672, %v7000
    %7002 = vmatprep.mubr.f32.mxu0 0.0
    %v7003 = vand.u32 %v146, 4294901760
    %7004 = vmatmul.mubr.f32.gmra.mrb[0].mxu0 %v7003
    %v7005 = vpop.f32.mrb[0].mxu0
    %v7006 = vadd.f32 %v6677, %v7005
    %v7007 = vpop.f32.mrb[0].mxu0
    %v7008 = vadd.f32 %v6679, %v7007
    %7009 = vmatprep.mubr.f32.mxu0 0.0
    %v7010 = vand.u32 %v149, 4294901760
    %7011 = vmatmul.mubr.f32.gmra.mrb[0].mxu0 %v7010
    %v7012 = vpop.f32.mrb[0].mxu0
    %v7013 = vadd.f32 %v6684, %v7012
    %v7014 = vpop.f32.mrb[0].mxu0
    %v7015 = vadd.f32 %v6686, %v7014
    %7016 = vmatprep.mubr.f32.mxu0 0.0
    %v7017 = vand.u32 %v152, 4294901760
    %7018 = vmatmul.mubr.f32.gmra.mrb[0].mxu0 %v7017
    %v7019 = vpop.f32.mrb[0].mxu0
    %v7020 = vadd.f32 %v6691, %v7019
    %v7021 = vpop.f32.mrb[0].mxu0
    %v7022 = vadd.f32 %v6693, %v7021
    %7023 = vmatprep.mubr.f32.mxu0 0.0
    %v7024 = vand.u32 %v155, 4294901760
    %7025 = vmatmul.mubr.f32.gmra.mrb[0].mxu0 %v7024
    %v7026 = vpop.f32.mrb[0].mxu0
    %v7027 = vadd.f32 %v6698, %v7026
    %v7028 = vpop.f32.mrb[0].mxu0
    %v7029 = vadd.f32 %v6700, %v7028
    %7030 = vmatprep.mubr.f32.mxu0 0.0
    %v7031 = vand.u32 %v158, 4294901760
    %7032 = vmatmul.mubr.f32.gmra.mrb[0].mxu0 %v7031
    %v7033 = vpop.f32.mrb[0].mxu0
    %v7034 = vadd.f32 %v6705, %v7033
    %v7035 = vpop.f32.mrb[0].mxu0
    %v7036 = vadd.f32 %v6707, %v7035
    %7037 = vmatprep.mubr.f32.mxu0 0.0
    %v7038 = vand.u32 %v161, 4294901760
    %7039 = vmatmul.mubr.f32.gmra.mrb[0].mxu0 %v7038
    %v7040 = vpop.f32.mrb[0].mxu0
    %v7041 = vadd.f32 %v6712, %v7040
    %v7042 = vpop.f32.mrb[0].mxu0
    %v7043 = vadd.f32 %v6714, %v7042
    %7044 = vmatprep.mubr.f32.mxu0 0.0
    %v7045 = vand.u32 %v164, 4294901760
    %7046 = vmatmul.mubr.f32.gmra.mrb[0].mxu0 %v7045
    %v7047 = vpop.f32.mrb[0].mxu0
    %v7048 = vadd.f32 %v6719, %v7047
    %v7049 = vpop.f32.mrb[0].mxu0
    %v7050 = vadd.f32 %v6721, %v7049
    %7051 = vmatprep.mubr.f32.mxu0 0.0
    %v7052 = vand.u32 %v167, 4294901760
    %7053 = vmatmul.mubr.f32.gmra.mrb[0].mxu0 %v7052
    %v7054 = vpop.f32.mrb[0].mxu0
    %v7055 = vadd.f32 %v6726, %v7054
    %v7056 = vpop.f32.mrb[0].mxu0
    %v7057 = vadd.f32 %v6728, %v7056
    %7058 = vmatprep.mubr.f32.mxu0 0.0
    %v7059 = vand.u32 %v170, 4294901760
    %7060 = vmatmul.mubr.f32.gmra.mrb[0].mxu0 %v7059
    %v7061 = vpop.f32.mrb[0].mxu0
    %v7062 = vadd.f32 %v6733, %v7061
    %v7063 = vpop.f32.mrb[0].mxu0
    %v7064 = vadd.f32 %v6735, %v7063
    %7065 = vmatprep.mubr.f32.mxu0 0.0
    %v7066 = vand.u32 %v173, 4294901760
    %7067 = vmatmul.mubr.f32.gmra.mrb[0].mxu0 %v7066
    %v7068 = vpop.f32.mrb[0].mxu0
    %v7069 = vadd.f32 %v6740, %v7068
    %v7070 = vpop.f32.mrb[0].mxu0
    %v7071 = vadd.f32 %v6742, %v7070
    %7072 = vmatprep.mubr.f32.mxu0 0.0
    %v7073 = vand.u32 %v176, 4294901760
    %7074 = vmatmul.mubr.f32.gmra.mrb[0].mxu0 %v7073
    %v7075 = vpop.f32.mrb[0].mxu0
    %v7076 = vadd.f32 %v6747, %v7075
    %v7077 = vpop.f32.mrb[0].mxu0
    %v7078 = vadd.f32 %v6749, %v7077
    %7079 = vmatprep.mubr.f32.mxu0 0.0
    %v7080 = vand.u32 %v179, 4294901760
    %7081 = vmatmul.mubr.f32.gmra.mrb[0].mxu0 %v7080
    %v7082 = vpop.f32.mrb[0].mxu0
    %v7083 = vadd.f32 %v6754, %v7082
    %v7084 = vpop.f32.mrb[0].mxu0
    %v7085 = vadd.f32 %v6756, %v7084
    %7086 = vmatprep.mubr.f32.mxu0 0.0
    %v7087 = vand.u32 %v182, 4294901760
    %7088 = vmatmul.mubr.f32.gmra.mrb[0].mxu0 %v7087
    %v7089 = vpop.f32.mrb[0].mxu0
    %v7090 = vadd.f32 %v6761, %v7089
    %v7091 = vpop.f32.mrb[0].mxu0
    %v7092 = vadd.f32 %v6763, %v7091
    %7093 = vmatprep.mubr.f32.mxu0 0.0
    %v7094 = vand.u32 %v185, 4294901760
    %7095 = vmatmul.mubr.f32.gmra.mrb[0].mxu0 %v7094
    %v7096 = vpop.f32.mrb[0].mxu0
    %v7097 = vadd.f32 %v6768, %v7096
    %v7098 = vpop.f32.mrb[0].mxu0
    %v7099 = vadd.f32 %v6770, %v7098
    %7100 = vmatprep.mubr.f32.mxu0 0.0
    %v7101 = vand.u32 %v188, 4294901760
    %7102 = vmatmul.mubr.f32.gmra.mrb[0].mxu0 %v7101
    %v7103 = vpop.f32.mrb[0].mxu0
    %v7104 = vadd.f32 %v6775, %v7103
    %v7105 = vpop.f32.mrb[0].mxu0
    %v7106 = vadd.f32 %v6777, %v7105
    %7107 = vmatprep.mubr.f32.mxu0 0.0
    %v7108 = vand.u32 %v191, 4294901760
    %7109 = vmatmul.mubr.f32.gmra.mrb[0].mxu0 %v7108
    %v7110 = vpop.f32.mrb[0].mxu0
    %v7111 = vadd.f32 %v6782, %v7110
    %v7112 = vpop.f32.mrb[0].mxu0
    %v7113 = vadd.f32 %v6784, %v7112
    %7114 = vmatprep.mubr.f32.mxu0 0.0
    %v7115 = vand.u32 %v194, 4294901760
    %7116 = vmatmul.mubr.f32.gmra.mrb[0].mxu0 %v7115
    %v7117 = vpop.f32.mrb[0].mxu0
    %v7118 = vadd.f32 %v6789, %v7117
    %v7119 = vpop.f32.mrb[0].mxu0
    %v7120 = vadd.f32 %v6791, %v7119
    %7121 = vmatprep.mubr.f32.mxu0 0.0
    %v7122 = vand.u32 %v197, 4294901760
    %7123 = vmatmul.mubr.f32.gmra.mrb[0].mxu0 %v7122
    %v7124 = vpop.f32.mrb[0].mxu0
    %v7125 = vadd.f32 %v6796, %v7124
    %v7126 = vpop.f32.mrb[0].mxu0
    %v7127 = vadd.f32 %v6798, %v7126
    %7128 = vdwg.mxu0
    %7129 = vmatprep.subr.mxu0 0.0
    %v7130 = vand.u32 %v54, 4294901760
    %7131 = vmatpush1.msra.mxu0 %v7130
    %7132 = vmatprep.subr.mxu0 0.0
    %v7133 = vand.u32 %v61, 4294901760
    %7134 = vmatpush1.msra.mxu0 %v7133
    %7135 = vmatprep.subr.mxu0 0.0
    %v7136 = vand.u32 %v68, 4294901760
    %7137 = vmatpush1.msra.mxu0 %v7136
    %7138 = vmatprep.subr.mxu0 0.0
    %v7139 = vand.u32 %v75, 4294901760
    %7140 = vmatpush1.msra.mxu0 %v7139
    %7141 = vmatprep.subr.mxu0 0.0
    %v7142 = vand.u32 %v82, 4294901760
    %7143 = vmatpush1.msra.mxu0 %v7142
    %7144 = vmatprep.subr.mxu0 0.0
    %v7145 = vand.u32 %v89, 4294901760
    %7146 = vmatpush1.msra.mxu0 %v7145
    %7147 = vmatprep.subr.mxu0 0.0
    %7148 = vmatpush1.msra.mxu0 0.0
    %7149 = vmatprep.subr.mxu0 0.0
    %7150 = vmatpush1.msra.mxu0 0.0
    %7151 = vmatprep.subr.mxu0 0.0
    %7152 = vmatpush1.msra.mxu0 0.0
    %7153 = vmatprep.subr.mxu0 0.0
    %7154 = vmatpush1.msra.mxu0 0.0
    %7155 = vmatprep.subr.mxu0 0.0
    %7156 = vmatpush1.msra.mxu0 0.0
    %7157 = vmatprep.subr.mxu0 0.0
    %7158 = vmatpush1.msra.mxu0 0.0
    %7159 = vmatprep.subr.mxu0 0.0
    %7160 = vmatpush1.msra.mxu0 0.0
    %7161 = vmatprep.subr.mxu0 0.0
    %7162 = vmatpush1.msra.mxu0 0.0
    %7163 = vmatprep.subr.mxu0 0.0
    %7164 = vmatpush1.msra.mxu0 0.0
    %7165 = vmatprep.subr.mxu0 0.0
    %7166 = vmatpush1.msra.mxu0 0.0
    %7167 = vmatprep.subr.mxu0 0.0
    %7168 = vmatpush1.msra.mxu0 0.0
    %7169 = vmatprep.subr.mxu0 0.0
    %7170 = vmatpush1.msra.mxu0 0.0
    %7171 = vmatprep.subr.mxu0 0.0
    %7172 = vmatpush1.msra.mxu0 0.0
    %7173 = vmatprep.subr.mxu0 0.0
    %7174 = vmatpush1.msra.mxu0 0.0
    %7175 = vmatprep.subr.mxu0 0.0
    %7176 = vmatpush1.msra.mxu0 0.0
    %7177 = vmatprep.subr.mxu0 0.0
    %7178 = vmatpush1.msra.mxu0 0.0
    %7179 = vmatprep.subr.mxu0 0.0
    %7180 = vmatpush1.msra.mxu0 0.0
    %7181 = vmatprep.subr.mxu0 0.0
    %7182 = vmatpush1.msra.mxu0 0.0
    %7183 = vmatprep.subr.mxu0 0.0
    %7184 = vmatpush1.msra.mxu0 0.0
    %7185 = vmatprep.subr.mxu0 0.0
    %7186 = vmatpush1.msra.mxu0 0.0
    %7187 = vmatprep.subr.mxu0 0.0
    %7188 = vmatpush1.msra.mxu0 0.0
    %7189 = vmatprep.subr.mxu0 0.0
    %7190 = vmatpush1.msra.mxu0 0.0
    %7191 = vmatprep.subr.mxu0 0.0
    %7192 = vmatpush1.msra.mxu0 0.0
    %7193 = vmatprep.subr.mxu0 0.0
    %7194 = vmatpush1.msra.mxu0 0.0
    %7195 = vmatprep.subr.mxu0 0.0
    %7196 = vmatpush1.msra.mxu0 0.0
    %7197 = vmatprep.subr.mxu0 0.0
    %7198 = vmatpush1.msra.mxu0 0.0
    %7199 = vmatprep.mubr.f32.mxu0 0.0
    %v7200 = vand.u32 %v92, 4294901760
    %v7201 = vsub.f32 %v92, %v7200
    %v7202 = vand.u32 %v7201, 4294901760
    %v7203 = vsub.f32 %v7201, %v7202
    %v7204 = vand.u32 %v7203, 4294901760
    %7205 = vmatmul.mubr.f32.gmra.mrb[0].mxu0 %v7204
    %v7206 = vpop.f32.mrb[0].mxu0
    %v7207 = vadd.f32 0.0, %v7206
    %v7208 = vpop.f32.mrb[0].mxu0
    %7209 = vmatprep.mubr.f32.mxu0 0.0
    %v7210 = vand.u32 %v95, 4294901760
    %v7211 = vsub.f32 %v95, %v7210
    %v7212 = vand.u32 %v7211, 4294901760
    %v7213 = vsub.f32 %v7211, %v7212
    %v7214 = vand.u32 %v7213, 4294901760
    %7215 = vmatmul.mubr.f32.gmra.mrb[0].mxu0 %v7214
    %v7216 = vpop.f32.mrb[0].mxu0
    %v7217 = vadd.f32 0.0, %v7216
    %v7218 = vpop.f32.mrb[0].mxu0
    %7219 = vmatprep.mubr.f32.mxu0 0.0
    %v7220 = vand.u32 %v98, 4294901760
    %v7221 = vsub.f32 %v98, %v7220
    %v7222 = vand.u32 %v7221, 4294901760
    %v7223 = vsub.f32 %v7221, %v7222
    %v7224 = vand.u32 %v7223, 4294901760
    %7225 = vmatmul.mubr.f32.gmra.mrb[0].mxu0 %v7224
    %v7226 = vpop.f32.mrb[0].mxu0
    %v7227 = vadd.f32 0.0, %v7226
    %v7228 = vpop.f32.mrb[0].mxu0
    %7229 = vmatprep.mubr.f32.mxu0 0.0
    %v7230 = vand.u32 %v101, 4294901760
    %v7231 = vsub.f32 %v101, %v7230
    %v7232 = vand.u32 %v7231, 4294901760
    %v7233 = vsub.f32 %v7231, %v7232
    %v7234 = vand.u32 %v7233, 4294901760
    %7235 = vmatmul.mubr.f32.gmra.mrb[0].mxu0 %v7234
    %v7236 = vpop.f32.mrb[0].mxu0
    %v7237 = vadd.f32 0.0, %v7236
    %v7238 = vpop.f32.mrb[0].mxu0
    %7239 = vmatprep.mubr.f32.mxu0 0.0
    %v7240 = vand.u32 %v104, 4294901760
    %v7241 = vsub.f32 %v104, %v7240
    %v7242 = vand.u32 %v7241, 4294901760
    %v7243 = vsub.f32 %v7241, %v7242
    %v7244 = vand.u32 %v7243, 4294901760
    %7245 = vmatmul.mubr.f32.gmra.mrb[0].mxu0 %v7244
    %v7246 = vpop.f32.mrb[0].mxu0
    %v7247 = vadd.f32 0.0, %v7246
    %v7248 = vpop.f32.mrb[0].mxu0
    %7249 = vmatprep.mubr.f32.mxu0 0.0
    %v7250 = vand.u32 %v107, 4294901760
    %v7251 = vsub.f32 %v107, %v7250
    %v7252 = vand.u32 %v7251, 4294901760
    %v7253 = vsub.f32 %v7251, %v7252
    %v7254 = vand.u32 %v7253, 4294901760
    %7255 = vmatmul.mubr.f32.gmra.mrb[0].mxu0 %v7254
    %v7256 = vpop.f32.mrb[0].mxu0
    %v7257 = vadd.f32 0.0, %v7256
    %v7258 = vpop.f32.mrb[0].mxu0
    %7259 = vmatprep.mubr.f32.mxu0 0.0
    %v7260 = vand.u32 %v110, 4294901760
    %v7261 = vsub.f32 %v110, %v7260
    %v7262 = vand.u32 %v7261, 4294901760
    %v7263 = vsub.f32 %v7261, %v7262
    %v7264 = vand.u32 %v7263, 4294901760
    %7265 = vmatmul.mubr.f32.gmra.mrb[0].mxu0 %v7264
    %v7266 = vpop.f32.mrb[0].mxu0
    %v7267 = vadd.f32 0.0, %v7266
    %v7268 = vpop.f32.mrb[0].mxu0
    %7269 = vmatprep.mubr.f32.mxu0 0.0
    %v7270 = vand.u32 %v113, 4294901760
    %v7271 = vsub.f32 %v113, %v7270
    %v7272 = vand.u32 %v7271, 4294901760
    %v7273 = vsub.f32 %v7271, %v7272
    %v7274 = vand.u32 %v7273, 4294901760
    %7275 = vmatmul.mubr.f32.gmra.mrb[0].mxu0 %v7274
    %v7276 = vpop.f32.mrb[0].mxu0
    %v7277 = vadd.f32 0.0, %v7276
    %v7278 = vpop.f32.mrb[0].mxu0
    %7279 = vmatprep.mubr.f32.mxu0 0.0
    %v7280 = vand.u32 %v116, 4294901760
    %v7281 = vsub.f32 %v116, %v7280
    %v7282 = vand.u32 %v7281, 4294901760
    %v7283 = vsub.f32 %v7281, %v7282
    %v7284 = vand.u32 %v7283, 4294901760
    %7285 = vmatmul.mubr.f32.gmra.mrb[0].mxu0 %v7284
    %v7286 = vpop.f32.mrb[0].mxu0
    %v7287 = vadd.f32 0.0, %v7286
    %v7288 = vpop.f32.mrb[0].mxu0
    %7289 = vmatprep.mubr.f32.mxu0 0.0
    %v7290 = vand.u32 %v119, 4294901760
    %v7291 = vsub.f32 %v119, %v7290
    %v7292 = vand.u32 %v7291, 4294901760
    %v7293 = vsub.f32 %v7291, %v7292
    %v7294 = vand.u32 %v7293, 4294901760
    %7295 = vmatmul.mubr.f32.gmra.mrb[0].mxu0 %v7294
    %v7296 = vpop.f32.mrb[0].mxu0
    %v7297 = vadd.f32 0.0, %v7296
    %v7298 = vpop.f32.mrb[0].mxu0
    %7299 = vmatprep.mubr.f32.mxu0 0.0
    %v7300 = vand.u32 %v122, 4294901760
    %v7301 = vsub.f32 %v122, %v7300
    %v7302 = vand.u32 %v7301, 4294901760
    %v7303 = vsub.f32 %v7301, %v7302
    %v7304 = vand.u32 %v7303, 4294901760
    %7305 = vmatmul.mubr.f32.gmra.mrb[0].mxu0 %v7304
    %v7306 = vpop.f32.mrb[0].mxu0
    %v7307 = vadd.f32 0.0, %v7306
    %v7308 = vpop.f32.mrb[0].mxu0
    %7309 = vmatprep.mubr.f32.mxu0 0.0
    %v7310 = vand.u32 %v125, 4294901760
    %v7311 = vsub.f32 %v125, %v7310
    %v7312 = vand.u32 %v7311, 4294901760
    %v7313 = vsub.f32 %v7311, %v7312
    %v7314 = vand.u32 %v7313, 4294901760
    %7315 = vmatmul.mubr.f32.gmra.mrb[0].mxu0 %v7314
    %v7316 = vpop.f32.mrb[0].mxu0
    %v7317 = vadd.f32 0.0, %v7316
    %v7318 = vpop.f32.mrb[0].mxu0
    %7319 = vmatprep.mubr.f32.mxu0 0.0
    %v7320 = vand.u32 %v128, 4294901760
    %v7321 = vsub.f32 %v128, %v7320
    %v7322 = vand.u32 %v7321, 4294901760
    %v7323 = vsub.f32 %v7321, %v7322
    %v7324 = vand.u32 %v7323, 4294901760
    %7325 = vmatmul.mubr.f32.gmra.mrb[0].mxu0 %v7324
    %v7326 = vpop.f32.mrb[0].mxu0
    %v7327 = vadd.f32 0.0, %v7326
    %v7328 = vpop.f32.mrb[0].mxu0
    %7329 = vmatprep.mubr.f32.mxu0 0.0
    %v7330 = vand.u32 %v131, 4294901760
    %v7331 = vsub.f32 %v131, %v7330
    %v7332 = vand.u32 %v7331, 4294901760
    %v7333 = vsub.f32 %v7331, %v7332
    %v7334 = vand.u32 %v7333, 4294901760
    %7335 = vmatmul.mubr.f32.gmra.mrb[0].mxu0 %v7334
    %v7336 = vpop.f32.mrb[0].mxu0
    %v7337 = vadd.f32 0.0, %v7336
    %v7338 = vpop.f32.mrb[0].mxu0
    %7339 = vmatprep.mubr.f32.mxu0 0.0
    %v7340 = vand.u32 %v134, 4294901760
    %v7341 = vsub.f32 %v134, %v7340
    %v7342 = vand.u32 %v7341, 4294901760
    %v7343 = vsub.f32 %v7341, %v7342
    %v7344 = vand.u32 %v7343, 4294901760
    %7345 = vmatmul.mubr.f32.gmra.mrb[0].mxu0 %v7344
    %v7346 = vpop.f32.mrb[0].mxu0
    %v7347 = vadd.f32 0.0, %v7346
    %v7348 = vpop.f32.mrb[0].mxu0
    %7349 = vmatprep.mubr.f32.mxu0 0.0
    %v7350 = vand.u32 %v137, 4294901760
    %v7351 = vsub.f32 %v137, %v7350
    %v7352 = vand.u32 %v7351, 4294901760
    %v7353 = vsub.f32 %v7351, %v7352
    %v7354 = vand.u32 %v7353, 4294901760
    %7355 = vmatmul.mubr.f32.gmra.mrb[0].mxu0 %v7354
    %v7356 = vpop.f32.mrb[0].mxu0
    %v7357 = vadd.f32 0.0, %v7356
    %v7358 = vpop.f32.mrb[0].mxu0
    %7359 = vmatprep.mubr.f32.mxu0 0.0
    %v7360 = vand.u32 %v140, 4294901760
    %v7361 = vsub.f32 %v140, %v7360
    %v7362 = vand.u32 %v7361, 4294901760
    %v7363 = vsub.f32 %v7361, %v7362
    %v7364 = vand.u32 %v7363, 4294901760
    %7365 = vmatmul.mubr.f32.gmra.mrb[0].mxu0 %v7364
    %v7366 = vpop.f32.mrb[0].mxu0
    %v7367 = vadd.f32 0.0, %v7366
    %v7368 = vpop.f32.mrb[0].mxu0
    %7369 = vmatprep.mubr.f32.mxu0 0.0
    %v7370 = vand.u32 %v143, 4294901760
    %v7371 = vsub.f32 %v143, %v7370
    %v7372 = vand.u32 %v7371, 4294901760
    %v7373 = vsub.f32 %v7371, %v7372
    %v7374 = vand.u32 %v7373, 4294901760
    %7375 = vmatmul.mubr.f32.gmra.mrb[0].mxu0 %v7374
    %v7376 = vpop.f32.mrb[0].mxu0
    %v7377 = vadd.f32 0.0, %v7376
    %v7378 = vpop.f32.mrb[0].mxu0
    %7379 = vmatprep.mubr.f32.mxu0 0.0
    %v7380 = vand.u32 %v146, 4294901760
    %v7381 = vsub.f32 %v146, %v7380
    %v7382 = vand.u32 %v7381, 4294901760
    %v7383 = vsub.f32 %v7381, %v7382
    %v7384 = vand.u32 %v7383, 4294901760
    %7385 = vmatmul.mubr.f32.gmra.mrb[0].mxu0 %v7384
    %v7386 = vpop.f32.mrb[0].mxu0
    %v7387 = vadd.f32 0.0, %v7386
    %v7388 = vpop.f32.mrb[0].mxu0
    %7389 = vmatprep.mubr.f32.mxu0 0.0
    %v7390 = vand.u32 %v149, 4294901760
    %v7391 = vsub.f32 %v149, %v7390
    %v7392 = vand.u32 %v7391, 4294901760
    %v7393 = vsub.f32 %v7391, %v7392
    %v7394 = vand.u32 %v7393, 4294901760
    %7395 = vmatmul.mubr.f32.gmra.mrb[0].mxu0 %v7394
    %v7396 = vpop.f32.mrb[0].mxu0
    %v7397 = vadd.f32 0.0, %v7396
    %v7398 = vpop.f32.mrb[0].mxu0
    %7399 = vmatprep.mubr.f32.mxu0 0.0
    %v7400 = vand.u32 %v152, 4294901760
    %v7401 = vsub.f32 %v152, %v7400
    %v7402 = vand.u32 %v7401, 4294901760
    %v7403 = vsub.f32 %v7401, %v7402
    %v7404 = vand.u32 %v7403, 4294901760
    %7405 = vmatmul.mubr.f32.gmra.mrb[0].mxu0 %v7404
    %v7406 = vpop.f32.mrb[0].mxu0
    %v7407 = vadd.f32 0.0, %v7406
    %v7408 = vpop.f32.mrb[0].mxu0
    %7409 = vmatprep.mubr.f32.mxu0 0.0
    %v7410 = vand.u32 %v155, 4294901760
    %v7411 = vsub.f32 %v155, %v7410
    %v7412 = vand.u32 %v7411, 4294901760
    %v7413 = vsub.f32 %v7411, %v7412
    %v7414 = vand.u32 %v7413, 4294901760
    %7415 = vmatmul.mubr.f32.gmra.mrb[0].mxu0 %v7414
    %v7416 = vpop.f32.mrb[0].mxu0
    %v7417 = vadd.f32 0.0, %v7416
    %v7418 = vpop.f32.mrb[0].mxu0
    %7419 = vmatprep.mubr.f32.mxu0 0.0
    %v7420 = vand.u32 %v158, 4294901760
    %v7421 = vsub.f32 %v158, %v7420
    %v7422 = vand.u32 %v7421, 4294901760
    %v7423 = vsub.f32 %v7421, %v7422
    %v7424 = vand.u32 %v7423, 4294901760
    %7425 = vmatmul.mubr.f32.gmra.mrb[0].mxu0 %v7424
    %v7426 = vpop.f32.mrb[0].mxu0
    %v7427 = vadd.f32 0.0, %v7426
    %v7428 = vpop.f32.mrb[0].mxu0
    %7429 = vmatprep.mubr.f32.mxu0 0.0
    %v7430 = vand.u32 %v161, 4294901760
    %v7431 = vsub.f32 %v161, %v7430
    %v7432 = vand.u32 %v7431, 4294901760
    %v7433 = vsub.f32 %v7431, %v7432
    %v7434 = vand.u32 %v7433, 4294901760
    %7435 = vmatmul.mubr.f32.gmra.mrb[0].mxu0 %v7434
    %v7436 = vpop.f32.mrb[0].mxu0
    %v7437 = vadd.f32 0.0, %v7436
    %v7438 = vpop.f32.mrb[0].mxu0
    %7439 = vmatprep.mubr.f32.mxu0 0.0
    %v7440 = vand.u32 %v164, 4294901760
    %v7441 = vsub.f32 %v164, %v7440
    %v7442 = vand.u32 %v7441, 4294901760
    %v7443 = vsub.f32 %v7441, %v7442
    %v7444 = vand.u32 %v7443, 4294901760
    %7445 = vmatmul.mubr.f32.gmra.mrb[0].mxu0 %v7444
    %v7446 = vpop.f32.mrb[0].mxu0
    %v7447 = vadd.f32 0.0, %v7446
    %v7448 = vpop.f32.mrb[0].mxu0
    %7449 = vmatprep.mubr.f32.mxu0 0.0
    %v7450 = vand.u32 %v167, 4294901760
    %v7451 = vsub.f32 %v167, %v7450
    %v7452 = vand.u32 %v7451, 4294901760
    %v7453 = vsub.f32 %v7451, %v7452
    %v7454 = vand.u32 %v7453, 4294901760
    %7455 = vmatmul.mubr.f32.gmra.mrb[0].mxu0 %v7454
    %v7456 = vpop.f32.mrb[0].mxu0
    %v7457 = vadd.f32 0.0, %v7456
    %v7458 = vpop.f32.mrb[0].mxu0
    %7459 = vmatprep.mubr.f32.mxu0 0.0
    %v7460 = vand.u32 %v170, 4294901760
    %v7461 = vsub.f32 %v170, %v7460
    %v7462 = vand.u32 %v7461, 4294901760
    %v7463 = vsub.f32 %v7461, %v7462
    %v7464 = vand.u32 %v7463, 4294901760
    %7465 = vmatmul.mubr.f32.gmra.mrb[0].mxu0 %v7464
    %v7466 = vpop.f32.mrb[0].mxu0
    %v7467 = vadd.f32 0.0, %v7466
    %v7468 = vpop.f32.mrb[0].mxu0
    %7469 = vmatprep.mubr.f32.mxu0 0.0
    %v7470 = vand.u32 %v173, 4294901760
    %v7471 = vsub.f32 %v173, %v7470
    %v7472 = vand.u32 %v7471, 4294901760
    %v7473 = vsub.f32 %v7471, %v7472
    %v7474 = vand.u32 %v7473, 4294901760
    %7475 = vmatmul.mubr.f32.gmra.mrb[0].mxu0 %v7474
    %v7476 = vpop.f32.mrb[0].mxu0
    %v7477 = vadd.f32 0.0, %v7476
    %v7478 = vpop.f32.mrb[0].mxu0
    %7479 = vmatprep.mubr.f32.mxu0 0.0
    %v7480 = vand.u32 %v176, 4294901760
    %v7481 = vsub.f32 %v176, %v7480
    %v7482 = vand.u32 %v7481, 4294901760
    %v7483 = vsub.f32 %v7481, %v7482
    %v7484 = vand.u32 %v7483, 4294901760
    %7485 = vmatmul.mubr.f32.gmra.mrb[0].mxu0 %v7484
    %v7486 = vpop.f32.mrb[0].mxu0
    %v7487 = vadd.f32 0.0, %v7486
    %v7488 = vpop.f32.mrb[0].mxu0
    %7489 = vmatprep.mubr.f32.mxu0 0.0
    %v7490 = vand.u32 %v179, 4294901760
    %v7491 = vsub.f32 %v179, %v7490
    %v7492 = vand.u32 %v7491, 4294901760
    %v7493 = vsub.f32 %v7491, %v7492
    %v7494 = vand.u32 %v7493, 4294901760
    %7495 = vmatmul.mubr.f32.gmra.mrb[0].mxu0 %v7494
    %v7496 = vpop.f32.mrb[0].mxu0
    %v7497 = vadd.f32 0.0, %v7496
    %v7498 = vpop.f32.mrb[0].mxu0
    %7499 = vmatprep.mubr.f32.mxu0 0.0
    %v7500 = vand.u32 %v182, 4294901760
    %v7501 = vsub.f32 %v182, %v7500
    %v7502 = vand.u32 %v7501, 4294901760
    %v7503 = vsub.f32 %v7501, %v7502
    %v7504 = vand.u32 %v7503, 4294901760
    %7505 = vmatmul.mubr.f32.gmra.mrb[0].mxu0 %v7504
    %v7506 = vpop.f32.mrb[0].mxu0
    %v7507 = vadd.f32 0.0, %v7506
    %v7508 = vpop.f32.mrb[0].mxu0
    %7509 = vmatprep.mubr.f32.mxu0 0.0
    %v7510 = vand.u32 %v185, 4294901760
    %v7511 = vsub.f32 %v185, %v7510
    %v7512 = vand.u32 %v7511, 4294901760
    %v7513 = vsub.f32 %v7511, %v7512
    %v7514 = vand.u32 %v7513, 4294901760
    %7515 = vmatmul.mubr.f32.gmra.mrb[0].mxu0 %v7514
    %v7516 = vpop.f32.mrb[0].mxu0
    %v7517 = vadd.f32 0.0, %v7516
    %v7518 = vpop.f32.mrb[0].mxu0
    %7519 = vmatprep.mubr.f32.mxu0 0.0
    %v7520 = vand.u32 %v188, 4294901760
    %v7521 = vsub.f32 %v188, %v7520
    %v7522 = vand.u32 %v7521, 4294901760
    %v7523 = vsub.f32 %v7521, %v7522
    %v7524 = vand.u32 %v7523, 4294901760
    %7525 = vmatmul.mubr.f32.gmra.mrb[0].mxu0 %v7524
    %v7526 = vpop.f32.mrb[0].mxu0
    %v7527 = vadd.f32 0.0, %v7526
    %v7528 = vpop.f32.mrb[0].mxu0
    %7529 = vmatprep.mubr.f32.mxu0 0.0
    %v7530 = vand.u32 %v191, 4294901760
    %v7531 = vsub.f32 %v191, %v7530
    %v7532 = vand.u32 %v7531, 4294901760
    %v7533 = vsub.f32 %v7531, %v7532
    %v7534 = vand.u32 %v7533, 4294901760
    %7535 = vmatmul.mubr.f32.gmra.mrb[0].mxu0 %v7534
    %v7536 = vpop.f32.mrb[0].mxu0
    %v7537 = vadd.f32 0.0, %v7536
    %v7538 = vpop.f32.mrb[0].mxu0
    %7539 = vmatprep.mubr.f32.mxu0 0.0
    %v7540 = vand.u32 %v194, 4294901760
    %v7541 = vsub.f32 %v194, %v7540
    %v7542 = vand.u32 %v7541, 4294901760
    %v7543 = vsub.f32 %v7541, %v7542
    %v7544 = vand.u32 %v7543, 4294901760
    %7545 = vmatmul.mubr.f32.gmra.mrb[0].mxu0 %v7544
    %v7546 = vpop.f32.mrb[0].mxu0
    %v7547 = vadd.f32 0.0, %v7546
    %v7548 = vpop.f32.mrb[0].mxu0
    %7549 = vmatprep.mubr.f32.mxu0 0.0
    %v7550 = vand.u32 %v197, 4294901760
    %v7551 = vsub.f32 %v197, %v7550
    %v7552 = vand.u32 %v7551, 4294901760
    %v7553 = vsub.f32 %v7551, %v7552
    %v7554 = vand.u32 %v7553, 4294901760
    %7555 = vmatmul.mubr.f32.gmra.mrb[0].mxu0 %v7554
    %v7556 = vpop.f32.mrb[0].mxu0
    %v7557 = vadd.f32 0.0, %v7556
    %v7558 = vpop.f32.mrb[0].mxu0
    %7559 = vdwg.mxu0
    %7560 = vmatprep.subr.mxu0 0.0
    %v7561 = vand.u32 %v54, 4294901760
    %v7562 = vsub.f32 %v54, %v7561
    %v7563 = vand.u32 %v7562, 4294901760
    %v7564 = vsub.f32 %v7562, %v7563
    %v7565 = vand.u32 %v7564, 4294901760
    %7566 = vmatpush1.msra.mxu0 %v7565
    %7567 = vmatprep.subr.mxu0 0.0
    %v7568 = vand.u32 %v61, 4294901760
    %v7569 = vsub.f32 %v61, %v7568
    %v7570 = vand.u32 %v7569, 4294901760
    %v7571 = vsub.f32 %v7569, %v7570
    %v7572 = vand.u32 %v7571, 4294901760
    %7573 = vmatpush1.msra.mxu0 %v7572
    %7574 = vmatprep.subr.mxu0 0.0
    %v7575 = vand.u32 %v68, 4294901760
    %v7576 = vsub.f32 %v68, %v7575
    %v7577 = vand.u32 %v7576, 4294901760
    %v7578 = vsub.f32 %v7576, %v7577
    %v7579 = vand.u32 %v7578, 4294901760
    %7580 = vmatpush1.msra.mxu0 %v7579
    %7581 = vmatprep.subr.mxu0 0.0
    %v7582 = vand.u32 %v75, 4294901760
    %v7583 = vsub.f32 %v75, %v7582
    %v7584 = vand.u32 %v7583, 4294901760
    %v7585 = vsub.f32 %v7583, %v7584
    %v7586 = vand.u32 %v7585, 4294901760
    %7587 = vmatpush1.msra.mxu0 %v7586
    %7588 = vmatprep.subr.mxu0 0.0
    %v7589 = vand.u32 %v82, 4294901760
    %v7590 = vsub.f32 %v82, %v7589
    %v7591 = vand.u32 %v7590, 4294901760
    %v7592 = vsub.f32 %v7590, %v7591
    %v7593 = vand.u32 %v7592, 4294901760
    %7594 = vmatpush1.msra.mxu0 %v7593
    %7595 = vmatprep.subr.mxu0 0.0
    %v7596 = vand.u32 %v89, 4294901760
    %v7597 = vsub.f32 %v89, %v7596
    %v7598 = vand.u32 %v7597, 4294901760
    %v7599 = vsub.f32 %v7597, %v7598
    %v7600 = vand.u32 %v7599, 4294901760
    %7601 = vmatpush1.msra.mxu0 %v7600
    %7602 = vmatprep.subr.mxu0 0.0
    %7603 = vmatpush1.msra.mxu0 0.0
    %7604 = vmatprep.subr.mxu0 0.0
    %7605 = vmatpush1.msra.mxu0 0.0
    %7606 = vmatprep.subr.mxu0 0.0
    %7607 = vmatpush1.msra.mxu0 0.0
    %7608 = vmatprep.subr.mxu0 0.0
    %7609 = vmatpush1.msra.mxu0 0.0
    %7610 = vmatprep.subr.mxu0 0.0
    %7611 = vmatpush1.msra.mxu0 0.0
    %7612 = vmatprep.subr.mxu0 0.0
    %7613 = vmatpush1.msra.mxu0 0.0
    %7614 = vmatprep.subr.mxu0 0.0
    %7615 = vmatpush1.msra.mxu0 0.0
    %7616 = vmatprep.subr.mxu0 0.0
    %7617 = vmatpush1.msra.mxu0 0.0
    %7618 = vmatprep.subr.mxu0 0.0
    %7619 = vmatpush1.msra.mxu0 0.0
    %7620 = vmatprep.subr.mxu0 0.0
    %7621 = vmatpush1.msra.mxu0 0.0
    %7622 = vmatprep.subr.mxu0 0.0
    %7623 = vmatpush1.msra.mxu0 0.0
    %7624 = vmatprep.subr.mxu0 0.0
    %7625 = vmatpush1.msra.mxu0 0.0
    %7626 = vmatprep.subr.mxu0 0.0
    %7627 = vmatpush1.msra.mxu0 0.0
    %7628 = vmatprep.subr.mxu0 0.0
    %7629 = vmatpush1.msra.mxu0 0.0
    %7630 = vmatprep.subr.mxu0 0.0
    %7631 = vmatpush1.msra.mxu0 0.0
    %7632 = vmatprep.subr.mxu0 0.0
    %7633 = vmatpush1.msra.mxu0 0.0
    %7634 = vmatprep.subr.mxu0 0.0
    %7635 = vmatpush1.msra.mxu0 0.0
    %7636 = vmatprep.subr.mxu0 0.0
    %7637 = vmatpush1.msra.mxu0 0.0
    %7638 = vmatprep.subr.mxu0 0.0
    %7639 = vmatpush1.msra.mxu0 0.0
    %7640 = vmatprep.subr.mxu0 0.0
    %7641 = vmatpush1.msra.mxu0 0.0
    %7642 = vmatprep.subr.mxu0 0.0
    %7643 = vmatpush1.msra.mxu0 0.0
    %7644 = vmatprep.subr.mxu0 0.0
    %7645 = vmatpush1.msra.mxu0 0.0
    %7646 = vmatprep.subr.mxu0 0.0
    %7647 = vmatpush1.msra.mxu0 0.0
    %7648 = vmatprep.subr.mxu0 0.0
    %7649 = vmatpush1.msra.mxu0 0.0
    %7650 = vmatprep.subr.mxu0 0.0
    %7651 = vmatpush1.msra.mxu0 0.0
    %7652 = vmatprep.subr.mxu0 0.0
    %7653 = vmatpush1.msra.mxu0 0.0
    %7654 = vmatprep.mubr.f32.mxu0 0.0
    %v7655 = vand.u32 %v92, 4294901760
    %7656 = vmatmul.mubr.f32.gmra.mrb[0].mxu0 %v7655
    %v7657 = vpop.f32.mrb[0].mxu0
    %v7658 = vadd.f32 %v7207, %v7657
    %v7659 = vpop.f32.mrb[0].mxu0
    %7660 = vmatprep.mubr.f32.mxu0 0.0
    %v7661 = vand.u32 %v95, 4294901760
    %7662 = vmatmul.mubr.f32.gmra.mrb[0].mxu0 %v7661
    %v7663 = vpop.f32.mrb[0].mxu0
    %v7664 = vadd.f32 %v7217, %v7663
    %v7665 = vpop.f32.mrb[0].mxu0
    %7666 = vmatprep.mubr.f32.mxu0 0.0
    %v7667 = vand.u32 %v98, 4294901760
    %7668 = vmatmul.mubr.f32.gmra.mrb[0].mxu0 %v7667
    %v7669 = vpop.f32.mrb[0].mxu0
    %v7670 = vadd.f32 %v7227, %v7669
    %v7671 = vpop.f32.mrb[0].mxu0
    %7672 = vmatprep.mubr.f32.mxu0 0.0
    %v7673 = vand.u32 %v101, 4294901760
    %7674 = vmatmul.mubr.f32.gmra.mrb[0].mxu0 %v7673
    %v7675 = vpop.f32.mrb[0].mxu0
    %v7676 = vadd.f32 %v7237, %v7675
    %v7677 = vpop.f32.mrb[0].mxu0
    %7678 = vmatprep.mubr.f32.mxu0 0.0
    %v7679 = vand.u32 %v104, 4294901760
    %7680 = vmatmul.mubr.f32.gmra.mrb[0].mxu0 %v7679
    %v7681 = vpop.f32.mrb[0].mxu0
    %v7682 = vadd.f32 %v7247, %v7681
    %v7683 = vpop.f32.mrb[0].mxu0
    %7684 = vmatprep.mubr.f32.mxu0 0.0
    %v7685 = vand.u32 %v107, 4294901760
    %7686 = vmatmul.mubr.f32.gmra.mrb[0].mxu0 %v7685
    %v7687 = vpop.f32.mrb[0].mxu0
    %v7688 = vadd.f32 %v7257, %v7687
    %v7689 = vpop.f32.mrb[0].mxu0
    %7690 = vmatprep.mubr.f32.mxu0 0.0
    %v7691 = vand.u32 %v110, 4294901760
    %7692 = vmatmul.mubr.f32.gmra.mrb[0].mxu0 %v7691
    %v7693 = vpop.f32.mrb[0].mxu0
    %v7694 = vadd.f32 %v7267, %v7693
    %v7695 = vpop.f32.mrb[0].mxu0
    %7696 = vmatprep.mubr.f32.mxu0 0.0
    %v7697 = vand.u32 %v113, 4294901760
    %7698 = vmatmul.mubr.f32.gmra.mrb[0].mxu0 %v7697
    %v7699 = vpop.f32.mrb[0].mxu0
    %v7700 = vadd.f32 %v7277, %v7699
    %v7701 = vpop.f32.mrb[0].mxu0
    %7702 = vmatprep.mubr.f32.mxu0 0.0
    %v7703 = vand.u32 %v116, 4294901760
    %7704 = vmatmul.mubr.f32.gmra.mrb[0].mxu0 %v7703
    %v7705 = vpop.f32.mrb[0].mxu0
    %v7706 = vadd.f32 %v7287, %v7705
    %v7707 = vpop.f32.mrb[0].mxu0
    %7708 = vmatprep.mubr.f32.mxu0 0.0
    %v7709 = vand.u32 %v119, 4294901760
    %7710 = vmatmul.mubr.f32.gmra.mrb[0].mxu0 %v7709
    %v7711 = vpop.f32.mrb[0].mxu0
    %v7712 = vadd.f32 %v7297, %v7711
    %v7713 = vpop.f32.mrb[0].mxu0
    %7714 = vmatprep.mubr.f32.mxu0 0.0
    %v7715 = vand.u32 %v122, 4294901760
    %7716 = vmatmul.mubr.f32.gmra.mrb[0].mxu0 %v7715
    %v7717 = vpop.f32.mrb[0].mxu0
    %v7718 = vadd.f32 %v7307, %v7717
    %v7719 = vpop.f32.mrb[0].mxu0
    %7720 = vmatprep.mubr.f32.mxu0 0.0
    %v7721 = vand.u32 %v125, 4294901760
    %7722 = vmatmul.mubr.f32.gmra.mrb[0].mxu0 %v7721
    %v7723 = vpop.f32.mrb[0].mxu0
    %v7724 = vadd.f32 %v7317, %v7723
    %v7725 = vpop.f32.mrb[0].mxu0
    %7726 = vmatprep.mubr.f32.mxu0 0.0
    %v7727 = vand.u32 %v128, 4294901760
    %7728 = vmatmul.mubr.f32.gmra.mrb[0].mxu0 %v7727
    %v7729 = vpop.f32.mrb[0].mxu0
    %v7730 = vadd.f32 %v7327, %v7729
    %v7731 = vpop.f32.mrb[0].mxu0
    %7732 = vmatprep.mubr.f32.mxu0 0.0
    %v7733 = vand.u32 %v131, 4294901760
    %7734 = vmatmul.mubr.f32.gmra.mrb[0].mxu0 %v7733
    %v7735 = vpop.f32.mrb[0].mxu0
    %v7736 = vadd.f32 %v7337, %v7735
    %v7737 = vpop.f32.mrb[0].mxu0
    %7738 = vmatprep.mubr.f32.mxu0 0.0
    %v7739 = vand.u32 %v134, 4294901760
    %7740 = vmatmul.mubr.f32.gmra.mrb[0].mxu0 %v7739
    %v7741 = vpop.f32.mrb[0].mxu0
    %v7742 = vadd.f32 %v7347, %v7741
    %v7743 = vpop.f32.mrb[0].mxu0
    %7744 = vmatprep.mubr.f32.mxu0 0.0
    %v7745 = vand.u32 %v137, 4294901760
    %7746 = vmatmul.mubr.f32.gmra.mrb[0].mxu0 %v7745
    %v7747 = vpop.f32.mrb[0].mxu0
    %v7748 = vadd.f32 %v7357, %v7747
    %v7749 = vpop.f32.mrb[0].mxu0
    %7750 = vmatprep.mubr.f32.mxu0 0.0
    %v7751 = vand.u32 %v140, 4294901760
    %7752 = vmatmul.mubr.f32.gmra.mrb[0].mxu0 %v7751
    %v7753 = vpop.f32.mrb[0].mxu0
    %v7754 = vadd.f32 %v7367, %v7753
    %v7755 = vpop.f32.mrb[0].mxu0
    %7756 = vmatprep.mubr.f32.mxu0 0.0
    %v7757 = vand.u32 %v143, 4294901760
    %7758 = vmatmul.mubr.f32.gmra.mrb[0].mxu0 %v7757
    %v7759 = vpop.f32.mrb[0].mxu0
    %v7760 = vadd.f32 %v7377, %v7759
    %v7761 = vpop.f32.mrb[0].mxu0
    %7762 = vmatprep.mubr.f32.mxu0 0.0
    %v7763 = vand.u32 %v146, 4294901760
    %7764 = vmatmul.mubr.f32.gmra.mrb[0].mxu0 %v7763
    %v7765 = vpop.f32.mrb[0].mxu0
    %v7766 = vadd.f32 %v7387, %v7765
    %v7767 = vpop.f32.mrb[0].mxu0
    %7768 = vmatprep.mubr.f32.mxu0 0.0
    %v7769 = vand.u32 %v149, 4294901760
    %7770 = vmatmul.mubr.f32.gmra.mrb[0].mxu0 %v7769
    %v7771 = vpop.f32.mrb[0].mxu0
    %v7772 = vadd.f32 %v7397, %v7771
    %v7773 = vpop.f32.mrb[0].mxu0
    %7774 = vmatprep.mubr.f32.mxu0 0.0
    %v7775 = vand.u32 %v152, 4294901760
    %7776 = vmatmul.mubr.f32.gmra.mrb[0].mxu0 %v7775
    %v7777 = vpop.f32.mrb[0].mxu0
    %v7778 = vadd.f32 %v7407, %v7777
    %v7779 = vpop.f32.mrb[0].mxu0
    %7780 = vmatprep.mubr.f32.mxu0 0.0
    %v7781 = vand.u32 %v155, 4294901760
    %7782 = vmatmul.mubr.f32.gmra.mrb[0].mxu0 %v7781
    %v7783 = vpop.f32.mrb[0].mxu0
    %v7784 = vadd.f32 %v7417, %v7783
    %v7785 = vpop.f32.mrb[0].mxu0
    %7786 = vmatprep.mubr.f32.mxu0 0.0
    %v7787 = vand.u32 %v158, 4294901760
    %7788 = vmatmul.mubr.f32.gmra.mrb[0].mxu0 %v7787
    %v7789 = vpop.f32.mrb[0].mxu0
    %v7790 = vadd.f32 %v7427, %v7789
    %v7791 = vpop.f32.mrb[0].mxu0
    %7792 = vmatprep.mubr.f32.mxu0 0.0
    %v7793 = vand.u32 %v161, 4294901760
    %7794 = vmatmul.mubr.f32.gmra.mrb[0].mxu0 %v7793
    %v7795 = vpop.f32.mrb[0].mxu0
    %v7796 = vadd.f32 %v7437, %v7795
    %v7797 = vpop.f32.mrb[0].mxu0
    %7798 = vmatprep.mubr.f32.mxu0 0.0
    %v7799 = vand.u32 %v164, 4294901760
    %7800 = vmatmul.mubr.f32.gmra.mrb[0].mxu0 %v7799
    %v7801 = vpop.f32.mrb[0].mxu0
    %v7802 = vadd.f32 %v7447, %v7801
    %v7803 = vpop.f32.mrb[0].mxu0
    %7804 = vmatprep.mubr.f32.mxu0 0.0
    %v7805 = vand.u32 %v167, 4294901760
    %7806 = vmatmul.mubr.f32.gmra.mrb[0].mxu0 %v7805
    %v7807 = vpop.f32.mrb[0].mxu0
    %v7808 = vadd.f32 %v7457, %v7807
    %v7809 = vpop.f32.mrb[0].mxu0
    %7810 = vmatprep.mubr.f32.mxu0 0.0
    %v7811 = vand.u32 %v170, 4294901760
    %7812 = vmatmul.mubr.f32.gmra.mrb[0].mxu0 %v7811
    %v7813 = vpop.f32.mrb[0].mxu0
    %v7814 = vadd.f32 %v7467, %v7813
    %v7815 = vpop.f32.mrb[0].mxu0
    %7816 = vmatprep.mubr.f32.mxu0 0.0
    %v7817 = vand.u32 %v173, 4294901760
    %7818 = vmatmul.mubr.f32.gmra.mrb[0].mxu0 %v7817
    %v7819 = vpop.f32.mrb[0].mxu0
    %v7820 = vadd.f32 %v7477, %v7819
    %v7821 = vpop.f32.mrb[0].mxu0
    %7822 = vmatprep.mubr.f32.mxu0 0.0
    %v7823 = vand.u32 %v176, 4294901760
    %7824 = vmatmul.mubr.f32.gmra.mrb[0].mxu0 %v7823
    %v7825 = vpop.f32.mrb[0].mxu0
    %v7826 = vadd.f32 %v7487, %v7825
    %v7827 = vpop.f32.mrb[0].mxu0
    %7828 = vmatprep.mubr.f32.mxu0 0.0
    %v7829 = vand.u32 %v179, 4294901760
    %7830 = vmatmul.mubr.f32.gmra.mrb[0].mxu0 %v7829
    %v7831 = vpop.f32.mrb[0].mxu0
    %v7832 = vadd.f32 %v7497, %v7831
    %v7833 = vpop.f32.mrb[0].mxu0
    %7834 = vmatprep.mubr.f32.mxu0 0.0
    %v7835 = vand.u32 %v182, 4294901760
    %7836 = vmatmul.mubr.f32.gmra.mrb[0].mxu0 %v7835
    %v7837 = vpop.f32.mrb[0].mxu0
    %v7838 = vadd.f32 %v7507, %v7837
    %v7839 = vpop.f32.mrb[0].mxu0
    %7840 = vmatprep.mubr.f32.mxu0 0.0
    %v7841 = vand.u32 %v185, 4294901760
    %7842 = vmatmul.mubr.f32.gmra.mrb[0].mxu0 %v7841
    %v7843 = vpop.f32.mrb[0].mxu0
    %v7844 = vadd.f32 %v7517, %v7843
    %v7845 = vpop.f32.mrb[0].mxu0
    %7846 = vmatprep.mubr.f32.mxu0 0.0
    %v7847 = vand.u32 %v188, 4294901760
    %7848 = vmatmul.mubr.f32.gmra.mrb[0].mxu0 %v7847
    %v7849 = vpop.f32.mrb[0].mxu0
    %v7850 = vadd.f32 %v7527, %v7849
    %v7851 = vpop.f32.mrb[0].mxu0
    %7852 = vmatprep.mubr.f32.mxu0 0.0
    %v7853 = vand.u32 %v191, 4294901760
    %7854 = vmatmul.mubr.f32.gmra.mrb[0].mxu0 %v7853
    %v7855 = vpop.f32.mrb[0].mxu0
    %v7856 = vadd.f32 %v7537, %v7855
    %v7857 = vpop.f32.mrb[0].mxu0
    %7858 = vmatprep.mubr.f32.mxu0 0.0
    %v7859 = vand.u32 %v194, 4294901760
    %7860 = vmatmul.mubr.f32.gmra.mrb[0].mxu0 %v7859
    %v7861 = vpop.f32.mrb[0].mxu0
    %v7862 = vadd.f32 %v7547, %v7861
    %v7863 = vpop.f32.mrb[0].mxu0
    %7864 = vmatprep.mubr.f32.mxu0 0.0
    %v7865 = vand.u32 %v197, 4294901760
    %7866 = vmatmul.mubr.f32.gmra.mrb[0].mxu0 %v7865
    %v7867 = vpop.f32.mrb[0].mxu0
    %v7868 = vadd.f32 %v7557, %v7867
    %v7869 = vpop.f32.mrb[0].mxu0
    %7870 = vdwg.mxu0
    %7871 = vmatprep.subr.mxu0 0.0
    %v7872 = vand.u32 %v54, 4294901760
    %v7873 = vsub.f32 %v54, %v7872
    %7874 = vmatpush1.msra.mxu0 %v7873
    %7875 = vmatprep.subr.mxu0 0.0
    %v7876 = vand.u32 %v61, 4294901760
    %v7877 = vsub.f32 %v61, %v7876
    %7878 = vmatpush1.msra.mxu0 %v7877
    %7879 = vmatprep.subr.mxu0 0.0
    %v7880 = vand.u32 %v68, 4294901760
    %v7881 = vsub.f32 %v68, %v7880
    %7882 = vmatpush1.msra.mxu0 %v7881
    %7883 = vmatprep.subr.mxu0 0.0
    %v7884 = vand.u32 %v75, 4294901760
    %v7885 = vsub.f32 %v75, %v7884
    %7886 = vmatpush1.msra.mxu0 %v7885
    %7887 = vmatprep.subr.mxu0 0.0
    %v7888 = vand.u32 %v82, 4294901760
    %v7889 = vsub.f32 %v82, %v7888
    %7890 = vmatpush1.msra.mxu0 %v7889
    %7891 = vmatprep.subr.mxu0 0.0
    %v7892 = vand.u32 %v89, 4294901760
    %v7893 = vsub.f32 %v89, %v7892
    %7894 = vmatpush1.msra.mxu0 %v7893
    %7895 = vmatprep.subr.mxu0 0.0
    %7896 = vmatpush1.msra.mxu0 0.0
    %7897 = vmatprep.subr.mxu0 0.0
    %7898 = vmatpush1.msra.mxu0 0.0
    %7899 = vmatprep.subr.mxu0 0.0
    %7900 = vmatpush1.msra.mxu0 0.0
    %7901 = vmatprep.subr.mxu0 0.0
    %7902 = vmatpush1.msra.mxu0 0.0
    %7903 = vmatprep.subr.mxu0 0.0
    %7904 = vmatpush1.msra.mxu0 0.0
    %7905 = vmatprep.subr.mxu0 0.0
    %7906 = vmatpush1.msra.mxu0 0.0
    %7907 = vmatprep.subr.mxu0 0.0
    %7908 = vmatpush1.msra.mxu0 0.0
    %7909 = vmatprep.subr.mxu0 0.0
    %7910 = vmatpush1.msra.mxu0 0.0
    %7911 = vmatprep.subr.mxu0 0.0
    %7912 = vmatpush1.msra.mxu0 0.0
    %7913 = vmatprep.subr.mxu0 0.0
    %7914 = vmatpush1.msra.mxu0 0.0
    %7915 = vmatprep.subr.mxu0 0.0
    %7916 = vmatpush1.msra.mxu0 0.0
    %7917 = vmatprep.subr.mxu0 0.0
    %7918 = vmatpush1.msra.mxu0 0.0
    %7919 = vmatprep.subr.mxu0 0.0
    %7920 = vmatpush1.msra.mxu0 0.0
    %7921 = vmatprep.subr.mxu0 0.0
    %7922 = vmatpush1.msra.mxu0 0.0
    %7923 = vmatprep.subr.mxu0 0.0
    %7924 = vmatpush1.msra.mxu0 0.0
    %7925 = vmatprep.subr.mxu0 0.0
    %7926 = vmatpush1.msra.mxu0 0.0
    %7927 = vmatprep.subr.mxu0 0.0
    %7928 = vmatpush1.msra.mxu0 0.0
    %7929 = vmatprep.subr.mxu0 0.0
    %7930 = vmatpush1.msra.mxu0 0.0
    %7931 = vmatprep.subr.mxu0 0.0
    %7932 = vmatpush1.msra.mxu0 0.0
    %7933 = vmatprep.subr.mxu0 0.0
    %7934 = vmatpush1.msra.mxu0 0.0
    %7935 = vmatprep.subr.mxu0 0.0
    %7936 = vmatpush1.msra.mxu0 0.0
    %7937 = vmatprep.subr.mxu0 0.0
    %7938 = vmatpush1.msra.mxu0 0.0
    %7939 = vmatprep.subr.mxu0 0.0
    %7940 = vmatpush1.msra.mxu0 0.0
    %7941 = vmatprep.subr.mxu0 0.0
    %7942 = vmatpush1.msra.mxu0 0.0
    %7943 = vmatprep.subr.mxu0 0.0
    %7944 = vmatpush1.msra.mxu0 0.0
    %7945 = vmatprep.subr.mxu0 0.0
    %7946 = vmatpush1.msra.mxu0 0.0
    %7947 = vmatprep.mubr.f32.mxu0 0.0
    %v7948 = vand.u32 %v92, 4294901760
    %v7949 = vsub.f32 %v92, %v7948
    %7950 = vmatmul.mubr.f32.gmra.mrb[0].mxu0 %v7949
    %v7951 = vpop.f32.mrb[0].mxu0
    %v7952 = vadd.f32 %v7658, %v7951
    %v7953 = vpop.f32.mrb[0].mxu0
    %7954 = vmatprep.mubr.f32.mxu0 0.0
    %v7955 = vand.u32 %v95, 4294901760
    %v7956 = vsub.f32 %v95, %v7955
    %7957 = vmatmul.mubr.f32.gmra.mrb[0].mxu0 %v7956
    %v7958 = vpop.f32.mrb[0].mxu0
    %v7959 = vadd.f32 %v7664, %v7958
    %v7960 = vpop.f32.mrb[0].mxu0
    %7961 = vmatprep.mubr.f32.mxu0 0.0
    %v7962 = vand.u32 %v98, 4294901760
    %v7963 = vsub.f32 %v98, %v7962
    %7964 = vmatmul.mubr.f32.gmra.mrb[0].mxu0 %v7963
    %v7965 = vpop.f32.mrb[0].mxu0
    %v7966 = vadd.f32 %v7670, %v7965
    %v7967 = vpop.f32.mrb[0].mxu0
    %7968 = vmatprep.mubr.f32.mxu0 0.0
    %v7969 = vand.u32 %v101, 4294901760
    %v7970 = vsub.f32 %v101, %v7969
    %7971 = vmatmul.mubr.f32.gmra.mrb[0].mxu0 %v7970
    %v7972 = vpop.f32.mrb[0].mxu0
    %v7973 = vadd.f32 %v7676, %v7972
    %v7974 = vpop.f32.mrb[0].mxu0
    %7975 = vmatprep.mubr.f32.mxu0 0.0
    %v7976 = vand.u32 %v104, 4294901760
    %v7977 = vsub.f32 %v104, %v7976
    %7978 = vmatmul.mubr.f32.gmra.mrb[0].mxu0 %v7977
    %v7979 = vpop.f32.mrb[0].mxu0
    %v7980 = vadd.f32 %v7682, %v7979
    %v7981 = vpop.f32.mrb[0].mxu0
    %7982 = vmatprep.mubr.f32.mxu0 0.0
    %v7983 = vand.u32 %v107, 4294901760
    %v7984 = vsub.f32 %v107, %v7983
    %7985 = vmatmul.mubr.f32.gmra.mrb[0].mxu0 %v7984
    %v7986 = vpop.f32.mrb[0].mxu0
    %v7987 = vadd.f32 %v7688, %v7986
    %v7988 = vpop.f32.mrb[0].mxu0
    %7989 = vmatprep.mubr.f32.mxu0 0.0
    %v7990 = vand.u32 %v110, 4294901760
    %v7991 = vsub.f32 %v110, %v7990
    %7992 = vmatmul.mubr.f32.gmra.mrb[0].mxu0 %v7991
    %v7993 = vpop.f32.mrb[0].mxu0
    %v7994 = vadd.f32 %v7694, %v7993
    %v7995 = vpop.f32.mrb[0].mxu0
    %7996 = vmatprep.mubr.f32.mxu0 0.0
    %v7997 = vand.u32 %v113, 4294901760
    %v7998 = vsub.f32 %v113, %v7997
    %7999 = vmatmul.mubr.f32.gmra.mrb[0].mxu0 %v7998
    %v8000 = vpop.f32.mrb[0].mxu0
    %v8001 = vadd.f32 %v7700, %v8000
    %v8002 = vpop.f32.mrb[0].mxu0
    %8003 = vmatprep.mubr.f32.mxu0 0.0
    %v8004 = vand.u32 %v116, 4294901760
    %v8005 = vsub.f32 %v116, %v8004
    %8006 = vmatmul.mubr.f32.gmra.mrb[0].mxu0 %v8005
    %v8007 = vpop.f32.mrb[0].mxu0
    %v8008 = vadd.f32 %v7706, %v8007
    %v8009 = vpop.f32.mrb[0].mxu0
    %8010 = vmatprep.mubr.f32.mxu0 0.0
    %v8011 = vand.u32 %v119, 4294901760
    %v8012 = vsub.f32 %v119, %v8011
    %8013 = vmatmul.mubr.f32.gmra.mrb[0].mxu0 %v8012
    %v8014 = vpop.f32.mrb[0].mxu0
    %v8015 = vadd.f32 %v7712, %v8014
    %v8016 = vpop.f32.mrb[0].mxu0
    %8017 = vmatprep.mubr.f32.mxu0 0.0
    %v8018 = vand.u32 %v122, 4294901760
    %v8019 = vsub.f32 %v122, %v8018
    %8020 = vmatmul.mubr.f32.gmra.mrb[0].mxu0 %v8019
    %v8021 = vpop.f32.mrb[0].mxu0
    %v8022 = vadd.f32 %v7718, %v8021
    %v8023 = vpop.f32.mrb[0].mxu0
    %8024 = vmatprep.mubr.f32.mxu0 0.0
    %v8025 = vand.u32 %v125, 4294901760
    %v8026 = vsub.f32 %v125, %v8025
    %8027 = vmatmul.mubr.f32.gmra.mrb[0].mxu0 %v8026
    %v8028 = vpop.f32.mrb[0].mxu0
    %v8029 = vadd.f32 %v7724, %v8028
    %v8030 = vpop.f32.mrb[0].mxu0
    %8031 = vmatprep.mubr.f32.mxu0 0.0
    %v8032 = vand.u32 %v128, 4294901760
    %v8033 = vsub.f32 %v128, %v8032
    %8034 = vmatmul.mubr.f32.gmra.mrb[0].mxu0 %v8033
    %v8035 = vpop.f32.mrb[0].mxu0
    %v8036 = vadd.f32 %v7730, %v8035
    %v8037 = vpop.f32.mrb[0].mxu0
    %8038 = vmatprep.mubr.f32.mxu0 0.0
    %v8039 = vand.u32 %v131, 4294901760
    %v8040 = vsub.f32 %v131, %v8039
    %8041 = vmatmul.mubr.f32.gmra.mrb[0].mxu0 %v8040
    %v8042 = vpop.f32.mrb[0].mxu0
    %v8043 = vadd.f32 %v7736, %v8042
    %v8044 = vpop.f32.mrb[0].mxu0
    %8045 = vmatprep.mubr.f32.mxu0 0.0
    %v8046 = vand.u32 %v134, 4294901760
    %v8047 = vsub.f32 %v134, %v8046
    %8048 = vmatmul.mubr.f32.gmra.mrb[0].mxu0 %v8047
    %v8049 = vpop.f32.mrb[0].mxu0
    %v8050 = vadd.f32 %v7742, %v8049
    %v8051 = vpop.f32.mrb[0].mxu0
    %8052 = vmatprep.mubr.f32.mxu0 0.0
    %v8053 = vand.u32 %v137, 4294901760
    %v8054 = vsub.f32 %v137, %v8053
    %8055 = vmatmul.mubr.f32.gmra.mrb[0].mxu0 %v8054
    %v8056 = vpop.f32.mrb[0].mxu0
    %v8057 = vadd.f32 %v7748, %v8056
    %v8058 = vpop.f32.mrb[0].mxu0
    %8059 = vmatprep.mubr.f32.mxu0 0.0
    %v8060 = vand.u32 %v140, 4294901760
    %v8061 = vsub.f32 %v140, %v8060
    %8062 = vmatmul.mubr.f32.gmra.mrb[0].mxu0 %v8061
    %v8063 = vpop.f32.mrb[0].mxu0
    %v8064 = vadd.f32 %v7754, %v8063
    %v8065 = vpop.f32.mrb[0].mxu0
    %8066 = vmatprep.mubr.f32.mxu0 0.0
    %v8067 = vand.u32 %v143, 4294901760
    %v8068 = vsub.f32 %v143, %v8067
    %8069 = vmatmul.mubr.f32.gmra.mrb[0].mxu0 %v8068
    %v8070 = vpop.f32.mrb[0].mxu0
    %v8071 = vadd.f32 %v7760, %v8070
    %v8072 = vpop.f32.mrb[0].mxu0
    %8073 = vmatprep.mubr.f32.mxu0 0.0
    %v8074 = vand.u32 %v146, 4294901760
    %v8075 = vsub.f32 %v146, %v8074
    %8076 = vmatmul.mubr.f32.gmra.mrb[0].mxu0 %v8075
    %v8077 = vpop.f32.mrb[0].mxu0
    %v8078 = vadd.f32 %v7766, %v8077
    %v8079 = vpop.f32.mrb[0].mxu0
    %8080 = vmatprep.mubr.f32.mxu0 0.0
    %v8081 = vand.u32 %v149, 4294901760
    %v8082 = vsub.f32 %v149, %v8081
    %8083 = vmatmul.mubr.f32.gmra.mrb[0].mxu0 %v8082
    %v8084 = vpop.f32.mrb[0].mxu0
    %v8085 = vadd.f32 %v7772, %v8084
    %v8086 = vpop.f32.mrb[0].mxu0
    %8087 = vmatprep.mubr.f32.mxu0 0.0
    %v8088 = vand.u32 %v152, 4294901760
    %v8089 = vsub.f32 %v152, %v8088
    %8090 = vmatmul.mubr.f32.gmra.mrb[0].mxu0 %v8089
    %v8091 = vpop.f32.mrb[0].mxu0
    %v8092 = vadd.f32 %v7778, %v8091
    %v8093 = vpop.f32.mrb[0].mxu0
    %8094 = vmatprep.mubr.f32.mxu0 0.0
    %v8095 = vand.u32 %v155, 4294901760
    %v8096 = vsub.f32 %v155, %v8095
    %8097 = vmatmul.mubr.f32.gmra.mrb[0].mxu0 %v8096
    %v8098 = vpop.f32.mrb[0].mxu0
    %v8099 = vadd.f32 %v7784, %v8098
    %v8100 = vpop.f32.mrb[0].mxu0
    %8101 = vmatprep.mubr.f32.mxu0 0.0
    %v8102 = vand.u32 %v158, 4294901760
    %v8103 = vsub.f32 %v158, %v8102
    %8104 = vmatmul.mubr.f32.gmra.mrb[0].mxu0 %v8103
    %v8105 = vpop.f32.mrb[0].mxu0
    %v8106 = vadd.f32 %v7790, %v8105
    %v8107 = vpop.f32.mrb[0].mxu0
    %8108 = vmatprep.mubr.f32.mxu0 0.0
    %v8109 = vand.u32 %v161, 4294901760
    %v8110 = vsub.f32 %v161, %v8109
    %8111 = vmatmul.mubr.f32.gmra.mrb[0].mxu0 %v8110
    %v8112 = vpop.f32.mrb[0].mxu0
    %v8113 = vadd.f32 %v7796, %v8112
    %v8114 = vpop.f32.mrb[0].mxu0
    %8115 = vmatprep.mubr.f32.mxu0 0.0
    %v8116 = vand.u32 %v164, 4294901760
    %v8117 = vsub.f32 %v164, %v8116
    %8118 = vmatmul.mubr.f32.gmra.mrb[0].mxu0 %v8117
    %v8119 = vpop.f32.mrb[0].mxu0
    %v8120 = vadd.f32 %v7802, %v8119
    %v8121 = vpop.f32.mrb[0].mxu0
    %8122 = vmatprep.mubr.f32.mxu0 0.0
    %v8123 = vand.u32 %v167, 4294901760
    %v8124 = vsub.f32 %v167, %v8123
    %8125 = vmatmul.mubr.f32.gmra.mrb[0].mxu0 %v8124
    %v8126 = vpop.f32.mrb[0].mxu0
    %v8127 = vadd.f32 %v7808, %v8126
    %v8128 = vpop.f32.mrb[0].mxu0
    %8129 = vmatprep.mubr.f32.mxu0 0.0
    %v8130 = vand.u32 %v170, 4294901760
    %v8131 = vsub.f32 %v170, %v8130
    %8132 = vmatmul.mubr.f32.gmra.mrb[0].mxu0 %v8131
    %v8133 = vpop.f32.mrb[0].mxu0
    %v8134 = vadd.f32 %v7814, %v8133
    %v8135 = vpop.f32.mrb[0].mxu0
    %8136 = vmatprep.mubr.f32.mxu0 0.0
    %v8137 = vand.u32 %v173, 4294901760
    %v8138 = vsub.f32 %v173, %v8137
    %8139 = vmatmul.mubr.f32.gmra.mrb[0].mxu0 %v8138
    %v8140 = vpop.f32.mrb[0].mxu0
    %v8141 = vadd.f32 %v7820, %v8140
    %v8142 = vpop.f32.mrb[0].mxu0
    %8143 = vmatprep.mubr.f32.mxu0 0.0
    %v8144 = vand.u32 %v176, 4294901760
    %v8145 = vsub.f32 %v176, %v8144
    %8146 = vmatmul.mubr.f32.gmra.mrb[0].mxu0 %v8145
    %v8147 = vpop.f32.mrb[0].mxu0
    %v8148 = vadd.f32 %v7826, %v8147
    %v8149 = vpop.f32.mrb[0].mxu0
    %8150 = vmatprep.mubr.f32.mxu0 0.0
    %v8151 = vand.u32 %v179, 4294901760
    %v8152 = vsub.f32 %v179, %v8151
    %8153 = vmatmul.mubr.f32.gmra.mrb[0].mxu0 %v8152
    %v8154 = vpop.f32.mrb[0].mxu0
    %v8155 = vadd.f32 %v7832, %v8154
    %v8156 = vpop.f32.mrb[0].mxu0
    %8157 = vmatprep.mubr.f32.mxu0 0.0
    %v8158 = vand.u32 %v182, 4294901760
    %v8159 = vsub.f32 %v182, %v8158
    %8160 = vmatmul.mubr.f32.gmra.mrb[0].mxu0 %v8159
    %v8161 = vpop.f32.mrb[0].mxu0
    %v8162 = vadd.f32 %v7838, %v8161
    %v8163 = vpop.f32.mrb[0].mxu0
    %8164 = vmatprep.mubr.f32.mxu0 0.0
    %v8165 = vand.u32 %v185, 4294901760
    %v8166 = vsub.f32 %v185, %v8165
    %8167 = vmatmul.mubr.f32.gmra.mrb[0].mxu0 %v8166
    %v8168 = vpop.f32.mrb[0].mxu0
    %v8169 = vadd.f32 %v7844, %v8168
    %v8170 = vpop.f32.mrb[0].mxu0
    %8171 = vmatprep.mubr.f32.mxu0 0.0
    %v8172 = vand.u32 %v188, 4294901760
    %v8173 = vsub.f32 %v188, %v8172
    %8174 = vmatmul.mubr.f32.gmra.mrb[0].mxu0 %v8173
    %v8175 = vpop.f32.mrb[0].mxu0
    %v8176 = vadd.f32 %v7850, %v8175
    %v8177 = vpop.f32.mrb[0].mxu0
    %8178 = vmatprep.mubr.f32.mxu0 0.0
    %v8179 = vand.u32 %v191, 4294901760
    %v8180 = vsub.f32 %v191, %v8179
    %8181 = vmatmul.mubr.f32.gmra.mrb[0].mxu0 %v8180
    %v8182 = vpop.f32.mrb[0].mxu0
    %v8183 = vadd.f32 %v7856, %v8182
    %v8184 = vpop.f32.mrb[0].mxu0
    %8185 = vmatprep.mubr.f32.mxu0 0.0
    %v8186 = vand.u32 %v194, 4294901760
    %v8187 = vsub.f32 %v194, %v8186
    %8188 = vmatmul.mubr.f32.gmra.mrb[0].mxu0 %v8187
    %v8189 = vpop.f32.mrb[0].mxu0
    %v8190 = vadd.f32 %v7862, %v8189
    %v8191 = vpop.f32.mrb[0].mxu0
    %8192 = vmatprep.mubr.f32.mxu0 0.0
    %v8193 = vand.u32 %v197, 4294901760
    %v8194 = vsub.f32 %v197, %v8193
    %8195 = vmatmul.mubr.f32.gmra.mrb[0].mxu0 %v8194
    %v8196 = vpop.f32.mrb[0].mxu0
    %v8197 = vadd.f32 %v7868, %v8196
    %v8198 = vpop.f32.mrb[0].mxu0
    %8199 = vdwg.mxu0
    %8200 = vmatprep.subr.mxu0 0.0
    %v8201 = vand.u32 %v54, 4294901760
    %8202 = vmatpush1.msra.mxu0 %v8201
    %8203 = vmatprep.subr.mxu0 0.0
    %v8204 = vand.u32 %v61, 4294901760
    %8205 = vmatpush1.msra.mxu0 %v8204
    %8206 = vmatprep.subr.mxu0 0.0
    %v8207 = vand.u32 %v68, 4294901760
    %8208 = vmatpush1.msra.mxu0 %v8207
    %8209 = vmatprep.subr.mxu0 0.0
    %v8210 = vand.u32 %v75, 4294901760
    %8211 = vmatpush1.msra.mxu0 %v8210
    %8212 = vmatprep.subr.mxu0 0.0
    %v8213 = vand.u32 %v82, 4294901760
    %8214 = vmatpush1.msra.mxu0 %v8213
    %8215 = vmatprep.subr.mxu0 0.0
    %v8216 = vand.u32 %v89, 4294901760
    %8217 = vmatpush1.msra.mxu0 %v8216
    %8218 = vmatprep.subr.mxu0 0.0
    %8219 = vmatpush1.msra.mxu0 0.0
    %8220 = vmatprep.subr.mxu0 0.0
    %8221 = vmatpush1.msra.mxu0 0.0
    %8222 = vmatprep.subr.mxu0 0.0
    %8223 = vmatpush1.msra.mxu0 0.0
    %8224 = vmatprep.subr.mxu0 0.0
    %8225 = vmatpush1.msra.mxu0 0.0
    %8226 = vmatprep.subr.mxu0 0.0
    %8227 = vmatpush1.msra.mxu0 0.0
    %8228 = vmatprep.subr.mxu0 0.0
    %8229 = vmatpush1.msra.mxu0 0.0
    %8230 = vmatprep.subr.mxu0 0.0
    %8231 = vmatpush1.msra.mxu0 0.0
    %8232 = vmatprep.subr.mxu0 0.0
    %8233 = vmatpush1.msra.mxu0 0.0
    %8234 = vmatprep.subr.mxu0 0.0
    %8235 = vmatpush1.msra.mxu0 0.0
    %8236 = vmatprep.subr.mxu0 0.0
    %8237 = vmatpush1.msra.mxu0 0.0
    %8238 = vmatprep.subr.mxu0 0.0
    %8239 = vmatpush1.msra.mxu0 0.0
    %8240 = vmatprep.subr.mxu0 0.0
    %8241 = vmatpush1.msra.mxu0 0.0
    %8242 = vmatprep.subr.mxu0 0.0
    %8243 = vmatpush1.msra.mxu0 0.0
    %8244 = vmatprep.subr.mxu0 0.0
    %8245 = vmatpush1.msra.mxu0 0.0
    %8246 = vmatprep.subr.mxu0 0.0
    %8247 = vmatpush1.msra.mxu0 0.0
    %8248 = vmatprep.subr.mxu0 0.0
    %8249 = vmatpush1.msra.mxu0 0.0
    %8250 = vmatprep.subr.mxu0 0.0
    %8251 = vmatpush1.msra.mxu0 0.0
    %8252 = vmatprep.subr.mxu0 0.0
    %8253 = vmatpush1.msra.mxu0 0.0
    %8254 = vmatprep.subr.mxu0 0.0
    %8255 = vmatpush1.msra.mxu0 0.0
    %8256 = vmatprep.subr.mxu0 0.0
    %8257 = vmatpush1.msra.mxu0 0.0
    %8258 = vmatprep.subr.mxu0 0.0
    %8259 = vmatpush1.msra.mxu0 0.0
    %8260 = vmatprep.subr.mxu0 0.0
    %8261 = vmatpush1.msra.mxu0 0.0
    %8262 = vmatprep.subr.mxu0 0.0
    %8263 = vmatpush1.msra.mxu0 0.0
    %8264 = vmatprep.subr.mxu0 0.0
    %8265 = vmatpush1.msra.mxu0 0.0
    %8266 = vmatprep.subr.mxu0 0.0
    %8267 = vmatpush1.msra.mxu0 0.0
    %8268 = vmatprep.subr.mxu0 0.0
    %8269 = vmatpush1.msra.mxu0 0.0
    %8270 = vmatprep.mubr.f32.mxu0 0.0
    %v8271 = vand.u32 %v92, 4294901760
    %v8272 = vsub.f32 %v92, %v8271
    %v8273 = vand.u32 %v8272, 4294901760
    %8274 = vmatmul.mubr.f32.gmra.mrb[0].mxu0 %v8273
    %v8275 = vpop.f32.mrb[0].mxu0
    %v8276 = vadd.f32 %v7952, %v8275
    %v8277 = vpop.f32.mrb[0].mxu0
    %8278 = vmatprep.mubr.f32.mxu0 0.0
    %v8279 = vand.u32 %v95, 4294901760
    %v8280 = vsub.f32 %v95, %v8279
    %v8281 = vand.u32 %v8280, 4294901760
    %8282 = vmatmul.mubr.f32.gmra.mrb[0].mxu0 %v8281
    %v8283 = vpop.f32.mrb[0].mxu0
    %v8284 = vadd.f32 %v7959, %v8283
    %v8285 = vpop.f32.mrb[0].mxu0
    %8286 = vmatprep.mubr.f32.mxu0 0.0
    %v8287 = vand.u32 %v98, 4294901760
    %v8288 = vsub.f32 %v98, %v8287
    %v8289 = vand.u32 %v8288, 4294901760
    %8290 = vmatmul.mubr.f32.gmra.mrb[0].mxu0 %v8289
    %v8291 = vpop.f32.mrb[0].mxu0
    %v8292 = vadd.f32 %v7966, %v8291
    %v8293 = vpop.f32.mrb[0].mxu0
    %8294 = vmatprep.mubr.f32.mxu0 0.0
    %v8295 = vand.u32 %v101, 4294901760
    %v8296 = vsub.f32 %v101, %v8295
    %v8297 = vand.u32 %v8296, 4294901760
    %8298 = vmatmul.mubr.f32.gmra.mrb[0].mxu0 %v8297
    %v8299 = vpop.f32.mrb[0].mxu0
    %v8300 = vadd.f32 %v7973, %v8299
    %v8301 = vpop.f32.mrb[0].mxu0
    %8302 = vmatprep.mubr.f32.mxu0 0.0
    %v8303 = vand.u32 %v104, 4294901760
    %v8304 = vsub.f32 %v104, %v8303
    %v8305 = vand.u32 %v8304, 4294901760
    %8306 = vmatmul.mubr.f32.gmra.mrb[0].mxu0 %v8305
    %v8307 = vpop.f32.mrb[0].mxu0
    %v8308 = vadd.f32 %v7980, %v8307
    %v8309 = vpop.f32.mrb[0].mxu0
    %8310 = vmatprep.mubr.f32.mxu0 0.0
    %v8311 = vand.u32 %v107, 4294901760
    %v8312 = vsub.f32 %v107, %v8311
    %v8313 = vand.u32 %v8312, 4294901760
    %8314 = vmatmul.mubr.f32.gmra.mrb[0].mxu0 %v8313
    %v8315 = vpop.f32.mrb[0].mxu0
    %v8316 = vadd.f32 %v7987, %v8315
    %v8317 = vpop.f32.mrb[0].mxu0
    %8318 = vmatprep.mubr.f32.mxu0 0.0
    %v8319 = vand.u32 %v110, 4294901760
    %v8320 = vsub.f32 %v110, %v8319
    %v8321 = vand.u32 %v8320, 4294901760
    %8322 = vmatmul.mubr.f32.gmra.mrb[0].mxu0 %v8321
    %v8323 = vpop.f32.mrb[0].mxu0
    %v8324 = vadd.f32 %v7994, %v8323
    %v8325 = vpop.f32.mrb[0].mxu0
    %8326 = vmatprep.mubr.f32.mxu0 0.0
    %v8327 = vand.u32 %v113, 4294901760
    %v8328 = vsub.f32 %v113, %v8327
    %v8329 = vand.u32 %v8328, 4294901760
    %8330 = vmatmul.mubr.f32.gmra.mrb[0].mxu0 %v8329
    %v8331 = vpop.f32.mrb[0].mxu0
    %v8332 = vadd.f32 %v8001, %v8331
    %v8333 = vpop.f32.mrb[0].mxu0
    %8334 = vmatprep.mubr.f32.mxu0 0.0
    %v8335 = vand.u32 %v116, 4294901760
    %v8336 = vsub.f32 %v116, %v8335
    %v8337 = vand.u32 %v8336, 4294901760
    %8338 = vmatmul.mubr.f32.gmra.mrb[0].mxu0 %v8337
    %v8339 = vpop.f32.mrb[0].mxu0
    %v8340 = vadd.f32 %v8008, %v8339
    %v8341 = vpop.f32.mrb[0].mxu0
    %8342 = vmatprep.mubr.f32.mxu0 0.0
    %v8343 = vand.u32 %v119, 4294901760
    %v8344 = vsub.f32 %v119, %v8343
    %v8345 = vand.u32 %v8344, 4294901760
    %8346 = vmatmul.mubr.f32.gmra.mrb[0].mxu0 %v8345
    %v8347 = vpop.f32.mrb[0].mxu0
    %v8348 = vadd.f32 %v8015, %v8347
    %v8349 = vpop.f32.mrb[0].mxu0
    %8350 = vmatprep.mubr.f32.mxu0 0.0
    %v8351 = vand.u32 %v122, 4294901760
    %v8352 = vsub.f32 %v122, %v8351
    %v8353 = vand.u32 %v8352, 4294901760
    %8354 = vmatmul.mubr.f32.gmra.mrb[0].mxu0 %v8353
    %v8355 = vpop.f32.mrb[0].mxu0
    %v8356 = vadd.f32 %v8022, %v8355
    %v8357 = vpop.f32.mrb[0].mxu0
    %8358 = vmatprep.mubr.f32.mxu0 0.0
    %v8359 = vand.u32 %v125, 4294901760
    %v8360 = vsub.f32 %v125, %v8359
    %v8361 = vand.u32 %v8360, 4294901760
    %8362 = vmatmul.mubr.f32.gmra.mrb[0].mxu0 %v8361
    %v8363 = vpop.f32.mrb[0].mxu0
    %v8364 = vadd.f32 %v8029, %v8363
    %v8365 = vpop.f32.mrb[0].mxu0
    %8366 = vmatprep.mubr.f32.mxu0 0.0
    %v8367 = vand.u32 %v128, 4294901760
    %v8368 = vsub.f32 %v128, %v8367
    %v8369 = vand.u32 %v8368, 4294901760
    %8370 = vmatmul.mubr.f32.gmra.mrb[0].mxu0 %v8369
    %v8371 = vpop.f32.mrb[0].mxu0
    %v8372 = vadd.f32 %v8036, %v8371
    %v8373 = vpop.f32.mrb[0].mxu0
    %8374 = vmatprep.mubr.f32.mxu0 0.0
    %v8375 = vand.u32 %v131, 4294901760
    %v8376 = vsub.f32 %v131, %v8375
    %v8377 = vand.u32 %v8376, 4294901760
    %8378 = vmatmul.mubr.f32.gmra.mrb[0].mxu0 %v8377
    %v8379 = vpop.f32.mrb[0].mxu0
    %v8380 = vadd.f32 %v8043, %v8379
    %v8381 = vpop.f32.mrb[0].mxu0
    %8382 = vmatprep.mubr.f32.mxu0 0.0
    %v8383 = vand.u32 %v134, 4294901760
    %v8384 = vsub.f32 %v134, %v8383
    %v8385 = vand.u32 %v8384, 4294901760
    %8386 = vmatmul.mubr.f32.gmra.mrb[0].mxu0 %v8385
    %v8387 = vpop.f32.mrb[0].mxu0
    %v8388 = vadd.f32 %v8050, %v8387
    %v8389 = vpop.f32.mrb[0].mxu0
    %8390 = vmatprep.mubr.f32.mxu0 0.0
    %v8391 = vand.u32 %v137, 4294901760
    %v8392 = vsub.f32 %v137, %v8391
    %v8393 = vand.u32 %v8392, 4294901760
    %8394 = vmatmul.mubr.f32.gmra.mrb[0].mxu0 %v8393
    %v8395 = vpop.f32.mrb[0].mxu0
    %v8396 = vadd.f32 %v8057, %v8395
    %v8397 = vpop.f32.mrb[0].mxu0
    %8398 = vmatprep.mubr.f32.mxu0 0.0
    %v8399 = vand.u32 %v140, 4294901760
    %v8400 = vsub.f32 %v140, %v8399
    %v8401 = vand.u32 %v8400, 4294901760
    %8402 = vmatmul.mubr.f32.gmra.mrb[0].mxu0 %v8401
    %v8403 = vpop.f32.mrb[0].mxu0
    %v8404 = vadd.f32 %v8064, %v8403
    %v8405 = vpop.f32.mrb[0].mxu0
    %8406 = vmatprep.mubr.f32.mxu0 0.0
    %v8407 = vand.u32 %v143, 4294901760
    %v8408 = vsub.f32 %v143, %v8407
    %v8409 = vand.u32 %v8408, 4294901760
    %8410 = vmatmul.mubr.f32.gmra.mrb[0].mxu0 %v8409
    %v8411 = vpop.f32.mrb[0].mxu0
    %v8412 = vadd.f32 %v8071, %v8411
    %v8413 = vpop.f32.mrb[0].mxu0
    %8414 = vmatprep.mubr.f32.mxu0 0.0
    %v8415 = vand.u32 %v146, 4294901760
    %v8416 = vsub.f32 %v146, %v8415
    %v8417 = vand.u32 %v8416, 4294901760
    %8418 = vmatmul.mubr.f32.gmra.mrb[0].mxu0 %v8417
    %v8419 = vpop.f32.mrb[0].mxu0
    %v8420 = vadd.f32 %v8078, %v8419
    %v8421 = vpop.f32.mrb[0].mxu0
    %8422 = vmatprep.mubr.f32.mxu0 0.0
    %v8423 = vand.u32 %v149, 4294901760
    %v8424 = vsub.f32 %v149, %v8423
    %v8425 = vand.u32 %v8424, 4294901760
    %8426 = vmatmul.mubr.f32.gmra.mrb[0].mxu0 %v8425
    %v8427 = vpop.f32.mrb[0].mxu0
    %v8428 = vadd.f32 %v8085, %v8427
    %v8429 = vpop.f32.mrb[0].mxu0
    %8430 = vmatprep.mubr.f32.mxu0 0.0
    %v8431 = vand.u32 %v152, 4294901760
    %v8432 = vsub.f32 %v152, %v8431
    %v8433 = vand.u32 %v8432, 4294901760
    %8434 = vmatmul.mubr.f32.gmra.mrb[0].mxu0 %v8433
    %v8435 = vpop.f32.mrb[0].mxu0
    %v8436 = vadd.f32 %v8092, %v8435
    %v8437 = vpop.f32.mrb[0].mxu0
    %8438 = vmatprep.mubr.f32.mxu0 0.0
    %v8439 = vand.u32 %v155, 4294901760
    %v8440 = vsub.f32 %v155, %v8439
    %v8441 = vand.u32 %v8440, 4294901760
    %8442 = vmatmul.mubr.f32.gmra.mrb[0].mxu0 %v8441
    %v8443 = vpop.f32.mrb[0].mxu0
    %v8444 = vadd.f32 %v8099, %v8443
    %v8445 = vpop.f32.mrb[0].mxu0
    %8446 = vmatprep.mubr.f32.mxu0 0.0
    %v8447 = vand.u32 %v158, 4294901760
    %v8448 = vsub.f32 %v158, %v8447
    %v8449 = vand.u32 %v8448, 4294901760
    %8450 = vmatmul.mubr.f32.gmra.mrb[0].mxu0 %v8449
    %v8451 = vpop.f32.mrb[0].mxu0
    %v8452 = vadd.f32 %v8106, %v8451
    %v8453 = vpop.f32.mrb[0].mxu0
    %8454 = vmatprep.mubr.f32.mxu0 0.0
    %v8455 = vand.u32 %v161, 4294901760
    %v8456 = vsub.f32 %v161, %v8455
    %v8457 = vand.u32 %v8456, 4294901760
    %8458 = vmatmul.mubr.f32.gmra.mrb[0].mxu0 %v8457
    %v8459 = vpop.f32.mrb[0].mxu0
    %v8460 = vadd.f32 %v8113, %v8459
    %v8461 = vpop.f32.mrb[0].mxu0
    %8462 = vmatprep.mubr.f32.mxu0 0.0
    %v8463 = vand.u32 %v164, 4294901760
    %v8464 = vsub.f32 %v164, %v8463
    %v8465 = vand.u32 %v8464, 4294901760
    %8466 = vmatmul.mubr.f32.gmra.mrb[0].mxu0 %v8465
    %v8467 = vpop.f32.mrb[0].mxu0
    %v8468 = vadd.f32 %v8120, %v8467
    %v8469 = vpop.f32.mrb[0].mxu0
    %8470 = vmatprep.mubr.f32.mxu0 0.0
    %v8471 = vand.u32 %v167, 4294901760
    %v8472 = vsub.f32 %v167, %v8471
    %v8473 = vand.u32 %v8472, 4294901760
    %8474 = vmatmul.mubr.f32.gmra.mrb[0].mxu0 %v8473
    %v8475 = vpop.f32.mrb[0].mxu0
    %v8476 = vadd.f32 %v8127, %v8475
    %v8477 = vpop.f32.mrb[0].mxu0
    %8478 = vmatprep.mubr.f32.mxu0 0.0
    %v8479 = vand.u32 %v170, 4294901760
    %v8480 = vsub.f32 %v170, %v8479
    %v8481 = vand.u32 %v8480, 4294901760
    %8482 = vmatmul.mubr.f32.gmra.mrb[0].mxu0 %v8481
    %v8483 = vpop.f32.mrb[0].mxu0
    %v8484 = vadd.f32 %v8134, %v8483
    %v8485 = vpop.f32.mrb[0].mxu0
    %8486 = vmatprep.mubr.f32.mxu0 0.0
    %v8487 = vand.u32 %v173, 4294901760
    %v8488 = vsub.f32 %v173, %v8487
    %v8489 = vand.u32 %v8488, 4294901760
    %8490 = vmatmul.mubr.f32.gmra.mrb[0].mxu0 %v8489
    %v8491 = vpop.f32.mrb[0].mxu0
    %v8492 = vadd.f32 %v8141, %v8491
    %v8493 = vpop.f32.mrb[0].mxu0
    %8494 = vmatprep.mubr.f32.mxu0 0.0
    %v8495 = vand.u32 %v176, 4294901760
    %v8496 = vsub.f32 %v176, %v8495
    %v8497 = vand.u32 %v8496, 4294901760
    %8498 = vmatmul.mubr.f32.gmra.mrb[0].mxu0 %v8497
    %v8499 = vpop.f32.mrb[0].mxu0
    %v8500 = vadd.f32 %v8148, %v8499
    %v8501 = vpop.f32.mrb[0].mxu0
    %8502 = vmatprep.mubr.f32.mxu0 0.0
    %v8503 = vand.u32 %v179, 4294901760
    %v8504 = vsub.f32 %v179, %v8503
    %v8505 = vand.u32 %v8504, 4294901760
    %8506 = vmatmul.mubr.f32.gmra.mrb[0].mxu0 %v8505
    %v8507 = vpop.f32.mrb[0].mxu0
    %v8508 = vadd.f32 %v8155, %v8507
    %v8509 = vpop.f32.mrb[0].mxu0
    %8510 = vmatprep.mubr.f32.mxu0 0.0
    %v8511 = vand.u32 %v182, 4294901760
    %v8512 = vsub.f32 %v182, %v8511
    %v8513 = vand.u32 %v8512, 4294901760
    %8514 = vmatmul.mubr.f32.gmra.mrb[0].mxu0 %v8513
    %v8515 = vpop.f32.mrb[0].mxu0
    %v8516 = vadd.f32 %v8162, %v8515
    %v8517 = vpop.f32.mrb[0].mxu0
    %8518 = vmatprep.mubr.f32.mxu0 0.0
    %v8519 = vand.u32 %v185, 4294901760
    %v8520 = vsub.f32 %v185, %v8519
    %v8521 = vand.u32 %v8520, 4294901760
    %8522 = vmatmul.mubr.f32.gmra.mrb[0].mxu0 %v8521
    %v8523 = vpop.f32.mrb[0].mxu0
    %v8524 = vadd.f32 %v8169, %v8523
    %v8525 = vpop.f32.mrb[0].mxu0
    %8526 = vmatprep.mubr.f32.mxu0 0.0
    %v8527 = vand.u32 %v188, 4294901760
    %v8528 = vsub.f32 %v188, %v8527
    %v8529 = vand.u32 %v8528, 4294901760
    %8530 = vmatmul.mubr.f32.gmra.mrb[0].mxu0 %v8529
    %v8531 = vpop.f32.mrb[0].mxu0
    %v8532 = vadd.f32 %v8176, %v8531
    %v8533 = vpop.f32.mrb[0].mxu0
    %8534 = vmatprep.mubr.f32.mxu0 0.0
    %v8535 = vand.u32 %v191, 4294901760
    %v8536 = vsub.f32 %v191, %v8535
    %v8537 = vand.u32 %v8536, 4294901760
    %8538 = vmatmul.mubr.f32.gmra.mrb[0].mxu0 %v8537
    %v8539 = vpop.f32.mrb[0].mxu0
    %v8540 = vadd.f32 %v8183, %v8539
    %v8541 = vpop.f32.mrb[0].mxu0
    %8542 = vmatprep.mubr.f32.mxu0 0.0
    %v8543 = vand.u32 %v194, 4294901760
    %v8544 = vsub.f32 %v194, %v8543
    %v8545 = vand.u32 %v8544, 4294901760
    %8546 = vmatmul.mubr.f32.gmra.mrb[0].mxu0 %v8545
    %v8547 = vpop.f32.mrb[0].mxu0
    %v8548 = vadd.f32 %v8190, %v8547
    %v8549 = vpop.f32.mrb[0].mxu0
    %8550 = vmatprep.mubr.f32.mxu0 0.0
    %v8551 = vand.u32 %v197, 4294901760
    %v8552 = vsub.f32 %v197, %v8551
    %v8553 = vand.u32 %v8552, 4294901760
    %8554 = vmatmul.mubr.f32.gmra.mrb[0].mxu0 %v8553
    %v8555 = vpop.f32.mrb[0].mxu0
    %v8556 = vadd.f32 %v8197, %v8555
    %v8557 = vpop.f32.mrb[0].mxu0
    %8558 = vdwg.mxu0
    %8559 = vmatprep.subr.mxu0 0.0
    %v8560 = vand.u32 %v54, 4294901760
    %v8561 = vsub.f32 %v54, %v8560
    %v8562 = vand.u32 %v8561, 4294901760
    %8563 = vmatpush1.msra.mxu0 %v8562
    %8564 = vmatprep.subr.mxu0 0.0
    %v8565 = vand.u32 %v61, 4294901760
    %v8566 = vsub.f32 %v61, %v8565
    %v8567 = vand.u32 %v8566, 4294901760
    %8568 = vmatpush1.msra.mxu0 %v8567
    %8569 = vmatprep.subr.mxu0 0.0
    %v8570 = vand.u32 %v68, 4294901760
    %v8571 = vsub.f32 %v68, %v8570
    %v8572 = vand.u32 %v8571, 4294901760
    %8573 = vmatpush1.msra.mxu0 %v8572
    %8574 = vmatprep.subr.mxu0 0.0
    %v8575 = vand.u32 %v75, 4294901760
    %v8576 = vsub.f32 %v75, %v8575
    %v8577 = vand.u32 %v8576, 4294901760
    %8578 = vmatpush1.msra.mxu0 %v8577
    %8579 = vmatprep.subr.mxu0 0.0
    %v8580 = vand.u32 %v82, 4294901760
    %v8581 = vsub.f32 %v82, %v8580
    %v8582 = vand.u32 %v8581, 4294901760
    %8583 = vmatpush1.msra.mxu0 %v8582
    %8584 = vmatprep.subr.mxu0 0.0
    %v8585 = vand.u32 %v89, 4294901760
    %v8586 = vsub.f32 %v89, %v8585
    %v8587 = vand.u32 %v8586, 4294901760
    %8588 = vmatpush1.msra.mxu0 %v8587
    %8589 = vmatprep.subr.mxu0 0.0
    %8590 = vmatpush1.msra.mxu0 0.0
    %8591 = vmatprep.subr.mxu0 0.0
    %8592 = vmatpush1.msra.mxu0 0.0
    %8593 = vmatprep.subr.mxu0 0.0
    %8594 = vmatpush1.msra.mxu0 0.0
    %8595 = vmatprep.subr.mxu0 0.0
    %8596 = vmatpush1.msra.mxu0 0.0
    %8597 = vmatprep.subr.mxu0 0.0
    %8598 = vmatpush1.msra.mxu0 0.0
    %8599 = vmatprep.subr.mxu0 0.0
    %8600 = vmatpush1.msra.mxu0 0.0
    %8601 = vmatprep.subr.mxu0 0.0
    %8602 = vmatpush1.msra.mxu0 0.0
    %8603 = vmatprep.subr.mxu0 0.0
    %8604 = vmatpush1.msra.mxu0 0.0
    %8605 = vmatprep.subr.mxu0 0.0
    %8606 = vmatpush1.msra.mxu0 0.0
    %8607 = vmatprep.subr.mxu0 0.0
    %8608 = vmatpush1.msra.mxu0 0.0
    %8609 = vmatprep.subr.mxu0 0.0
    %8610 = vmatpush1.msra.mxu0 0.0
    %8611 = vmatprep.subr.mxu0 0.0
    %8612 = vmatpush1.msra.mxu0 0.0
    %8613 = vmatprep.subr.mxu0 0.0
    %8614 = vmatpush1.msra.mxu0 0.0
    %8615 = vmatprep.subr.mxu0 0.0
    %8616 = vmatpush1.msra.mxu0 0.0
    %8617 = vmatprep.subr.mxu0 0.0
    %8618 = vmatpush1.msra.mxu0 0.0
    %8619 = vmatprep.subr.mxu0 0.0
    %8620 = vmatpush1.msra.mxu0 0.0
    %8621 = vmatprep.subr.mxu0 0.0
    %8622 = vmatpush1.msra.mxu0 0.0
    %8623 = vmatprep.subr.mxu0 0.0
    %8624 = vmatpush1.msra.mxu0 0.0
    %8625 = vmatprep.subr.mxu0 0.0
    %8626 = vmatpush1.msra.mxu0 0.0
    %8627 = vmatprep.subr.mxu0 0.0
    %8628 = vmatpush1.msra.mxu0 0.0
    %8629 = vmatprep.subr.mxu0 0.0
    %8630 = vmatpush1.msra.mxu0 0.0
    %8631 = vmatprep.subr.mxu0 0.0
    %8632 = vmatpush1.msra.mxu0 0.0
    %8633 = vmatprep.subr.mxu0 0.0
    %8634 = vmatpush1.msra.mxu0 0.0
    %8635 = vmatprep.subr.mxu0 0.0
    %8636 = vmatpush1.msra.mxu0 0.0
    %8637 = vmatprep.subr.mxu0 0.0
    %8638 = vmatpush1.msra.mxu0 0.0
    %8639 = vmatprep.subr.mxu0 0.0
    %8640 = vmatpush1.msra.mxu0 0.0
    %8641 = vmatprep.mubr.f32.mxu0 0.0
    %v8642 = vand.u32 %v92, 4294901760
    %8643 = vmatmul.mubr.f32.gmra.mrb[0].mxu0 %v8642
    %v8644 = vpop.f32.mrb[0].mxu0
    %v8645 = vadd.f32 %v8276, %v8644
    %v8646 = vpop.f32.mrb[0].mxu0
    %8647 = vmatprep.mubr.f32.mxu0 0.0
    %v8648 = vand.u32 %v95, 4294901760
    %8649 = vmatmul.mubr.f32.gmra.mrb[0].mxu0 %v8648
    %v8650 = vpop.f32.mrb[0].mxu0
    %v8651 = vadd.f32 %v8284, %v8650
    %v8652 = vpop.f32.mrb[0].mxu0
    %8653 = vmatprep.mubr.f32.mxu0 0.0
    %v8654 = vand.u32 %v98, 4294901760
    %8655 = vmatmul.mubr.f32.gmra.mrb[0].mxu0 %v8654
    %v8656 = vpop.f32.mrb[0].mxu0
    %v8657 = vadd.f32 %v8292, %v8656
    %v8658 = vpop.f32.mrb[0].mxu0
    %8659 = vmatprep.mubr.f32.mxu0 0.0
    %v8660 = vand.u32 %v101, 4294901760
    %8661 = vmatmul.mubr.f32.gmra.mrb[0].mxu0 %v8660
    %v8662 = vpop.f32.mrb[0].mxu0
    %v8663 = vadd.f32 %v8300, %v8662
    %v8664 = vpop.f32.mrb[0].mxu0
    %8665 = vmatprep.mubr.f32.mxu0 0.0
    %v8666 = vand.u32 %v104, 4294901760
    %8667 = vmatmul.mubr.f32.gmra.mrb[0].mxu0 %v8666
    %v8668 = vpop.f32.mrb[0].mxu0
    %v8669 = vadd.f32 %v8308, %v8668
    %v8670 = vpop.f32.mrb[0].mxu0
    %8671 = vmatprep.mubr.f32.mxu0 0.0
    %v8672 = vand.u32 %v107, 4294901760
    %8673 = vmatmul.mubr.f32.gmra.mrb[0].mxu0 %v8672
    %v8674 = vpop.f32.mrb[0].mxu0
    %v8675 = vadd.f32 %v8316, %v8674
    %v8676 = vpop.f32.mrb[0].mxu0
    %8677 = vmatprep.mubr.f32.mxu0 0.0
    %v8678 = vand.u32 %v110, 4294901760
    %8679 = vmatmul.mubr.f32.gmra.mrb[0].mxu0 %v8678
    %v8680 = vpop.f32.mrb[0].mxu0
    %v8681 = vadd.f32 %v8324, %v8680
    %v8682 = vpop.f32.mrb[0].mxu0
    %8683 = vmatprep.mubr.f32.mxu0 0.0
    %v8684 = vand.u32 %v113, 4294901760
    %8685 = vmatmul.mubr.f32.gmra.mrb[0].mxu0 %v8684
    %v8686 = vpop.f32.mrb[0].mxu0
    %v8687 = vadd.f32 %v8332, %v8686
    %v8688 = vpop.f32.mrb[0].mxu0
    %8689 = vmatprep.mubr.f32.mxu0 0.0
    %v8690 = vand.u32 %v116, 4294901760
    %8691 = vmatmul.mubr.f32.gmra.mrb[0].mxu0 %v8690
    %v8692 = vpop.f32.mrb[0].mxu0
    %v8693 = vadd.f32 %v8340, %v8692
    %v8694 = vpop.f32.mrb[0].mxu0
    %8695 = vmatprep.mubr.f32.mxu0 0.0
    %v8696 = vand.u32 %v119, 4294901760
    %8697 = vmatmul.mubr.f32.gmra.mrb[0].mxu0 %v8696
    %v8698 = vpop.f32.mrb[0].mxu0
    %v8699 = vadd.f32 %v8348, %v8698
    %v8700 = vpop.f32.mrb[0].mxu0
    %8701 = vmatprep.mubr.f32.mxu0 0.0
    %v8702 = vand.u32 %v122, 4294901760
    %8703 = vmatmul.mubr.f32.gmra.mrb[0].mxu0 %v8702
    %v8704 = vpop.f32.mrb[0].mxu0
    %v8705 = vadd.f32 %v8356, %v8704
    %v8706 = vpop.f32.mrb[0].mxu0
    %8707 = vmatprep.mubr.f32.mxu0 0.0
    %v8708 = vand.u32 %v125, 4294901760
    %8709 = vmatmul.mubr.f32.gmra.mrb[0].mxu0 %v8708
    %v8710 = vpop.f32.mrb[0].mxu0
    %v8711 = vadd.f32 %v8364, %v8710
    %v8712 = vpop.f32.mrb[0].mxu0
    %8713 = vmatprep.mubr.f32.mxu0 0.0
    %v8714 = vand.u32 %v128, 4294901760
    %8715 = vmatmul.mubr.f32.gmra.mrb[0].mxu0 %v8714
    %v8716 = vpop.f32.mrb[0].mxu0
    %v8717 = vadd.f32 %v8372, %v8716
    %v8718 = vpop.f32.mrb[0].mxu0
    %8719 = vmatprep.mubr.f32.mxu0 0.0
    %v8720 = vand.u32 %v131, 4294901760
    %8721 = vmatmul.mubr.f32.gmra.mrb[0].mxu0 %v8720
    %v8722 = vpop.f32.mrb[0].mxu0
    %v8723 = vadd.f32 %v8380, %v8722
    %v8724 = vpop.f32.mrb[0].mxu0
    %8725 = vmatprep.mubr.f32.mxu0 0.0
    %v8726 = vand.u32 %v134, 4294901760
    %8727 = vmatmul.mubr.f32.gmra.mrb[0].mxu0 %v8726
    %v8728 = vpop.f32.mrb[0].mxu0
    %v8729 = vadd.f32 %v8388, %v8728
    %v8730 = vpop.f32.mrb[0].mxu0
    %8731 = vmatprep.mubr.f32.mxu0 0.0
    %v8732 = vand.u32 %v137, 4294901760
    %8733 = vmatmul.mubr.f32.gmra.mrb[0].mxu0 %v8732
    %v8734 = vpop.f32.mrb[0].mxu0
    %v8735 = vadd.f32 %v8396, %v8734
    %v8736 = vpop.f32.mrb[0].mxu0
    %8737 = vmatprep.mubr.f32.mxu0 0.0
    %v8738 = vand.u32 %v140, 4294901760
    %8739 = vmatmul.mubr.f32.gmra.mrb[0].mxu0 %v8738
    %v8740 = vpop.f32.mrb[0].mxu0
    %v8741 = vadd.f32 %v8404, %v8740
    %v8742 = vpop.f32.mrb[0].mxu0
    %8743 = vmatprep.mubr.f32.mxu0 0.0
    %v8744 = vand.u32 %v143, 4294901760
    %8745 = vmatmul.mubr.f32.gmra.mrb[0].mxu0 %v8744
    %v8746 = vpop.f32.mrb[0].mxu0
    %v8747 = vadd.f32 %v8412, %v8746
    %v8748 = vpop.f32.mrb[0].mxu0
    %8749 = vmatprep.mubr.f32.mxu0 0.0
    %v8750 = vand.u32 %v146, 4294901760
    %8751 = vmatmul.mubr.f32.gmra.mrb[0].mxu0 %v8750
    %v8752 = vpop.f32.mrb[0].mxu0
    %v8753 = vadd.f32 %v8420, %v8752
    %v8754 = vpop.f32.mrb[0].mxu0
    %8755 = vmatprep.mubr.f32.mxu0 0.0
    %v8756 = vand.u32 %v149, 4294901760
    %8757 = vmatmul.mubr.f32.gmra.mrb[0].mxu0 %v8756
    %v8758 = vpop.f32.mrb[0].mxu0
    %v8759 = vadd.f32 %v8428, %v8758
    %v8760 = vpop.f32.mrb[0].mxu0
    %8761 = vmatprep.mubr.f32.mxu0 0.0
    %v8762 = vand.u32 %v152, 4294901760
    %8763 = vmatmul.mubr.f32.gmra.mrb[0].mxu0 %v8762
    %v8764 = vpop.f32.mrb[0].mxu0
    %v8765 = vadd.f32 %v8436, %v8764
    %v8766 = vpop.f32.mrb[0].mxu0
    %8767 = vmatprep.mubr.f32.mxu0 0.0
    %v8768 = vand.u32 %v155, 4294901760
    %8769 = vmatmul.mubr.f32.gmra.mrb[0].mxu0 %v8768
    %v8770 = vpop.f32.mrb[0].mxu0
    %v8771 = vadd.f32 %v8444, %v8770
    %v8772 = vpop.f32.mrb[0].mxu0
    %8773 = vmatprep.mubr.f32.mxu0 0.0
    %v8774 = vand.u32 %v158, 4294901760
    %8775 = vmatmul.mubr.f32.gmra.mrb[0].mxu0 %v8774
    %v8776 = vpop.f32.mrb[0].mxu0
    %v8777 = vadd.f32 %v8452, %v8776
    %v8778 = vpop.f32.mrb[0].mxu0
    %8779 = vmatprep.mubr.f32.mxu0 0.0
    %v8780 = vand.u32 %v161, 4294901760
    %8781 = vmatmul.mubr.f32.gmra.mrb[0].mxu0 %v8780
    %v8782 = vpop.f32.mrb[0].mxu0
    %v8783 = vadd.f32 %v8460, %v8782
    %v8784 = vpop.f32.mrb[0].mxu0
    %8785 = vmatprep.mubr.f32.mxu0 0.0
    %v8786 = vand.u32 %v164, 4294901760
    %8787 = vmatmul.mubr.f32.gmra.mrb[0].mxu0 %v8786
    %v8788 = vpop.f32.mrb[0].mxu0
    %v8789 = vadd.f32 %v8468, %v8788
    %v8790 = vpop.f32.mrb[0].mxu0
    %8791 = vmatprep.mubr.f32.mxu0 0.0
    %v8792 = vand.u32 %v167, 4294901760
    %8793 = vmatmul.mubr.f32.gmra.mrb[0].mxu0 %v8792
    %v8794 = vpop.f32.mrb[0].mxu0
    %v8795 = vadd.f32 %v8476, %v8794
    %v8796 = vpop.f32.mrb[0].mxu0
    %8797 = vmatprep.mubr.f32.mxu0 0.0
    %v8798 = vand.u32 %v170, 4294901760
    %8799 = vmatmul.mubr.f32.gmra.mrb[0].mxu0 %v8798
    %v8800 = vpop.f32.mrb[0].mxu0
    %v8801 = vadd.f32 %v8484, %v8800
    %v8802 = vpop.f32.mrb[0].mxu0
    %8803 = vmatprep.mubr.f32.mxu0 0.0
    %v8804 = vand.u32 %v173, 4294901760
    %8805 = vmatmul.mubr.f32.gmra.mrb[0].mxu0 %v8804
    %v8806 = vpop.f32.mrb[0].mxu0
    %v8807 = vadd.f32 %v8492, %v8806
    %v8808 = vpop.f32.mrb[0].mxu0
    %8809 = vmatprep.mubr.f32.mxu0 0.0
    %v8810 = vand.u32 %v176, 4294901760
    %8811 = vmatmul.mubr.f32.gmra.mrb[0].mxu0 %v8810
    %v8812 = vpop.f32.mrb[0].mxu0
    %v8813 = vadd.f32 %v8500, %v8812
    %v8814 = vpop.f32.mrb[0].mxu0
    %8815 = vmatprep.mubr.f32.mxu0 0.0
    %v8816 = vand.u32 %v179, 4294901760
    %8817 = vmatmul.mubr.f32.gmra.mrb[0].mxu0 %v8816
    %v8818 = vpop.f32.mrb[0].mxu0
    %v8819 = vadd.f32 %v8508, %v8818
    %v8820 = vpop.f32.mrb[0].mxu0
    %8821 = vmatprep.mubr.f32.mxu0 0.0
    %v8822 = vand.u32 %v182, 4294901760
    %8823 = vmatmul.mubr.f32.gmra.mrb[0].mxu0 %v8822
    %v8824 = vpop.f32.mrb[0].mxu0
    %v8825 = vadd.f32 %v8516, %v8824
    %v8826 = vpop.f32.mrb[0].mxu0
    %8827 = vmatprep.mubr.f32.mxu0 0.0
    %v8828 = vand.u32 %v185, 4294901760
    %8829 = vmatmul.mubr.f32.gmra.mrb[0].mxu0 %v8828
    %v8830 = vpop.f32.mrb[0].mxu0
    %v8831 = vadd.f32 %v8524, %v8830
    %v8832 = vpop.f32.mrb[0].mxu0
    %8833 = vmatprep.mubr.f32.mxu0 0.0
    %v8834 = vand.u32 %v188, 4294901760
    %8835 = vmatmul.mubr.f32.gmra.mrb[0].mxu0 %v8834
    %v8836 = vpop.f32.mrb[0].mxu0
    %v8837 = vadd.f32 %v8532, %v8836
    %v8838 = vpop.f32.mrb[0].mxu0
    %8839 = vmatprep.mubr.f32.mxu0 0.0
    %v8840 = vand.u32 %v191, 4294901760
    %8841 = vmatmul.mubr.f32.gmra.mrb[0].mxu0 %v8840
    %v8842 = vpop.f32.mrb[0].mxu0
    %v8843 = vadd.f32 %v8540, %v8842
    %v8844 = vpop.f32.mrb[0].mxu0
    %8845 = vmatprep.mubr.f32.mxu0 0.0
    %v8846 = vand.u32 %v194, 4294901760
    %8847 = vmatmul.mubr.f32.gmra.mrb[0].mxu0 %v8846
    %v8848 = vpop.f32.mrb[0].mxu0
    %v8849 = vadd.f32 %v8548, %v8848
    %v8850 = vpop.f32.mrb[0].mxu0
    %8851 = vmatprep.mubr.f32.mxu0 0.0
    %v8852 = vand.u32 %v197, 4294901760
    %8853 = vmatmul.mubr.f32.gmra.mrb[0].mxu0 %v8852
    %v8854 = vpop.f32.mrb[0].mxu0
    %v8855 = vadd.f32 %v8556, %v8854
    %v8856 = vpop.f32.mrb[0].mxu0
    %8857 = vdwg.mxu0
    %8858 = vmatprep.subr.mxu0 0.0
    %v8859 = vand.u32 %v54, 4294901760
    %8860 = vmatpush1.msra.mxu0 %v8859
    %8861 = vmatprep.subr.mxu0 0.0
    %v8862 = vand.u32 %v61, 4294901760
    %8863 = vmatpush1.msra.mxu0 %v8862
    %8864 = vmatprep.subr.mxu0 0.0
    %v8865 = vand.u32 %v68, 4294901760
    %8866 = vmatpush1.msra.mxu0 %v8865
    %8867 = vmatprep.subr.mxu0 0.0
    %v8868 = vand.u32 %v75, 4294901760
    %8869 = vmatpush1.msra.mxu0 %v8868
    %8870 = vmatprep.subr.mxu0 0.0
    %v8871 = vand.u32 %v82, 4294901760
    %8872 = vmatpush1.msra.mxu0 %v8871
    %8873 = vmatprep.subr.mxu0 0.0
    %v8874 = vand.u32 %v89, 4294901760
    %8875 = vmatpush1.msra.mxu0 %v8874
    %8876 = vmatprep.subr.mxu0 0.0
    %8877 = vmatpush1.msra.mxu0 0.0
    %8878 = vmatprep.subr.mxu0 0.0
    %8879 = vmatpush1.msra.mxu0 0.0
    %8880 = vmatprep.subr.mxu0 0.0
    %8881 = vmatpush1.msra.mxu0 0.0
    %8882 = vmatprep.subr.mxu0 0.0
    %8883 = vmatpush1.msra.mxu0 0.0
    %8884 = vmatprep.subr.mxu0 0.0
    %8885 = vmatpush1.msra.mxu0 0.0
    %8886 = vmatprep.subr.mxu0 0.0
    %8887 = vmatpush1.msra.mxu0 0.0
    %8888 = vmatprep.subr.mxu0 0.0
    %8889 = vmatpush1.msra.mxu0 0.0
    %8890 = vmatprep.subr.mxu0 0.0
    %8891 = vmatpush1.msra.mxu0 0.0
    %8892 = vmatprep.subr.mxu0 0.0
    %8893 = vmatpush1.msra.mxu0 0.0
    %8894 = vmatprep.subr.mxu0 0.0
    %8895 = vmatpush1.msra.mxu0 0.0
    %8896 = vmatprep.subr.mxu0 0.0
    %8897 = vmatpush1.msra.mxu0 0.0
    %8898 = vmatprep.subr.mxu0 0.0
    %8899 = vmatpush1.msra.mxu0 0.0
    %8900 = vmatprep.subr.mxu0 0.0
    %8901 = vmatpush1.msra.mxu0 0.0
    %8902 = vmatprep.subr.mxu0 0.0
    %8903 = vmatpush1.msra.mxu0 0.0
    %8904 = vmatprep.subr.mxu0 0.0
    %8905 = vmatpush1.msra.mxu0 0.0
    %8906 = vmatprep.subr.mxu0 0.0
    %8907 = vmatpush1.msra.mxu0 0.0
    %8908 = vmatprep.subr.mxu0 0.0
    %8909 = vmatpush1.msra.mxu0 0.0
    %8910 = vmatprep.subr.mxu0 0.0
    %8911 = vmatpush1.msra.mxu0 0.0
    %8912 = vmatprep.subr.mxu0 0.0
    %8913 = vmatpush1.msra.mxu0 0.0
    %8914 = vmatprep.subr.mxu0 0.0
    %8915 = vmatpush1.msra.mxu0 0.0
    %8916 = vmatprep.subr.mxu0 0.0
    %8917 = vmatpush1.msra.mxu0 0.0
    %8918 = vmatprep.subr.mxu0 0.0
    %8919 = vmatpush1.msra.mxu0 0.0
    %8920 = vmatprep.subr.mxu0 0.0
    %8921 = vmatpush1.msra.mxu0 0.0
    %8922 = vmatprep.subr.mxu0 0.0
    %8923 = vmatpush1.msra.mxu0 0.0
    %8924 = vmatprep.subr.mxu0 0.0
    %8925 = vmatpush1.msra.mxu0 0.0
    %8926 = vmatprep.subr.mxu0 0.0
    %8927 = vmatpush1.msra.mxu0 0.0
    %8928 = vmatprep.mubr.f32.mxu0 0.0
    %v8929 = vand.u32 %v92, 4294901760
    %8930 = vmatmul.mubr.f32.gmra.mrb[0].mxu0 %v8929
    %v8931 = vpop.f32.mrb[0].mxu0
    %v8932 = vadd.f32 %v8645, %v8931
    %v8933 = vpop.f32.mrb[0].mxu0
    %8934 = vmatprep.mubr.f32.mxu0 0.0
    %v8935 = vand.u32 %v95, 4294901760
    %8936 = vmatmul.mubr.f32.gmra.mrb[0].mxu0 %v8935
    %v8937 = vpop.f32.mrb[0].mxu0
    %v8938 = vadd.f32 %v8651, %v8937
    %v8939 = vpop.f32.mrb[0].mxu0
    %8940 = vmatprep.mubr.f32.mxu0 0.0
    %v8941 = vand.u32 %v98, 4294901760
    %8942 = vmatmul.mubr.f32.gmra.mrb[0].mxu0 %v8941
    %v8943 = vpop.f32.mrb[0].mxu0
    %v8944 = vadd.f32 %v8657, %v8943
    %v8945 = vpop.f32.mrb[0].mxu0
    %8946 = vmatprep.mubr.f32.mxu0 0.0
    %v8947 = vand.u32 %v101, 4294901760
    %8948 = vmatmul.mubr.f32.gmra.mrb[0].mxu0 %v8947
    %v8949 = vpop.f32.mrb[0].mxu0
    %v8950 = vadd.f32 %v8663, %v8949
    %v8951 = vpop.f32.mrb[0].mxu0
    %8952 = vmatprep.mubr.f32.mxu0 0.0
    %v8953 = vand.u32 %v104, 4294901760
    %8954 = vmatmul.mubr.f32.gmra.mrb[0].mxu0 %v8953
    %v8955 = vpop.f32.mrb[0].mxu0
    %v8956 = vadd.f32 %v8669, %v8955
    %v8957 = vpop.f32.mrb[0].mxu0
    %8958 = vmatprep.mubr.f32.mxu0 0.0
    %v8959 = vand.u32 %v107, 4294901760
    %8960 = vmatmul.mubr.f32.gmra.mrb[0].mxu0 %v8959
    %v8961 = vpop.f32.mrb[0].mxu0
    %v8962 = vadd.f32 %v8675, %v8961
    %v8963 = vpop.f32.mrb[0].mxu0
    %8964 = vmatprep.mubr.f32.mxu0 0.0
    %v8965 = vand.u32 %v110, 4294901760
    %8966 = vmatmul.mubr.f32.gmra.mrb[0].mxu0 %v8965
    %v8967 = vpop.f32.mrb[0].mxu0
    %v8968 = vadd.f32 %v8681, %v8967
    %v8969 = vpop.f32.mrb[0].mxu0
    %8970 = vmatprep.mubr.f32.mxu0 0.0
    %v8971 = vand.u32 %v113, 4294901760
    %8972 = vmatmul.mubr.f32.gmra.mrb[0].mxu0 %v8971
    %v8973 = vpop.f32.mrb[0].mxu0
    %v8974 = vadd.f32 %v8687, %v8973
    %v8975 = vpop.f32.mrb[0].mxu0
    %8976 = vmatprep.mubr.f32.mxu0 0.0
    %v8977 = vand.u32 %v116, 4294901760
    %8978 = vmatmul.mubr.f32.gmra.mrb[0].mxu0 %v8977
    %v8979 = vpop.f32.mrb[0].mxu0
    %v8980 = vadd.f32 %v8693, %v8979
    %v8981 = vpop.f32.mrb[0].mxu0
    %8982 = vmatprep.mubr.f32.mxu0 0.0
    %v8983 = vand.u32 %v119, 4294901760
    %8984 = vmatmul.mubr.f32.gmra.mrb[0].mxu0 %v8983
    %v8985 = vpop.f32.mrb[0].mxu0
    %v8986 = vadd.f32 %v8699, %v8985
    %v8987 = vpop.f32.mrb[0].mxu0
    %8988 = vmatprep.mubr.f32.mxu0 0.0
    %v8989 = vand.u32 %v122, 4294901760
    %8990 = vmatmul.mubr.f32.gmra.mrb[0].mxu0 %v8989
    %v8991 = vpop.f32.mrb[0].mxu0
    %v8992 = vadd.f32 %v8705, %v8991
    %v8993 = vpop.f32.mrb[0].mxu0
    %8994 = vmatprep.mubr.f32.mxu0 0.0
    %v8995 = vand.u32 %v125, 4294901760
    %8996 = vmatmul.mubr.f32.gmra.mrb[0].mxu0 %v8995
    %v8997 = vpop.f32.mrb[0].mxu0
    %v8998 = vadd.f32 %v8711, %v8997
    %v8999 = vpop.f32.mrb[0].mxu0
    %9000 = vmatprep.mubr.f32.mxu0 0.0
    %v9001 = vand.u32 %v128, 4294901760
    %9002 = vmatmul.mubr.f32.gmra.mrb[0].mxu0 %v9001
    %v9003 = vpop.f32.mrb[0].mxu0
    %v9004 = vadd.f32 %v8717, %v9003
    %v9005 = vpop.f32.mrb[0].mxu0
    %9006 = vmatprep.mubr.f32.mxu0 0.0
    %v9007 = vand.u32 %v131, 4294901760
    %9008 = vmatmul.mubr.f32.gmra.mrb[0].mxu0 %v9007
    %v9009 = vpop.f32.mrb[0].mxu0
    %v9010 = vadd.f32 %v8723, %v9009
    %v9011 = vpop.f32.mrb[0].mxu0
    %9012 = vmatprep.mubr.f32.mxu0 0.0
    %v9013 = vand.u32 %v134, 4294901760
    %9014 = vmatmul.mubr.f32.gmra.mrb[0].mxu0 %v9013
    %v9015 = vpop.f32.mrb[0].mxu0
    %v9016 = vadd.f32 %v8729, %v9015
    %v9017 = vpop.f32.mrb[0].mxu0
    %9018 = vmatprep.mubr.f32.mxu0 0.0
    %v9019 = vand.u32 %v137, 4294901760
    %9020 = vmatmul.mubr.f32.gmra.mrb[0].mxu0 %v9019
    %v9021 = vpop.f32.mrb[0].mxu0
    %v9022 = vadd.f32 %v8735, %v9021
    %v9023 = vpop.f32.mrb[0].mxu0
    %9024 = vmatprep.mubr.f32.mxu0 0.0
    %v9025 = vand.u32 %v140, 4294901760
    %9026 = vmatmul.mubr.f32.gmra.mrb[0].mxu0 %v9025
    %v9027 = vpop.f32.mrb[0].mxu0
    %v9028 = vadd.f32 %v8741, %v9027
    %v9029 = vpop.f32.mrb[0].mxu0
    %9030 = vmatprep.mubr.f32.mxu0 0.0
    %v9031 = vand.u32 %v143, 4294901760
    %9032 = vmatmul.mubr.f32.gmra.mrb[0].mxu0 %v9031
    %v9033 = vpop.f32.mrb[0].mxu0
    %v9034 = vadd.f32 %v8747, %v9033
    %v9035 = vpop.f32.mrb[0].mxu0
    %9036 = vmatprep.mubr.f32.mxu0 0.0
    %v9037 = vand.u32 %v146, 4294901760
    %9038 = vmatmul.mubr.f32.gmra.mrb[0].mxu0 %v9037
    %v9039 = vpop.f32.mrb[0].mxu0
    %v9040 = vadd.f32 %v8753, %v9039
    %v9041 = vpop.f32.mrb[0].mxu0
    %9042 = vmatprep.mubr.f32.mxu0 0.0
    %v9043 = vand.u32 %v149, 4294901760
    %9044 = vmatmul.mubr.f32.gmra.mrb[0].mxu0 %v9043
    %v9045 = vpop.f32.mrb[0].mxu0
    %v9046 = vadd.f32 %v8759, %v9045
    %v9047 = vpop.f32.mrb[0].mxu0
    %9048 = vmatprep.mubr.f32.mxu0 0.0
    %v9049 = vand.u32 %v152, 4294901760
    %9050 = vmatmul.mubr.f32.gmra.mrb[0].mxu0 %v9049
    %v9051 = vpop.f32.mrb[0].mxu0
    %v9052 = vadd.f32 %v8765, %v9051
    %v9053 = vpop.f32.mrb[0].mxu0
    %9054 = vmatprep.mubr.f32.mxu0 0.0
    %v9055 = vand.u32 %v155, 4294901760
    %9056 = vmatmul.mubr.f32.gmra.mrb[0].mxu0 %v9055
    %v9057 = vpop.f32.mrb[0].mxu0
    %v9058 = vadd.f32 %v8771, %v9057
    %v9059 = vpop.f32.mrb[0].mxu0
    %9060 = vmatprep.mubr.f32.mxu0 0.0
    %v9061 = vand.u32 %v158, 4294901760
    %9062 = vmatmul.mubr.f32.gmra.mrb[0].mxu0 %v9061
    %v9063 = vpop.f32.mrb[0].mxu0
    %v9064 = vadd.f32 %v8777, %v9063
    %v9065 = vpop.f32.mrb[0].mxu0
    %9066 = vmatprep.mubr.f32.mxu0 0.0
    %v9067 = vand.u32 %v161, 4294901760
    %9068 = vmatmul.mubr.f32.gmra.mrb[0].mxu0 %v9067
    %v9069 = vpop.f32.mrb[0].mxu0
    %v9070 = vadd.f32 %v8783, %v9069
    %v9071 = vpop.f32.mrb[0].mxu0
    %9072 = vmatprep.mubr.f32.mxu0 0.0
    %v9073 = vand.u32 %v164, 4294901760
    %9074 = vmatmul.mubr.f32.gmra.mrb[0].mxu0 %v9073
    %v9075 = vpop.f32.mrb[0].mxu0
    %v9076 = vadd.f32 %v8789, %v9075
    %v9077 = vpop.f32.mrb[0].mxu0
    %9078 = vmatprep.mubr.f32.mxu0 0.0
    %v9079 = vand.u32 %v167, 4294901760
    %9080 = vmatmul.mubr.f32.gmra.mrb[0].mxu0 %v9079
    %v9081 = vpop.f32.mrb[0].mxu0
    %v9082 = vadd.f32 %v8795, %v9081
    %v9083 = vpop.f32.mrb[0].mxu0
    %9084 = vmatprep.mubr.f32.mxu0 0.0
    %v9085 = vand.u32 %v170, 4294901760
    %9086 = vmatmul.mubr.f32.gmra.mrb[0].mxu0 %v9085
    %v9087 = vpop.f32.mrb[0].mxu0
    %v9088 = vadd.f32 %v8801, %v9087
    %v9089 = vpop.f32.mrb[0].mxu0
    %9090 = vmatprep.mubr.f32.mxu0 0.0
    %v9091 = vand.u32 %v173, 4294901760
    %9092 = vmatmul.mubr.f32.gmra.mrb[0].mxu0 %v9091
    %v9093 = vpop.f32.mrb[0].mxu0
    %v9094 = vadd.f32 %v8807, %v9093
    %v9095 = vpop.f32.mrb[0].mxu0
    %9096 = vmatprep.mubr.f32.mxu0 0.0
    %v9097 = vand.u32 %v176, 4294901760
    %9098 = vmatmul.mubr.f32.gmra.mrb[0].mxu0 %v9097
    %v9099 = vpop.f32.mrb[0].mxu0
    %v9100 = vadd.f32 %v8813, %v9099
    %v9101 = vpop.f32.mrb[0].mxu0
    %9102 = vmatprep.mubr.f32.mxu0 0.0
    %v9103 = vand.u32 %v179, 4294901760
    %9104 = vmatmul.mubr.f32.gmra.mrb[0].mxu0 %v9103
    %v9105 = vpop.f32.mrb[0].mxu0
    %v9106 = vadd.f32 %v8819, %v9105
    %v9107 = vpop.f32.mrb[0].mxu0
    %9108 = vmatprep.mubr.f32.mxu0 0.0
    %v9109 = vand.u32 %v182, 4294901760
    %9110 = vmatmul.mubr.f32.gmra.mrb[0].mxu0 %v9109
    %v9111 = vpop.f32.mrb[0].mxu0
    %v9112 = vadd.f32 %v8825, %v9111
    %v9113 = vpop.f32.mrb[0].mxu0
    %9114 = vmatprep.mubr.f32.mxu0 0.0
    %v9115 = vand.u32 %v185, 4294901760
    %9116 = vmatmul.mubr.f32.gmra.mrb[0].mxu0 %v9115
    %v9117 = vpop.f32.mrb[0].mxu0
    %v9118 = vadd.f32 %v8831, %v9117
    %v9119 = vpop.f32.mrb[0].mxu0
    %9120 = vmatprep.mubr.f32.mxu0 0.0
    %v9121 = vand.u32 %v188, 4294901760
    %9122 = vmatmul.mubr.f32.gmra.mrb[0].mxu0 %v9121
    %v9123 = vpop.f32.mrb[0].mxu0
    %v9124 = vadd.f32 %v8837, %v9123
    %v9125 = vpop.f32.mrb[0].mxu0
    %9126 = vmatprep.mubr.f32.mxu0 0.0
    %v9127 = vand.u32 %v191, 4294901760
    %9128 = vmatmul.mubr.f32.gmra.mrb[0].mxu0 %v9127
    %v9129 = vpop.f32.mrb[0].mxu0
    %v9130 = vadd.f32 %v8843, %v9129
    %v9131 = vpop.f32.mrb[0].mxu0
    %9132 = vmatprep.mubr.f32.mxu0 0.0
    %v9133 = vand.u32 %v194, 4294901760
    %9134 = vmatmul.mubr.f32.gmra.mrb[0].mxu0 %v9133
    %v9135 = vpop.f32.mrb[0].mxu0
    %v9136 = vadd.f32 %v8849, %v9135
    %v9137 = vpop.f32.mrb[0].mxu0
    %9138 = vmatprep.mubr.f32.mxu0 0.0
    %v9139 = vand.u32 %v197, 4294901760
    %9140 = vmatmul.mubr.f32.gmra.mrb[0].mxu0 %v9139
    %v9141 = vpop.f32.mrb[0].mxu0
    %v9142 = vadd.f32 %v8855, %v9141
    %v9143 = vpop.f32.mrb[0].mxu0
    %9144 = vdwg.mxu0
    %9145 = vst [vmem:[#allocation2] sm:$0xff] %v2260
    %9146 = vst [vmem:[#allocation2 + $0x8] sm:$0xff] %v2262
    %9147 = vst [vmem:[#allocation2 + $0x10] sm:$0xff] %v4570
    %9148 = vst [vmem:[#allocation2 + $0x18] sm:$0xff] %v4572
    %9149 = vst [vmem:[#allocation2 + $0x20] sm:$0xff] %v6880
    %9150 = vst [vmem:[#allocation2 + $0x28] sm:$0xff] %v6882
    %vm9151 = vcmask 130048
    %9152 = vst.msk [vmem:[#allocation2 + $0x30] sm:$0xff] %vm9151, %v8932
    %9153 = vst [vmem:[#allocation2 + $0x38] sm:$0xff] %v2267
    %9154 = vst [vmem:[#allocation2 + $0x40] sm:$0xff] %v2269
    %9155 = vst [vmem:[#allocation2 + $0x48] sm:$0xff] %v4577
    %9156 = vst [vmem:[#allocation2 + $0x50] sm:$0xff] %v4579
    %9157 = vst [vmem:[#allocation2 + $0x58] sm:$0xff] %v6887
    %9158 = vst [vmem:[#allocation2 + $0x60] sm:$0xff] %v6889
    %9159 = vst.msk [vmem:[#allocation2 + $0x68] sm:$0xff] %vm9151, %v8938
    %9160 = vst [vmem:[#allocation2 + $0x70] sm:$0xff] %v2274
    %9161 = vst [vmem:[#allocation2 + $0x78] sm:$0xff] %v2276
    %9162 = vst [vmem:[#allocation2 + $0x80] sm:$0xff] %v4584
    %9163 = vst [vmem:[#allocation2 + $0x88] sm:$0xff] %v4586
    %9164 = vst [vmem:[#allocation2 + $0x90] sm:$0xff] %v6894
    %9165 = vst [vmem:[#allocation2 + $0x98] sm:$0xff] %v6896
    %9166 = vst.msk [vmem:[#allocation2 + $0xa0] sm:$0xff] %vm9151, %v8944
    %9167 = vst [vmem:[#allocation2 + $0xa8] sm:$0xff] %v2281
    %9168 = vst [vmem:[#allocation2 + $0xb0] sm:$0xff] %v2283
    %9169 = vst [vmem:[#allocation2 + $0xb8] sm:$0xff] %v4591
    %9170 = vst [vmem:[#allocation2 + $0xc0] sm:$0xff] %v4593
    %9171 = vst [vmem:[#allocation2 + $0xc8] sm:$0xff] %v6901
    %9172 = vst [vmem:[#allocation2 + $0xd0] sm:$0xff] %v6903
    %9173 = vst.msk [vmem:[#allocation2 + $0xd8] sm:$0xff] %vm9151, %v8950
    %9174 = vst [vmem:[#allocation2 + $0xe0] sm:$0xff] %v2288
    %9175 = vst [vmem:[#allocation2 + $0xe8] sm:$0xff] %v2290
    %9176 = vst [vmem:[#allocation2 + $0xf0] sm:$0xff] %v4598
    %9177 = vst [vmem:[#allocation2 + $0xf8] sm:$0xff] %v4600
    %9178 = vst [vmem:[#allocation2 + $0x100] sm:$0xff] %v6908
    %9179 = vst [vmem:[#allocation2 + $0x108] sm:$0xff] %v6910
    %9180 = vst.msk [vmem:[#allocation2 + $0x110] sm:$0xff] %vm9151, %v8956
    %9181 = vst [vmem:[#allocation2 + $0x118] sm:$0xff] %v2295
    %9182 = vst [vmem:[#allocation2 + $0x120] sm:$0xff] %v2297
    %9183 = vst [vmem:[#allocation2 + $0x128] sm:$0xff] %v4605
    %9184 = vst [vmem:[#allocation2 + $0x130] sm:$0xff] %v4607
    %9185 = vst [vmem:[#allocation2 + $0x138] sm:$0xff] %v6915
    %9186 = vst [vmem:[#allocation2 + $0x140] sm:$0xff] %v6917
    %9187 = vst.msk [vmem:[#allocation2 + $0x148] sm:$0xff] %vm9151, %v8962
    %9188 = vst [vmem:[#allocation2 + $0x150] sm:$0xff] %v2302
    %9189 = vst [vmem:[#allocation2 + $0x158] sm:$0xff] %v2304
    %9190 = vst [vmem:[#allocation2 + $0x160] sm:$0xff] %v4612
    %9191 = vst [vmem:[#allocation2 + $0x168] sm:$0xff] %v4614
    %9192 = vst [vmem:[#allocation2 + $0x170] sm:$0xff] %v6922
    %9193 = vst [vmem:[#allocation2 + $0x178] sm:$0xff] %v6924
    %9194 = vst.msk [vmem:[#allocation2 + $0x180] sm:$0xff] %vm9151, %v8968
    %9195 = vst [vmem:[#allocation2 + $0x188] sm:$0xff] %v2309
    %9196 = vst [vmem:[#allocation2 + $0x190] sm:$0xff] %v2311
    %9197 = vst [vmem:[#allocation2 + $0x198] sm:$0xff] %v4619
    %9198 = vst [vmem:[#allocation2 + $0x1a0] sm:$0xff] %v4621
    %9199 = vst [vmem:[#allocation2 + $0x1a8] sm:$0xff] %v6929
    %9200 = vst [vmem:[#allocation2 + $0x1b0] sm:$0xff] %v6931
    %9201 = vst.msk [vmem:[#allocation2 + $0x1b8] sm:$0xff] %vm9151, %v8974
    %9202 = vst [vmem:[#allocation2 + $0x1c0] sm:$0xff] %v2316
    %9203 = vst [vmem:[#allocation2 + $0x1c8] sm:$0xff] %v2318
    %9204 = vst [vmem:[#allocation2 + $0x1d0] sm:$0xff] %v4626
    %9205 = vst [vmem:[#allocation2 + $0x1d8] sm:$0xff] %v4628
    %9206 = vst [vmem:[#allocation2 + $0x1e0] sm:$0xff] %v6936
    %9207 = vst [vmem:[#allocation2 + $0x1e8] sm:$0xff] %v6938
    %9208 = vst.msk [vmem:[#allocation2 + $0x1f0] sm:$0xff] %vm9151, %v8980
    %9209 = vst [vmem:[#allocation2 + $0x1f8] sm:$0xff] %v2323
    %9210 = vst [vmem:[#allocation2 + $0x200] sm:$0xff] %v2325
    %9211 = vst [vmem:[#allocation2 + $0x208] sm:$0xff] %v4633
    %9212 = vst [vmem:[#allocation2 + $0x210] sm:$0xff] %v4635
    %9213 = vst [vmem:[#allocation2 + $0x218] sm:$0xff] %v6943
    %9214 = vst [vmem:[#allocation2 + $0x220] sm:$0xff] %v6945
    %9215 = vst.msk [vmem:[#allocation2 + $0x228] sm:$0xff] %vm9151, %v8986
    %9216 = vst [vmem:[#allocation2 + $0x230] sm:$0xff] %v2330
    %9217 = vst [vmem:[#allocation2 + $0x238] sm:$0xff] %v2332
    %9218 = vst [vmem:[#allocation2 + $0x240] sm:$0xff] %v4640
    %9219 = vst [vmem:[#allocation2 + $0x248] sm:$0xff] %v4642
    %9220 = vst [vmem:[#allocation2 + $0x250] sm:$0xff] %v6950
    %9221 = vst [vmem:[#allocation2 + $0x258] sm:$0xff] %v6952
    %9222 = vst.msk [vmem:[#allocation2 + $0x260] sm:$0xff] %vm9151, %v8992
    %9223 = vst [vmem:[#allocation2 + $0x268] sm:$0xff] %v2337
    %9224 = vst [vmem:[#allocation2 + $0x270] sm:$0xff] %v2339
    %9225 = vst [vmem:[#allocation2 + $0x278] sm:$0xff] %v4647
    %9226 = vst [vmem:[#allocation2 + $0x280] sm:$0xff] %v4649
    %9227 = vst [vmem:[#allocation2 + $0x288] sm:$0xff] %v6957
    %9228 = vst [vmem:[#allocation2 + $0x290] sm:$0xff] %v6959
    %9229 = vst.msk [vmem:[#allocation2 + $0x298] sm:$0xff] %vm9151, %v8998
    %9230 = vst [vmem:[#allocation2 + $0x2a0] sm:$0xff] %v2344
    %9231 = vst [vmem:[#allocation2 + $0x2a8] sm:$0xff] %v2346
    %9232 = vst [vmem:[#allocation2 + $0x2b0] sm:$0xff] %v4654
    %9233 = vst [vmem:[#allocation2 + $0x2b8] sm:$0xff] %v4656
    %9234 = vst [vmem:[#allocation2 + $0x2c0] sm:$0xff] %v6964
    %9235 = vst [vmem:[#allocation2 + $0x2c8] sm:$0xff] %v6966
    %9236 = vst.msk [vmem:[#allocation2 + $0x2d0] sm:$0xff] %vm9151, %v9004
    %9237 = vst [vmem:[#allocation2 + $0x2d8] sm:$0xff] %v2351
    %9238 = vst [vmem:[#allocation2 + $0x2e0] sm:$0xff] %v2353
    %9239 = vst [vmem:[#allocation2 + $0x2e8] sm:$0xff] %v4661
    %9240 = vst [vmem:[#allocation2 + $0x2f0] sm:$0xff] %v4663
    %9241 = vst [vmem:[#allocation2 + $0x2f8] sm:$0xff] %v6971
    %9242 = vst [vmem:[#allocation2 + $0x300] sm:$0xff] %v6973
    %9243 = vst.msk [vmem:[#allocation2 + $0x308] sm:$0xff] %vm9151, %v9010
    %9244 = vst [vmem:[#allocation2 + $0x310] sm:$0xff] %v2358
    %9245 = vst [vmem:[#allocation2 + $0x318] sm:$0xff] %v2360
    %9246 = vst [vmem:[#allocation2 + $0x320] sm:$0xff] %v4668
    %9247 = vst [vmem:[#allocation2 + $0x328] sm:$0xff] %v4670
    %9248 = vst [vmem:[#allocation2 + $0x330] sm:$0xff] %v6978
    %9249 = vst [vmem:[#allocation2 + $0x338] sm:$0xff] %v6980
    %9250 = vst.msk [vmem:[#allocation2 + $0x340] sm:$0xff] %vm9151, %v9016
    %9251 = vst [vmem:[#allocation2 + $0x348] sm:$0xff] %v2365
    %9252 = vst [vmem:[#allocation2 + $0x350] sm:$0xff] %v2367
    %9253 = vst [vmem:[#allocation2 + $0x358] sm:$0xff] %v4675
    %9254 = vst [vmem:[#allocation2 + $0x360] sm:$0xff] %v4677
    %9255 = vst [vmem:[#allocation2 + $0x368] sm:$0xff] %v6985
    %9256 = vst [vmem:[#allocation2 + $0x370] sm:$0xff] %v6987
    %9257 = vst.msk [vmem:[#allocation2 + $0x378] sm:$0xff] %vm9151, %v9022
    %9258 = vst [vmem:[#allocation2 + $0x380] sm:$0xff] %v2372
    %9259 = vst [vmem:[#allocation2 + $0x388] sm:$0xff] %v2374
    %9260 = vst [vmem:[#allocation2 + $0x390] sm:$0xff] %v4682
    %9261 = vst [vmem:[#allocation2 + $0x398] sm:$0xff] %v4684
    %9262 = vst [vmem:[#allocation2 + $0x3a0] sm:$0xff] %v6992
    %9263 = vst [vmem:[#allocation2 + $0x3a8] sm:$0xff] %v6994
    %9264 = vst.msk [vmem:[#allocation2 + $0x3b0] sm:$0xff] %vm9151, %v9028
    %9265 = vst [vmem:[#allocation2 + $0x3b8] sm:$0xff] %v2379
    %9266 = vst [vmem:[#allocation2 + $0x3c0] sm:$0xff] %v2381
    %9267 = vst [vmem:[#allocation2 + $0x3c8] sm:$0xff] %v4689
    %9268 = vst [vmem:[#allocation2 + $0x3d0] sm:$0xff] %v4691
    %9269 = vst [vmem:[#allocation2 + $0x3d8] sm:$0xff] %v6999
    %9270 = vst [vmem:[#allocation2 + $0x3e0] sm:$0xff] %v7001
    %9271 = vst.msk [vmem:[#allocation2 + $0x3e8] sm:$0xff] %vm9151, %v9034
    %9272 = vst [vmem:[#allocation2 + $0x3f0] sm:$0xff] %v2386
    %9273 = vst [vmem:[#allocation2 + $0x3f8] sm:$0xff] %v2388
    %9274 = vst [vmem:[#allocation2 + $0x400] sm:$0xff] %v4696
    %9275 = vst [vmem:[#allocation2 + $0x408] sm:$0xff] %v4698
    %9276 = vst [vmem:[#allocation2 + $0x410] sm:$0xff] %v7006
    %9277 = vst [vmem:[#allocation2 + $0x418] sm:$0xff] %v7008
    %9278 = vst.msk [vmem:[#allocation2 + $0x420] sm:$0xff] %vm9151, %v9040
    %9279 = vst [vmem:[#allocation2 + $0x428] sm:$0xff] %v2393
    %9280 = vst [vmem:[#allocation2 + $0x430] sm:$0xff] %v2395
    %9281 = vst [vmem:[#allocation2 + $0x438] sm:$0xff] %v4703
    %9282 = vst [vmem:[#allocation2 + $0x440] sm:$0xff] %v4705
    %9283 = vst [vmem:[#allocation2 + $0x448] sm:$0xff] %v7013
    %9284 = vst [vmem:[#allocation2 + $0x450] sm:$0xff] %v7015
    %9285 = vst.msk [vmem:[#allocation2 + $0x458] sm:$0xff] %vm9151, %v9046
    %9286 = vst [vmem:[#allocation2 + $0x460] sm:$0xff] %v2400
    %9287 = vst [vmem:[#allocation2 + $0x468] sm:$0xff] %v2402
    %9288 = vst [vmem:[#allocation2 + $0x470] sm:$0xff] %v4710
    %9289 = vst [vmem:[#allocation2 + $0x478] sm:$0xff] %v4712
    %9290 = vst [vmem:[#allocation2 + $0x480] sm:$0xff] %v7020
    %9291 = vst [vmem:[#allocation2 + $0x488] sm:$0xff] %v7022
    %9292 = vst.msk [vmem:[#allocation2 + $0x490] sm:$0xff] %vm9151, %v9052
    %9293 = vst [vmem:[#allocation2 + $0x498] sm:$0xff] %v2407
    %9294 = vst [vmem:[#allocation2 + $0x4a0] sm:$0xff] %v2409
    %9295 = vst [vmem:[#allocation2 + $0x4a8] sm:$0xff] %v4717
    %9296 = vst [vmem:[#allocation2 + $0x4b0] sm:$0xff] %v4719
    %9297 = vst [vmem:[#allocation2 + $0x4b8] sm:$0xff] %v7027
    %9298 = vst [vmem:[#allocation2 + $0x4c0] sm:$0xff] %v7029
    %9299 = vst.msk [vmem:[#allocation2 + $0x4c8] sm:$0xff] %vm9151, %v9058
    %9300 = vst [vmem:[#allocation2 + $0x4d0] sm:$0xff] %v2414
    %9301 = vst [vmem:[#allocation2 + $0x4d8] sm:$0xff] %v2416
    %9302 = vst [vmem:[#allocation2 + $0x4e0] sm:$0xff] %v4724
    %9303 = vst [vmem:[#allocation2 + $0x4e8] sm:$0xff] %v4726
    %9304 = vst [vmem:[#allocation2 + $0x4f0] sm:$0xff] %v7034
    %9305 = vst [vmem:[#allocation2 + $0x4f8] sm:$0xff] %v7036
    %9306 = vst.msk [vmem:[#allocation2 + $0x500] sm:$0xff] %vm9151, %v9064
    %9307 = vst [vmem:[#allocation2 + $0x508] sm:$0xff] %v2421
    %9308 = vst [vmem:[#allocation2 + $0x510] sm:$0xff] %v2423
    %9309 = vst [vmem:[#allocation2 + $0x518] sm:$0xff] %v4731
    %9310 = vst [vmem:[#allocation2 + $0x520] sm:$0xff] %v4733
    %9311 = vst [vmem:[#allocation2 + $0x528] sm:$0xff] %v7041
    %9312 = vst [vmem:[#allocation2 + $0x530] sm:$0xff] %v7043
    %9313 = vst.msk [vmem:[#allocation2 + $0x538] sm:$0xff] %vm9151, %v9070
    %9314 = vst [vmem:[#allocation2 + $0x540] sm:$0xff] %v2428
    %9315 = vst [vmem:[#allocation2 + $0x548] sm:$0xff] %v2430
    %9316 = vst [vmem:[#allocation2 + $0x550] sm:$0xff] %v4738
    %9317 = vst [vmem:[#allocation2 + $0x558] sm:$0xff] %v4740
    %9318 = vst [vmem:[#allocation2 + $0x560] sm:$0xff] %v7048
    %9319 = vst [vmem:[#allocation2 + $0x568] sm:$0xff] %v7050
    %9320 = vst.msk [vmem:[#allocation2 + $0x570] sm:$0xff] %vm9151, %v9076
    %9321 = vst [vmem:[#allocation2 + $0x578] sm:$0xff] %v2435
    %9322 = vst [vmem:[#allocation2 + $0x580] sm:$0xff] %v2437
    %9323 = vst [vmem:[#allocation2 + $0x588] sm:$0xff] %v4745
    %9324 = vst [vmem:[#allocation2 + $0x590] sm:$0xff] %v4747
    %9325 = vst [vmem:[#allocation2 + $0x598] sm:$0xff] %v7055
    %9326 = vst [vmem:[#allocation2 + $0x5a0] sm:$0xff] %v7057
    %9327 = vst.msk [vmem:[#allocation2 + $0x5a8] sm:$0xff] %vm9151, %v9082
    %9328 = vst [vmem:[#allocation2 + $0x5b0] sm:$0xff] %v2442
    %9329 = vst [vmem:[#allocation2 + $0x5b8] sm:$0xff] %v2444
    %9330 = vst [vmem:[#allocation2 + $0x5c0] sm:$0xff] %v4752
    %9331 = vst [vmem:[#allocation2 + $0x5c8] sm:$0xff] %v4754
    %9332 = vst [vmem:[#allocation2 + $0x5d0] sm:$0xff] %v7062
    %9333 = vst [vmem:[#allocation2 + $0x5d8] sm:$0xff] %v7064
    %9334 = vst.msk [vmem:[#allocation2 + $0x5e0] sm:$0xff] %vm9151, %v9088
    %9335 = vst [vmem:[#allocation2 + $0x5e8] sm:$0xff] %v2449
    %9336 = vst [vmem:[#allocation2 + $0x5f0] sm:$0xff] %v2451
    %9337 = vst [vmem:[#allocation2 + $0x5f8] sm:$0xff] %v4759
    %9338 = vst [vmem:[#allocation2 + $0x600] sm:$0xff] %v4761
    %9339 = vst [vmem:[#allocation2 + $0x608] sm:$0xff] %v7069
    %9340 = vst [vmem:[#allocation2 + $0x610] sm:$0xff] %v7071
    %9341 = vst.msk [vmem:[#allocation2 + $0x618] sm:$0xff] %vm9151, %v9094
    %9342 = vst [vmem:[#allocation2 + $0x620] sm:$0xff] %v2456
    %9343 = vst [vmem:[#allocation2 + $0x628] sm:$0xff] %v2458
    %9344 = vst [vmem:[#allocation2 + $0x630] sm:$0xff] %v4766
    %9345 = vst [vmem:[#allocation2 + $0x638] sm:$0xff] %v4768
    %9346 = vst [vmem:[#allocation2 + $0x640] sm:$0xff] %v7076
    %9347 = vst [vmem:[#allocation2 + $0x648] sm:$0xff] %v7078
    %9348 = vst.msk [vmem:[#allocation2 + $0x650] sm:$0xff] %vm9151, %v9100
    %9349 = vst [vmem:[#allocation2 + $0x658] sm:$0xff] %v2463
    %9350 = vst [vmem:[#allocation2 + $0x660] sm:$0xff] %v2465
    %9351 = vst [vmem:[#allocation2 + $0x668] sm:$0xff] %v4773
    %9352 = vst [vmem:[#allocation2 + $0x670] sm:$0xff] %v4775
    %9353 = vst [vmem:[#allocation2 + $0x678] sm:$0xff] %v7083
    %9354 = vst [vmem:[#allocation2 + $0x680] sm:$0xff] %v7085
    %9355 = vst.msk [vmem:[#allocation2 + $0x688] sm:$0xff] %vm9151, %v9106
    %9356 = vst [vmem:[#allocation2 + $0x690] sm:$0xff] %v2470
    %9357 = vst [vmem:[#allocation2 + $0x698] sm:$0xff] %v2472
    %9358 = vst [vmem:[#allocation2 + $0x6a0] sm:$0xff] %v4780
    %9359 = vst [vmem:[#allocation2 + $0x6a8] sm:$0xff] %v4782
    %9360 = vst [vmem:[#allocation2 + $0x6b0] sm:$0xff] %v7090
    %9361 = vst [vmem:[#allocation2 + $0x6b8] sm:$0xff] %v7092
    %9362 = vst.msk [vmem:[#allocation2 + $0x6c0] sm:$0xff] %vm9151, %v9112
    %9363 = vst [vmem:[#allocation2 + $0x6c8] sm:$0xff] %v2477
    %9364 = vst [vmem:[#allocation2 + $0x6d0] sm:$0xff] %v2479
    %9365 = vst [vmem:[#allocation2 + $0x6d8] sm:$0xff] %v4787
    %9366 = vst [vmem:[#allocation2 + $0x6e0] sm:$0xff] %v4789
    %9367 = vst [vmem:[#allocation2 + $0x6e8] sm:$0xff] %v7097
    %9368 = vst [vmem:[#allocation2 + $0x6f0] sm:$0xff] %v7099
    %9369 = vst.msk [vmem:[#allocation2 + $0x6f8] sm:$0xff] %vm9151, %v9118
    %9370 = vst [vmem:[#allocation2 + $0x700] sm:$0xff] %v2484
    %9371 = vst [vmem:[#allocation2 + $0x708] sm:$0xff] %v2486
    %9372 = vst [vmem:[#allocation2 + $0x710] sm:$0xff] %v4794
    %9373 = vst [vmem:[#allocation2 + $0x718] sm:$0xff] %v4796
    %9374 = vst [vmem:[#allocation2 + $0x720] sm:$0xff] %v7104
    %9375 = vst [vmem:[#allocation2 + $0x728] sm:$0xff] %v7106
    %9376 = vst.msk [vmem:[#allocation2 + $0x730] sm:$0xff] %vm9151, %v9124
    %9377 = vst [vmem:[#allocation2 + $0x738] sm:$0xff] %v2491
    %9378 = vst [vmem:[#allocation2 + $0x740] sm:$0xff] %v2493
    %9379 = vst [vmem:[#allocation2 + $0x748] sm:$0xff] %v4801
    %9380 = vst [vmem:[#allocation2 + $0x750] sm:$0xff] %v4803
    %9381 = vst [vmem:[#allocation2 + $0x758] sm:$0xff] %v7111
    %9382 = vst [vmem:[#allocation2 + $0x760] sm:$0xff] %v7113
    %9383 = vst.msk [vmem:[#allocation2 + $0x768] sm:$0xff] %vm9151, %v9130
    %9384 = vst [vmem:[#allocation2 + $0x770] sm:$0xff] %v2498
    %9385 = vst [vmem:[#allocation2 + $0x778] sm:$0xff] %v2500
    %9386 = vst [vmem:[#allocation2 + $0x780] sm:$0xff] %v4808
    %9387 = vst [vmem:[#allocation2 + $0x788] sm:$0xff] %v4810
    %9388 = vst [vmem:[#allocation2 + $0x790] sm:$0xff] %v7118
    %9389 = vst [vmem:[#allocation2 + $0x798] sm:$0xff] %v7120
    %9390 = vst.msk [vmem:[#allocation2 + $0x7a0] sm:$0xff] %vm9151, %v9136
    %9391 = vst [vmem:[#allocation2 + $0x7a8] sm:$0xff] %v2505
    %9392 = vst [vmem:[#allocation2 + $0x7b0] sm:$0xff] %v2507
    %9393 = vst [vmem:[#allocation2 + $0x7b8] sm:$0xff] %v4815
    %9394 = vst [vmem:[#allocation2 + $0x7c0] sm:$0xff] %v4817
    %9395 = vst [vmem:[#allocation2 + $0x7c8] sm:$0xff] %v7125
    %9396 = vst [vmem:[#allocation2 + $0x7d0] sm:$0xff] %v7127
    %9397 = vst.msk [vmem:[#allocation2 + $0x7d8] sm:$0xff] %vm9151, %v9142
    // Predicated region
    $region10: #{tpu_custom_call.1} parent=1 // pred_check
      _
    $region11: #{tpu_custom_call.1} parent=1 // pred_check_branch
      %9399 = sbr.rel (0) target = $region13
    $region12: #{tpu_custom_call.1} parent=1 // pred_region
      %s9401 = ssub.s32 32256, 32256
      %9402 = vsyncadd [#allocation3], %s9401
      %s9403 = sshll.u32 [#allocation2], 4
      %s9404 = int_to_ptr.vmem [resolvable:$true] %s9403
      %9409 = dma.vmem_to_hbm [thread:$0]  %s9404, 32256, %s2, [#allocation3], 896, 896, 56
    $region13: #{tpu_custom_call.1} parent=1 // pred_fallthru
      _
    // Predicated region
    $region14: #{tpu_custom_call.1} parent=1 // pred_check
      _
    $region15: #{tpu_custom_call.1} parent=1 // pred_check_branch
      %9411 = sbr.rel (0) target = $region17
    $region16: #{tpu_custom_call.1} parent=1 // pred_region
      %9412 = dma.done [#allocation3], 32256
    $region17: #{tpu_custom_call.1} parent=1 // pred_fallthru
      _
    %9413 = vsyncpa [#allocation3], 1

</llo_original>
